<compile_context>
chip_gen: v7x
topology: tpu7x:2x2x1
jax: 0.10.0
libtpu: 0.0.40
codegen_flags: <defaults>
</compile_context>

<pallas_src>
import jax
import jax.numpy as jnp
from jax import lax
from jax.experimental import pallas as pl
from jax.experimental.pallas import tpu as pltpu

NEG = -1e9          # "minus infinity" for padded tag lanes (finite -> exp(NEG) == 0, no NaNs)
TAGSET = 9          # self.tagset_size
TP = 128            # tagset padded to one full lane register
HIDDEN = 768        # self.hidden_dim
VOCAB = 64          # toy vocabulary for the bert_enc surrogate
BLOCK_B = 128       # sequences per grid step (multiple of 8; multiple of 128 when nb > 1)


def danet_crf_kernel(tags_ref,       # [L, Bblk, 1] int32 gold tags (time-major)
                     emb_ref,        # [L, Bblk, H] bf16  encoder output (time-major)
                     w_ref,          # [H, TP]      bf16  fc weight (transposed, zero-padded)
                     b_ref,          # [1, TP]      f32   fc bias (padded lanes = NEG)
                     trans_ref,      # [TP, TP]     bf16  CRF transitions (padded = NEG)
                     exp_trans_ref,  # [TP, TP]     bf16  exp(transitions) (padded = 0)
                     start_ref,      # [1, TP]      f32   CRF start transitions (padded = NEG)
                     end_ref,        # [1, TP]      f32   CRF end transitions   (padded = NEG)
                     out_ref):       # [Bblk, TP]   f32   per-sequence NLL (lane-broadcast)
    L, bblk, hdim = emb_ref.shape
    tp = out_ref.shape[1]

    # ---- emissions = self.fc(bert_enc(x)): one (L*Bblk, H) @ (H, TP) bf16 MXU matmul ----
    emb2d = emb_ref[...].reshape(L * bblk, hdim)
    e2d = jnp.dot(emb2d, w_ref[...], preferred_element_type=jnp.float32) + b_ref[...]
    e3 = e2d.reshape(L, bblk, tp)          # time-major: e3[t] is a whole (Bblk, TP) slab

    start = start_ref[...]                 # (1, TP)
    end = end_ref[...]                     # (1, TP)

    # One-hot of the gold tags over the padded tag lanes (exact in bf16: values are 0/1).
    oh = (lax.broadcasted_iota(jnp.int32, (L, bblk, tp), 2)
          == tags_ref[...]).astype(jnp.bfloat16)                     # (L, Bblk, TP)

    # ---- numerator (gold-path score), fully vectorized, outside the time loop ----
    sel = jnp.dot(oh[:L - 1].reshape((L - 1) * bblk, tp), trans_ref[...],
                  preferred_element_type=jnp.float32).reshape(L - 1, bblk, tp)
    gold = (start * oh[0]                        # start[y_0]
            + end * oh[L - 1]                    # end[y_{L-1}]
            + jnp.sum(oh * e3, axis=0)           # sum_t e[t, y_t]
            + jnp.sum(sel * oh[1:], axis=0))     # sum_t T[y_{t-1}, y_t]
    num = jnp.sum(gold, axis=-1, keepdims=True)  # (Bblk, 1)

    # ---- denominator (partition function): forward algorithm in scaled exp-space ----
    # invariant: alpha_t == c + log(beta); padded lanes of beta stay exactly 0.
    em_max = jnp.max(e3, axis=-1, keepdims=True)     # (L, Bblk, 1) per-(t,b) emission max
    exp_e = jnp.exp(e3 - em_max)                     # ONE bulk EUP pass; no per-step log
    exp_trans = exp_trans_ref[...]                   # (TP, TP) bf16, padded rows/cols == 0

    beta = jnp.exp(start) * exp_e[0]                 # (Bblk, TP); exp(NEG) == 0 on pad lanes
    c = em_max[0]                                    # (Bblk, 1)
    # TODO(synk): for BERT-scale L switch this static unroll to lax.fori_loop(unroll=2..4)
    # with exp_e staged in VMEM scratch; static unroll is fine for small L.
    for t in range(1, L):
        s = jnp.dot(beta.astype(jnp.bfloat16), exp_trans,
                    preferred_element_type=jnp.float32)              # (Bblk, TP) MXU
        beta_new = s * exp_e[t]
        m = jnp.max(beta_new, axis=-1, keepdims=True)                # > 0 on real lanes
        r = pl.reciprocal(m, approx=True)                            # EUP on (Bblk, 1) only
        beta = beta_new * r                                          # renorm keeps f32 range
        c = c + em_max[t] - jnp.log(r)      # -log(r) exactly compensates the approx recip

    z = jnp.sum(beta * jnp.exp(end), axis=-1, keepdims=True)         # (Bblk, 1), > 0
    log_z = c + jnp.log(z)

    out_ref[...] = jnp.broadcast_to(log_z - num, out_ref.shape)      # NLL = log Z - score


def _round_up(x, m):
    return ((x + m - 1) // m) * m


def danet_forward(x_ids, y_tags, params, block_b=BLOCK_B):
    """loss = -crf(fc(bert_enc(x)), y, mask=None); returns loss.mean()."""
    B, L = x_ids.shape
    # bert_enc surrogate: gather the (pre-cast) bf16 embedding table in time-major order,
    # so the encoder output never takes an extra f32 round-trip through HBM.
    emb_tm = jnp.take(params["emb_bf16"], jnp.transpose(x_ids), axis=0)   # (L, B, H) bf16
    H = emb_tm.shape[-1]

    # Per-step batch block: multiple of 8 sublanes; 128 keeps tag lanes dense and gives
    # >= 2 grid steps (megacore on v7x) once B >= 2*BLOCK_B. Padded rows are discarded.
    bb = block_b if B > block_b else _round_up(B, 8)
    b_pad = _round_up(B, bb)
    if b_pad != B:
        emb_tm = jnp.pad(emb_tm, ((0, 0), (0, b_pad - B), (0, 0)))
        y_tags = jnp.pad(y_tags, ((0, b_pad - B), (0, 0)))

    tags_tm = jnp.transpose(y_tags.astype(jnp.int32))[:, :, None]        # (L, b_pad, 1)
    nb = b_pad // bb

    out = pl.pallas_call(
        danet_crf_kernel,
        out_shape=jax.ShapeDtypeStruct((b_pad, TP), jnp.float32),
        grid_spec=pltpu.PrefetchScalarGridSpec(
            num_scalar_prefetch=0,
            grid=(nb,),
            in_specs=[
                pl.BlockSpec((L, bb, 1), lambda i: (0, i, 0)),     # tags (time-major)
                pl.BlockSpec((L, bb, H), lambda i: (0, i, 0)),     # encoder output
                pl.BlockSpec((H, TP), lambda i: (0, 0)),           # fc weight (bf16)
                pl.BlockSpec((1, TP), lambda i: (0, 0)),           # fc bias
                pl.BlockSpec((TP, TP), lambda i: (0, 0)),          # transitions (bf16)
                pl.BlockSpec((TP, TP), lambda i: (0, 0)),          # exp(transitions) (bf16)
                pl.BlockSpec((1, TP), lambda i: (0, 0)),           # start
                pl.BlockSpec((1, TP), lambda i: (0, 0)),           # end
            ],
            out_specs=pl.BlockSpec((bb, TP), lambda i: (i, 0)),    # lane-dense NLL block
        ),
        compiler_params=pltpu.CompilerParams(
            dimension_semantics=("parallel",),        # batch-block axis -> v7x megacore
            vmem_limit_bytes=32 * 1024 * 1024),       # explicit budget (v5e default is 16 MiB)
    )(tags_tm, emb_tm, params["w_pad_bf16"], params["b_pad"],
      params["trans_pad_bf16"], params["exp_trans_pad_bf16"],
      params["start_pad"], params["end_pad"])

    per_seq_nll = out[:B, 0]
    return jnp.mean(per_seq_nll)


def ref_forward(x_ids, y_tags, params):
    """Pure-JAX f32 reference of the same forward pass (unpadded tagset)."""
    embeds = jnp.take(params["emb_bf16"].astype(jnp.float32), x_ids, axis=0)
    emis = jnp.einsum("blh,th->blt", embeds, params["fc_w"]) + params["fc_b"]
    trans, start, end = params["trans"], params["start"], params["end"]

    def seq_nll(e, y):
        L = e.shape[0]
        num = start[y[0]] + e[0, y[0]]
        alpha = start + e[0]
        for t in range(1, L):
            num = num + trans[y[t - 1], y[t]] + e[t, y[t]]
            alpha = jax.scipy.special.logsumexp(alpha[:, None] + trans, axis=0) + e[t]
        num = num + end[y[-1]]
        return jax.scipy.special.logsumexp(alpha + end) - num

    return jnp.mean(jax.vmap(seq_nll)(emis, y_tags))


def make_params(key):
    k1, k2, k3, k4, k5, k6 = jax.random.split(key, 6)
    emb = jax.random.normal(k1, (VOCAB, HIDDEN), jnp.float32) * 0.02      # token embeds
    fc_w = jax.random.normal(k2, (TAGSET, HIDDEN), jnp.float32) * 0.02    # Linear(768, 9)
    fc_b = jax.random.normal(k3, (TAGSET,), jnp.float32) * 0.02
    trans = jax.random.normal(k4, (TAGSET, TAGSET), jnp.float32) * 0.1    # CRF(9)
    start = jax.random.normal(k5, (TAGSET,), jnp.float32) * 0.1
    end = jax.random.normal(k6, (TAGSET,), jnp.float32) * 0.1

    # Tagset padded to a full 128-lane register; padded lanes carry NEG so exp() of them
    # is exactly 0 and they never contribute to a logsumexp / matmul.
    w_pad = jnp.zeros((HIDDEN, TP), jnp.float32).at[:, :TAGSET].set(fc_w.T)
    b_pad = jnp.full((1, TP), NEG, jnp.float32).at[0, :TAGSET].set(fc_b)
    trans_pad = jnp.full((TP, TP), NEG, jnp.float32).at[:TAGSET, :TAGSET].set(trans)
    start_pad = jnp.full((1, TP), NEG, jnp.float32).at[0, :TAGSET].set(start)
    end_pad = jnp.full((1, TP), NEG, jnp.float32).at[0, :TAGSET].set(end)
    exp_trans_pad = jnp.exp(trans_pad)              # exp(NEG) == 0 exactly for padding

    return dict(
        emb_bf16=emb.astype(jnp.bfloat16),          # cast the table ONCE; gather in bf16
        fc_w=fc_w, fc_b=fc_b, trans=trans, start=start, end=end,
        w_pad_bf16=w_pad.astype(jnp.bfloat16),
        b_pad=b_pad,
        trans_pad_bf16=trans_pad.astype(jnp.bfloat16),
        exp_trans_pad_bf16=exp_trans_pad.astype(jnp.bfloat16),
        start_pad=start_pad, end_pad=end_pad)


if __name__ == "__main__":
    B, L = 2 * BLOCK_B, 8     # two grid steps of 128 sequences; still tiny (2048 tokens)
    key = jax.random.PRNGKey(0)
    kp, kx, ky = jax.random.split(key, 3)
    params = make_params(kp)
    x_ids = jax.random.randint(kx, (B, L), 0, VOCAB, dtype=jnp.int32)       # token ids
    y_tags = jax.random.randint(ky, (B, L), 0, TAGSET, dtype=jnp.int32)     # gold tags

    loss = jax.block_until_ready(danet_forward(x_ids, y_tags, params))
    ref = jax.block_until_ready(ref_forward(x_ids, y_tags, params))
    # bf16-MXU pipeline (projection, one-hot @ trans, exp-space recursion) vs f32 reference.
    assert jnp.allclose(loss, ref, rtol=1e-2, atol=1e-2), (loss, ref)

    print("KERNEL_OK")
</pallas_src>

<mosaic_0001>
module attributes {stable_mosaic.version = 11 : i64} {
  func.func @danet_crf_kernel(%arg0: i32, %arg1: memref<8x128x1xi32, #tpu.memory_space<vmem>>, %arg2: memref<8x128x768xbf16, #tpu.memory_space<vmem>>, %arg3: memref<768x128xbf16, #tpu.memory_space<vmem>>, %arg4: memref<1x128xf32, #tpu.memory_space<vmem>>, %arg5: memref<128x128xbf16, #tpu.memory_space<vmem>>, %arg6: memref<128x128xbf16, #tpu.memory_space<vmem>>, %arg7: memref<1x128xf32, #tpu.memory_space<vmem>>, %arg8: memref<1x128xf32, #tpu.memory_space<vmem>>, %arg9: memref<128x128xf32, #tpu.memory_space<vmem>>) attributes {dimension_semantics = [#tpu.dimension_semantics<parallel>], iteration_bounds = array<i64: 2>, scalar_prefetch = 0 : i64, scratch_operands = 0 : i64, tpu.core_type = #tpu.core_type<tc>, window_params = [{transform_indices = @transform_0, window_bounds = array<i64: 8, 128, 1>}, {transform_indices = @transform_1, window_bounds = array<i64: 8, 128, 768>}, {pipeline_mode = #tpu.pipeline_mode<synchronous>, transform_indices = @transform_2, window_bounds = array<i64: 768, 128>}, {pipeline_mode = #tpu.pipeline_mode<synchronous>, transform_indices = @transform_3, window_bounds = array<i64: 1, 128>}, {pipeline_mode = #tpu.pipeline_mode<synchronous>, transform_indices = @transform_4, window_bounds = array<i64: 128, 128>}, {pipeline_mode = #tpu.pipeline_mode<synchronous>, transform_indices = @transform_5, window_bounds = array<i64: 128, 128>}, {pipeline_mode = #tpu.pipeline_mode<synchronous>, transform_indices = @transform_6, window_bounds = array<i64: 1, 128>}, {pipeline_mode = #tpu.pipeline_mode<synchronous>, transform_indices = @transform_7, window_bounds = array<i64: 1, 128>}, {transform_indices = @transform_8, window_bounds = array<i64: 128, 128>}]} {
    %c0 = arith.constant 0 : index
    %c0_0 = arith.constant 0 : index
    %c0_1 = arith.constant 0 : index
    %0 = vector.load %arg2[%c0, %c0_0, %c0_1] : memref<8x128x768xbf16, #tpu.memory_space<vmem>>, vector<8x128x768xbf16>
    %1 = vector.shape_cast %0 : vector<8x128x768xbf16> to vector<1024x768xbf16>
    %c0_2 = arith.constant 0 : index
    %c0_3 = arith.constant 0 : index
    %2 = vector.load %arg3[%c0_2, %c0_3] : memref<768x128xbf16, #tpu.memory_space<vmem>>, vector<768x128xbf16>
    %cst = arith.constant dense<0.000000e+00> : vector<1024x128xf32>
    %3 = tpu.matmul %1, %2, %cst {dimension_numbers = #tpu.dot_dimension_numbers<[1], [0], [0], [1], [0, 0, 1, 1], [], []>} : vector<1024x768xbf16>, vector<768x128xbf16>, vector<1024x128xf32> -> vector<1024x128xf32>
    %c0_4 = arith.constant 0 : index
    %c0_5 = arith.constant 0 : index
    %4 = vector.load %arg4[%c0_4, %c0_5] : memref<1x128xf32, #tpu.memory_space<vmem>>, vector<1x128xf32>
    %5 = vector.broadcast %4 : vector<1x128xf32> to vector<1024x128xf32>
    %6 = arith.addf %3, %5 : vector<1024x128xf32>
    %7 = vector.shape_cast %6 : vector<1024x128xf32> to vector<8x128x128xf32>
    %c0_6 = arith.constant 0 : index
    %c0_7 = arith.constant 0 : index
    %8 = vector.load %arg7[%c0_6, %c0_7] : memref<1x128xf32, #tpu.memory_space<vmem>>, vector<1x128xf32>
    %c0_8 = arith.constant 0 : index
    %c0_9 = arith.constant 0 : index
    %9 = vector.load %arg8[%c0_8, %c0_9] : memref<1x128xf32, #tpu.memory_space<vmem>>, vector<1x128xf32>
    %10 = tpu.iota {dimensions = array<i32: 2>} : vector<8x128x128xi32>
    %c0_10 = arith.constant 0 : index
    %c0_11 = arith.constant 0 : index
    %c0_12 = arith.constant 0 : index
    %11 = vector.load %arg1[%c0_10, %c0_11, %c0_12] : memref<8x128x1xi32, #tpu.memory_space<vmem>>, vector<8x128x1xi32>
    %12 = vector.broadcast %11 : vector<8x128x1xi32> to vector<8x128x128xi32>
    %13 = arith.cmpi eq, %10, %12 : vector<8x128x128xi32>
    %14 = arith.extui %13 : vector<8x128x128xi1> to vector<8x128x128xi32>
    %15 = arith.sitofp %14 : vector<8x128x128xi32> to vector<8x128x128xf32>
    %16 = arith.truncf %15 : vector<8x128x128xf32> to vector<8x128x128xbf16>
    %17 = vector.extract_strided_slice %16 {offsets = [0, 0, 0], sizes = [7, 128, 128], strides = [1, 1, 1]} : vector<8x128x128xbf16> to vector<7x128x128xbf16>
    %18 = vector.shape_cast %17 : vector<7x128x128xbf16> to vector<896x128xbf16>
    %c0_13 = arith.constant 0 : index
    %c0_14 = arith.constant 0 : index
    %19 = vector.load %arg5[%c0_13, %c0_14] : memref<128x128xbf16, #tpu.memory_space<vmem>>, vector<128x128xbf16>
    %cst_15 = arith.constant dense<0.000000e+00> : vector<896x128xf32>
    %20 = tpu.matmul %18, %19, %cst_15 {dimension_numbers = #tpu.dot_dimension_numbers<[1], [0], [0], [1], [0, 0, 1, 1], [], []>} : vector<896x128xbf16>, vector<128x128xbf16>, vector<896x128xf32> -> vector<896x128xf32>
    %21 = vector.shape_cast %20 : vector<896x128xf32> to vector<7x128x128xf32>
    %22 = vector.extract_strided_slice %16 {offsets = [0, 0, 0], sizes = [1, 128, 128], strides = [1, 1, 1]} : vector<8x128x128xbf16> to vector<1x128x128xbf16>
    %23 = vector.shape_cast %22 : vector<1x128x128xbf16> to vector<128x128xbf16>
    %24 = arith.extf %23 : vector<128x128xbf16> to vector<128x128xf32>
    %25 = vector.broadcast %8 : vector<1x128xf32> to vector<128x128xf32>
    %26 = arith.mulf %25, %24 : vector<128x128xf32>
    %27 = vector.extract_strided_slice %16 {offsets = [7, 0, 0], sizes = [1, 128, 128], strides = [1, 1, 1]} : vector<8x128x128xbf16> to vector<1x128x128xbf16>
    %28 = vector.shape_cast %27 : vector<1x128x128xbf16> to vector<128x128xbf16>
    %29 = arith.extf %28 : vector<128x128xbf16> to vector<128x128xf32>
    %30 = vector.broadcast %9 : vector<1x128xf32> to vector<128x128xf32>
    %31 = arith.mulf %30, %29 : vector<128x128xf32>
    %32 = arith.addf %26, %31 : vector<128x128xf32>
    %33 = arith.extf %16 : vector<8x128x128xbf16> to vector<8x128x128xf32>
    %34 = arith.mulf %33, %7 : vector<8x128x128xf32>
    %cst_16 = arith.constant dense<0.000000e+00> : vector<128x128xf32>
    %35 = vector.multi_reduction <add>, %34, %cst_16 [0] : vector<8x128x128xf32> to vector<128x128xf32>
    %36 = arith.addf %32, %35 : vector<128x128xf32>
    %37 = vector.extract_strided_slice %16 {offsets = [1, 0, 0], sizes = [7, 128, 128], strides = [1, 1, 1]} : vector<8x128x128xbf16> to vector<7x128x128xbf16>
    %38 = arith.extf %37 : vector<7x128x128xbf16> to vector<7x128x128xf32>
    %39 = arith.mulf %21, %38 : vector<7x128x128xf32>
    %cst_17 = arith.constant dense<0.000000e+00> : vector<128x128xf32>
    %40 = vector.multi_reduction <add>, %39, %cst_17 [0] : vector<7x128x128xf32> to vector<128x128xf32>
    %41 = arith.addf %36, %40 : vector<128x128xf32>
    %cst_18 = arith.constant dense<0.000000e+00> : vector<128xf32>
    %42 = vector.multi_reduction <add>, %41, %cst_18 [1] : vector<128x128xf32> to vector<128xf32>
    %43 = vector.shape_cast %42 : vector<128xf32> to vector<128x1xf32>
    %cst_19 = arith.constant dense<0xFF800000> : vector<8x128xf32>
    %44 = vector.multi_reduction <maximumf>, %7, %cst_19 [2] : vector<8x128x128xf32> to vector<8x128xf32>
    %45 = vector.shape_cast %44 : vector<8x128xf32> to vector<8x128x1xf32>
    %46 = vector.broadcast %45 : vector<8x128x1xf32> to vector<8x128x128xf32>
    %47 = arith.subf %7, %46 : vector<8x128x128xf32>
    %48 = math.exp %47 : vector<8x128x128xf32>
    %c0_20 = arith.constant 0 : index
    %c0_21 = arith.constant 0 : index
    %49 = vector.load %arg6[%c0_20, %c0_21] : memref<128x128xbf16, #tpu.memory_space<vmem>>, vector<128x128xbf16>
    %50 = math.exp %8 : vector<1x128xf32>
    %51 = vector.extract_strided_slice %48 {offsets = [0, 0, 0], sizes = [1, 128, 128], strides = [1, 1, 1]} : vector<8x128x128xf32> to vector<1x128x128xf32>
    %52 = vector.shape_cast %51 : vector<1x128x128xf32> to vector<128x128xf32>
    %53 = vector.broadcast %50 : vector<1x128xf32> to vector<128x128xf32>
    %54 = arith.mulf %53, %52 : vector<128x128xf32>
    %55 = vector.extract_strided_slice %45 {offsets = [0, 0, 0], sizes = [1, 128, 1], strides = [1, 1, 1]} : vector<8x128x1xf32> to vector<1x128x1xf32>
    %56 = vector.shape_cast %55 : vector<1x128x1xf32> to vector<128x1xf32>
    %57 = arith.truncf %54 : vector<128x128xf32> to vector<128x128xbf16>
    %cst_22 = arith.constant dense<0.000000e+00> : vector<128x128xf32>
    %58 = tpu.matmul %57, %49, %cst_22 {dimension_numbers = #tpu.dot_dimension_numbers<[1], [0], [0], [1], [0, 0, 1, 1], [], []>} : vector<128x128xbf16>, vector<128x128xbf16>, vector<128x128xf32> -> vector<128x128xf32>
    %59 = vector.extract_strided_slice %48 {offsets = [1, 0, 0], sizes = [1, 128, 128], strides = [1, 1, 1]} : vector<8x128x128xf32> to vector<1x128x128xf32>
    %60 = vector.shape_cast %59 : vector<1x128x128xf32> to vector<128x128xf32>
    %61 = arith.mulf %58, %60 : vector<128x128xf32>
    %cst_23 = arith.constant dense<0xFF800000> : vector<128xf32>
    %62 = vector.multi_reduction <maximumf>, %61, %cst_23 [1] : vector<128x128xf32> to vector<128xf32>
    %63 = vector.shape_cast %62 : vector<128xf32> to vector<128x1xf32>
    %64 = tpu.reciprocal %63 {approx = true} : vector<128x1xf32> -> vector<128x1xf32>
    %65 = vector.broadcast %64 : vector<128x1xf32> to vector<128x128xf32>
    %66 = arith.mulf %61, %65 : vector<128x128xf32>
    %67 = vector.extract_strided_slice %45 {offsets = [1, 0, 0], sizes = [1, 128, 1], strides = [1, 1, 1]} : vector<8x128x1xf32> to vector<1x128x1xf32>
    %68 = vector.shape_cast %67 : vector<1x128x1xf32> to vector<128x1xf32>
    %69 = arith.addf %56, %68 : vector<128x1xf32>
    %70 = math.log %64 : vector<128x1xf32>
    %71 = arith.subf %69, %70 : vector<128x1xf32>
    %72 = arith.truncf %66 : vector<128x128xf32> to vector<128x128xbf16>
    %cst_24 = arith.constant dense<0.000000e+00> : vector<128x128xf32>
    %73 = tpu.matmul %72, %49, %cst_24 {dimension_numbers = #tpu.dot_dimension_numbers<[1], [0], [0], [1], [0, 0, 1, 1], [], []>} : vector<128x128xbf16>, vector<128x128xbf16>, vector<128x128xf32> -> vector<128x128xf32>
    %74 = vector.extract_strided_slice %48 {offsets = [2, 0, 0], sizes = [1, 128, 128], strides = [1, 1, 1]} : vector<8x128x128xf32> to vector<1x128x128xf32>
    %75 = vector.shape_cast %74 : vector<1x128x128xf32> to vector<128x128xf32>
    %76 = arith.mulf %73, %75 : vector<128x128xf32>
    %cst_25 = arith.constant dense<0xFF800000> : vector<128xf32>
    %77 = vector.multi_reduction <maximumf>, %76, %cst_25 [1] : vector<128x128xf32> to vector<128xf32>
    %78 = vector.shape_cast %77 : vector<128xf32> to vector<128x1xf32>
    %79 = tpu.reciprocal %78 {approx = true} : vector<128x1xf32> -> vector<128x1xf32>
    %80 = vector.broadcast %79 : vector<128x1xf32> to vector<128x128xf32>
    %81 = arith.mulf %76, %80 : vector<128x128xf32>
    %82 = vector.extract_strided_slice %45 {offsets = [2, 0, 0], sizes = [1, 128, 1], strides = [1, 1, 1]} : vector<8x128x1xf32> to vector<1x128x1xf32>
    %83 = vector.shape_cast %82 : vector<1x128x1xf32> to vector<128x1xf32>
    %84 = arith.addf %71, %83 : vector<128x1xf32>
    %85 = math.log %79 : vector<128x1xf32>
    %86 = arith.subf %84, %85 : vector<128x1xf32>
    %87 = arith.truncf %81 : vector<128x128xf32> to vector<128x128xbf16>
    %cst_26 = arith.constant dense<0.000000e+00> : vector<128x128xf32>
    %88 = tpu.matmul %87, %49, %cst_26 {dimension_numbers = #tpu.dot_dimension_numbers<[1], [0], [0], [1], [0, 0, 1, 1], [], []>} : vector<128x128xbf16>, vector<128x128xbf16>, vector<128x128xf32> -> vector<128x128xf32>
    %89 = vector.extract_strided_slice %48 {offsets = [3, 0, 0], sizes = [1, 128, 128], strides = [1, 1, 1]} : vector<8x128x128xf32> to vector<1x128x128xf32>
    %90 = vector.shape_cast %89 : vector<1x128x128xf32> to vector<128x128xf32>
    %91 = arith.mulf %88, %90 : vector<128x128xf32>
    %cst_27 = arith.constant dense<0xFF800000> : vector<128xf32>
    %92 = vector.multi_reduction <maximumf>, %91, %cst_27 [1] : vector<128x128xf32> to vector<128xf32>
    %93 = vector.shape_cast %92 : vector<128xf32> to vector<128x1xf32>
    %94 = tpu.reciprocal %93 {approx = true} : vector<128x1xf32> -> vector<128x1xf32>
    %95 = vector.broadcast %94 : vector<128x1xf32> to vector<128x128xf32>
    %96 = arith.mulf %91, %95 : vector<128x128xf32>
    %97 = vector.extract_strided_slice %45 {offsets = [3, 0, 0], sizes = [1, 128, 1], strides = [1, 1, 1]} : vector<8x128x1xf32> to vector<1x128x1xf32>
    %98 = vector.shape_cast %97 : vector<1x128x1xf32> to vector<128x1xf32>
    %99 = arith.addf %86, %98 : vector<128x1xf32>
    %100 = math.log %94 : vector<128x1xf32>
    %101 = arith.subf %99, %100 : vector<128x1xf32>
    %102 = arith.truncf %96 : vector<128x128xf32> to vector<128x128xbf16>
    %cst_28 = arith.constant dense<0.000000e+00> : vector<128x128xf32>
    %103 = tpu.matmul %102, %49, %cst_28 {dimension_numbers = #tpu.dot_dimension_numbers<[1], [0], [0], [1], [0, 0, 1, 1], [], []>} : vector<128x128xbf16>, vector<128x128xbf16>, vector<128x128xf32> -> vector<128x128xf32>
    %104 = vector.extract_strided_slice %48 {offsets = [4, 0, 0], sizes = [1, 128, 128], strides = [1, 1, 1]} : vector<8x128x128xf32> to vector<1x128x128xf32>
    %105 = vector.shape_cast %104 : vector<1x128x128xf32> to vector<128x128xf32>
    %106 = arith.mulf %103, %105 : vector<128x128xf32>
    %cst_29 = arith.constant dense<0xFF800000> : vector<128xf32>
    %107 = vector.multi_reduction <maximumf>, %106, %cst_29 [1] : vector<128x128xf32> to vector<128xf32>
    %108 = vector.shape_cast %107 : vector<128xf32> to vector<128x1xf32>
    %109 = tpu.reciprocal %108 {approx = true} : vector<128x1xf32> -> vector<128x1xf32>
    %110 = vector.broadcast %109 : vector<128x1xf32> to vector<128x128xf32>
    %111 = arith.mulf %106, %110 : vector<128x128xf32>
    %112 = vector.extract_strided_slice %45 {offsets = [4, 0, 0], sizes = [1, 128, 1], strides = [1, 1, 1]} : vector<8x128x1xf32> to vector<1x128x1xf32>
    %113 = vector.shape_cast %112 : vector<1x128x1xf32> to vector<128x1xf32>
    %114 = arith.addf %101, %113 : vector<128x1xf32>
    %115 = math.log %109 : vector<128x1xf32>
    %116 = arith.subf %114, %115 : vector<128x1xf32>
    %117 = arith.truncf %111 : vector<128x128xf32> to vector<128x128xbf16>
    %cst_30 = arith.constant dense<0.000000e+00> : vector<128x128xf32>
    %118 = tpu.matmul %117, %49, %cst_30 {dimension_numbers = #tpu.dot_dimension_numbers<[1], [0], [0], [1], [0, 0, 1, 1], [], []>} : vector<128x128xbf16>, vector<128x128xbf16>, vector<128x128xf32> -> vector<128x128xf32>
    %119 = vector.extract_strided_slice %48 {offsets = [5, 0, 0], sizes = [1, 128, 128], strides = [1, 1, 1]} : vector<8x128x128xf32> to vector<1x128x128xf32>
    %120 = vector.shape_cast %119 : vector<1x128x128xf32> to vector<128x128xf32>
    %121 = arith.mulf %118, %120 : vector<128x128xf32>
    %cst_31 = arith.constant dense<0xFF800000> : vector<128xf32>
    %122 = vector.multi_reduction <maximumf>, %121, %cst_31 [1] : vector<128x128xf32> to vector<128xf32>
    %123 = vector.shape_cast %122 : vector<128xf32> to vector<128x1xf32>
    %124 = tpu.reciprocal %123 {approx = true} : vector<128x1xf32> -> vector<128x1xf32>
    %125 = vector.broadcast %124 : vector<128x1xf32> to vector<128x128xf32>
    %126 = arith.mulf %121, %125 : vector<128x128xf32>
    %127 = vector.extract_strided_slice %45 {offsets = [5, 0, 0], sizes = [1, 128, 1], strides = [1, 1, 1]} : vector<8x128x1xf32> to vector<1x128x1xf32>
    %128 = vector.shape_cast %127 : vector<1x128x1xf32> to vector<128x1xf32>
    %129 = arith.addf %116, %128 : vector<128x1xf32>
    %130 = math.log %124 : vector<128x1xf32>
    %131 = arith.subf %129, %130 : vector<128x1xf32>
    %132 = arith.truncf %126 : vector<128x128xf32> to vector<128x128xbf16>
    %cst_32 = arith.constant dense<0.000000e+00> : vector<128x128xf32>
    %133 = tpu.matmul %132, %49, %cst_32 {dimension_numbers = #tpu.dot_dimension_numbers<[1], [0], [0], [1], [0, 0, 1, 1], [], []>} : vector<128x128xbf16>, vector<128x128xbf16>, vector<128x128xf32> -> vector<128x128xf32>
    %134 = vector.extract_strided_slice %48 {offsets = [6, 0, 0], sizes = [1, 128, 128], strides = [1, 1, 1]} : vector<8x128x128xf32> to vector<1x128x128xf32>
    %135 = vector.shape_cast %134 : vector<1x128x128xf32> to vector<128x128xf32>
    %136 = arith.mulf %133, %135 : vector<128x128xf32>
    %cst_33 = arith.constant dense<0xFF800000> : vector<128xf32>
    %137 = vector.multi_reduction <maximumf>, %136, %cst_33 [1] : vector<128x128xf32> to vector<128xf32>
    %138 = vector.shape_cast %137 : vector<128xf32> to vector<128x1xf32>
    %139 = tpu.reciprocal %138 {approx = true} : vector<128x1xf32> -> vector<128x1xf32>
    %140 = vector.broadcast %139 : vector<128x1xf32> to vector<128x128xf32>
    %141 = arith.mulf %136, %140 : vector<128x128xf32>
    %142 = vector.extract_strided_slice %45 {offsets = [6, 0, 0], sizes = [1, 128, 1], strides = [1, 1, 1]} : vector<8x128x1xf32> to vector<1x128x1xf32>
    %143 = vector.shape_cast %142 : vector<1x128x1xf32> to vector<128x1xf32>
    %144 = arith.addf %131, %143 : vector<128x1xf32>
    %145 = math.log %139 : vector<128x1xf32>
    %146 = arith.subf %144, %145 : vector<128x1xf32>
    %147 = arith.truncf %141 : vector<128x128xf32> to vector<128x128xbf16>
    %cst_34 = arith.constant dense<0.000000e+00> : vector<128x128xf32>
    %148 = tpu.matmul %147, %49, %cst_34 {dimension_numbers = #tpu.dot_dimension_numbers<[1], [0], [0], [1], [0, 0, 1, 1], [], []>} : vector<128x128xbf16>, vector<128x128xbf16>, vector<128x128xf32> -> vector<128x128xf32>
    %149 = vector.extract_strided_slice %48 {offsets = [7, 0, 0], sizes = [1, 128, 128], strides = [1, 1, 1]} : vector<8x128x128xf32> to vector<1x128x128xf32>
    %150 = vector.shape_cast %149 : vector<1x128x128xf32> to vector<128x128xf32>
    %151 = arith.mulf %148, %150 : vector<128x128xf32>
    %cst_35 = arith.constant dense<0xFF800000> : vector<128xf32>
    %152 = vector.multi_reduction <maximumf>, %151, %cst_35 [1] : vector<128x128xf32> to vector<128xf32>
    %153 = vector.shape_cast %152 : vector<128xf32> to vector<128x1xf32>
    %154 = tpu.reciprocal %153 {approx = true} : vector<128x1xf32> -> vector<128x1xf32>
    %155 = vector.broadcast %154 : vector<128x1xf32> to vector<128x128xf32>
    %156 = arith.mulf %151, %155 : vector<128x128xf32>
    %157 = vector.extract_strided_slice %45 {offsets = [7, 0, 0], sizes = [1, 128, 1], strides = [1, 1, 1]} : vector<8x128x1xf32> to vector<1x128x1xf32>
    %158 = vector.shape_cast %157 : vector<1x128x1xf32> to vector<128x1xf32>
    %159 = arith.addf %146, %158 : vector<128x1xf32>
    %160 = math.log %154 : vector<128x1xf32>
    %161 = arith.subf %159, %160 : vector<128x1xf32>
    %162 = math.exp %9 : vector<1x128xf32>
    %163 = vector.broadcast %162 : vector<1x128xf32> to vector<128x128xf32>
    %164 = arith.mulf %156, %163 : vector<128x128xf32>
    %cst_36 = arith.constant dense<0.000000e+00> : vector<128xf32>
    %165 = vector.multi_reduction <add>, %164, %cst_36 [1] : vector<128x128xf32> to vector<128xf32>
    %166 = vector.shape_cast %165 : vector<128xf32> to vector<128x1xf32>
    %167 = math.log %166 : vector<128x1xf32>
    %168 = arith.addf %161, %167 : vector<128x1xf32>
    %169 = arith.subf %168, %43 : vector<128x1xf32>
    %170 = vector.shape_cast %169 : vector<128x1xf32> to vector<128x1xf32>
    %171 = vector.broadcast %170 : vector<128x1xf32> to vector<128x128xf32>
    %c0_37 = arith.constant 0 : index
    %c0_38 = arith.constant 0 : index
    %172 = vector.load %arg9[%c0_37, %c0_38] : memref<128x128xf32, #tpu.memory_space<vmem>>, vector<128x128xf32>
    tpu.vector_store %arg9[%c0_37, %c0_38], %171 {strides = array<i32>} : memref<128x128xf32, #tpu.memory_space<vmem>>, vector<128x128xf32>,
    return
  }
  func.func @transform_0(%arg0: i32) -> (i32, i32, i32) {
    %c0_i32 = arith.constant 0 : i32
    %c0_i32_0 = arith.constant 0 : i32
    %c0_i32_1 = arith.constant 0 : i32
    return %c0_i32, %arg0, %c0_i32_0 : i32, i32, i32
  }
  func.func @transform_1(%arg0: i32) -> (i32, i32, i32) {
    %c0_i32 = arith.constant 0 : i32
    %c0_i32_0 = arith.constant 0 : i32
    %c0_i32_1 = arith.constant 0 : i32
    return %c0_i32, %arg0, %c0_i32_0 : i32, i32, i32
  }
  func.func @transform_2(%arg0: i32) -> (i32, i32) {
    %c0_i32 = arith.constant 0 : i32
    %c0_i32_0 = arith.constant 0 : i32
    %c0_i32_1 = arith.constant 0 : i32
    return %c0_i32, %c0_i32_0 : i32, i32
  }
  func.func @transform_3(%arg0: i32) -> (i32, i32) {
    %c0_i32 = arith.constant 0 : i32
    %c0_i32_0 = arith.constant 0 : i32
    %c0_i32_1 = arith.constant 0 : i32
    return %c0_i32, %c0_i32_0 : i32, i32
  }
  func.func @transform_4(%arg0: i32) -> (i32, i32) {
    %c0_i32 = arith.constant 0 : i32
    %c0_i32_0 = arith.constant 0 : i32
    %c0_i32_1 = arith.constant 0 : i32
    return %c0_i32, %c0_i32_0 : i32, i32
  }
  func.func @transform_5(%arg0: i32) -> (i32, i32) {
    %c0_i32 = arith.constant 0 : i32
    %c0_i32_0 = arith.constant 0 : i32
    %c0_i32_1 = arith.constant 0 : i32
    return %c0_i32, %c0_i32_0 : i32, i32
  }
  func.func @transform_6(%arg0: i32) -> (i32, i32) {
    %c0_i32 = arith.constant 0 : i32
    %c0_i32_0 = arith.constant 0 : i32
    %c0_i32_1 = arith.constant 0 : i32
    return %c0_i32, %c0_i32_0 : i32, i32
  }
  func.func @transform_7(%arg0: i32) -> (i32, i32) {
    %c0_i32 = arith.constant 0 : i32
    %c0_i32_0 = arith.constant 0 : i32
    %c0_i32_1 = arith.constant 0 : i32
    return %c0_i32, %c0_i32_0 : i32, i32
  }
  func.func @transform_8(%arg0: i32) -> (i32, i32) {
    %c0_i32 = arith.constant 0 : i32
    %c0_i32_0 = arith.constant 0 : i32
    return %arg0, %c0_i32 : i32, i32
  }
}

</mosaic_0001>

<llo_original>
// kernel: tpu_custom_call.1
$region0: #{tpu_custom_call.1}
  #allocation0 [shape = 'u32[]', space=smem, size = 0x4, offset = 0x4, fixed_abs, tag = 'smem constant byte address 0x4 - core index']
  #allocation1 [shape = 'u32[144,128]{1,0:T(1,128)}', space=vmem, size = 0x12000, scoped, tag = 'internal scratch']
  #allocation16 [shape = 's32[]', space=sflag, size = 0x4, offset = 0, fixed_abs, tag = 'sflag constant byte address 0x0 - dummy sync flag']
  %s0 = inlined_call_operand.vmem [shape: s32[8,256,1], index: 0, kind: input, shape index: {}]
  %s1 = inlined_call_operand.hbm [shape: bf16[8,256,768], index: 1, kind: input, shape index: {}]
  %s2 = inlined_call_operand.hbm [shape: bf16[768,128], index: 2, kind: input, shape index: {}]
  %s3 = inlined_call_operand.hbm [shape: f32[1,128], index: 3, kind: input, shape index: {}]
  %s4 = inlined_call_operand.hbm [shape: bf16[128,128], index: 4, kind: input, shape index: {}]
  %s5 = inlined_call_operand.hbm [shape: bf16[128,128], index: 5, kind: input, shape index: {}]
  %s6 = inlined_call_operand.hbm [shape: f32[1,128], index: 6, kind: input, shape index: {}]
  %s7 = inlined_call_operand.hbm [shape: f32[1,128], index: 7, kind: input, shape index: {}]
  %s8 = inlined_call_operand.hbm [shape: f32[256,128], index: 8, kind: output, shape index: {}]
  %s9 = sld [smem:[#allocation0]]
  $region131: #{tpu_custom_call.1} parent=0
    _
  %s11 = ssub.s32 1, %s9
  %s12 = scalar_select 0, %s11, %s9
  $region1: #{tpu_custom_call.1} parent=0
    #allocation2 [shape = 'u8[1048576]{0}', space=vmem, size = 0x100000, scoped, tag = 'input window, operand 0']
    #allocation3 [shape = 'u8[3145728]{0}', space=vmem, size = 0x300000, scoped, tag = 'input window, operand 1']
    #allocation4 [shape = 's32[2]{0}', space=sflag, size = 0x8, scoped, tag = 'scoped memory for tpu_custom_call.1']
    #allocation5 [shape = 's32[2]{0}', space=sflag, size = 0x8, scoped, tag = 'scoped memory for tpu_custom_call.1']
    #allocation6 [shape = 'u8[196608]{0}', space=vmem, size = 0x30000, scoped, tag = 'input window, operand 2, single buffered']
    #allocation7 [shape = 's32[1]{0}', space=sflag, size = 0x4, scoped, tag = 'scoped memory for tpu_custom_call.1']
    #allocation8 [shape = 'u8[512]{0}', space=vmem, size = 0x400, scoped, tag = 'input window, operand 3, single buffered']
    #allocation9 [shape = 'u8[32768]{0}', space=vmem, size = 0x8000, scoped, tag = 'input window, operand 4, single buffered']
    #allocation10 [shape = 's32[1]{0}', space=sflag, size = 0x4, scoped, tag = 'scoped memory for tpu_custom_call.1']
    #allocation11 [shape = 'u8[32768]{0}', space=vmem, size = 0x8000, scoped, tag = 'input window, operand 5, single buffered']
    #allocation12 [shape = 'u8[512]{0}', space=vmem, size = 0x400, scoped, tag = 'input window, operand 6, single buffered']
    #allocation13 [shape = 's32[1]{0}', space=sflag, size = 0x4, scoped, tag = 'scoped memory for tpu_custom_call.1']
    #allocation14 [shape = 'u8[512]{0}', space=vmem, size = 0x400, scoped, tag = 'input window, operand 7, single buffered']
    #allocation15 [shape = 'u8[131072]{0}', space=vmem, size = 0x20000, scoped, tag = 'output window, operand 0']
    %13 = vsyncpa [#allocation4], 0
    %s14 = scalar_lea.sflag [#allocation4], 1
    %15 = vsyncpa %s14, 0
    %16 = vsyncpa [#allocation7], 0
    %17 = vsyncpa [#allocation10], 0
    %18 = vsyncpa [#allocation13], 0
    %19 = vsyncpa [#allocation5], 0
    %s20 = scalar_lea.sflag [#allocation5], 1
    %21 = vsyncpa %s20, 0
    loop: start=0, step=1, limit=4
    $region2: #{tpu_custom_call.1} parent=1 // loop_pre_header
      _
    $region3: #{tpu_custom_call.1} parent=1 // loop_header
      %s23 = sphi 0, %s27
      %p24 = scmp.ge.s32.totalorder %s23, 4
      %s33 = sphi 0, %s35
      %s36 = sphi 0, %s33
      %s37 = sphi 0, %s36
      %s53 = sphi 0, %s37
      %s59 = sphi 0, %s61
      %s62 = sphi 0, %s59
      %s63 = sphi 0, %s62
      %s79 = sphi 0, %s63
      %s83 = sphi 0, %s83
      %s85 = sphi 0, %s83
      %s86 = sphi 0, %s85
      %s100 = sphi 0, %s86
      %s104 = sphi 0, %s104
      %s106 = sphi 0, %s104
      %s107 = sphi 0, %s106
      %s121 = sphi 0, %s107
      %s125 = sphi 0, %s125
      %s127 = sphi 0, %s125
      %s128 = sphi 0, %s127
      %s142 = sphi 0, %s128
      %s146 = sphi 0, %s146
      %s148 = sphi 0, %s146
      %s149 = sphi 0, %s148
      %s163 = sphi 0, %s149
      %s167 = sphi 0, %s167
      %s169 = sphi 0, %s167
      %s170 = sphi 0, %s169
      %s184 = sphi 0, %s170
      %s188 = sphi 0, %s188
      %s190 = sphi 0, %s188
      %s191 = sphi 0, %s190
      %s205 = sphi 0, %s191
      %s211 = sphi 0, %s213
      %s214 = sphi 0, %s211
      %s215 = sphi 0, %s214
      %s231 = sphi 0, %s215
    $region4: #{tpu_custom_call.1} parent=1 // loop_header_branch
      %26 = sbr.rel (%p24) target = $region8
    $region5: #{tpu_custom_call.1} parent=1 // loop_body
      %s28 = ssub.s32 %s23, 1
      %s29 = ssub.s32 %s23, 2
      %s30 = sadd.s32 %s23, 1
      %s31 = ssub.s32 %s23, %s30
      %p32 = scmp.eq.s32.totalorder %s31, 0
      %s34 = sadd.s32 %s33, 1
      %s35 = scalar_select %p32, %s33, %s34
      %p38 = pneg %p32
      %p39 = scmp.eq.s32.totalorder %s23, 1
      %p40 = por %p38, %p39
      %p41 = scmp.ne.s32.totalorder %s33, %s36
      %p42 = scmp.eq.s32.totalorder %s23, 0
      %p43 = por %p41, %p42
      %p44 = scmp.ne.s32.totalorder %s33, %s36
      %p45 = scmp.eq.s32.totalorder %s28, 1
      %p46 = por %p44, %p45
      %p47 = scmp.ne.s32.totalorder %s36, %s37
      %p48 = scmp.eq.s32.totalorder %s28, 0
      %p49 = por %p47, %p48
      %p50 = scmp.ne.s32.totalorder %s36, %s37
      %p51 = scmp.eq.s32.totalorder %s29, 1
      %p52 = por %p50, %p51
      %p54 = scmp.ne.s32.totalorder %s37, %s53
      %p55 = scmp.eq.s32.totalorder %s29, 0
      %p56 = por %p54, %p55
      %s57 = ssub.s32 %s23, %s30
      %p58 = scmp.eq.s32.totalorder %s57, 0
      %s60 = sadd.s32 %s59, 1
      %s61 = scalar_select %p58, %s59, %s60
      %p64 = pneg %p58
      %p65 = scmp.eq.s32.totalorder %s23, 1
      %p66 = por %p64, %p65
      %p67 = scmp.ne.s32.totalorder %s59, %s62
      %p68 = scmp.eq.s32.totalorder %s23, 0
      %p69 = por %p67, %p68
      %p70 = scmp.ne.s32.totalorder %s59, %s62
      %p71 = scmp.eq.s32.totalorder %s28, 1
      %p72 = por %p70, %p71
      %p73 = scmp.ne.s32.totalorder %s62, %s63
      %p74 = scmp.eq.s32.totalorder %s28, 0
      %p75 = por %p73, %p74
      %p76 = scmp.ne.s32.totalorder %s62, %s63
      %p77 = scmp.eq.s32.totalorder %s29, 1
      %p78 = por %p76, %p77
      %p80 = scmp.ne.s32.totalorder %s63, %s79
      %p81 = scmp.eq.s32.totalorder %s29, 0
      %p82 = por %p80, %p81
      %s84 = sadd.s32 %s83, 1
      %p87 = scmp.eq.s32.totalorder %s23, 1
      %p88 = scmp.ne.s32.totalorder %s83, %s85
      %p89 = scmp.eq.s32.totalorder %s23, 0
      %p90 = por %p88, %p89
      %p91 = scmp.ne.s32.totalorder %s83, %s85
      %p92 = scmp.eq.s32.totalorder %s28, 1
      %p93 = por %p91, %p92
      %p94 = scmp.ne.s32.totalorder %s85, %s86
      %p95 = scmp.eq.s32.totalorder %s28, 0
      %p96 = por %p94, %p95
      %p97 = scmp.ne.s32.totalorder %s85, %s86
      %p98 = scmp.eq.s32.totalorder %s29, 1
      %p99 = por %p97, %p98
      %p101 = scmp.ne.s32.totalorder %s86, %s100
      %p102 = scmp.eq.s32.totalorder %s29, 0
      %p103 = por %p101, %p102
      %s105 = sadd.s32 %s104, 1
      %p108 = scmp.eq.s32.totalorder %s23, 1
      %p109 = scmp.ne.s32.totalorder %s104, %s106
      %p110 = scmp.eq.s32.totalorder %s23, 0
      %p111 = por %p109, %p110
      %p112 = scmp.ne.s32.totalorder %s104, %s106
      %p113 = scmp.eq.s32.totalorder %s28, 1
      %p114 = por %p112, %p113
      %p115 = scmp.ne.s32.totalorder %s106, %s107
      %p116 = scmp.eq.s32.totalorder %s28, 0
      %p117 = por %p115, %p116
      %p118 = scmp.ne.s32.totalorder %s106, %s107
      %p119 = scmp.eq.s32.totalorder %s29, 1
      %p120 = por %p118, %p119
      %p122 = scmp.ne.s32.totalorder %s107, %s121
      %p123 = scmp.eq.s32.totalorder %s29, 0
      %p124 = por %p122, %p123
      %s126 = sadd.s32 %s125, 1
      %p129 = scmp.eq.s32.totalorder %s23, 1
      %p130 = scmp.ne.s32.totalorder %s125, %s127
      %p131 = scmp.eq.s32.totalorder %s23, 0
      %p132 = por %p130, %p131
      %p133 = scmp.ne.s32.totalorder %s125, %s127
      %p134 = scmp.eq.s32.totalorder %s28, 1
      %p135 = por %p133, %p134
      %p136 = scmp.ne.s32.totalorder %s127, %s128
      %p137 = scmp.eq.s32.totalorder %s28, 0
      %p138 = por %p136, %p137
      %p139 = scmp.ne.s32.totalorder %s127, %s128
      %p140 = scmp.eq.s32.totalorder %s29, 1
      %p141 = por %p139, %p140
      %p143 = scmp.ne.s32.totalorder %s128, %s142
      %p144 = scmp.eq.s32.totalorder %s29, 0
      %p145 = por %p143, %p144
      %s147 = sadd.s32 %s146, 1
      %p150 = scmp.eq.s32.totalorder %s23, 1
      %p151 = scmp.ne.s32.totalorder %s146, %s148
      %p152 = scmp.eq.s32.totalorder %s23, 0
      %p153 = por %p151, %p152
      %p154 = scmp.ne.s32.totalorder %s146, %s148
      %p155 = scmp.eq.s32.totalorder %s28, 1
      %p156 = por %p154, %p155
      %p157 = scmp.ne.s32.totalorder %s148, %s149
      %p158 = scmp.eq.s32.totalorder %s28, 0
      %p159 = por %p157, %p158
      %p160 = scmp.ne.s32.totalorder %s148, %s149
      %p161 = scmp.eq.s32.totalorder %s29, 1
      %p162 = por %p160, %p161
      %p164 = scmp.ne.s32.totalorder %s149, %s163
      %p165 = scmp.eq.s32.totalorder %s29, 0
      %p166 = por %p164, %p165
      %s168 = sadd.s32 %s167, 1
      %p171 = scmp.eq.s32.totalorder %s23, 1
      %p172 = scmp.ne.s32.totalorder %s167, %s169
      %p173 = scmp.eq.s32.totalorder %s23, 0
      %p174 = por %p172, %p173
      %p175 = scmp.ne.s32.totalorder %s167, %s169
      %p176 = scmp.eq.s32.totalorder %s28, 1
      %p177 = por %p175, %p176
      %p178 = scmp.ne.s32.totalorder %s169, %s170
      %p179 = scmp.eq.s32.totalorder %s28, 0
      %p180 = por %p178, %p179
      %p181 = scmp.ne.s32.totalorder %s169, %s170
      %p182 = scmp.eq.s32.totalorder %s29, 1
      %p183 = por %p181, %p182
      %p185 = scmp.ne.s32.totalorder %s170, %s184
      %p186 = scmp.eq.s32.totalorder %s29, 0
      %p187 = por %p185, %p186
      %s189 = sadd.s32 %s188, 1
      %p192 = scmp.eq.s32.totalorder %s23, 1
      %p193 = scmp.ne.s32.totalorder %s188, %s190
      %p194 = scmp.eq.s32.totalorder %s23, 0
      %p195 = por %p193, %p194
      %p196 = scmp.ne.s32.totalorder %s188, %s190
      %p197 = scmp.eq.s32.totalorder %s28, 1
      %p198 = por %p196, %p197
      %p199 = scmp.ne.s32.totalorder %s190, %s191
      %p200 = scmp.eq.s32.totalorder %s28, 0
      %p201 = por %p199, %p200
      %p202 = scmp.ne.s32.totalorder %s190, %s191
      %p203 = scmp.eq.s32.totalorder %s29, 1
      %p204 = por %p202, %p203
      %p206 = scmp.ne.s32.totalorder %s191, %s205
      %p207 = scmp.eq.s32.totalorder %s29, 0
      %p208 = por %p206, %p207
      %s209 = ssub.s32 %s23, %s30
      %p210 = scmp.eq.s32.totalorder %s209, 0
      %s212 = sadd.s32 %s211, 1
      %s213 = scalar_select %p210, %s211, %s212
      %p216 = pneg %p210
      %p217 = scmp.eq.s32.totalorder %s23, 1
      %p218 = por %p216, %p217
      %p219 = scmp.ne.s32.totalorder %s211, %s214
      %p220 = scmp.eq.s32.totalorder %s23, 0
      %p221 = por %p219, %p220
      %p222 = scmp.ne.s32.totalorder %s211, %s214
      %p223 = scmp.eq.s32.totalorder %s28, 1
      %p224 = por %p222, %p223
      %p225 = scmp.ne.s32.totalorder %s214, %s215
      %p226 = scmp.eq.s32.totalorder %s28, 0
      %p227 = por %p225, %p226
      %p228 = scmp.ne.s32.totalorder %s214, %s215
      %p229 = scmp.eq.s32.totalorder %s29, 1
      %p230 = por %p228, %p229
      %p232 = scmp.ne.s32.totalorder %s215, %s231
      %p233 = scmp.eq.s32.totalorder %s29, 0
      %p234 = por %p232, %p233
      %p235 = scmp.le.s32.totalorder 1, %s23
      %p236 = scmp.lt.s32.totalorder %s23, 3
      %p237 = pnand %p235, %p236
      %p238 = pneg %p237
      // Predicated region
      $region9: #{tpu_custom_call.1} parent=5 // pred_check
        _
      $region10: #{tpu_custom_call.1} parent=5 // pred_check_branch
        %240 = sbr.rel (%p237) target = $region12
      $region11: #{tpu_custom_call.1} parent=5 // pred_region
        %s241 = ssub.s32 %s23, 1
        // Predicated region
        $region13: #{tpu_custom_call.1} parent=11 // pred_check
          %p242 = pneg %p96
        $region14: #{tpu_custom_call.1} parent=11 // pred_check_branch
          %244 = sbr.rel (%p242) target = $region16
        $region15: #{tpu_custom_call.1} parent=11 // pred_region
          %s246 = ssub.s32 6144, 6144
          %247 = vsyncadd [#allocation7], %s246
          %s248 = sshll.u32 [#allocation6], 4
          %s249 = int_to_ptr.vmem [resolvable:$true] %s248
          %254 = dma.hbm_to_vmem [thread:$0]  %s2, 6144, %s249, [#allocation7], 64, 64, 4
        $region16: #{tpu_custom_call.1} parent=11 // pred_fallthru
          _
        // Predicated region
        $region17: #{tpu_custom_call.1} parent=11 // pred_check
          %p255 = pneg %p117
        $region18: #{tpu_custom_call.1} parent=11 // pred_check_branch
          %257 = sbr.rel (%p255) target = $region20
        $region19: #{tpu_custom_call.1} parent=11 // pred_region
          %s259 = ssub.s32 16, 16
          %260 = vsyncadd [#allocation7], %s259
          %s262 = sshll.u32 [#allocation8], 4
          %s263 = int_to_ptr.vmem [resolvable:$true] %s262
          %265 = dma.hbm_to_vmem [thread:$0]  %s3, 16, %s263, [#allocation7]
        $region20: #{tpu_custom_call.1} parent=11 // pred_fallthru
          _
        // Predicated region
        $region21: #{tpu_custom_call.1} parent=11 // pred_check
          %p266 = pneg %p138
        $region22: #{tpu_custom_call.1} parent=11 // pred_check_branch
          %268 = sbr.rel (%p266) target = $region24
        $region23: #{tpu_custom_call.1} parent=11 // pred_region
          %s270 = ssub.s32 1024, 1024
          %271 = vsyncadd [#allocation10], %s270
          %s272 = sshll.u32 [#allocation9], 4
          %s273 = int_to_ptr.vmem [resolvable:$true] %s272
          %278 = dma.hbm_to_vmem [thread:$0]  %s4, 1024, %s273, [#allocation10], 64, 64, 4
        $region24: #{tpu_custom_call.1} parent=11 // pred_fallthru
          _
        // Predicated region
        $region25: #{tpu_custom_call.1} parent=11 // pred_check
          %p279 = pneg %p159
        $region26: #{tpu_custom_call.1} parent=11 // pred_check_branch
          %281 = sbr.rel (%p279) target = $region28
        $region27: #{tpu_custom_call.1} parent=11 // pred_region
          %s283 = ssub.s32 1024, 1024
          %284 = vsyncadd [#allocation10], %s283
          %s285 = sshll.u32 [#allocation11], 4
          %s286 = int_to_ptr.vmem [resolvable:$true] %s285
          %291 = dma.hbm_to_vmem [thread:$0]  %s5, 1024, %s286, [#allocation10], 64, 64, 4
        $region28: #{tpu_custom_call.1} parent=11 // pred_fallthru
          _
        // Predicated region
        $region29: #{tpu_custom_call.1} parent=11 // pred_check
          %p292 = pneg %p180
        $region30: #{tpu_custom_call.1} parent=11 // pred_check_branch
          %294 = sbr.rel (%p292) target = $region32
        $region31: #{tpu_custom_call.1} parent=11 // pred_region
          %s296 = ssub.s32 16, 16
          %297 = vsyncadd [#allocation13], %s296
          %s299 = sshll.u32 [#allocation12], 4
          %s300 = int_to_ptr.vmem [resolvable:$true] %s299
          %302 = dma.hbm_to_vmem [thread:$0]  %s6, 16, %s300, [#allocation13]
        $region32: #{tpu_custom_call.1} parent=11 // pred_fallthru
          _
        // Predicated region
        $region33: #{tpu_custom_call.1} parent=11 // pred_check
          %p303 = pneg %p201
        $region34: #{tpu_custom_call.1} parent=11 // pred_check_branch
          %305 = sbr.rel (%p303) target = $region36
        $region35: #{tpu_custom_call.1} parent=11 // pred_region
          %s307 = ssub.s32 16, 16
          %308 = vsyncadd [#allocation13], %s307
          %s310 = sshll.u32 [#allocation14], 4
          %s311 = int_to_ptr.vmem [resolvable:$true] %s310
          %313 = dma.hbm_to_vmem [thread:$0]  %s7, 16, %s311, [#allocation13]
        $region36: #{tpu_custom_call.1} parent=11 // pred_fallthru
          _
      $region12: #{tpu_custom_call.1} parent=5 // pred_fallthru
        _
      %p314 = scmp.lt.s32.totalorder %s23, 2
      // Predicated region
      $region37: #{tpu_custom_call.1} parent=5 // pred_check
        %p315 = pneg %p314
      $region38: #{tpu_custom_call.1} parent=5 // pred_check_branch
        %317 = sbr.rel (%p315) target = $region40
      $region39: #{tpu_custom_call.1} parent=5 // pred_region
        // Predicated region
        $region41: #{tpu_custom_call.1} parent=39 // pred_check
          %p318 = pneg %p43
        $region42: #{tpu_custom_call.1} parent=39 // pred_check_branch
          %320 = sbr.rel (%p318) target = $region44
        $region43: #{tpu_custom_call.1} parent=39 // pred_region
          %s321 = sand.u32 %s33, 1
          %s322 = sand.u32 %s33, 1
          %s323 = smul.addr %s322, 1024
          %s324 = scalar_lea.vmem [#allocation2], %s323
          %s325 = smul.u32 16, %s23
          %s326 = smul.addr %s325, 8
          %s327 = scalar_lea.vmem %s0, %s326
          // Predicated region
          $region45: #{tpu_custom_call.1} parent=43 // pred_check
            _
          $region46: #{tpu_custom_call.1} parent=43 // pred_check_branch
            %329 = sbr.rel (0) target = $region48
          $region47: #{tpu_custom_call.1} parent=43 // pred_region
            // Predicated region
            $region49: #{tpu_custom_call.1} parent=47 // pred_check
              _
            $region50: #{tpu_custom_call.1} parent=47 // pred_check_branch
              %331 = sbr.rel (0) target = $region52
            $region51: #{tpu_custom_call.1} parent=47 // pred_region
              // Predicated region
              $region64: #{tpu_custom_call.1} parent=51 // pred_check
                _
              $region65: #{tpu_custom_call.1} parent=51 // pred_check_branch
                %600 = sbr.rel (0) target = $region67
              $region66: #{tpu_custom_call.1} parent=51 // pred_region
                loop: start=0, step=1, limit=1
                $region68: #{tpu_custom_call.1} parent=66 // loop_pre_header
                  _
                $region69: #{tpu_custom_call.1} parent=66 // loop_header
                  %s602 = sphi 0, %s606
                  %p603 = scmp.ge.s32.totalorder %s602, 1
                  %s607 = sphi %s327, %s327
                  %s608 = sphi %s324, %s324
                $region70: #{tpu_custom_call.1} parent=66 // loop_header_branch
                  %605 = sbr.rel (%p603) target = $region74
                $region71: #{tpu_custom_call.1} parent=66 // loop_body
                  %v609 = vld [vmem:[%s607] sm:$0xff]
                  %610 = vst [vmem:[%s608] sm:$0xff] %v609
                  %v611 = vld [vmem:[%s607 + $0x8] sm:$0xff]
                  %612 = vst [vmem:[%s608 + $0x8] sm:$0xff] %v611
                  %v613 = vld [vmem:[%s607 + $0x10] sm:$0xff]
                  %614 = vst [vmem:[%s608 + $0x10] sm:$0xff] %v613
                  %v615 = vld [vmem:[%s607 + $0x18] sm:$0xff]
                  %616 = vst [vmem:[%s608 + $0x18] sm:$0xff] %v615
                  %v617 = vld [vmem:[%s607 + $0x20] sm:$0xff]
                  %618 = vst [vmem:[%s608 + $0x20] sm:$0xff] %v617
                  %v619 = vld [vmem:[%s607 + $0x28] sm:$0xff]
                  %620 = vst [vmem:[%s608 + $0x28] sm:$0xff] %v619
                  %v621 = vld [vmem:[%s607 + $0x30] sm:$0xff]
                  %622 = vst [vmem:[%s608 + $0x30] sm:$0xff] %v621
                  %v623 = vld [vmem:[%s607 + $0x38] sm:$0xff]
                  %624 = vst [vmem:[%s608 + $0x38] sm:$0xff] %v623
                  %v625 = vld [vmem:[%s607 + $0x40] sm:$0xff]
                  %626 = vst [vmem:[%s608 + $0x40] sm:$0xff] %v625
                  %v627 = vld [vmem:[%s607 + $0x48] sm:$0xff]
                  %628 = vst [vmem:[%s608 + $0x48] sm:$0xff] %v627
                  %v629 = vld [vmem:[%s607 + $0x50] sm:$0xff]
                  %630 = vst [vmem:[%s608 + $0x50] sm:$0xff] %v629
                  %v631 = vld [vmem:[%s607 + $0x58] sm:$0xff]
                  %632 = vst [vmem:[%s608 + $0x58] sm:$0xff] %v631
                  %v633 = vld [vmem:[%s607 + $0x60] sm:$0xff]
                  %634 = vst [vmem:[%s608 + $0x60] sm:$0xff] %v633
                  %v635 = vld [vmem:[%s607 + $0x68] sm:$0xff]
                  %636 = vst [vmem:[%s608 + $0x68] sm:$0xff] %v635
                  %v637 = vld [vmem:[%s607 + $0x70] sm:$0xff]
                  %638 = vst [vmem:[%s608 + $0x70] sm:$0xff] %v637
                  %v639 = vld [vmem:[%s607 + $0x78] sm:$0xff]
                  %640 = vst [vmem:[%s608 + $0x78] sm:$0xff] %v639
                  %v641 = vld [vmem:[%s607 + $0x100] sm:$0xff]
                  %642 = vst [vmem:[%s608 + $0x80] sm:$0xff] %v641
                  %v643 = vld [vmem:[%s607 + $0x108] sm:$0xff]
                  %644 = vst [vmem:[%s608 + $0x88] sm:$0xff] %v643
                  %v645 = vld [vmem:[%s607 + $0x110] sm:$0xff]
                  %646 = vst [vmem:[%s608 + $0x90] sm:$0xff] %v645
                  %v647 = vld [vmem:[%s607 + $0x118] sm:$0xff]
                  %648 = vst [vmem:[%s608 + $0x98] sm:$0xff] %v647
                  %v649 = vld [vmem:[%s607 + $0x120] sm:$0xff]
                  %650 = vst [vmem:[%s608 + $0xa0] sm:$0xff] %v649
                  %v651 = vld [vmem:[%s607 + $0x128] sm:$0xff]
                  %652 = vst [vmem:[%s608 + $0xa8] sm:$0xff] %v651
                  %v653 = vld [vmem:[%s607 + $0x130] sm:$0xff]
                  %654 = vst [vmem:[%s608 + $0xb0] sm:$0xff] %v653
                  %v655 = vld [vmem:[%s607 + $0x138] sm:$0xff]
                  %656 = vst [vmem:[%s608 + $0xb8] sm:$0xff] %v655
                  %v657 = vld [vmem:[%s607 + $0x140] sm:$0xff]
                  %658 = vst [vmem:[%s608 + $0xc0] sm:$0xff] %v657
                  %v659 = vld [vmem:[%s607 + $0x148] sm:$0xff]
                  %660 = vst [vmem:[%s608 + $0xc8] sm:$0xff] %v659
                  %v661 = vld [vmem:[%s607 + $0x150] sm:$0xff]
                  %662 = vst [vmem:[%s608 + $0xd0] sm:$0xff] %v661
                  %v663 = vld [vmem:[%s607 + $0x158] sm:$0xff]
                  %664 = vst [vmem:[%s608 + $0xd8] sm:$0xff] %v663
                  %v665 = vld [vmem:[%s607 + $0x160] sm:$0xff]
                  %666 = vst [vmem:[%s608 + $0xe0] sm:$0xff] %v665
                  %v667 = vld [vmem:[%s607 + $0x168] sm:$0xff]
                  %668 = vst [vmem:[%s608 + $0xe8] sm:$0xff] %v667
                  %v669 = vld [vmem:[%s607 + $0x170] sm:$0xff]
                  %670 = vst [vmem:[%s608 + $0xf0] sm:$0xff] %v669
                  %v671 = vld [vmem:[%s607 + $0x178] sm:$0xff]
                  %672 = vst [vmem:[%s608 + $0xf8] sm:$0xff] %v671
                  %v673 = vld [vmem:[%s607 + $0x200] sm:$0xff]
                  %674 = vst [vmem:[%s608 + $0x100] sm:$0xff] %v673
                  %v675 = vld [vmem:[%s607 + $0x208] sm:$0xff]
                  %676 = vst [vmem:[%s608 + $0x108] sm:$0xff] %v675
                  %v677 = vld [vmem:[%s607 + $0x210] sm:$0xff]
                  %678 = vst [vmem:[%s608 + $0x110] sm:$0xff] %v677
                  %v679 = vld [vmem:[%s607 + $0x218] sm:$0xff]
                  %680 = vst [vmem:[%s608 + $0x118] sm:$0xff] %v679
                  %v681 = vld [vmem:[%s607 + $0x220] sm:$0xff]
                  %682 = vst [vmem:[%s608 + $0x120] sm:$0xff] %v681
                  %v683 = vld [vmem:[%s607 + $0x228] sm:$0xff]
                  %684 = vst [vmem:[%s608 + $0x128] sm:$0xff] %v683
                  %v685 = vld [vmem:[%s607 + $0x230] sm:$0xff]
                  %686 = vst [vmem:[%s608 + $0x130] sm:$0xff] %v685
                  %v687 = vld [vmem:[%s607 + $0x238] sm:$0xff]
                  %688 = vst [vmem:[%s608 + $0x138] sm:$0xff] %v687
                  %v689 = vld [vmem:[%s607 + $0x240] sm:$0xff]
                  %690 = vst [vmem:[%s608 + $0x140] sm:$0xff] %v689
                  %v691 = vld [vmem:[%s607 + $0x248] sm:$0xff]
                  %692 = vst [vmem:[%s608 + $0x148] sm:$0xff] %v691
                  %v693 = vld [vmem:[%s607 + $0x250] sm:$0xff]
                  %694 = vst [vmem:[%s608 + $0x150] sm:$0xff] %v693
                  %v695 = vld [vmem:[%s607 + $0x258] sm:$0xff]
                  %696 = vst [vmem:[%s608 + $0x158] sm:$0xff] %v695
                  %v697 = vld [vmem:[%s607 + $0x260] sm:$0xff]
                  %698 = vst [vmem:[%s608 + $0x160] sm:$0xff] %v697
                  %v699 = vld [vmem:[%s607 + $0x268] sm:$0xff]
                  %700 = vst [vmem:[%s608 + $0x168] sm:$0xff] %v699
                  %v701 = vld [vmem:[%s607 + $0x270] sm:$0xff]
                  %702 = vst [vmem:[%s608 + $0x170] sm:$0xff] %v701
                  %v703 = vld [vmem:[%s607 + $0x278] sm:$0xff]
                  %704 = vst [vmem:[%s608 + $0x178] sm:$0xff] %v703
                  %v705 = vld [vmem:[%s607 + $0x300] sm:$0xff]
                  %706 = vst [vmem:[%s608 + $0x180] sm:$0xff] %v705
                  %v707 = vld [vmem:[%s607 + $0x308] sm:$0xff]
                  %708 = vst [vmem:[%s608 + $0x188] sm:$0xff] %v707
                  %v709 = vld [vmem:[%s607 + $0x310] sm:$0xff]
                  %710 = vst [vmem:[%s608 + $0x190] sm:$0xff] %v709
                  %v711 = vld [vmem:[%s607 + $0x318] sm:$0xff]
                  %712 = vst [vmem:[%s608 + $0x198] sm:$0xff] %v711
                  %v713 = vld [vmem:[%s607 + $0x320] sm:$0xff]
                  %714 = vst [vmem:[%s608 + $0x1a0] sm:$0xff] %v713
                  %v715 = vld [vmem:[%s607 + $0x328] sm:$0xff]
                  %716 = vst [vmem:[%s608 + $0x1a8] sm:$0xff] %v715
                  %v717 = vld [vmem:[%s607 + $0x330] sm:$0xff]
                  %718 = vst [vmem:[%s608 + $0x1b0] sm:$0xff] %v717
                  %v719 = vld [vmem:[%s607 + $0x338] sm:$0xff]
                  %720 = vst [vmem:[%s608 + $0x1b8] sm:$0xff] %v719
                  %v721 = vld [vmem:[%s607 + $0x340] sm:$0xff]
                  %722 = vst [vmem:[%s608 + $0x1c0] sm:$0xff] %v721
                  %v723 = vld [vmem:[%s607 + $0x348] sm:$0xff]
                  %724 = vst [vmem:[%s608 + $0x1c8] sm:$0xff] %v723
                  %v725 = vld [vmem:[%s607 + $0x350] sm:$0xff]
                  %726 = vst [vmem:[%s608 + $0x1d0] sm:$0xff] %v725
                  %v727 = vld [vmem:[%s607 + $0x358] sm:$0xff]
                  %728 = vst [vmem:[%s608 + $0x1d8] sm:$0xff] %v727
                  %v729 = vld [vmem:[%s607 + $0x360] sm:$0xff]
                  %730 = vst [vmem:[%s608 + $0x1e0] sm:$0xff] %v729
                  %v731 = vld [vmem:[%s607 + $0x368] sm:$0xff]
                  %732 = vst [vmem:[%s608 + $0x1e8] sm:$0xff] %v731
                  %v733 = vld [vmem:[%s607 + $0x370] sm:$0xff]
                  %734 = vst [vmem:[%s608 + $0x1f0] sm:$0xff] %v733
                  %v735 = vld [vmem:[%s607 + $0x378] sm:$0xff]
                  %736 = vst [vmem:[%s608 + $0x1f8] sm:$0xff] %v735
                  %v737 = vld [vmem:[%s607 + $0x400] sm:$0xff]
                  %738 = vst [vmem:[%s608 + $0x200] sm:$0xff] %v737
                  %v739 = vld [vmem:[%s607 + $0x408] sm:$0xff]
                  %740 = vst [vmem:[%s608 + $0x208] sm:$0xff] %v739
                  %v741 = vld [vmem:[%s607 + $0x410] sm:$0xff]
                  %742 = vst [vmem:[%s608 + $0x210] sm:$0xff] %v741
                  %v743 = vld [vmem:[%s607 + $0x418] sm:$0xff]
                  %744 = vst [vmem:[%s608 + $0x218] sm:$0xff] %v743
                  %v745 = vld [vmem:[%s607 + $0x420] sm:$0xff]
                  %746 = vst [vmem:[%s608 + $0x220] sm:$0xff] %v745
                  %v747 = vld [vmem:[%s607 + $0x428] sm:$0xff]
                  %748 = vst [vmem:[%s608 + $0x228] sm:$0xff] %v747
                  %v749 = vld [vmem:[%s607 + $0x430] sm:$0xff]
                  %750 = vst [vmem:[%s608 + $0x230] sm:$0xff] %v749
                  %v751 = vld [vmem:[%s607 + $0x438] sm:$0xff]
                  %752 = vst [vmem:[%s608 + $0x238] sm:$0xff] %v751
                  %v753 = vld [vmem:[%s607 + $0x440] sm:$0xff]
                  %754 = vst [vmem:[%s608 + $0x240] sm:$0xff] %v753
                  %v755 = vld [vmem:[%s607 + $0x448] sm:$0xff]
                  %756 = vst [vmem:[%s608 + $0x248] sm:$0xff] %v755
                  %v757 = vld [vmem:[%s607 + $0x450] sm:$0xff]
                  %758 = vst [vmem:[%s608 + $0x250] sm:$0xff] %v757
                  %v759 = vld [vmem:[%s607 + $0x458] sm:$0xff]
                  %760 = vst [vmem:[%s608 + $0x258] sm:$0xff] %v759
                  %v761 = vld [vmem:[%s607 + $0x460] sm:$0xff]
                  %762 = vst [vmem:[%s608 + $0x260] sm:$0xff] %v761
                  %v763 = vld [vmem:[%s607 + $0x468] sm:$0xff]
                  %764 = vst [vmem:[%s608 + $0x268] sm:$0xff] %v763
                  %v765 = vld [vmem:[%s607 + $0x470] sm:$0xff]
                  %766 = vst [vmem:[%s608 + $0x270] sm:$0xff] %v765
                  %v767 = vld [vmem:[%s607 + $0x478] sm:$0xff]
                  %768 = vst [vmem:[%s608 + $0x278] sm:$0xff] %v767
                  %v769 = vld [vmem:[%s607 + $0x500] sm:$0xff]
                  %770 = vst [vmem:[%s608 + $0x280] sm:$0xff] %v769
                  %v771 = vld [vmem:[%s607 + $0x508] sm:$0xff]
                  %772 = vst [vmem:[%s608 + $0x288] sm:$0xff] %v771
                  %v773 = vld [vmem:[%s607 + $0x510] sm:$0xff]
                  %774 = vst [vmem:[%s608 + $0x290] sm:$0xff] %v773
                  %v775 = vld [vmem:[%s607 + $0x518] sm:$0xff]
                  %776 = vst [vmem:[%s608 + $0x298] sm:$0xff] %v775
                  %v777 = vld [vmem:[%s607 + $0x520] sm:$0xff]
                  %778 = vst [vmem:[%s608 + $0x2a0] sm:$0xff] %v777
                  %v779 = vld [vmem:[%s607 + $0x528] sm:$0xff]
                  %780 = vst [vmem:[%s608 + $0x2a8] sm:$0xff] %v779
                  %v781 = vld [vmem:[%s607 + $0x530] sm:$0xff]
                  %782 = vst [vmem:[%s608 + $0x2b0] sm:$0xff] %v781
                  %v783 = vld [vmem:[%s607 + $0x538] sm:$0xff]
                  %784 = vst [vmem:[%s608 + $0x2b8] sm:$0xff] %v783
                  %v785 = vld [vmem:[%s607 + $0x540] sm:$0xff]
                  %786 = vst [vmem:[%s608 + $0x2c0] sm:$0xff] %v785
                  %v787 = vld [vmem:[%s607 + $0x548] sm:$0xff]
                  %788 = vst [vmem:[%s608 + $0x2c8] sm:$0xff] %v787
                  %v789 = vld [vmem:[%s607 + $0x550] sm:$0xff]
                  %790 = vst [vmem:[%s608 + $0x2d0] sm:$0xff] %v789
                  %v791 = vld [vmem:[%s607 + $0x558] sm:$0xff]
                  %792 = vst [vmem:[%s608 + $0x2d8] sm:$0xff] %v791
                  %v793 = vld [vmem:[%s607 + $0x560] sm:$0xff]
                  %794 = vst [vmem:[%s608 + $0x2e0] sm:$0xff] %v793
                  %v795 = vld [vmem:[%s607 + $0x568] sm:$0xff]
                  %796 = vst [vmem:[%s608 + $0x2e8] sm:$0xff] %v795
                  %v797 = vld [vmem:[%s607 + $0x570] sm:$0xff]
                  %798 = vst [vmem:[%s608 + $0x2f0] sm:$0xff] %v797
                  %v799 = vld [vmem:[%s607 + $0x578] sm:$0xff]
                  %800 = vst [vmem:[%s608 + $0x2f8] sm:$0xff] %v799
                  %v801 = vld [vmem:[%s607 + $0x600] sm:$0xff]
                  %802 = vst [vmem:[%s608 + $0x300] sm:$0xff] %v801
                  %v803 = vld [vmem:[%s607 + $0x608] sm:$0xff]
                  %804 = vst [vmem:[%s608 + $0x308] sm:$0xff] %v803
                  %v805 = vld [vmem:[%s607 + $0x610] sm:$0xff]
                  %806 = vst [vmem:[%s608 + $0x310] sm:$0xff] %v805
                  %v807 = vld [vmem:[%s607 + $0x618] sm:$0xff]
                  %808 = vst [vmem:[%s608 + $0x318] sm:$0xff] %v807
                  %v809 = vld [vmem:[%s607 + $0x620] sm:$0xff]
                  %810 = vst [vmem:[%s608 + $0x320] sm:$0xff] %v809
                  %v811 = vld [vmem:[%s607 + $0x628] sm:$0xff]
                  %812 = vst [vmem:[%s608 + $0x328] sm:$0xff] %v811
                  %v813 = vld [vmem:[%s607 + $0x630] sm:$0xff]
                  %814 = vst [vmem:[%s608 + $0x330] sm:$0xff] %v813
                  %v815 = vld [vmem:[%s607 + $0x638] sm:$0xff]
                  %816 = vst [vmem:[%s608 + $0x338] sm:$0xff] %v815
                  %v817 = vld [vmem:[%s607 + $0x640] sm:$0xff]
                  %818 = vst [vmem:[%s608 + $0x340] sm:$0xff] %v817
                  %v819 = vld [vmem:[%s607 + $0x648] sm:$0xff]
                  %820 = vst [vmem:[%s608 + $0x348] sm:$0xff] %v819
                  %v821 = vld [vmem:[%s607 + $0x650] sm:$0xff]
                  %822 = vst [vmem:[%s608 + $0x350] sm:$0xff] %v821
                  %v823 = vld [vmem:[%s607 + $0x658] sm:$0xff]
                  %824 = vst [vmem:[%s608 + $0x358] sm:$0xff] %v823
                  %v825 = vld [vmem:[%s607 + $0x660] sm:$0xff]
                  %826 = vst [vmem:[%s608 + $0x360] sm:$0xff] %v825
                  %v827 = vld [vmem:[%s607 + $0x668] sm:$0xff]
                  %828 = vst [vmem:[%s608 + $0x368] sm:$0xff] %v827
                  %v829 = vld [vmem:[%s607 + $0x670] sm:$0xff]
                  %830 = vst [vmem:[%s608 + $0x370] sm:$0xff] %v829
                  %v831 = vld [vmem:[%s607 + $0x678] sm:$0xff]
                  %832 = vst [vmem:[%s608 + $0x378] sm:$0xff] %v831
                  %v833 = vld [vmem:[%s607 + $0x700] sm:$0xff]
                  %834 = vst [vmem:[%s608 + $0x380] sm:$0xff] %v833
                  %v835 = vld [vmem:[%s607 + $0x708] sm:$0xff]
                  %836 = vst [vmem:[%s608 + $0x388] sm:$0xff] %v835
                  %v837 = vld [vmem:[%s607 + $0x710] sm:$0xff]
                  %838 = vst [vmem:[%s608 + $0x390] sm:$0xff] %v837
                  %v839 = vld [vmem:[%s607 + $0x718] sm:$0xff]
                  %840 = vst [vmem:[%s608 + $0x398] sm:$0xff] %v839
                  %v841 = vld [vmem:[%s607 + $0x720] sm:$0xff]
                  %842 = vst [vmem:[%s608 + $0x3a0] sm:$0xff] %v841
                  %v843 = vld [vmem:[%s607 + $0x728] sm:$0xff]
                  %844 = vst [vmem:[%s608 + $0x3a8] sm:$0xff] %v843
                  %v845 = vld [vmem:[%s607 + $0x730] sm:$0xff]
                  %846 = vst [vmem:[%s608 + $0x3b0] sm:$0xff] %v845
                  %v847 = vld [vmem:[%s607 + $0x738] sm:$0xff]
                  %848 = vst [vmem:[%s608 + $0x3b8] sm:$0xff] %v847
                  %v849 = vld [vmem:[%s607 + $0x740] sm:$0xff]
                  %850 = vst [vmem:[%s608 + $0x3c0] sm:$0xff] %v849
                  %v851 = vld [vmem:[%s607 + $0x748] sm:$0xff]
                  %852 = vst [vmem:[%s608 + $0x3c8] sm:$0xff] %v851
                  %v853 = vld [vmem:[%s607 + $0x750] sm:$0xff]
                  %854 = vst [vmem:[%s608 + $0x3d0] sm:$0xff] %v853
                  %v855 = vld [vmem:[%s607 + $0x758] sm:$0xff]
                  %856 = vst [vmem:[%s608 + $0x3d8] sm:$0xff] %v855
                  %v857 = vld [vmem:[%s607 + $0x760] sm:$0xff]
                  %858 = vst [vmem:[%s608 + $0x3e0] sm:$0xff] %v857
                  %v859 = vld [vmem:[%s607 + $0x768] sm:$0xff]
                  %860 = vst [vmem:[%s608 + $0x3e8] sm:$0xff] %v859
                  %v861 = vld [vmem:[%s607 + $0x770] sm:$0xff]
                  %862 = vst [vmem:[%s608 + $0x3f0] sm:$0xff] %v861
                  %v863 = vld [vmem:[%s607 + $0x778] sm:$0xff]
                  %864 = vst [vmem:[%s608 + $0x3f8] sm:$0xff] %v863
                $region72: #{tpu_custom_call.1} parent=66 // loop_footer
                  %s606 = sadd.s32 1, %s602
                $region73: #{tpu_custom_call.1} parent=66 // loop_footer_branch
                  %601 = sbr.rel target = $region69
                $region74: #{tpu_custom_call.1} parent=66 // loop_exit
                  _
              $region67: #{tpu_custom_call.1} parent=51 // pred_fallthru
                _
              // Predicated region
              $region75: #{tpu_custom_call.1} parent=51 // pred_check
                _
              $region76: #{tpu_custom_call.1} parent=51 // pred_check_branch
                %866 = sbr.rel target = $region78
              $region77: #{tpu_custom_call.1} parent=51 // pred_region
                _
              $region78: #{tpu_custom_call.1} parent=51 // pred_fallthru
                _
            $region52: #{tpu_custom_call.1} parent=47 // pred_fallthru
              _
            // Predicated region
            $region53: #{tpu_custom_call.1} parent=47 // pred_check
              _
            $region54: #{tpu_custom_call.1} parent=47 // pred_check_branch
              %333 = sbr.rel target = $region56
            $region55: #{tpu_custom_call.1} parent=47 // pred_region
              loop: start=0, step=1, limit=1
              $region57: #{tpu_custom_call.1} parent=55 // loop_pre_header
                _
              $region58: #{tpu_custom_call.1} parent=55 // loop_header
                %s336 = sphi 0, %s340
                %p337 = scmp.ge.s32.totalorder %s336, 1
                %s341 = sphi %s327, %s327
                %s342 = sphi %s324, %s324
              $region59: #{tpu_custom_call.1} parent=55 // loop_header_branch
                %339 = sbr.rel (%p337) target = $region63
              $region60: #{tpu_custom_call.1} parent=55 // loop_body
                %v343 = vld [vmem:[%s341] sm:$0xff]
                %344 = vst [vmem:[%s342] sm:$0xff] %v343
                %v345 = vld [vmem:[%s341 + $0x8] sm:$0xff]
                %346 = vst [vmem:[%s342 + $0x8] sm:$0xff] %v345
                %v347 = vld [vmem:[%s341 + $0x10] sm:$0xff]
                %348 = vst [vmem:[%s342 + $0x10] sm:$0xff] %v347
                %v349 = vld [vmem:[%s341 + $0x18] sm:$0xff]
                %350 = vst [vmem:[%s342 + $0x18] sm:$0xff] %v349
                %v351 = vld [vmem:[%s341 + $0x20] sm:$0xff]
                %352 = vst [vmem:[%s342 + $0x20] sm:$0xff] %v351
                %v353 = vld [vmem:[%s341 + $0x28] sm:$0xff]
                %354 = vst [vmem:[%s342 + $0x28] sm:$0xff] %v353
                %v355 = vld [vmem:[%s341 + $0x30] sm:$0xff]
                %356 = vst [vmem:[%s342 + $0x30] sm:$0xff] %v355
                %v357 = vld [vmem:[%s341 + $0x38] sm:$0xff]
                %358 = vst [vmem:[%s342 + $0x38] sm:$0xff] %v357
                %v359 = vld [vmem:[%s341 + $0x40] sm:$0xff]
                %360 = vst [vmem:[%s342 + $0x40] sm:$0xff] %v359
                %v361 = vld [vmem:[%s341 + $0x48] sm:$0xff]
                %362 = vst [vmem:[%s342 + $0x48] sm:$0xff] %v361
                %v363 = vld [vmem:[%s341 + $0x50] sm:$0xff]
                %364 = vst [vmem:[%s342 + $0x50] sm:$0xff] %v363
                %v365 = vld [vmem:[%s341 + $0x58] sm:$0xff]
                %366 = vst [vmem:[%s342 + $0x58] sm:$0xff] %v365
                %v367 = vld [vmem:[%s341 + $0x60] sm:$0xff]
                %368 = vst [vmem:[%s342 + $0x60] sm:$0xff] %v367
                %v369 = vld [vmem:[%s341 + $0x68] sm:$0xff]
                %370 = vst [vmem:[%s342 + $0x68] sm:$0xff] %v369
                %v371 = vld [vmem:[%s341 + $0x70] sm:$0xff]
                %372 = vst [vmem:[%s342 + $0x70] sm:$0xff] %v371
                %v373 = vld [vmem:[%s341 + $0x78] sm:$0xff]
                %374 = vst [vmem:[%s342 + $0x78] sm:$0xff] %v373
                %v375 = vld [vmem:[%s341 + $0x100] sm:$0xff]
                %376 = vst [vmem:[%s342 + $0x80] sm:$0xff] %v375
                %v377 = vld [vmem:[%s341 + $0x108] sm:$0xff]
                %378 = vst [vmem:[%s342 + $0x88] sm:$0xff] %v377
                %v379 = vld [vmem:[%s341 + $0x110] sm:$0xff]
                %380 = vst [vmem:[%s342 + $0x90] sm:$0xff] %v379
                %v381 = vld [vmem:[%s341 + $0x118] sm:$0xff]
                %382 = vst [vmem:[%s342 + $0x98] sm:$0xff] %v381
                %v383 = vld [vmem:[%s341 + $0x120] sm:$0xff]
                %384 = vst [vmem:[%s342 + $0xa0] sm:$0xff] %v383
                %v385 = vld [vmem:[%s341 + $0x128] sm:$0xff]
                %386 = vst [vmem:[%s342 + $0xa8] sm:$0xff] %v385
                %v387 = vld [vmem:[%s341 + $0x130] sm:$0xff]
                %388 = vst [vmem:[%s342 + $0xb0] sm:$0xff] %v387
                %v389 = vld [vmem:[%s341 + $0x138] sm:$0xff]
                %390 = vst [vmem:[%s342 + $0xb8] sm:$0xff] %v389
                %v391 = vld [vmem:[%s341 + $0x140] sm:$0xff]
                %392 = vst [vmem:[%s342 + $0xc0] sm:$0xff] %v391
                %v393 = vld [vmem:[%s341 + $0x148] sm:$0xff]
                %394 = vst [vmem:[%s342 + $0xc8] sm:$0xff] %v393
                %v395 = vld [vmem:[%s341 + $0x150] sm:$0xff]
                %396 = vst [vmem:[%s342 + $0xd0] sm:$0xff] %v395
                %v397 = vld [vmem:[%s341 + $0x158] sm:$0xff]
                %398 = vst [vmem:[%s342 + $0xd8] sm:$0xff] %v397
                %v399 = vld [vmem:[%s341 + $0x160] sm:$0xff]
                %400 = vst [vmem:[%s342 + $0xe0] sm:$0xff] %v399
                %v401 = vld [vmem:[%s341 + $0x168] sm:$0xff]
                %402 = vst [vmem:[%s342 + $0xe8] sm:$0xff] %v401
                %v403 = vld [vmem:[%s341 + $0x170] sm:$0xff]
                %404 = vst [vmem:[%s342 + $0xf0] sm:$0xff] %v403
                %v405 = vld [vmem:[%s341 + $0x178] sm:$0xff]
                %406 = vst [vmem:[%s342 + $0xf8] sm:$0xff] %v405
                %v407 = vld [vmem:[%s341 + $0x200] sm:$0xff]
                %408 = vst [vmem:[%s342 + $0x100] sm:$0xff] %v407
                %v409 = vld [vmem:[%s341 + $0x208] sm:$0xff]
                %410 = vst [vmem:[%s342 + $0x108] sm:$0xff] %v409
                %v411 = vld [vmem:[%s341 + $0x210] sm:$0xff]
                %412 = vst [vmem:[%s342 + $0x110] sm:$0xff] %v411
                %v413 = vld [vmem:[%s341 + $0x218] sm:$0xff]
                %414 = vst [vmem:[%s342 + $0x118] sm:$0xff] %v413
                %v415 = vld [vmem:[%s341 + $0x220] sm:$0xff]
                %416 = vst [vmem:[%s342 + $0x120] sm:$0xff] %v415
                %v417 = vld [vmem:[%s341 + $0x228] sm:$0xff]
                %418 = vst [vmem:[%s342 + $0x128] sm:$0xff] %v417
                %v419 = vld [vmem:[%s341 + $0x230] sm:$0xff]
                %420 = vst [vmem:[%s342 + $0x130] sm:$0xff] %v419
                %v421 = vld [vmem:[%s341 + $0x238] sm:$0xff]
                %422 = vst [vmem:[%s342 + $0x138] sm:$0xff] %v421
                %v423 = vld [vmem:[%s341 + $0x240] sm:$0xff]
                %424 = vst [vmem:[%s342 + $0x140] sm:$0xff] %v423
                %v425 = vld [vmem:[%s341 + $0x248] sm:$0xff]
                %426 = vst [vmem:[%s342 + $0x148] sm:$0xff] %v425
                %v427 = vld [vmem:[%s341 + $0x250] sm:$0xff]
                %428 = vst [vmem:[%s342 + $0x150] sm:$0xff] %v427
                %v429 = vld [vmem:[%s341 + $0x258] sm:$0xff]
                %430 = vst [vmem:[%s342 + $0x158] sm:$0xff] %v429
                %v431 = vld [vmem:[%s341 + $0x260] sm:$0xff]
                %432 = vst [vmem:[%s342 + $0x160] sm:$0xff] %v431
                %v433 = vld [vmem:[%s341 + $0x268] sm:$0xff]
                %434 = vst [vmem:[%s342 + $0x168] sm:$0xff] %v433
                %v435 = vld [vmem:[%s341 + $0x270] sm:$0xff]
                %436 = vst [vmem:[%s342 + $0x170] sm:$0xff] %v435
                %v437 = vld [vmem:[%s341 + $0x278] sm:$0xff]
                %438 = vst [vmem:[%s342 + $0x178] sm:$0xff] %v437
                %v439 = vld [vmem:[%s341 + $0x300] sm:$0xff]
                %440 = vst [vmem:[%s342 + $0x180] sm:$0xff] %v439
                %v441 = vld [vmem:[%s341 + $0x308] sm:$0xff]
                %442 = vst [vmem:[%s342 + $0x188] sm:$0xff] %v441
                %v443 = vld [vmem:[%s341 + $0x310] sm:$0xff]
                %444 = vst [vmem:[%s342 + $0x190] sm:$0xff] %v443
                %v445 = vld [vmem:[%s341 + $0x318] sm:$0xff]
                %446 = vst [vmem:[%s342 + $0x198] sm:$0xff] %v445
                %v447 = vld [vmem:[%s341 + $0x320] sm:$0xff]
                %448 = vst [vmem:[%s342 + $0x1a0] sm:$0xff] %v447
                %v449 = vld [vmem:[%s341 + $0x328] sm:$0xff]
                %450 = vst [vmem:[%s342 + $0x1a8] sm:$0xff] %v449
                %v451 = vld [vmem:[%s341 + $0x330] sm:$0xff]
                %452 = vst [vmem:[%s342 + $0x1b0] sm:$0xff] %v451
                %v453 = vld [vmem:[%s341 + $0x338] sm:$0xff]
                %454 = vst [vmem:[%s342 + $0x1b8] sm:$0xff] %v453
                %v455 = vld [vmem:[%s341 + $0x340] sm:$0xff]
                %456 = vst [vmem:[%s342 + $0x1c0] sm:$0xff] %v455
                %v457 = vld [vmem:[%s341 + $0x348] sm:$0xff]
                %458 = vst [vmem:[%s342 + $0x1c8] sm:$0xff] %v457
                %v459 = vld [vmem:[%s341 + $0x350] sm:$0xff]
                %460 = vst [vmem:[%s342 + $0x1d0] sm:$0xff] %v459
                %v461 = vld [vmem:[%s341 + $0x358] sm:$0xff]
                %462 = vst [vmem:[%s342 + $0x1d8] sm:$0xff] %v461
                %v463 = vld [vmem:[%s341 + $0x360] sm:$0xff]
                %464 = vst [vmem:[%s342 + $0x1e0] sm:$0xff] %v463
                %v465 = vld [vmem:[%s341 + $0x368] sm:$0xff]
                %466 = vst [vmem:[%s342 + $0x1e8] sm:$0xff] %v465
                %v467 = vld [vmem:[%s341 + $0x370] sm:$0xff]
                %468 = vst [vmem:[%s342 + $0x1f0] sm:$0xff] %v467
                %v469 = vld [vmem:[%s341 + $0x378] sm:$0xff]
                %470 = vst [vmem:[%s342 + $0x1f8] sm:$0xff] %v469
                %v471 = vld [vmem:[%s341 + $0x400] sm:$0xff]
                %472 = vst [vmem:[%s342 + $0x200] sm:$0xff] %v471
                %v473 = vld [vmem:[%s341 + $0x408] sm:$0xff]
                %474 = vst [vmem:[%s342 + $0x208] sm:$0xff] %v473
                %v475 = vld [vmem:[%s341 + $0x410] sm:$0xff]
                %476 = vst [vmem:[%s342 + $0x210] sm:$0xff] %v475
                %v477 = vld [vmem:[%s341 + $0x418] sm:$0xff]
                %478 = vst [vmem:[%s342 + $0x218] sm:$0xff] %v477
                %v479 = vld [vmem:[%s341 + $0x420] sm:$0xff]
                %480 = vst [vmem:[%s342 + $0x220] sm:$0xff] %v479
                %v481 = vld [vmem:[%s341 + $0x428] sm:$0xff]
                %482 = vst [vmem:[%s342 + $0x228] sm:$0xff] %v481
                %v483 = vld [vmem:[%s341 + $0x430] sm:$0xff]
                %484 = vst [vmem:[%s342 + $0x230] sm:$0xff] %v483
                %v485 = vld [vmem:[%s341 + $0x438] sm:$0xff]
                %486 = vst [vmem:[%s342 + $0x238] sm:$0xff] %v485
                %v487 = vld [vmem:[%s341 + $0x440] sm:$0xff]
                %488 = vst [vmem:[%s342 + $0x240] sm:$0xff] %v487
                %v489 = vld [vmem:[%s341 + $0x448] sm:$0xff]
                %490 = vst [vmem:[%s342 + $0x248] sm:$0xff] %v489
                %v491 = vld [vmem:[%s341 + $0x450] sm:$0xff]
                %492 = vst [vmem:[%s342 + $0x250] sm:$0xff] %v491
                %v493 = vld [vmem:[%s341 + $0x458] sm:$0xff]
                %494 = vst [vmem:[%s342 + $0x258] sm:$0xff] %v493
                %v495 = vld [vmem:[%s341 + $0x460] sm:$0xff]
                %496 = vst [vmem:[%s342 + $0x260] sm:$0xff] %v495
                %v497 = vld [vmem:[%s341 + $0x468] sm:$0xff]
                %498 = vst [vmem:[%s342 + $0x268] sm:$0xff] %v497
                %v499 = vld [vmem:[%s341 + $0x470] sm:$0xff]
                %500 = vst [vmem:[%s342 + $0x270] sm:$0xff] %v499
                %v501 = vld [vmem:[%s341 + $0x478] sm:$0xff]
                %502 = vst [vmem:[%s342 + $0x278] sm:$0xff] %v501
                %v503 = vld [vmem:[%s341 + $0x500] sm:$0xff]
                %504 = vst [vmem:[%s342 + $0x280] sm:$0xff] %v503
                %v505 = vld [vmem:[%s341 + $0x508] sm:$0xff]
                %506 = vst [vmem:[%s342 + $0x288] sm:$0xff] %v505
                %v507 = vld [vmem:[%s341 + $0x510] sm:$0xff]
                %508 = vst [vmem:[%s342 + $0x290] sm:$0xff] %v507
                %v509 = vld [vmem:[%s341 + $0x518] sm:$0xff]
                %510 = vst [vmem:[%s342 + $0x298] sm:$0xff] %v509
                %v511 = vld [vmem:[%s341 + $0x520] sm:$0xff]
                %512 = vst [vmem:[%s342 + $0x2a0] sm:$0xff] %v511
                %v513 = vld [vmem:[%s341 + $0x528] sm:$0xff]
                %514 = vst [vmem:[%s342 + $0x2a8] sm:$0xff] %v513
                %v515 = vld [vmem:[%s341 + $0x530] sm:$0xff]
                %516 = vst [vmem:[%s342 + $0x2b0] sm:$0xff] %v515
                %v517 = vld [vmem:[%s341 + $0x538] sm:$0xff]
                %518 = vst [vmem:[%s342 + $0x2b8] sm:$0xff] %v517
                %v519 = vld [vmem:[%s341 + $0x540] sm:$0xff]
                %520 = vst [vmem:[%s342 + $0x2c0] sm:$0xff] %v519
                %v521 = vld [vmem:[%s341 + $0x548] sm:$0xff]
                %522 = vst [vmem:[%s342 + $0x2c8] sm:$0xff] %v521
                %v523 = vld [vmem:[%s341 + $0x550] sm:$0xff]
                %524 = vst [vmem:[%s342 + $0x2d0] sm:$0xff] %v523
                %v525 = vld [vmem:[%s341 + $0x558] sm:$0xff]
                %526 = vst [vmem:[%s342 + $0x2d8] sm:$0xff] %v525
                %v527 = vld [vmem:[%s341 + $0x560] sm:$0xff]
                %528 = vst [vmem:[%s342 + $0x2e0] sm:$0xff] %v527
                %v529 = vld [vmem:[%s341 + $0x568] sm:$0xff]
                %530 = vst [vmem:[%s342 + $0x2e8] sm:$0xff] %v529
                %v531 = vld [vmem:[%s341 + $0x570] sm:$0xff]
                %532 = vst [vmem:[%s342 + $0x2f0] sm:$0xff] %v531
                %v533 = vld [vmem:[%s341 + $0x578] sm:$0xff]
                %534 = vst [vmem:[%s342 + $0x2f8] sm:$0xff] %v533
                %v535 = vld [vmem:[%s341 + $0x600] sm:$0xff]
                %536 = vst [vmem:[%s342 + $0x300] sm:$0xff] %v535
                %v537 = vld [vmem:[%s341 + $0x608] sm:$0xff]
                %538 = vst [vmem:[%s342 + $0x308] sm:$0xff] %v537
                %v539 = vld [vmem:[%s341 + $0x610] sm:$0xff]
                %540 = vst [vmem:[%s342 + $0x310] sm:$0xff] %v539
                %v541 = vld [vmem:[%s341 + $0x618] sm:$0xff]
                %542 = vst [vmem:[%s342 + $0x318] sm:$0xff] %v541
                %v543 = vld [vmem:[%s341 + $0x620] sm:$0xff]
                %544 = vst [vmem:[%s342 + $0x320] sm:$0xff] %v543
                %v545 = vld [vmem:[%s341 + $0x628] sm:$0xff]
                %546 = vst [vmem:[%s342 + $0x328] sm:$0xff] %v545
                %v547 = vld [vmem:[%s341 + $0x630] sm:$0xff]
                %548 = vst [vmem:[%s342 + $0x330] sm:$0xff] %v547
                %v549 = vld [vmem:[%s341 + $0x638] sm:$0xff]
                %550 = vst [vmem:[%s342 + $0x338] sm:$0xff] %v549
                %v551 = vld [vmem:[%s341 + $0x640] sm:$0xff]
                %552 = vst [vmem:[%s342 + $0x340] sm:$0xff] %v551
                %v553 = vld [vmem:[%s341 + $0x648] sm:$0xff]
                %554 = vst [vmem:[%s342 + $0x348] sm:$0xff] %v553
                %v555 = vld [vmem:[%s341 + $0x650] sm:$0xff]
                %556 = vst [vmem:[%s342 + $0x350] sm:$0xff] %v555
                %v557 = vld [vmem:[%s341 + $0x658] sm:$0xff]
                %558 = vst [vmem:[%s342 + $0x358] sm:$0xff] %v557
                %v559 = vld [vmem:[%s341 + $0x660] sm:$0xff]
                %560 = vst [vmem:[%s342 + $0x360] sm:$0xff] %v559
                %v561 = vld [vmem:[%s341 + $0x668] sm:$0xff]
                %562 = vst [vmem:[%s342 + $0x368] sm:$0xff] %v561
                %v563 = vld [vmem:[%s341 + $0x670] sm:$0xff]
                %564 = vst [vmem:[%s342 + $0x370] sm:$0xff] %v563
                %v565 = vld [vmem:[%s341 + $0x678] sm:$0xff]
                %566 = vst [vmem:[%s342 + $0x378] sm:$0xff] %v565
                %v567 = vld [vmem:[%s341 + $0x700] sm:$0xff]
                %568 = vst [vmem:[%s342 + $0x380] sm:$0xff] %v567
                %v569 = vld [vmem:[%s341 + $0x708] sm:$0xff]
                %570 = vst [vmem:[%s342 + $0x388] sm:$0xff] %v569
                %v571 = vld [vmem:[%s341 + $0x710] sm:$0xff]
                %572 = vst [vmem:[%s342 + $0x390] sm:$0xff] %v571
                %v573 = vld [vmem:[%s341 + $0x718] sm:$0xff]
                %574 = vst [vmem:[%s342 + $0x398] sm:$0xff] %v573
                %v575 = vld [vmem:[%s341 + $0x720] sm:$0xff]
                %576 = vst [vmem:[%s342 + $0x3a0] sm:$0xff] %v575
                %v577 = vld [vmem:[%s341 + $0x728] sm:$0xff]
                %578 = vst [vmem:[%s342 + $0x3a8] sm:$0xff] %v577
                %v579 = vld [vmem:[%s341 + $0x730] sm:$0xff]
                %580 = vst [vmem:[%s342 + $0x3b0] sm:$0xff] %v579
                %v581 = vld [vmem:[%s341 + $0x738] sm:$0xff]
                %582 = vst [vmem:[%s342 + $0x3b8] sm:$0xff] %v581
                %v583 = vld [vmem:[%s341 + $0x740] sm:$0xff]
                %584 = vst [vmem:[%s342 + $0x3c0] sm:$0xff] %v583
                %v585 = vld [vmem:[%s341 + $0x748] sm:$0xff]
                %586 = vst [vmem:[%s342 + $0x3c8] sm:$0xff] %v585
                %v587 = vld [vmem:[%s341 + $0x750] sm:$0xff]
                %588 = vst [vmem:[%s342 + $0x3d0] sm:$0xff] %v587
                %v589 = vld [vmem:[%s341 + $0x758] sm:$0xff]
                %590 = vst [vmem:[%s342 + $0x3d8] sm:$0xff] %v589
                %v591 = vld [vmem:[%s341 + $0x760] sm:$0xff]
                %592 = vst [vmem:[%s342 + $0x3e0] sm:$0xff] %v591
                %v593 = vld [vmem:[%s341 + $0x768] sm:$0xff]
                %594 = vst [vmem:[%s342 + $0x3e8] sm:$0xff] %v593
                %v595 = vld [vmem:[%s341 + $0x770] sm:$0xff]
                %596 = vst [vmem:[%s342 + $0x3f0] sm:$0xff] %v595
                %v597 = vld [vmem:[%s341 + $0x778] sm:$0xff]
                %598 = vst [vmem:[%s342 + $0x3f8] sm:$0xff] %v597
              $region61: #{tpu_custom_call.1} parent=55 // loop_footer
                %s340 = sadd.s32 1, %s336
              $region62: #{tpu_custom_call.1} parent=55 // loop_footer_branch
                %335 = sbr.rel target = $region58
              $region63: #{tpu_custom_call.1} parent=55 // loop_exit
                _
            $region56: #{tpu_custom_call.1} parent=47 // pred_fallthru
              _
          $region48: #{tpu_custom_call.1} parent=43 // pred_fallthru
            _
          %867 = vnop
        $region44: #{tpu_custom_call.1} parent=39 // pred_fallthru
          _
        // Predicated region
        $region79: #{tpu_custom_call.1} parent=39 // pred_check
          %p868 = pneg %p69
        $region80: #{tpu_custom_call.1} parent=39 // pred_check_branch
          %870 = sbr.rel (%p868) target = $region82
        $region81: #{tpu_custom_call.1} parent=39 // pred_region
          #allocation17 [shape = 'u32[6]{0}', space=smem, size = 0x18, scoped, tag = 'DMA stride descriptor']
          %s871 = sand.u32 %s59, 1
          %s872 = scalar_lea.sflag [#allocation4], %s871
          %s873 = sand.u32 %s59, 1
          %s874 = smul.addr %s873, 3072
          %s875 = scalar_lea.vmem [#allocation3], %s874
          %s876 = smul.u32 16, %s23
          %s878 = ssub.s32 49152, 49152
          %879 = vsyncadd %s872, %s878
          %s880 = smul.addr %s876, 6
          %s881 = smul.addr %s880, 64
          %s882 = scalar_lea.hbm %s1, %s881
          %s884 = sshll.u32 1, 14
          %s885 = sxor.u32 4294967295, %s884
          %s887 = sld [smem:[#allocation0]]
          %s888 = sadd.s32 2, %s887
          %s890 = sshll.u32 7, 26
          %s891 = sxor.u32 4294967295, %s890
          %s892 = sand.u32 0, %s891
          %s893 = sshll.u32 %s888, 26
          %s894 = sor.u32 %s892, %s893
          %s895 = sshll.u32 %s875, 4
          %s896 = int_to_ptr.vmem [resolvable:$true] %s895
          %902 = sst [smem:[#allocation17]] 12288
          %s903 = scalar_lea.smem [#allocation17], 1
          %904 = sst [smem:[%s903]] 6144
          %s905 = scalar_lea.smem [#allocation17], 2
          %906 = sst [smem:[%s905]] 16
          %s907 = scalar_lea.smem [#allocation17], 3
          %908 = sst [smem:[%s907]] 384
          %s909 = scalar_lea.smem [#allocation17], 4
          %910 = sst [smem:[%s909]] 384
          %s911 = scalar_lea.smem [#allocation17], 5
          %912 = sst [smem:[%s911]] 24
          %914 = dma.general %s882, 49152, %s896, %s872, [#allocation16], [#allocation17], %s894, 0
        $region82: #{tpu_custom_call.1} parent=39 // pred_fallthru
          _
      $region40: #{tpu_custom_call.1} parent=5 // pred_fallthru
        _
      %p915 = scmp.le.s32.totalorder 1, %s23
      %p916 = scmp.lt.s32.totalorder %s23, 3
      %p917 = pnand %p915, %p916
      %p918 = pneg %p917
      // Predicated region
      $region83: #{tpu_custom_call.1} parent=5 // pred_check
        _
      $region84: #{tpu_custom_call.1} parent=5 // pred_check_branch
        %920 = sbr.rel (%p917) target = $region86
      $region85: #{tpu_custom_call.1} parent=5 // pred_region
        %s921 = ssub.s32 %s23, 1
        %s922 = sand.u32 %s36, 1
        %s923 = sand.u32 %s36, 1
        %s924 = smul.addr %s923, 1024
        %s925 = scalar_lea.vmem [#allocation2], %s924
        // Predicated region
        $region87: #{tpu_custom_call.1} parent=85 // pred_check
          %p926 = pneg %p49
        $region88: #{tpu_custom_call.1} parent=85 // pred_check_branch
          %928 = sbr.rel (%p926) target = $region90
        $region89: #{tpu_custom_call.1} parent=85 // pred_region
          _
        $region90: #{tpu_custom_call.1} parent=85 // pred_fallthru
          _
        %s929 = sand.u32 %s62, 1
        %s930 = scalar_lea.sflag [#allocation4], %s929
        %s931 = sand.u32 %s62, 1
        %s932 = smul.addr %s931, 3072
        %s933 = scalar_lea.vmem [#allocation3], %s932
        // Predicated region
        $region91: #{tpu_custom_call.1} parent=85 // pred_check
          %p934 = pneg %p75
        $region92: #{tpu_custom_call.1} parent=85 // pred_check_branch
          %936 = sbr.rel (%p934) target = $region94
        $region93: #{tpu_custom_call.1} parent=85 // pred_region
          %937 = dma.done %s930, 49152
        $region94: #{tpu_custom_call.1} parent=85 // pred_fallthru
          _
        // Predicated region
        $region95: #{tpu_custom_call.1} parent=85 // pred_check
          %p938 = pneg %p96
        $region96: #{tpu_custom_call.1} parent=85 // pred_check_branch
          %940 = sbr.rel (%p938) target = $region98
        $region97: #{tpu_custom_call.1} parent=85 // pred_region
          %941 = dma.done [#allocation7], 6144
        $region98: #{tpu_custom_call.1} parent=85 // pred_fallthru
          _
        // Predicated region
        $region99: #{tpu_custom_call.1} parent=85 // pred_check
          %p942 = pneg %p117
        $region100: #{tpu_custom_call.1} parent=85 // pred_check_branch
          %944 = sbr.rel (%p942) target = $region102
        $region101: #{tpu_custom_call.1} parent=85 // pred_region
          %945 = dma.done [#allocation7], 16
        $region102: #{tpu_custom_call.1} parent=85 // pred_fallthru
          _
        // Predicated region
        $region103: #{tpu_custom_call.1} parent=85 // pred_check
          %p946 = pneg %p138
        $region104: #{tpu_custom_call.1} parent=85 // pred_check_branch
          %948 = sbr.rel (%p946) target = $region106
        $region105: #{tpu_custom_call.1} parent=85 // pred_region
          %949 = dma.done [#allocation10], 1024
        $region106: #{tpu_custom_call.1} parent=85 // pred_fallthru
          _
        // Predicated region
        $region107: #{tpu_custom_call.1} parent=85 // pred_check
          %p950 = pneg %p159
        $region108: #{tpu_custom_call.1} parent=85 // pred_check_branch
          %952 = sbr.rel (%p950) target = $region110
        $region109: #{tpu_custom_call.1} parent=85 // pred_region
          %953 = dma.done [#allocation10], 1024
        $region110: #{tpu_custom_call.1} parent=85 // pred_fallthru
          _
        // Predicated region
        $region111: #{tpu_custom_call.1} parent=85 // pred_check
          %p954 = pneg %p180
        $region112: #{tpu_custom_call.1} parent=85 // pred_check_branch
          %956 = sbr.rel (%p954) target = $region114
        $region113: #{tpu_custom_call.1} parent=85 // pred_region
          %957 = dma.done [#allocation13], 16
        $region114: #{tpu_custom_call.1} parent=85 // pred_fallthru
          _
        // Predicated region
        $region115: #{tpu_custom_call.1} parent=85 // pred_check
          %p958 = pneg %p201
        $region116: #{tpu_custom_call.1} parent=85 // pred_check_branch
          %960 = sbr.rel (%p958) target = $region118
        $region117: #{tpu_custom_call.1} parent=85 // pred_region
          %961 = dma.done [#allocation13], 16
        $region118: #{tpu_custom_call.1} parent=85 // pred_fallthru
          _
        %s962 = sand.u32 %s36, 1
        %s963 = sand.u32 %s36, 1
        %s964 = smul.addr %s963, 1024
        %s965 = scalar_lea.vmem [#allocation2], %s964
        %p966 = pneg %p49
        %p967 = pneg %p46
        %s968 = sand.u32 %s62, 1
        %s969 = scalar_lea.sflag [#allocation4], %s968
        %s970 = sand.u32 %s62, 1
        %s971 = smul.addr %s970, 3072
        %s972 = scalar_lea.vmem [#allocation3], %s971
        %p973 = pneg %p75
        %p974 = pneg %p72
        %p975 = pneg %p96
        %p976 = pneg %p93
        %p977 = pneg %p117
        %p978 = pneg %p114
        %p979 = pneg %p138
        %p980 = pneg %p135
        %p981 = pneg %p159
        %p982 = pneg %p156
        %p983 = pneg %p180
        %p984 = pneg %p177
        %p985 = pneg %p201
        %p986 = pneg %p198
        %p987 = pneg %p227
        %p988 = pneg %p224
        %s989 = sand.u32 %s214, 1
        %s990 = scalar_lea.sflag [#allocation5], %s989
        %s991 = sand.u32 %s214, 1
        %s992 = smul.addr %s991, 128
        %s993 = scalar_lea.vmem [#allocation15], %s992
        %s994 = smul.u32 16, %s28
        %s995 = smul.u32 16, %s28
        %s996 = smul.u32 16, %s28
        %v998 = vld [vmem:[%s933] sm:$0xff]
        %v999 = vld [vmem:[%s933 + $0x8] sm:$0xff]
        %v1000 = vld [vmem:[%s933 + $0x10] sm:$0xff]
        %v1001 = vld [vmem:[%s933 + $0x18] sm:$0xff]
        %v1002 = vld [vmem:[%s933 + $0x20] sm:$0xff]
        %v1003 = vld [vmem:[%s933 + $0x28] sm:$0xff]
        %v1004 = vld [vmem:[%s933 + $0x30] sm:$0xff]
        %v1005 = vld [vmem:[%s933 + $0x38] sm:$0xff]
        %v1006 = vld [vmem:[%s933 + $0x40] sm:$0xff]
        %v1007 = vld [vmem:[%s933 + $0x48] sm:$0xff]
        %v1008 = vld [vmem:[%s933 + $0x50] sm:$0xff]
        %v1009 = vld [vmem:[%s933 + $0x58] sm:$0xff]
        %v1010 = vld [vmem:[%s933 + $0x60] sm:$0xff]
        %v1011 = vld [vmem:[%s933 + $0x68] sm:$0xff]
        %v1012 = vld [vmem:[%s933 + $0x70] sm:$0xff]
        %v1013 = vld [vmem:[%s933 + $0x78] sm:$0xff]
        %v1014 = vld [vmem:[%s933 + $0x80] sm:$0xff]
        %v1015 = vld [vmem:[%s933 + $0x88] sm:$0xff]
        %v1016 = vld [vmem:[%s933 + $0x90] sm:$0xff]
        %v1017 = vld [vmem:[%s933 + $0x98] sm:$0xff]
        %v1018 = vld [vmem:[%s933 + $0xa0] sm:$0xff]
        %v1019 = vld [vmem:[%s933 + $0xa8] sm:$0xff]
        %v1020 = vld [vmem:[%s933 + $0xb0] sm:$0xff]
        %v1021 = vld [vmem:[%s933 + $0xb8] sm:$0xff]
        %v1022 = vld [vmem:[%s933 + $0xc0] sm:$0xff]
        %v1023 = vld [vmem:[%s933 + $0xc8] sm:$0xff]
        %v1024 = vld [vmem:[%s933 + $0xd0] sm:$0xff]
        %v1025 = vld [vmem:[%s933 + $0xd8] sm:$0xff]
        %v1026 = vld [vmem:[%s933 + $0xe0] sm:$0xff]
        %v1027 = vld [vmem:[%s933 + $0xe8] sm:$0xff]
        %v1028 = vld [vmem:[%s933 + $0xf0] sm:$0xff]
        %v1029 = vld [vmem:[%s933 + $0xf8] sm:$0xff]
        %v1030 = vld [vmem:[%s933 + $0x100] sm:$0xff]
        %v1031 = vld [vmem:[%s933 + $0x108] sm:$0xff]
        %v1032 = vld [vmem:[%s933 + $0x110] sm:$0xff]
        %v1033 = vld [vmem:[%s933 + $0x118] sm:$0xff]
        %v1034 = vld [vmem:[%s933 + $0x120] sm:$0xff]
        %v1035 = vld [vmem:[%s933 + $0x128] sm:$0xff]
        %v1036 = vld [vmem:[%s933 + $0x130] sm:$0xff]
        %v1037 = vld [vmem:[%s933 + $0x138] sm:$0xff]
        %v1038 = vld [vmem:[%s933 + $0x140] sm:$0xff]
        %v1039 = vld [vmem:[%s933 + $0x148] sm:$0xff]
        %v1040 = vld [vmem:[%s933 + $0x150] sm:$0xff]
        %v1041 = vld [vmem:[%s933 + $0x158] sm:$0xff]
        %v1042 = vld [vmem:[%s933 + $0x160] sm:$0xff]
        %v1043 = vld [vmem:[%s933 + $0x168] sm:$0xff]
        %v1044 = vld [vmem:[%s933 + $0x170] sm:$0xff]
        %v1045 = vld [vmem:[%s933 + $0x178] sm:$0xff]
        %v1046 = vld [vmem:[%s933 + $0x180] sm:$0xff]
        %v1047 = vld [vmem:[%s933 + $0x188] sm:$0xff]
        %v1048 = vld [vmem:[%s933 + $0x190] sm:$0xff]
        %v1049 = vld [vmem:[%s933 + $0x198] sm:$0xff]
        %v1050 = vld [vmem:[%s933 + $0x1a0] sm:$0xff]
        %v1051 = vld [vmem:[%s933 + $0x1a8] sm:$0xff]
        %v1052 = vld [vmem:[%s933 + $0x1b0] sm:$0xff]
        %v1053 = vld [vmem:[%s933 + $0x1b8] sm:$0xff]
        %v1054 = vld [vmem:[%s933 + $0x1c0] sm:$0xff]
        %v1055 = vld [vmem:[%s933 + $0x1c8] sm:$0xff]
        %v1056 = vld [vmem:[%s933 + $0x1d0] sm:$0xff]
        %v1057 = vld [vmem:[%s933 + $0x1d8] sm:$0xff]
        %v1058 = vld [vmem:[%s933 + $0x1e0] sm:$0xff]
        %v1059 = vld [vmem:[%s933 + $0x1e8] sm:$0xff]
        %v1060 = vld [vmem:[%s933 + $0x1f0] sm:$0xff]
        %v1061 = vld [vmem:[%s933 + $0x1f8] sm:$0xff]
        %v1062 = vld [vmem:[%s933 + $0x200] sm:$0xff]
        %v1063 = vld [vmem:[%s933 + $0x208] sm:$0xff]
        %v1064 = vld [vmem:[%s933 + $0x210] sm:$0xff]
        %v1065 = vld [vmem:[%s933 + $0x218] sm:$0xff]
        %v1066 = vld [vmem:[%s933 + $0x220] sm:$0xff]
        %v1067 = vld [vmem:[%s933 + $0x228] sm:$0xff]
        %v1068 = vld [vmem:[%s933 + $0x230] sm:$0xff]
        %v1069 = vld [vmem:[%s933 + $0x238] sm:$0xff]
        %v1070 = vld [vmem:[%s933 + $0x240] sm:$0xff]
        %v1071 = vld [vmem:[%s933 + $0x248] sm:$0xff]
        %v1072 = vld [vmem:[%s933 + $0x250] sm:$0xff]
        %v1073 = vld [vmem:[%s933 + $0x258] sm:$0xff]
        %v1074 = vld [vmem:[%s933 + $0x260] sm:$0xff]
        %v1075 = vld [vmem:[%s933 + $0x268] sm:$0xff]
        %v1076 = vld [vmem:[%s933 + $0x270] sm:$0xff]
        %v1077 = vld [vmem:[%s933 + $0x278] sm:$0xff]
        %v1078 = vld [vmem:[%s933 + $0x280] sm:$0xff]
        %v1079 = vld [vmem:[%s933 + $0x288] sm:$0xff]
        %v1080 = vld [vmem:[%s933 + $0x290] sm:$0xff]
        %v1081 = vld [vmem:[%s933 + $0x298] sm:$0xff]
        %v1082 = vld [vmem:[%s933 + $0x2a0] sm:$0xff]
        %v1083 = vld [vmem:[%s933 + $0x2a8] sm:$0xff]
        %v1084 = vld [vmem:[%s933 + $0x2b0] sm:$0xff]
        %v1085 = vld [vmem:[%s933 + $0x2b8] sm:$0xff]
        %v1086 = vld [vmem:[%s933 + $0x2c0] sm:$0xff]
        %v1087 = vld [vmem:[%s933 + $0x2c8] sm:$0xff]
        %v1088 = vld [vmem:[%s933 + $0x2d0] sm:$0xff]
        %v1089 = vld [vmem:[%s933 + $0x2d8] sm:$0xff]
        %v1090 = vld [vmem:[%s933 + $0x2e0] sm:$0xff]
        %v1091 = vld [vmem:[%s933 + $0x2e8] sm:$0xff]
        %v1092 = vld [vmem:[%s933 + $0x2f0] sm:$0xff]
        %v1093 = vld [vmem:[%s933 + $0x2f8] sm:$0xff]
        %v1094 = vld [vmem:[%s933 + $0x300] sm:$0xff]
        %v1095 = vld [vmem:[%s933 + $0x308] sm:$0xff]
        %v1096 = vld [vmem:[%s933 + $0x310] sm:$0xff]
        %v1097 = vld [vmem:[%s933 + $0x318] sm:$0xff]
        %v1098 = vld [vmem:[%s933 + $0x320] sm:$0xff]
        %v1099 = vld [vmem:[%s933 + $0x328] sm:$0xff]
        %v1100 = vld [vmem:[%s933 + $0x330] sm:$0xff]
        %v1101 = vld [vmem:[%s933 + $0x338] sm:$0xff]
        %v1102 = vld [vmem:[%s933 + $0x340] sm:$0xff]
        %v1103 = vld [vmem:[%s933 + $0x348] sm:$0xff]
        %v1104 = vld [vmem:[%s933 + $0x350] sm:$0xff]
        %v1105 = vld [vmem:[%s933 + $0x358] sm:$0xff]
        %v1106 = vld [vmem:[%s933 + $0x360] sm:$0xff]
        %v1107 = vld [vmem:[%s933 + $0x368] sm:$0xff]
        %v1108 = vld [vmem:[%s933 + $0x370] sm:$0xff]
        %v1109 = vld [vmem:[%s933 + $0x378] sm:$0xff]
        %v1110 = vld [vmem:[%s933 + $0x380] sm:$0xff]
        %v1111 = vld [vmem:[%s933 + $0x388] sm:$0xff]
        %v1112 = vld [vmem:[%s933 + $0x390] sm:$0xff]
        %v1113 = vld [vmem:[%s933 + $0x398] sm:$0xff]
        %v1114 = vld [vmem:[%s933 + $0x3a0] sm:$0xff]
        %v1115 = vld [vmem:[%s933 + $0x3a8] sm:$0xff]
        %v1116 = vld [vmem:[%s933 + $0x3b0] sm:$0xff]
        %v1117 = vld [vmem:[%s933 + $0x3b8] sm:$0xff]
        %v1118 = vld [vmem:[%s933 + $0x3c0] sm:$0xff]
        %v1119 = vld [vmem:[%s933 + $0x3c8] sm:$0xff]
        %v1120 = vld [vmem:[%s933 + $0x3d0] sm:$0xff]
        %v1121 = vld [vmem:[%s933 + $0x3d8] sm:$0xff]
        %v1122 = vld [vmem:[%s933 + $0x3e0] sm:$0xff]
        %v1123 = vld [vmem:[%s933 + $0x3e8] sm:$0xff]
        %v1124 = vld [vmem:[%s933 + $0x3f0] sm:$0xff]
        %v1125 = vld [vmem:[%s933 + $0x3f8] sm:$0xff]
        %v1126 = vld [vmem:[%s933 + $0x400] sm:$0xff]
        %v1127 = vld [vmem:[%s933 + $0x408] sm:$0xff]
        %v1128 = vld [vmem:[%s933 + $0x410] sm:$0xff]
        %v1129 = vld [vmem:[%s933 + $0x418] sm:$0xff]
        %v1130 = vld [vmem:[%s933 + $0x420] sm:$0xff]
        %v1131 = vld [vmem:[%s933 + $0x428] sm:$0xff]
        %v1132 = vld [vmem:[%s933 + $0x430] sm:$0xff]
        %v1133 = vld [vmem:[%s933 + $0x438] sm:$0xff]
        %v1134 = vld [vmem:[%s933 + $0x440] sm:$0xff]
        %v1135 = vld [vmem:[%s933 + $0x448] sm:$0xff]
        %v1136 = vld [vmem:[%s933 + $0x450] sm:$0xff]
        %v1137 = vld [vmem:[%s933 + $0x458] sm:$0xff]
        %v1138 = vld [vmem:[%s933 + $0x460] sm:$0xff]
        %v1139 = vld [vmem:[%s933 + $0x468] sm:$0xff]
        %v1140 = vld [vmem:[%s933 + $0x470] sm:$0xff]
        %v1141 = vld [vmem:[%s933 + $0x478] sm:$0xff]
        %v1142 = vld [vmem:[%s933 + $0x480] sm:$0xff]
        %v1143 = vld [vmem:[%s933 + $0x488] sm:$0xff]
        %v1144 = vld [vmem:[%s933 + $0x490] sm:$0xff]
        %v1145 = vld [vmem:[%s933 + $0x498] sm:$0xff]
        %v1146 = vld [vmem:[%s933 + $0x4a0] sm:$0xff]
        %v1147 = vld [vmem:[%s933 + $0x4a8] sm:$0xff]
        %v1148 = vld [vmem:[%s933 + $0x4b0] sm:$0xff]
        %v1149 = vld [vmem:[%s933 + $0x4b8] sm:$0xff]
        %v1150 = vld [vmem:[%s933 + $0x4c0] sm:$0xff]
        %v1151 = vld [vmem:[%s933 + $0x4c8] sm:$0xff]
        %v1152 = vld [vmem:[%s933 + $0x4d0] sm:$0xff]
        %v1153 = vld [vmem:[%s933 + $0x4d8] sm:$0xff]
        %v1154 = vld [vmem:[%s933 + $0x4e0] sm:$0xff]
        %v1155 = vld [vmem:[%s933 + $0x4e8] sm:$0xff]
        %v1156 = vld [vmem:[%s933 + $0x4f0] sm:$0xff]
        %v1157 = vld [vmem:[%s933 + $0x4f8] sm:$0xff]
        %v1158 = vld [vmem:[%s933 + $0x500] sm:$0xff]
        %v1159 = vld [vmem:[%s933 + $0x508] sm:$0xff]
        %v1160 = vld [vmem:[%s933 + $0x510] sm:$0xff]
        %v1161 = vld [vmem:[%s933 + $0x518] sm:$0xff]
        %v1162 = vld [vmem:[%s933 + $0x520] sm:$0xff]
        %v1163 = vld [vmem:[%s933 + $0x528] sm:$0xff]
        %v1164 = vld [vmem:[%s933 + $0x530] sm:$0xff]
        %v1165 = vld [vmem:[%s933 + $0x538] sm:$0xff]
        %v1166 = vld [vmem:[%s933 + $0x540] sm:$0xff]
        %v1167 = vld [vmem:[%s933 + $0x548] sm:$0xff]
        %v1168 = vld [vmem:[%s933 + $0x550] sm:$0xff]
        %v1169 = vld [vmem:[%s933 + $0x558] sm:$0xff]
        %v1170 = vld [vmem:[%s933 + $0x560] sm:$0xff]
        %v1171 = vld [vmem:[%s933 + $0x568] sm:$0xff]
        %v1172 = vld [vmem:[%s933 + $0x570] sm:$0xff]
        %v1173 = vld [vmem:[%s933 + $0x578] sm:$0xff]
        %v1174 = vld [vmem:[%s933 + $0x580] sm:$0xff]
        %v1175 = vld [vmem:[%s933 + $0x588] sm:$0xff]
        %v1176 = vld [vmem:[%s933 + $0x590] sm:$0xff]
        %v1177 = vld [vmem:[%s933 + $0x598] sm:$0xff]
        %v1178 = vld [vmem:[%s933 + $0x5a0] sm:$0xff]
        %v1179 = vld [vmem:[%s933 + $0x5a8] sm:$0xff]
        %v1180 = vld [vmem:[%s933 + $0x5b0] sm:$0xff]
        %v1181 = vld [vmem:[%s933 + $0x5b8] sm:$0xff]
        %v1182 = vld [vmem:[%s933 + $0x5c0] sm:$0xff]
        %v1183 = vld [vmem:[%s933 + $0x5c8] sm:$0xff]
        %v1184 = vld [vmem:[%s933 + $0x5d0] sm:$0xff]
        %v1185 = vld [vmem:[%s933 + $0x5d8] sm:$0xff]
        %v1186 = vld [vmem:[%s933 + $0x5e0] sm:$0xff]
        %v1187 = vld [vmem:[%s933 + $0x5e8] sm:$0xff]
        %v1188 = vld [vmem:[%s933 + $0x5f0] sm:$0xff]
        %v1189 = vld [vmem:[%s933 + $0x5f8] sm:$0xff]
        %v1190 = vld [vmem:[%s933 + $0x600] sm:$0xff]
        %v1191 = vld [vmem:[%s933 + $0x608] sm:$0xff]
        %v1192 = vld [vmem:[%s933 + $0x610] sm:$0xff]
        %v1193 = vld [vmem:[%s933 + $0x618] sm:$0xff]
        %v1194 = vld [vmem:[%s933 + $0x620] sm:$0xff]
        %v1195 = vld [vmem:[%s933 + $0x628] sm:$0xff]
        %v1196 = vld [vmem:[%s933 + $0x630] sm:$0xff]
        %v1197 = vld [vmem:[%s933 + $0x638] sm:$0xff]
        %v1198 = vld [vmem:[%s933 + $0x640] sm:$0xff]
        %v1199 = vld [vmem:[%s933 + $0x648] sm:$0xff]
        %v1200 = vld [vmem:[%s933 + $0x650] sm:$0xff]
        %v1201 = vld [vmem:[%s933 + $0x658] sm:$0xff]
        %v1202 = vld [vmem:[%s933 + $0x660] sm:$0xff]
        %v1203 = vld [vmem:[%s933 + $0x668] sm:$0xff]
        %v1204 = vld [vmem:[%s933 + $0x670] sm:$0xff]
        %v1205 = vld [vmem:[%s933 + $0x678] sm:$0xff]
        %v1206 = vld [vmem:[%s933 + $0x680] sm:$0xff]
        %v1207 = vld [vmem:[%s933 + $0x688] sm:$0xff]
        %v1208 = vld [vmem:[%s933 + $0x690] sm:$0xff]
        %v1209 = vld [vmem:[%s933 + $0x698] sm:$0xff]
        %v1210 = vld [vmem:[%s933 + $0x6a0] sm:$0xff]
        %v1211 = vld [vmem:[%s933 + $0x6a8] sm:$0xff]
        %v1212 = vld [vmem:[%s933 + $0x6b0] sm:$0xff]
        %v1213 = vld [vmem:[%s933 + $0x6b8] sm:$0xff]
        %v1214 = vld [vmem:[%s933 + $0x6c0] sm:$0xff]
        %v1215 = vld [vmem:[%s933 + $0x6c8] sm:$0xff]
        %v1216 = vld [vmem:[%s933 + $0x6d0] sm:$0xff]
        %v1217 = vld [vmem:[%s933 + $0x6d8] sm:$0xff]
        %v1218 = vld [vmem:[%s933 + $0x6e0] sm:$0xff]
        %v1219 = vld [vmem:[%s933 + $0x6e8] sm:$0xff]
        %v1220 = vld [vmem:[%s933 + $0x6f0] sm:$0xff]
        %v1221 = vld [vmem:[%s933 + $0x6f8] sm:$0xff]
        %v1222 = vld [vmem:[%s933 + $0x700] sm:$0xff]
        %v1223 = vld [vmem:[%s933 + $0x708] sm:$0xff]
        %v1224 = vld [vmem:[%s933 + $0x710] sm:$0xff]
        %v1225 = vld [vmem:[%s933 + $0x718] sm:$0xff]
        %v1226 = vld [vmem:[%s933 + $0x720] sm:$0xff]
        %v1227 = vld [vmem:[%s933 + $0x728] sm:$0xff]
        %v1228 = vld [vmem:[%s933 + $0x730] sm:$0xff]
        %v1229 = vld [vmem:[%s933 + $0x738] sm:$0xff]
        %v1230 = vld [vmem:[%s933 + $0x740] sm:$0xff]
        %v1231 = vld [vmem:[%s933 + $0x748] sm:$0xff]
        %v1232 = vld [vmem:[%s933 + $0x750] sm:$0xff]
        %v1233 = vld [vmem:[%s933 + $0x758] sm:$0xff]
        %v1234 = vld [vmem:[%s933 + $0x760] sm:$0xff]
        %v1235 = vld [vmem:[%s933 + $0x768] sm:$0xff]
        %v1236 = vld [vmem:[%s933 + $0x770] sm:$0xff]
        %v1237 = vld [vmem:[%s933 + $0x778] sm:$0xff]
        %v1238 = vld [vmem:[%s933 + $0x780] sm:$0xff]
        %v1239 = vld [vmem:[%s933 + $0x788] sm:$0xff]
        %v1240 = vld [vmem:[%s933 + $0x790] sm:$0xff]
        %v1241 = vld [vmem:[%s933 + $0x798] sm:$0xff]
        %v1242 = vld [vmem:[%s933 + $0x7a0] sm:$0xff]
        %v1243 = vld [vmem:[%s933 + $0x7a8] sm:$0xff]
        %v1244 = vld [vmem:[%s933 + $0x7b0] sm:$0xff]
        %v1245 = vld [vmem:[%s933 + $0x7b8] sm:$0xff]
        %v1246 = vld [vmem:[%s933 + $0x7c0] sm:$0xff]
        %v1247 = vld [vmem:[%s933 + $0x7c8] sm:$0xff]
        %v1248 = vld [vmem:[%s933 + $0x7d0] sm:$0xff]
        %v1249 = vld [vmem:[%s933 + $0x7d8] sm:$0xff]
        %v1250 = vld [vmem:[%s933 + $0x7e0] sm:$0xff]
        %v1251 = vld [vmem:[%s933 + $0x7e8] sm:$0xff]
        %v1252 = vld [vmem:[%s933 + $0x7f0] sm:$0xff]
        %v1253 = vld [vmem:[%s933 + $0x7f8] sm:$0xff]
        %v1254 = vld [vmem:[%s933 + $0x800] sm:$0xff]
        %v1255 = vld [vmem:[%s933 + $0x808] sm:$0xff]
        %v1256 = vld [vmem:[%s933 + $0x810] sm:$0xff]
        %v1257 = vld [vmem:[%s933 + $0x818] sm:$0xff]
        %v1258 = vld [vmem:[%s933 + $0x820] sm:$0xff]
        %v1259 = vld [vmem:[%s933 + $0x828] sm:$0xff]
        %v1260 = vld [vmem:[%s933 + $0x830] sm:$0xff]
        %v1261 = vld [vmem:[%s933 + $0x838] sm:$0xff]
        %v1262 = vld [vmem:[%s933 + $0x840] sm:$0xff]
        %v1263 = vld [vmem:[%s933 + $0x848] sm:$0xff]
        %v1264 = vld [vmem:[%s933 + $0x850] sm:$0xff]
        %v1265 = vld [vmem:[%s933 + $0x858] sm:$0xff]
        %v1266 = vld [vmem:[%s933 + $0x860] sm:$0xff]
        %v1267 = vld [vmem:[%s933 + $0x868] sm:$0xff]
        %v1268 = vld [vmem:[%s933 + $0x870] sm:$0xff]
        %v1269 = vld [vmem:[%s933 + $0x878] sm:$0xff]
        %v1270 = vld [vmem:[%s933 + $0x880] sm:$0xff]
        %v1271 = vld [vmem:[%s933 + $0x888] sm:$0xff]
        %v1272 = vld [vmem:[%s933 + $0x890] sm:$0xff]
        %v1273 = vld [vmem:[%s933 + $0x898] sm:$0xff]
        %v1274 = vld [vmem:[%s933 + $0x8a0] sm:$0xff]
        %v1275 = vld [vmem:[%s933 + $0x8a8] sm:$0xff]
        %v1276 = vld [vmem:[%s933 + $0x8b0] sm:$0xff]
        %v1277 = vld [vmem:[%s933 + $0x8b8] sm:$0xff]
        %v1278 = vld [vmem:[%s933 + $0x8c0] sm:$0xff]
        %v1279 = vld [vmem:[%s933 + $0x8c8] sm:$0xff]
        %v1280 = vld [vmem:[%s933 + $0x8d0] sm:$0xff]
        %v1281 = vld [vmem:[%s933 + $0x8d8] sm:$0xff]
        %v1282 = vld [vmem:[%s933 + $0x8e0] sm:$0xff]
        %v1283 = vld [vmem:[%s933 + $0x8e8] sm:$0xff]
        %v1284 = vld [vmem:[%s933 + $0x8f0] sm:$0xff]
        %v1285 = vld [vmem:[%s933 + $0x8f8] sm:$0xff]
        %v1286 = vld [vmem:[%s933 + $0x900] sm:$0xff]
        %v1287 = vld [vmem:[%s933 + $0x908] sm:$0xff]
        %v1288 = vld [vmem:[%s933 + $0x910] sm:$0xff]
        %v1289 = vld [vmem:[%s933 + $0x918] sm:$0xff]
        %v1290 = vld [vmem:[%s933 + $0x920] sm:$0xff]
        %v1291 = vld [vmem:[%s933 + $0x928] sm:$0xff]
        %v1292 = vld [vmem:[%s933 + $0x930] sm:$0xff]
        %v1293 = vld [vmem:[%s933 + $0x938] sm:$0xff]
        %v1294 = vld [vmem:[%s933 + $0x940] sm:$0xff]
        %v1295 = vld [vmem:[%s933 + $0x948] sm:$0xff]
        %v1296 = vld [vmem:[%s933 + $0x950] sm:$0xff]
        %v1297 = vld [vmem:[%s933 + $0x958] sm:$0xff]
        %v1298 = vld [vmem:[%s933 + $0x960] sm:$0xff]
        %v1299 = vld [vmem:[%s933 + $0x968] sm:$0xff]
        %v1300 = vld [vmem:[%s933 + $0x970] sm:$0xff]
        %v1301 = vld [vmem:[%s933 + $0x978] sm:$0xff]
        %v1302 = vld [vmem:[%s933 + $0x980] sm:$0xff]
        %v1303 = vld [vmem:[%s933 + $0x988] sm:$0xff]
        %v1304 = vld [vmem:[%s933 + $0x990] sm:$0xff]
        %v1305 = vld [vmem:[%s933 + $0x998] sm:$0xff]
        %v1306 = vld [vmem:[%s933 + $0x9a0] sm:$0xff]
        %v1307 = vld [vmem:[%s933 + $0x9a8] sm:$0xff]
        %v1308 = vld [vmem:[%s933 + $0x9b0] sm:$0xff]
        %v1309 = vld [vmem:[%s933 + $0x9b8] sm:$0xff]
        %v1310 = vld [vmem:[%s933 + $0x9c0] sm:$0xff]
        %v1311 = vld [vmem:[%s933 + $0x9c8] sm:$0xff]
        %v1312 = vld [vmem:[%s933 + $0x9d0] sm:$0xff]
        %v1313 = vld [vmem:[%s933 + $0x9d8] sm:$0xff]
        %v1314 = vld [vmem:[%s933 + $0x9e0] sm:$0xff]
        %v1315 = vld [vmem:[%s933 + $0x9e8] sm:$0xff]
        %v1316 = vld [vmem:[%s933 + $0x9f0] sm:$0xff]
        %v1317 = vld [vmem:[%s933 + $0x9f8] sm:$0xff]
        %v1318 = vld [vmem:[%s933 + $0xa00] sm:$0xff]
        %v1319 = vld [vmem:[%s933 + $0xa08] sm:$0xff]
        %v1320 = vld [vmem:[%s933 + $0xa10] sm:$0xff]
        %v1321 = vld [vmem:[%s933 + $0xa18] sm:$0xff]
        %v1322 = vld [vmem:[%s933 + $0xa20] sm:$0xff]
        %v1323 = vld [vmem:[%s933 + $0xa28] sm:$0xff]
        %v1324 = vld [vmem:[%s933 + $0xa30] sm:$0xff]
        %v1325 = vld [vmem:[%s933 + $0xa38] sm:$0xff]
        %v1326 = vld [vmem:[%s933 + $0xa40] sm:$0xff]
        %v1327 = vld [vmem:[%s933 + $0xa48] sm:$0xff]
        %v1328 = vld [vmem:[%s933 + $0xa50] sm:$0xff]
        %v1329 = vld [vmem:[%s933 + $0xa58] sm:$0xff]
        %v1330 = vld [vmem:[%s933 + $0xa60] sm:$0xff]
        %v1331 = vld [vmem:[%s933 + $0xa68] sm:$0xff]
        %v1332 = vld [vmem:[%s933 + $0xa70] sm:$0xff]
        %v1333 = vld [vmem:[%s933 + $0xa78] sm:$0xff]
        %v1334 = vld [vmem:[%s933 + $0xa80] sm:$0xff]
        %v1335 = vld [vmem:[%s933 + $0xa88] sm:$0xff]
        %v1336 = vld [vmem:[%s933 + $0xa90] sm:$0xff]
        %v1337 = vld [vmem:[%s933 + $0xa98] sm:$0xff]
        %v1338 = vld [vmem:[%s933 + $0xaa0] sm:$0xff]
        %v1339 = vld [vmem:[%s933 + $0xaa8] sm:$0xff]
        %v1340 = vld [vmem:[%s933 + $0xab0] sm:$0xff]
        %v1341 = vld [vmem:[%s933 + $0xab8] sm:$0xff]
        %v1342 = vld [vmem:[%s933 + $0xac0] sm:$0xff]
        %v1343 = vld [vmem:[%s933 + $0xac8] sm:$0xff]
        %v1344 = vld [vmem:[%s933 + $0xad0] sm:$0xff]
        %v1345 = vld [vmem:[%s933 + $0xad8] sm:$0xff]
        %v1346 = vld [vmem:[%s933 + $0xae0] sm:$0xff]
        %v1347 = vld [vmem:[%s933 + $0xae8] sm:$0xff]
        %v1348 = vld [vmem:[%s933 + $0xaf0] sm:$0xff]
        %v1349 = vld [vmem:[%s933 + $0xaf8] sm:$0xff]
        %v1350 = vld [vmem:[%s933 + $0xb00] sm:$0xff]
        %v1351 = vld [vmem:[%s933 + $0xb08] sm:$0xff]
        %v1352 = vld [vmem:[%s933 + $0xb10] sm:$0xff]
        %v1353 = vld [vmem:[%s933 + $0xb18] sm:$0xff]
        %v1354 = vld [vmem:[%s933 + $0xb20] sm:$0xff]
        %v1355 = vld [vmem:[%s933 + $0xb28] sm:$0xff]
        %v1356 = vld [vmem:[%s933 + $0xb30] sm:$0xff]
        %v1357 = vld [vmem:[%s933 + $0xb38] sm:$0xff]
        %v1358 = vld [vmem:[%s933 + $0xb40] sm:$0xff]
        %v1359 = vld [vmem:[%s933 + $0xb48] sm:$0xff]
        %v1360 = vld [vmem:[%s933 + $0xb50] sm:$0xff]
        %v1361 = vld [vmem:[%s933 + $0xb58] sm:$0xff]
        %v1362 = vld [vmem:[%s933 + $0xb60] sm:$0xff]
        %v1363 = vld [vmem:[%s933 + $0xb68] sm:$0xff]
        %v1364 = vld [vmem:[%s933 + $0xb70] sm:$0xff]
        %v1365 = vld [vmem:[%s933 + $0xb78] sm:$0xff]
        %v1366 = vld [vmem:[%s933 + $0xb80] sm:$0xff]
        %v1367 = vld [vmem:[%s933 + $0xb88] sm:$0xff]
        %v1368 = vld [vmem:[%s933 + $0xb90] sm:$0xff]
        %v1369 = vld [vmem:[%s933 + $0xb98] sm:$0xff]
        %v1370 = vld [vmem:[%s933 + $0xba0] sm:$0xff]
        %v1371 = vld [vmem:[%s933 + $0xba8] sm:$0xff]
        %v1372 = vld [vmem:[%s933 + $0xbb0] sm:$0xff]
        %v1373 = vld [vmem:[%s933 + $0xbb8] sm:$0xff]
        %v1374 = vld [vmem:[%s933 + $0xbc0] sm:$0xff]
        %v1375 = vld [vmem:[%s933 + $0xbc8] sm:$0xff]
        %v1376 = vld [vmem:[%s933 + $0xbd0] sm:$0xff]
        %v1377 = vld [vmem:[%s933 + $0xbd8] sm:$0xff]
        %v1378 = vld [vmem:[%s933 + $0xbe0] sm:$0xff]
        %v1379 = vld [vmem:[%s933 + $0xbe8] sm:$0xff]
        %v1380 = vld [vmem:[%s933 + $0xbf0] sm:$0xff]
        %v1381 = vld [vmem:[%s933 + $0xbf8] sm:$0xff]
        %v1382 = vld [vmem:[#allocation6] sm:$0xf]
        %v1383 = vld [vmem:[#allocation6 + $0x4] sm:$0xf]
        %v1384 = vld [vmem:[#allocation6 + $0x8] sm:$0xf]
        %v1385 = vld [vmem:[#allocation6 + $0xc] sm:$0xf]
        %v1386 = vld [vmem:[#allocation6 + $0x10] sm:$0xf]
        %v1387 = vld [vmem:[#allocation6 + $0x14] sm:$0xf]
        %v1388 = vld [vmem:[#allocation6 + $0x18] sm:$0xf]
        %v1389 = vld [vmem:[#allocation6 + $0x1c] sm:$0xf]
        %v1390 = vld [vmem:[#allocation6 + $0x20] sm:$0xf]
        %v1391 = vld [vmem:[#allocation6 + $0x24] sm:$0xf]
        %v1392 = vld [vmem:[#allocation6 + $0x28] sm:$0xf]
        %v1393 = vld [vmem:[#allocation6 + $0x2c] sm:$0xf]
        %v1394 = vld [vmem:[#allocation6 + $0x30] sm:$0xf]
        %v1395 = vld [vmem:[#allocation6 + $0x34] sm:$0xf]
        %v1396 = vld [vmem:[#allocation6 + $0x38] sm:$0xf]
        %v1397 = vld [vmem:[#allocation6 + $0x3c] sm:$0xf]
        %v1398 = vld [vmem:[#allocation6 + $0x40] sm:$0xf]
        %v1399 = vld [vmem:[#allocation6 + $0x44] sm:$0xf]
        %v1400 = vld [vmem:[#allocation6 + $0x48] sm:$0xf]
        %v1401 = vld [vmem:[#allocation6 + $0x4c] sm:$0xf]
        %v1402 = vld [vmem:[#allocation6 + $0x50] sm:$0xf]
        %v1403 = vld [vmem:[#allocation6 + $0x54] sm:$0xf]
        %v1404 = vld [vmem:[#allocation6 + $0x58] sm:$0xf]
        %v1405 = vld [vmem:[#allocation6 + $0x5c] sm:$0xf]
        %v1406 = vld [vmem:[#allocation6 + $0x60] sm:$0xf]
        %v1407 = vld [vmem:[#allocation6 + $0x64] sm:$0xf]
        %v1408 = vld [vmem:[#allocation6 + $0x68] sm:$0xf]
        %v1409 = vld [vmem:[#allocation6 + $0x6c] sm:$0xf]
        %v1410 = vld [vmem:[#allocation6 + $0x70] sm:$0xf]
        %v1411 = vld [vmem:[#allocation6 + $0x74] sm:$0xf]
        %v1412 = vld [vmem:[#allocation6 + $0x78] sm:$0xf]
        %v1413 = vld [vmem:[#allocation6 + $0x7c] sm:$0xf]
        %v1414 = vld [vmem:[#allocation6 + $0x80] sm:$0xf]
        %v1415 = vld [vmem:[#allocation6 + $0x84] sm:$0xf]
        %v1416 = vld [vmem:[#allocation6 + $0x88] sm:$0xf]
        %v1417 = vld [vmem:[#allocation6 + $0x8c] sm:$0xf]
        %v1418 = vld [vmem:[#allocation6 + $0x90] sm:$0xf]
        %v1419 = vld [vmem:[#allocation6 + $0x94] sm:$0xf]
        %v1420 = vld [vmem:[#allocation6 + $0x98] sm:$0xf]
        %v1421 = vld [vmem:[#allocation6 + $0x9c] sm:$0xf]
        %v1422 = vld [vmem:[#allocation6 + $0xa0] sm:$0xf]
        %v1423 = vld [vmem:[#allocation6 + $0xa4] sm:$0xf]
        %v1424 = vld [vmem:[#allocation6 + $0xa8] sm:$0xf]
        %v1425 = vld [vmem:[#allocation6 + $0xac] sm:$0xf]
        %v1426 = vld [vmem:[#allocation6 + $0xb0] sm:$0xf]
        %v1427 = vld [vmem:[#allocation6 + $0xb4] sm:$0xf]
        %v1428 = vld [vmem:[#allocation6 + $0xb8] sm:$0xf]
        %v1429 = vld [vmem:[#allocation6 + $0xbc] sm:$0xf]
        %v1430 = vld [vmem:[#allocation6 + $0xc0] sm:$0xf]
        %v1431 = vld [vmem:[#allocation6 + $0xc4] sm:$0xf]
        %v1432 = vld [vmem:[#allocation6 + $0xc8] sm:$0xf]
        %v1433 = vld [vmem:[#allocation6 + $0xcc] sm:$0xf]
        %v1434 = vld [vmem:[#allocation6 + $0xd0] sm:$0xf]
        %v1435 = vld [vmem:[#allocation6 + $0xd4] sm:$0xf]
        %v1436 = vld [vmem:[#allocation6 + $0xd8] sm:$0xf]
        %v1437 = vld [vmem:[#allocation6 + $0xdc] sm:$0xf]
        %v1438 = vld [vmem:[#allocation6 + $0xe0] sm:$0xf]
        %v1439 = vld [vmem:[#allocation6 + $0xe4] sm:$0xf]
        %v1440 = vld [vmem:[#allocation6 + $0xe8] sm:$0xf]
        %v1441 = vld [vmem:[#allocation6 + $0xec] sm:$0xf]
        %v1442 = vld [vmem:[#allocation6 + $0xf0] sm:$0xf]
        %v1443 = vld [vmem:[#allocation6 + $0xf4] sm:$0xf]
        %v1444 = vld [vmem:[#allocation6 + $0xf8] sm:$0xf]
        %v1445 = vld [vmem:[#allocation6 + $0xfc] sm:$0xf]
        %v1446 = vld [vmem:[#allocation6 + $0x100] sm:$0xf]
        %v1447 = vld [vmem:[#allocation6 + $0x104] sm:$0xf]
        %v1448 = vld [vmem:[#allocation6 + $0x108] sm:$0xf]
        %v1449 = vld [vmem:[#allocation6 + $0x10c] sm:$0xf]
        %v1450 = vld [vmem:[#allocation6 + $0x110] sm:$0xf]
        %v1451 = vld [vmem:[#allocation6 + $0x114] sm:$0xf]
        %v1452 = vld [vmem:[#allocation6 + $0x118] sm:$0xf]
        %v1453 = vld [vmem:[#allocation6 + $0x11c] sm:$0xf]
        %v1454 = vld [vmem:[#allocation6 + $0x120] sm:$0xf]
        %v1455 = vld [vmem:[#allocation6 + $0x124] sm:$0xf]
        %v1456 = vld [vmem:[#allocation6 + $0x128] sm:$0xf]
        %v1457 = vld [vmem:[#allocation6 + $0x12c] sm:$0xf]
        %v1458 = vld [vmem:[#allocation6 + $0x130] sm:$0xf]
        %v1459 = vld [vmem:[#allocation6 + $0x134] sm:$0xf]
        %v1460 = vld [vmem:[#allocation6 + $0x138] sm:$0xf]
        %v1461 = vld [vmem:[#allocation6 + $0x13c] sm:$0xf]
        %v1462 = vld [vmem:[#allocation6 + $0x140] sm:$0xf]
        %v1463 = vld [vmem:[#allocation6 + $0x144] sm:$0xf]
        %v1464 = vld [vmem:[#allocation6 + $0x148] sm:$0xf]
        %v1465 = vld [vmem:[#allocation6 + $0x14c] sm:$0xf]
        %v1466 = vld [vmem:[#allocation6 + $0x150] sm:$0xf]
        %v1467 = vld [vmem:[#allocation6 + $0x154] sm:$0xf]
        %v1468 = vld [vmem:[#allocation6 + $0x158] sm:$0xf]
        %v1469 = vld [vmem:[#allocation6 + $0x15c] sm:$0xf]
        %v1470 = vld [vmem:[#allocation6 + $0x160] sm:$0xf]
        %v1471 = vld [vmem:[#allocation6 + $0x164] sm:$0xf]
        %v1472 = vld [vmem:[#allocation6 + $0x168] sm:$0xf]
        %v1473 = vld [vmem:[#allocation6 + $0x16c] sm:$0xf]
        %v1474 = vld [vmem:[#allocation6 + $0x170] sm:$0xf]
        %v1475 = vld [vmem:[#allocation6 + $0x174] sm:$0xf]
        %v1476 = vld [vmem:[#allocation6 + $0x178] sm:$0xf]
        %v1477 = vld [vmem:[#allocation6 + $0x17c] sm:$0xf]
        %v1478 = vld [vmem:[#allocation8] sm:$0x1]
        %v1480 = vlaneseq
        %v1481 = vshrl.u32 %v1480, 7
        %v1482 = vsub.s32 0, %v1481
        %v1483 = vrot.slane %v1478, %v1482
        %v1869 = vunpack.c.l.b16 %v998
        %v1870 = vunpack.c.h.b16 %v998
        %v1871 = vunpack.c.l.b16 %v999
        %v1872 = vunpack.c.h.b16 %v999
        %v1873 = vunpack.c.l.b16 %v1000
        %v1874 = vunpack.c.h.b16 %v1000
        %v1875 = vunpack.c.l.b16 %v1001
        %v1876 = vunpack.c.h.b16 %v1001
        %v1877 = vunpack.c.l.b16 %v1002
        %v1878 = vunpack.c.h.b16 %v1002
        %v1879 = vunpack.c.l.b16 %v1003
        %v1880 = vunpack.c.h.b16 %v1003
        %v1881 = vunpack.c.l.b16 %v1004
        %v1882 = vunpack.c.h.b16 %v1004
        %v1883 = vunpack.c.l.b16 %v1005
        %v1884 = vunpack.c.h.b16 %v1005
        %v1885 = vunpack.c.l.b16 %v1006
        %v1886 = vunpack.c.h.b16 %v1006
        %v1887 = vunpack.c.l.b16 %v1007
        %v1888 = vunpack.c.h.b16 %v1007
        %v1889 = vunpack.c.l.b16 %v1008
        %v1890 = vunpack.c.h.b16 %v1008
        %v1891 = vunpack.c.l.b16 %v1009
        %v1892 = vunpack.c.h.b16 %v1009
        %v1893 = vunpack.c.l.b16 %v1010
        %v1894 = vunpack.c.h.b16 %v1010
        %v1895 = vunpack.c.l.b16 %v1011
        %v1896 = vunpack.c.h.b16 %v1011
        %v1897 = vunpack.c.l.b16 %v1012
        %v1898 = vunpack.c.h.b16 %v1012
        %v1899 = vunpack.c.l.b16 %v1013
        %v1900 = vunpack.c.h.b16 %v1013
        %v1901 = vunpack.c.l.b16 %v1014
        %v1902 = vunpack.c.h.b16 %v1014
        %v1903 = vunpack.c.l.b16 %v1015
        %v1904 = vunpack.c.h.b16 %v1015
        %v1905 = vunpack.c.l.b16 %v1016
        %v1906 = vunpack.c.h.b16 %v1016
        %v1907 = vunpack.c.l.b16 %v1017
        %v1908 = vunpack.c.h.b16 %v1017
        %v1909 = vunpack.c.l.b16 %v1018
        %v1910 = vunpack.c.h.b16 %v1018
        %v1911 = vunpack.c.l.b16 %v1019
        %v1912 = vunpack.c.h.b16 %v1019
        %v1913 = vunpack.c.l.b16 %v1020
        %v1914 = vunpack.c.h.b16 %v1020
        %v1915 = vunpack.c.l.b16 %v1021
        %v1916 = vunpack.c.h.b16 %v1021
        %v1917 = vunpack.c.l.b16 %v1022
        %v1918 = vunpack.c.h.b16 %v1022
        %v1919 = vunpack.c.l.b16 %v1023
        %v1920 = vunpack.c.h.b16 %v1023
        %v1921 = vunpack.c.l.b16 %v1024
        %v1922 = vunpack.c.h.b16 %v1024
        %v1923 = vunpack.c.l.b16 %v1025
        %v1924 = vunpack.c.h.b16 %v1025
        %v1925 = vunpack.c.l.b16 %v1026
        %v1926 = vunpack.c.h.b16 %v1026
        %v1927 = vunpack.c.l.b16 %v1027
        %v1928 = vunpack.c.h.b16 %v1027
        %v1929 = vunpack.c.l.b16 %v1028
        %v1930 = vunpack.c.h.b16 %v1028
        %v1931 = vunpack.c.l.b16 %v1029
        %v1932 = vunpack.c.h.b16 %v1029
        %v1933 = vunpack.c.l.b16 %v1030
        %v1934 = vunpack.c.h.b16 %v1030
        %v1935 = vunpack.c.l.b16 %v1031
        %v1936 = vunpack.c.h.b16 %v1031
        %v1937 = vunpack.c.l.b16 %v1032
        %v1938 = vunpack.c.h.b16 %v1032
        %v1939 = vunpack.c.l.b16 %v1033
        %v1940 = vunpack.c.h.b16 %v1033
        %v1941 = vunpack.c.l.b16 %v1034
        %v1942 = vunpack.c.h.b16 %v1034
        %v1943 = vunpack.c.l.b16 %v1035
        %v1944 = vunpack.c.h.b16 %v1035
        %v1945 = vunpack.c.l.b16 %v1036
        %v1946 = vunpack.c.h.b16 %v1036
        %v1947 = vunpack.c.l.b16 %v1037
        %v1948 = vunpack.c.h.b16 %v1037
        %v1949 = vunpack.c.l.b16 %v1038
        %v1950 = vunpack.c.h.b16 %v1038
        %v1951 = vunpack.c.l.b16 %v1039
        %v1952 = vunpack.c.h.b16 %v1039
        %v1953 = vunpack.c.l.b16 %v1040
        %v1954 = vunpack.c.h.b16 %v1040
        %v1955 = vunpack.c.l.b16 %v1041
        %v1956 = vunpack.c.h.b16 %v1041
        %v1957 = vunpack.c.l.b16 %v1042
        %v1958 = vunpack.c.h.b16 %v1042
        %v1959 = vunpack.c.l.b16 %v1043
        %v1960 = vunpack.c.h.b16 %v1043
        %v1961 = vunpack.c.l.b16 %v1044
        %v1962 = vunpack.c.h.b16 %v1044
        %v1963 = vunpack.c.l.b16 %v1045
        %v1964 = vunpack.c.h.b16 %v1045
        %v1965 = vunpack.c.l.b16 %v1046
        %v1966 = vunpack.c.h.b16 %v1046
        %v1967 = vunpack.c.l.b16 %v1047
        %v1968 = vunpack.c.h.b16 %v1047
        %v1969 = vunpack.c.l.b16 %v1048
        %v1970 = vunpack.c.h.b16 %v1048
        %v1971 = vunpack.c.l.b16 %v1049
        %v1972 = vunpack.c.h.b16 %v1049
        %v1973 = vunpack.c.l.b16 %v1050
        %v1974 = vunpack.c.h.b16 %v1050
        %v1975 = vunpack.c.l.b16 %v1051
        %v1976 = vunpack.c.h.b16 %v1051
        %v1977 = vunpack.c.l.b16 %v1052
        %v1978 = vunpack.c.h.b16 %v1052
        %v1979 = vunpack.c.l.b16 %v1053
        %v1980 = vunpack.c.h.b16 %v1053
        %v1981 = vunpack.c.l.b16 %v1054
        %v1982 = vunpack.c.h.b16 %v1054
        %v1983 = vunpack.c.l.b16 %v1055
        %v1984 = vunpack.c.h.b16 %v1055
        %v1985 = vunpack.c.l.b16 %v1056
        %v1986 = vunpack.c.h.b16 %v1056
        %v1987 = vunpack.c.l.b16 %v1057
        %v1988 = vunpack.c.h.b16 %v1057
        %v1989 = vunpack.c.l.b16 %v1058
        %v1990 = vunpack.c.h.b16 %v1058
        %v1991 = vunpack.c.l.b16 %v1059
        %v1992 = vunpack.c.h.b16 %v1059
        %v1993 = vunpack.c.l.b16 %v1060
        %v1994 = vunpack.c.h.b16 %v1060
        %v1995 = vunpack.c.l.b16 %v1061
        %v1996 = vunpack.c.h.b16 %v1061
        %v1997 = vunpack.c.l.b16 %v1062
        %v1998 = vunpack.c.h.b16 %v1062
        %v1999 = vunpack.c.l.b16 %v1063
        %v2000 = vunpack.c.h.b16 %v1063
        %v2001 = vunpack.c.l.b16 %v1064
        %v2002 = vunpack.c.h.b16 %v1064
        %v2003 = vunpack.c.l.b16 %v1065
        %v2004 = vunpack.c.h.b16 %v1065
        %v2005 = vunpack.c.l.b16 %v1066
        %v2006 = vunpack.c.h.b16 %v1066
        %v2007 = vunpack.c.l.b16 %v1067
        %v2008 = vunpack.c.h.b16 %v1067
        %v2009 = vunpack.c.l.b16 %v1068
        %v2010 = vunpack.c.h.b16 %v1068
        %v2011 = vunpack.c.l.b16 %v1069
        %v2012 = vunpack.c.h.b16 %v1069
        %v2013 = vunpack.c.l.b16 %v1070
        %v2014 = vunpack.c.h.b16 %v1070
        %v2015 = vunpack.c.l.b16 %v1071
        %v2016 = vunpack.c.h.b16 %v1071
        %v2017 = vunpack.c.l.b16 %v1072
        %v2018 = vunpack.c.h.b16 %v1072
        %v2019 = vunpack.c.l.b16 %v1073
        %v2020 = vunpack.c.h.b16 %v1073
        %v2021 = vunpack.c.l.b16 %v1074
        %v2022 = vunpack.c.h.b16 %v1074
        %v2023 = vunpack.c.l.b16 %v1075
        %v2024 = vunpack.c.h.b16 %v1075
        %v2025 = vunpack.c.l.b16 %v1076
        %v2026 = vunpack.c.h.b16 %v1076
        %v2027 = vunpack.c.l.b16 %v1077
        %v2028 = vunpack.c.h.b16 %v1077
        %v2029 = vunpack.c.l.b16 %v1078
        %v2030 = vunpack.c.h.b16 %v1078
        %v2031 = vunpack.c.l.b16 %v1079
        %v2032 = vunpack.c.h.b16 %v1079
        %v2033 = vunpack.c.l.b16 %v1080
        %v2034 = vunpack.c.h.b16 %v1080
        %v2035 = vunpack.c.l.b16 %v1081
        %v2036 = vunpack.c.h.b16 %v1081
        %v2037 = vunpack.c.l.b16 %v1082
        %v2038 = vunpack.c.h.b16 %v1082
        %v2039 = vunpack.c.l.b16 %v1083
        %v2040 = vunpack.c.h.b16 %v1083
        %v2041 = vunpack.c.l.b16 %v1084
        %v2042 = vunpack.c.h.b16 %v1084
        %v2043 = vunpack.c.l.b16 %v1085
        %v2044 = vunpack.c.h.b16 %v1085
        %v2045 = vunpack.c.l.b16 %v1086
        %v2046 = vunpack.c.h.b16 %v1086
        %v2047 = vunpack.c.l.b16 %v1087
        %v2048 = vunpack.c.h.b16 %v1087
        %v2049 = vunpack.c.l.b16 %v1088
        %v2050 = vunpack.c.h.b16 %v1088
        %v2051 = vunpack.c.l.b16 %v1089
        %v2052 = vunpack.c.h.b16 %v1089
        %v2053 = vunpack.c.l.b16 %v1090
        %v2054 = vunpack.c.h.b16 %v1090
        %v2055 = vunpack.c.l.b16 %v1091
        %v2056 = vunpack.c.h.b16 %v1091
        %v2057 = vunpack.c.l.b16 %v1092
        %v2058 = vunpack.c.h.b16 %v1092
        %v2059 = vunpack.c.l.b16 %v1093
        %v2060 = vunpack.c.h.b16 %v1093
        %v2061 = vunpack.c.l.b16 %v1094
        %v2062 = vunpack.c.h.b16 %v1094
        %v2063 = vunpack.c.l.b16 %v1095
        %v2064 = vunpack.c.h.b16 %v1095
        %v2065 = vunpack.c.l.b16 %v1096
        %v2066 = vunpack.c.h.b16 %v1096
        %v2067 = vunpack.c.l.b16 %v1097
        %v2068 = vunpack.c.h.b16 %v1097
        %v2069 = vunpack.c.l.b16 %v1098
        %v2070 = vunpack.c.h.b16 %v1098
        %v2071 = vunpack.c.l.b16 %v1099
        %v2072 = vunpack.c.h.b16 %v1099
        %v2073 = vunpack.c.l.b16 %v1100
        %v2074 = vunpack.c.h.b16 %v1100
        %v2075 = vunpack.c.l.b16 %v1101
        %v2076 = vunpack.c.h.b16 %v1101
        %v2077 = vunpack.c.l.b16 %v1102
        %v2078 = vunpack.c.h.b16 %v1102
        %v2079 = vunpack.c.l.b16 %v1103
        %v2080 = vunpack.c.h.b16 %v1103
        %v2081 = vunpack.c.l.b16 %v1104
        %v2082 = vunpack.c.h.b16 %v1104
        %v2083 = vunpack.c.l.b16 %v1105
        %v2084 = vunpack.c.h.b16 %v1105
        %v2085 = vunpack.c.l.b16 %v1106
        %v2086 = vunpack.c.h.b16 %v1106
        %v2087 = vunpack.c.l.b16 %v1107
        %v2088 = vunpack.c.h.b16 %v1107
        %v2089 = vunpack.c.l.b16 %v1108
        %v2090 = vunpack.c.h.b16 %v1108
        %v2091 = vunpack.c.l.b16 %v1109
        %v2092 = vunpack.c.h.b16 %v1109
        %v2093 = vunpack.c.l.b16 %v1110
        %v2094 = vunpack.c.h.b16 %v1110
        %v2095 = vunpack.c.l.b16 %v1111
        %v2096 = vunpack.c.h.b16 %v1111
        %v2097 = vunpack.c.l.b16 %v1112
        %v2098 = vunpack.c.h.b16 %v1112
        %v2099 = vunpack.c.l.b16 %v1113
        %v2100 = vunpack.c.h.b16 %v1113
        %v2101 = vunpack.c.l.b16 %v1114
        %v2102 = vunpack.c.h.b16 %v1114
        %v2103 = vunpack.c.l.b16 %v1115
        %v2104 = vunpack.c.h.b16 %v1115
        %v2105 = vunpack.c.l.b16 %v1116
        %v2106 = vunpack.c.h.b16 %v1116
        %v2107 = vunpack.c.l.b16 %v1117
        %v2108 = vunpack.c.h.b16 %v1117
        %v2109 = vunpack.c.l.b16 %v1118
        %v2110 = vunpack.c.h.b16 %v1118
        %v2111 = vunpack.c.l.b16 %v1119
        %v2112 = vunpack.c.h.b16 %v1119
        %v2113 = vunpack.c.l.b16 %v1120
        %v2114 = vunpack.c.h.b16 %v1120
        %v2115 = vunpack.c.l.b16 %v1121
        %v2116 = vunpack.c.h.b16 %v1121
        %v2117 = vunpack.c.l.b16 %v1122
        %v2118 = vunpack.c.h.b16 %v1122
        %v2119 = vunpack.c.l.b16 %v1123
        %v2120 = vunpack.c.h.b16 %v1123
        %v2121 = vunpack.c.l.b16 %v1124
        %v2122 = vunpack.c.h.b16 %v1124
        %v2123 = vunpack.c.l.b16 %v1125
        %v2124 = vunpack.c.h.b16 %v1125
        %v2125 = vunpack.c.l.b16 %v1126
        %v2126 = vunpack.c.h.b16 %v1126
        %v2127 = vunpack.c.l.b16 %v1127
        %v2128 = vunpack.c.h.b16 %v1127
        %v2129 = vunpack.c.l.b16 %v1128
        %v2130 = vunpack.c.h.b16 %v1128
        %v2131 = vunpack.c.l.b16 %v1129
        %v2132 = vunpack.c.h.b16 %v1129
        %v2133 = vunpack.c.l.b16 %v1130
        %v2134 = vunpack.c.h.b16 %v1130
        %v2135 = vunpack.c.l.b16 %v1131
        %v2136 = vunpack.c.h.b16 %v1131
        %v2137 = vunpack.c.l.b16 %v1132
        %v2138 = vunpack.c.h.b16 %v1132
        %v2139 = vunpack.c.l.b16 %v1133
        %v2140 = vunpack.c.h.b16 %v1133
        %v2141 = vunpack.c.l.b16 %v1134
        %v2142 = vunpack.c.h.b16 %v1134
        %v2143 = vunpack.c.l.b16 %v1135
        %v2144 = vunpack.c.h.b16 %v1135
        %v2145 = vunpack.c.l.b16 %v1136
        %v2146 = vunpack.c.h.b16 %v1136
        %v2147 = vunpack.c.l.b16 %v1137
        %v2148 = vunpack.c.h.b16 %v1137
        %v2149 = vunpack.c.l.b16 %v1138
        %v2150 = vunpack.c.h.b16 %v1138
        %v2151 = vunpack.c.l.b16 %v1139
        %v2152 = vunpack.c.h.b16 %v1139
        %v2153 = vunpack.c.l.b16 %v1140
        %v2154 = vunpack.c.h.b16 %v1140
        %v2155 = vunpack.c.l.b16 %v1141
        %v2156 = vunpack.c.h.b16 %v1141
        %v2157 = vunpack.c.l.b16 %v1142
        %v2158 = vunpack.c.h.b16 %v1142
        %v2159 = vunpack.c.l.b16 %v1143
        %v2160 = vunpack.c.h.b16 %v1143
        %v2161 = vunpack.c.l.b16 %v1144
        %v2162 = vunpack.c.h.b16 %v1144
        %v2163 = vunpack.c.l.b16 %v1145
        %v2164 = vunpack.c.h.b16 %v1145
        %v2165 = vunpack.c.l.b16 %v1146
        %v2166 = vunpack.c.h.b16 %v1146
        %v2167 = vunpack.c.l.b16 %v1147
        %v2168 = vunpack.c.h.b16 %v1147
        %v2169 = vunpack.c.l.b16 %v1148
        %v2170 = vunpack.c.h.b16 %v1148
        %v2171 = vunpack.c.l.b16 %v1149
        %v2172 = vunpack.c.h.b16 %v1149
        %v2173 = vunpack.c.l.b16 %v1150
        %v2174 = vunpack.c.h.b16 %v1150
        %v2175 = vunpack.c.l.b16 %v1151
        %v2176 = vunpack.c.h.b16 %v1151
        %v2177 = vunpack.c.l.b16 %v1152
        %v2178 = vunpack.c.h.b16 %v1152
        %v2179 = vunpack.c.l.b16 %v1153
        %v2180 = vunpack.c.h.b16 %v1153
        %v2181 = vunpack.c.l.b16 %v1154
        %v2182 = vunpack.c.h.b16 %v1154
        %v2183 = vunpack.c.l.b16 %v1155
        %v2184 = vunpack.c.h.b16 %v1155
        %v2185 = vunpack.c.l.b16 %v1156
        %v2186 = vunpack.c.h.b16 %v1156
        %v2187 = vunpack.c.l.b16 %v1157
        %v2188 = vunpack.c.h.b16 %v1157
        %v2189 = vunpack.c.l.b16 %v1158
        %v2190 = vunpack.c.h.b16 %v1158
        %v2191 = vunpack.c.l.b16 %v1159
        %v2192 = vunpack.c.h.b16 %v1159
        %v2193 = vunpack.c.l.b16 %v1160
        %v2194 = vunpack.c.h.b16 %v1160
        %v2195 = vunpack.c.l.b16 %v1161
        %v2196 = vunpack.c.h.b16 %v1161
        %v2197 = vunpack.c.l.b16 %v1162
        %v2198 = vunpack.c.h.b16 %v1162
        %v2199 = vunpack.c.l.b16 %v1163
        %v2200 = vunpack.c.h.b16 %v1163
        %v2201 = vunpack.c.l.b16 %v1164
        %v2202 = vunpack.c.h.b16 %v1164
        %v2203 = vunpack.c.l.b16 %v1165
        %v2204 = vunpack.c.h.b16 %v1165
        %v2205 = vunpack.c.l.b16 %v1166
        %v2206 = vunpack.c.h.b16 %v1166
        %v2207 = vunpack.c.l.b16 %v1167
        %v2208 = vunpack.c.h.b16 %v1167
        %v2209 = vunpack.c.l.b16 %v1168
        %v2210 = vunpack.c.h.b16 %v1168
        %v2211 = vunpack.c.l.b16 %v1169
        %v2212 = vunpack.c.h.b16 %v1169
        %v2213 = vunpack.c.l.b16 %v1170
        %v2214 = vunpack.c.h.b16 %v1170
        %v2215 = vunpack.c.l.b16 %v1171
        %v2216 = vunpack.c.h.b16 %v1171
        %v2217 = vunpack.c.l.b16 %v1172
        %v2218 = vunpack.c.h.b16 %v1172
        %v2219 = vunpack.c.l.b16 %v1173
        %v2220 = vunpack.c.h.b16 %v1173
        %v2221 = vunpack.c.l.b16 %v1174
        %v2222 = vunpack.c.h.b16 %v1174
        %v2223 = vunpack.c.l.b16 %v1175
        %v2224 = vunpack.c.h.b16 %v1175
        %v2225 = vunpack.c.l.b16 %v1176
        %v2226 = vunpack.c.h.b16 %v1176
        %v2227 = vunpack.c.l.b16 %v1177
        %v2228 = vunpack.c.h.b16 %v1177
        %v2229 = vunpack.c.l.b16 %v1178
        %v2230 = vunpack.c.h.b16 %v1178
        %v2231 = vunpack.c.l.b16 %v1179
        %v2232 = vunpack.c.h.b16 %v1179
        %v2233 = vunpack.c.l.b16 %v1180
        %v2234 = vunpack.c.h.b16 %v1180
        %v2235 = vunpack.c.l.b16 %v1181
        %v2236 = vunpack.c.h.b16 %v1181
        %v2237 = vunpack.c.l.b16 %v1182
        %v2238 = vunpack.c.h.b16 %v1182
        %v2239 = vunpack.c.l.b16 %v1183
        %v2240 = vunpack.c.h.b16 %v1183
        %v2241 = vunpack.c.l.b16 %v1184
        %v2242 = vunpack.c.h.b16 %v1184
        %v2243 = vunpack.c.l.b16 %v1185
        %v2244 = vunpack.c.h.b16 %v1185
        %v2245 = vunpack.c.l.b16 %v1186
        %v2246 = vunpack.c.h.b16 %v1186
        %v2247 = vunpack.c.l.b16 %v1187
        %v2248 = vunpack.c.h.b16 %v1187
        %v2249 = vunpack.c.l.b16 %v1188
        %v2250 = vunpack.c.h.b16 %v1188
        %v2251 = vunpack.c.l.b16 %v1189
        %v2252 = vunpack.c.h.b16 %v1189
        %v2253 = vunpack.c.l.b16 %v1190
        %v2254 = vunpack.c.h.b16 %v1190
        %v2255 = vunpack.c.l.b16 %v1191
        %v2256 = vunpack.c.h.b16 %v1191
        %v2257 = vunpack.c.l.b16 %v1192
        %v2258 = vunpack.c.h.b16 %v1192
        %v2259 = vunpack.c.l.b16 %v1193
        %v2260 = vunpack.c.h.b16 %v1193
        %v2261 = vunpack.c.l.b16 %v1194
        %v2262 = vunpack.c.h.b16 %v1194
        %v2263 = vunpack.c.l.b16 %v1195
        %v2264 = vunpack.c.h.b16 %v1195
        %v2265 = vunpack.c.l.b16 %v1196
        %v2266 = vunpack.c.h.b16 %v1196
        %v2267 = vunpack.c.l.b16 %v1197
        %v2268 = vunpack.c.h.b16 %v1197
        %v2269 = vunpack.c.l.b16 %v1198
        %v2270 = vunpack.c.h.b16 %v1198
        %v2271 = vunpack.c.l.b16 %v1199
        %v2272 = vunpack.c.h.b16 %v1199
        %v2273 = vunpack.c.l.b16 %v1200
        %v2274 = vunpack.c.h.b16 %v1200
        %v2275 = vunpack.c.l.b16 %v1201
        %v2276 = vunpack.c.h.b16 %v1201
        %v2277 = vunpack.c.l.b16 %v1202
        %v2278 = vunpack.c.h.b16 %v1202
        %v2279 = vunpack.c.l.b16 %v1203
        %v2280 = vunpack.c.h.b16 %v1203
        %v2281 = vunpack.c.l.b16 %v1204
        %v2282 = vunpack.c.h.b16 %v1204
        %v2283 = vunpack.c.l.b16 %v1205
        %v2284 = vunpack.c.h.b16 %v1205
        %v2285 = vunpack.c.l.b16 %v1206
        %v2286 = vunpack.c.h.b16 %v1206
        %v2287 = vunpack.c.l.b16 %v1207
        %v2288 = vunpack.c.h.b16 %v1207
        %v2289 = vunpack.c.l.b16 %v1208
        %v2290 = vunpack.c.h.b16 %v1208
        %v2291 = vunpack.c.l.b16 %v1209
        %v2292 = vunpack.c.h.b16 %v1209
        %v2293 = vunpack.c.l.b16 %v1210
        %v2294 = vunpack.c.h.b16 %v1210
        %v2295 = vunpack.c.l.b16 %v1211
        %v2296 = vunpack.c.h.b16 %v1211
        %v2297 = vunpack.c.l.b16 %v1212
        %v2298 = vunpack.c.h.b16 %v1212
        %v2299 = vunpack.c.l.b16 %v1213
        %v2300 = vunpack.c.h.b16 %v1213
        %v2301 = vunpack.c.l.b16 %v1214
        %v2302 = vunpack.c.h.b16 %v1214
        %v2303 = vunpack.c.l.b16 %v1215
        %v2304 = vunpack.c.h.b16 %v1215
        %v2305 = vunpack.c.l.b16 %v1216
        %v2306 = vunpack.c.h.b16 %v1216
        %v2307 = vunpack.c.l.b16 %v1217
        %v2308 = vunpack.c.h.b16 %v1217
        %v2309 = vunpack.c.l.b16 %v1218
        %v2310 = vunpack.c.h.b16 %v1218
        %v2311 = vunpack.c.l.b16 %v1219
        %v2312 = vunpack.c.h.b16 %v1219
        %v2313 = vunpack.c.l.b16 %v1220
        %v2314 = vunpack.c.h.b16 %v1220
        %v2315 = vunpack.c.l.b16 %v1221
        %v2316 = vunpack.c.h.b16 %v1221
        %v2317 = vunpack.c.l.b16 %v1222
        %v2318 = vunpack.c.h.b16 %v1222
        %v2319 = vunpack.c.l.b16 %v1223
        %v2320 = vunpack.c.h.b16 %v1223
        %v2321 = vunpack.c.l.b16 %v1224
        %v2322 = vunpack.c.h.b16 %v1224
        %v2323 = vunpack.c.l.b16 %v1225
        %v2324 = vunpack.c.h.b16 %v1225
        %v2325 = vunpack.c.l.b16 %v1226
        %v2326 = vunpack.c.h.b16 %v1226
        %v2327 = vunpack.c.l.b16 %v1227
        %v2328 = vunpack.c.h.b16 %v1227
        %v2329 = vunpack.c.l.b16 %v1228
        %v2330 = vunpack.c.h.b16 %v1228
        %v2331 = vunpack.c.l.b16 %v1229
        %v2332 = vunpack.c.h.b16 %v1229
        %v2333 = vunpack.c.l.b16 %v1230
        %v2334 = vunpack.c.h.b16 %v1230
        %v2335 = vunpack.c.l.b16 %v1231
        %v2336 = vunpack.c.h.b16 %v1231
        %v2337 = vunpack.c.l.b16 %v1232
        %v2338 = vunpack.c.h.b16 %v1232
        %v2339 = vunpack.c.l.b16 %v1233
        %v2340 = vunpack.c.h.b16 %v1233
        %v2341 = vunpack.c.l.b16 %v1234
        %v2342 = vunpack.c.h.b16 %v1234
        %v2343 = vunpack.c.l.b16 %v1235
        %v2344 = vunpack.c.h.b16 %v1235
        %v2345 = vunpack.c.l.b16 %v1236
        %v2346 = vunpack.c.h.b16 %v1236
        %v2347 = vunpack.c.l.b16 %v1237
        %v2348 = vunpack.c.h.b16 %v1237
        %v2349 = vunpack.c.l.b16 %v1238
        %v2350 = vunpack.c.h.b16 %v1238
        %v2351 = vunpack.c.l.b16 %v1239
        %v2352 = vunpack.c.h.b16 %v1239
        %v2353 = vunpack.c.l.b16 %v1240
        %v2354 = vunpack.c.h.b16 %v1240
        %v2355 = vunpack.c.l.b16 %v1241
        %v2356 = vunpack.c.h.b16 %v1241
        %v2357 = vunpack.c.l.b16 %v1242
        %v2358 = vunpack.c.h.b16 %v1242
        %v2359 = vunpack.c.l.b16 %v1243
        %v2360 = vunpack.c.h.b16 %v1243
        %v2361 = vunpack.c.l.b16 %v1244
        %v2362 = vunpack.c.h.b16 %v1244
        %v2363 = vunpack.c.l.b16 %v1245
        %v2364 = vunpack.c.h.b16 %v1245
        %v2365 = vunpack.c.l.b16 %v1246
        %v2366 = vunpack.c.h.b16 %v1246
        %v2367 = vunpack.c.l.b16 %v1247
        %v2368 = vunpack.c.h.b16 %v1247
        %v2369 = vunpack.c.l.b16 %v1248
        %v2370 = vunpack.c.h.b16 %v1248
        %v2371 = vunpack.c.l.b16 %v1249
        %v2372 = vunpack.c.h.b16 %v1249
        %v2373 = vunpack.c.l.b16 %v1250
        %v2374 = vunpack.c.h.b16 %v1250
        %v2375 = vunpack.c.l.b16 %v1251
        %v2376 = vunpack.c.h.b16 %v1251
        %v2377 = vunpack.c.l.b16 %v1252
        %v2378 = vunpack.c.h.b16 %v1252
        %v2379 = vunpack.c.l.b16 %v1253
        %v2380 = vunpack.c.h.b16 %v1253
        %v2381 = vunpack.c.l.b16 %v1254
        %v2382 = vunpack.c.h.b16 %v1254
        %v2383 = vunpack.c.l.b16 %v1255
        %v2384 = vunpack.c.h.b16 %v1255
        %v2385 = vunpack.c.l.b16 %v1256
        %v2386 = vunpack.c.h.b16 %v1256
        %v2387 = vunpack.c.l.b16 %v1257
        %v2388 = vunpack.c.h.b16 %v1257
        %v2389 = vunpack.c.l.b16 %v1258
        %v2390 = vunpack.c.h.b16 %v1258
        %v2391 = vunpack.c.l.b16 %v1259
        %v2392 = vunpack.c.h.b16 %v1259
        %v2393 = vunpack.c.l.b16 %v1260
        %v2394 = vunpack.c.h.b16 %v1260
        %v2395 = vunpack.c.l.b16 %v1261
        %v2396 = vunpack.c.h.b16 %v1261
        %v2397 = vunpack.c.l.b16 %v1262
        %v2398 = vunpack.c.h.b16 %v1262
        %v2399 = vunpack.c.l.b16 %v1263
        %v2400 = vunpack.c.h.b16 %v1263
        %v2401 = vunpack.c.l.b16 %v1264
        %v2402 = vunpack.c.h.b16 %v1264
        %v2403 = vunpack.c.l.b16 %v1265
        %v2404 = vunpack.c.h.b16 %v1265
        %v2405 = vunpack.c.l.b16 %v1266
        %v2406 = vunpack.c.h.b16 %v1266
        %v2407 = vunpack.c.l.b16 %v1267
        %v2408 = vunpack.c.h.b16 %v1267
        %v2409 = vunpack.c.l.b16 %v1268
        %v2410 = vunpack.c.h.b16 %v1268
        %v2411 = vunpack.c.l.b16 %v1269
        %v2412 = vunpack.c.h.b16 %v1269
        %v2413 = vunpack.c.l.b16 %v1270
        %v2414 = vunpack.c.h.b16 %v1270
        %v2415 = vunpack.c.l.b16 %v1271
        %v2416 = vunpack.c.h.b16 %v1271
        %v2417 = vunpack.c.l.b16 %v1272
        %v2418 = vunpack.c.h.b16 %v1272
        %v2419 = vunpack.c.l.b16 %v1273
        %v2420 = vunpack.c.h.b16 %v1273
        %v2421 = vunpack.c.l.b16 %v1274
        %v2422 = vunpack.c.h.b16 %v1274
        %v2423 = vunpack.c.l.b16 %v1275
        %v2424 = vunpack.c.h.b16 %v1275
        %v2425 = vunpack.c.l.b16 %v1276
        %v2426 = vunpack.c.h.b16 %v1276
        %v2427 = vunpack.c.l.b16 %v1277
        %v2428 = vunpack.c.h.b16 %v1277
        %v2429 = vunpack.c.l.b16 %v1278
        %v2430 = vunpack.c.h.b16 %v1278
        %v2431 = vunpack.c.l.b16 %v1279
        %v2432 = vunpack.c.h.b16 %v1279
        %v2433 = vunpack.c.l.b16 %v1280
        %v2434 = vunpack.c.h.b16 %v1280
        %v2435 = vunpack.c.l.b16 %v1281
        %v2436 = vunpack.c.h.b16 %v1281
        %v2437 = vunpack.c.l.b16 %v1282
        %v2438 = vunpack.c.h.b16 %v1282
        %v2439 = vunpack.c.l.b16 %v1283
        %v2440 = vunpack.c.h.b16 %v1283
        %v2441 = vunpack.c.l.b16 %v1284
        %v2442 = vunpack.c.h.b16 %v1284
        %v2443 = vunpack.c.l.b16 %v1285
        %v2444 = vunpack.c.h.b16 %v1285
        %v2445 = vunpack.c.l.b16 %v1286
        %v2446 = vunpack.c.h.b16 %v1286
        %v2447 = vunpack.c.l.b16 %v1287
        %v2448 = vunpack.c.h.b16 %v1287
        %v2449 = vunpack.c.l.b16 %v1288
        %v2450 = vunpack.c.h.b16 %v1288
        %v2451 = vunpack.c.l.b16 %v1289
        %v2452 = vunpack.c.h.b16 %v1289
        %v2453 = vunpack.c.l.b16 %v1290
        %v2454 = vunpack.c.h.b16 %v1290
        %v2455 = vunpack.c.l.b16 %v1291
        %v2456 = vunpack.c.h.b16 %v1291
        %v2457 = vunpack.c.l.b16 %v1292
        %v2458 = vunpack.c.h.b16 %v1292
        %v2459 = vunpack.c.l.b16 %v1293
        %v2460 = vunpack.c.h.b16 %v1293
        %v2461 = vunpack.c.l.b16 %v1294
        %v2462 = vunpack.c.h.b16 %v1294
        %v2463 = vunpack.c.l.b16 %v1295
        %v2464 = vunpack.c.h.b16 %v1295
        %v2465 = vunpack.c.l.b16 %v1296
        %v2466 = vunpack.c.h.b16 %v1296
        %v2467 = vunpack.c.l.b16 %v1297
        %v2468 = vunpack.c.h.b16 %v1297
        %v2469 = vunpack.c.l.b16 %v1298
        %v2470 = vunpack.c.h.b16 %v1298
        %v2471 = vunpack.c.l.b16 %v1299
        %v2472 = vunpack.c.h.b16 %v1299
        %v2473 = vunpack.c.l.b16 %v1300
        %v2474 = vunpack.c.h.b16 %v1300
        %v2475 = vunpack.c.l.b16 %v1301
        %v2476 = vunpack.c.h.b16 %v1301
        %v2477 = vunpack.c.l.b16 %v1302
        %v2478 = vunpack.c.h.b16 %v1302
        %v2479 = vunpack.c.l.b16 %v1303
        %v2480 = vunpack.c.h.b16 %v1303
        %v2481 = vunpack.c.l.b16 %v1304
        %v2482 = vunpack.c.h.b16 %v1304
        %v2483 = vunpack.c.l.b16 %v1305
        %v2484 = vunpack.c.h.b16 %v1305
        %v2485 = vunpack.c.l.b16 %v1306
        %v2486 = vunpack.c.h.b16 %v1306
        %v2487 = vunpack.c.l.b16 %v1307
        %v2488 = vunpack.c.h.b16 %v1307
        %v2489 = vunpack.c.l.b16 %v1308
        %v2490 = vunpack.c.h.b16 %v1308
        %v2491 = vunpack.c.l.b16 %v1309
        %v2492 = vunpack.c.h.b16 %v1309
        %v2493 = vunpack.c.l.b16 %v1310
        %v2494 = vunpack.c.h.b16 %v1310
        %v2495 = vunpack.c.l.b16 %v1311
        %v2496 = vunpack.c.h.b16 %v1311
        %v2497 = vunpack.c.l.b16 %v1312
        %v2498 = vunpack.c.h.b16 %v1312
        %v2499 = vunpack.c.l.b16 %v1313
        %v2500 = vunpack.c.h.b16 %v1313
        %v2501 = vunpack.c.l.b16 %v1314
        %v2502 = vunpack.c.h.b16 %v1314
        %v2503 = vunpack.c.l.b16 %v1315
        %v2504 = vunpack.c.h.b16 %v1315
        %v2505 = vunpack.c.l.b16 %v1316
        %v2506 = vunpack.c.h.b16 %v1316
        %v2507 = vunpack.c.l.b16 %v1317
        %v2508 = vunpack.c.h.b16 %v1317
        %v2509 = vunpack.c.l.b16 %v1318
        %v2510 = vunpack.c.h.b16 %v1318
        %v2511 = vunpack.c.l.b16 %v1319
        %v2512 = vunpack.c.h.b16 %v1319
        %v2513 = vunpack.c.l.b16 %v1320
        %v2514 = vunpack.c.h.b16 %v1320
        %v2515 = vunpack.c.l.b16 %v1321
        %v2516 = vunpack.c.h.b16 %v1321
        %v2517 = vunpack.c.l.b16 %v1322
        %v2518 = vunpack.c.h.b16 %v1322
        %v2519 = vunpack.c.l.b16 %v1323
        %v2520 = vunpack.c.h.b16 %v1323
        %v2521 = vunpack.c.l.b16 %v1324
        %v2522 = vunpack.c.h.b16 %v1324
        %v2523 = vunpack.c.l.b16 %v1325
        %v2524 = vunpack.c.h.b16 %v1325
        %v2525 = vunpack.c.l.b16 %v1326
        %v2526 = vunpack.c.h.b16 %v1326
        %v2527 = vunpack.c.l.b16 %v1327
        %v2528 = vunpack.c.h.b16 %v1327
        %v2529 = vunpack.c.l.b16 %v1328
        %v2530 = vunpack.c.h.b16 %v1328
        %v2531 = vunpack.c.l.b16 %v1329
        %v2532 = vunpack.c.h.b16 %v1329
        %v2533 = vunpack.c.l.b16 %v1330
        %v2534 = vunpack.c.h.b16 %v1330
        %v2535 = vunpack.c.l.b16 %v1331
        %v2536 = vunpack.c.h.b16 %v1331
        %v2537 = vunpack.c.l.b16 %v1332
        %v2538 = vunpack.c.h.b16 %v1332
        %v2539 = vunpack.c.l.b16 %v1333
        %v2540 = vunpack.c.h.b16 %v1333
        %v2541 = vunpack.c.l.b16 %v1334
        %v2542 = vunpack.c.h.b16 %v1334
        %v2543 = vunpack.c.l.b16 %v1335
        %v2544 = vunpack.c.h.b16 %v1335
        %v2545 = vunpack.c.l.b16 %v1336
        %v2546 = vunpack.c.h.b16 %v1336
        %v2547 = vunpack.c.l.b16 %v1337
        %v2548 = vunpack.c.h.b16 %v1337
        %v2549 = vunpack.c.l.b16 %v1338
        %v2550 = vunpack.c.h.b16 %v1338
        %v2551 = vunpack.c.l.b16 %v1339
        %v2552 = vunpack.c.h.b16 %v1339
        %v2553 = vunpack.c.l.b16 %v1340
        %v2554 = vunpack.c.h.b16 %v1340
        %v2555 = vunpack.c.l.b16 %v1341
        %v2556 = vunpack.c.h.b16 %v1341
        %v2557 = vunpack.c.l.b16 %v1342
        %v2558 = vunpack.c.h.b16 %v1342
        %v2559 = vunpack.c.l.b16 %v1343
        %v2560 = vunpack.c.h.b16 %v1343
        %v2561 = vunpack.c.l.b16 %v1344
        %v2562 = vunpack.c.h.b16 %v1344
        %v2563 = vunpack.c.l.b16 %v1345
        %v2564 = vunpack.c.h.b16 %v1345
        %v2565 = vunpack.c.l.b16 %v1346
        %v2566 = vunpack.c.h.b16 %v1346
        %v2567 = vunpack.c.l.b16 %v1347
        %v2568 = vunpack.c.h.b16 %v1347
        %v2569 = vunpack.c.l.b16 %v1348
        %v2570 = vunpack.c.h.b16 %v1348
        %v2571 = vunpack.c.l.b16 %v1349
        %v2572 = vunpack.c.h.b16 %v1349
        %v2573 = vunpack.c.l.b16 %v1350
        %v2574 = vunpack.c.h.b16 %v1350
        %v2575 = vunpack.c.l.b16 %v1351
        %v2576 = vunpack.c.h.b16 %v1351
        %v2577 = vunpack.c.l.b16 %v1352
        %v2578 = vunpack.c.h.b16 %v1352
        %v2579 = vunpack.c.l.b16 %v1353
        %v2580 = vunpack.c.h.b16 %v1353
        %v2581 = vunpack.c.l.b16 %v1354
        %v2582 = vunpack.c.h.b16 %v1354
        %v2583 = vunpack.c.l.b16 %v1355
        %v2584 = vunpack.c.h.b16 %v1355
        %v2585 = vunpack.c.l.b16 %v1356
        %v2586 = vunpack.c.h.b16 %v1356
        %v2587 = vunpack.c.l.b16 %v1357
        %v2588 = vunpack.c.h.b16 %v1357
        %v2589 = vunpack.c.l.b16 %v1358
        %v2590 = vunpack.c.h.b16 %v1358
        %v2591 = vunpack.c.l.b16 %v1359
        %v2592 = vunpack.c.h.b16 %v1359
        %v2593 = vunpack.c.l.b16 %v1360
        %v2594 = vunpack.c.h.b16 %v1360
        %v2595 = vunpack.c.l.b16 %v1361
        %v2596 = vunpack.c.h.b16 %v1361
        %v2597 = vunpack.c.l.b16 %v1362
        %v2598 = vunpack.c.h.b16 %v1362
        %v2599 = vunpack.c.l.b16 %v1363
        %v2600 = vunpack.c.h.b16 %v1363
        %v2601 = vunpack.c.l.b16 %v1364
        %v2602 = vunpack.c.h.b16 %v1364
        %v2603 = vunpack.c.l.b16 %v1365
        %v2604 = vunpack.c.h.b16 %v1365
        %v2605 = vunpack.c.l.b16 %v1366
        %v2606 = vunpack.c.h.b16 %v1366
        %v2607 = vunpack.c.l.b16 %v1367
        %v2608 = vunpack.c.h.b16 %v1367
        %v2609 = vunpack.c.l.b16 %v1368
        %v2610 = vunpack.c.h.b16 %v1368
        %v2611 = vunpack.c.l.b16 %v1369
        %v2612 = vunpack.c.h.b16 %v1369
        %v2613 = vunpack.c.l.b16 %v1370
        %v2614 = vunpack.c.h.b16 %v1370
        %v2615 = vunpack.c.l.b16 %v1371
        %v2616 = vunpack.c.h.b16 %v1371
        %v2617 = vunpack.c.l.b16 %v1372
        %v2618 = vunpack.c.h.b16 %v1372
        %v2619 = vunpack.c.l.b16 %v1373
        %v2620 = vunpack.c.h.b16 %v1373
        %v2621 = vunpack.c.l.b16 %v1374
        %v2622 = vunpack.c.h.b16 %v1374
        %v2623 = vunpack.c.l.b16 %v1375
        %v2624 = vunpack.c.h.b16 %v1375
        %v2625 = vunpack.c.l.b16 %v1376
        %v2626 = vunpack.c.h.b16 %v1376
        %v2627 = vunpack.c.l.b16 %v1377
        %v2628 = vunpack.c.h.b16 %v1377
        %v2629 = vunpack.c.l.b16 %v1378
        %v2630 = vunpack.c.h.b16 %v1378
        %v2631 = vunpack.c.l.b16 %v1379
        %v2632 = vunpack.c.h.b16 %v1379
        %v2633 = vunpack.c.l.b16 %v1380
        %v2634 = vunpack.c.h.b16 %v1380
        %v2635 = vunpack.c.l.b16 %v1381
        %v2636 = vunpack.c.h.b16 %v1381
        %v2637 = vpack.c.b16 %v1875, %v1869
        %v2638 = vpack.c.b16 %v1876, %v1870
        %v2639 = vpack.c.b16 %v1877, %v1871
        %v2640 = vpack.c.b16 %v1878, %v1872
        %v2641 = vpack.c.b16 %v1879, %v1873
        %v2642 = vpack.c.b16 %v1880, %v1874
        %v2643 = vpack.c.b16 %v1887, %v1881
        %v2644 = vpack.c.b16 %v1888, %v1882
        %v2645 = vpack.c.b16 %v1889, %v1883
        %v2646 = vpack.c.b16 %v1890, %v1884
        %v2647 = vpack.c.b16 %v1891, %v1885
        %v2648 = vpack.c.b16 %v1892, %v1886
        %v2649 = vpack.c.b16 %v1899, %v1893
        %v2650 = vpack.c.b16 %v1900, %v1894
        %v2651 = vpack.c.b16 %v1901, %v1895
        %v2652 = vpack.c.b16 %v1902, %v1896
        %v2653 = vpack.c.b16 %v1903, %v1897
        %v2654 = vpack.c.b16 %v1904, %v1898
        %v2655 = vpack.c.b16 %v1911, %v1905
        %v2656 = vpack.c.b16 %v1912, %v1906
        %v2657 = vpack.c.b16 %v1913, %v1907
        %v2658 = vpack.c.b16 %v1914, %v1908
        %v2659 = vpack.c.b16 %v1915, %v1909
        %v2660 = vpack.c.b16 %v1916, %v1910
        %v2661 = vpack.c.b16 %v1923, %v1917
        %v2662 = vpack.c.b16 %v1924, %v1918
        %v2663 = vpack.c.b16 %v1925, %v1919
        %v2664 = vpack.c.b16 %v1926, %v1920
        %v2665 = vpack.c.b16 %v1927, %v1921
        %v2666 = vpack.c.b16 %v1928, %v1922
        %v2667 = vpack.c.b16 %v1935, %v1929
        %v2668 = vpack.c.b16 %v1936, %v1930
        %v2669 = vpack.c.b16 %v1937, %v1931
        %v2670 = vpack.c.b16 %v1938, %v1932
        %v2671 = vpack.c.b16 %v1939, %v1933
        %v2672 = vpack.c.b16 %v1940, %v1934
        %v2673 = vpack.c.b16 %v1947, %v1941
        %v2674 = vpack.c.b16 %v1948, %v1942
        %v2675 = vpack.c.b16 %v1949, %v1943
        %v2676 = vpack.c.b16 %v1950, %v1944
        %v2677 = vpack.c.b16 %v1951, %v1945
        %v2678 = vpack.c.b16 %v1952, %v1946
        %v2679 = vpack.c.b16 %v1959, %v1953
        %v2680 = vpack.c.b16 %v1960, %v1954
        %v2681 = vpack.c.b16 %v1961, %v1955
        %v2682 = vpack.c.b16 %v1962, %v1956
        %v2683 = vpack.c.b16 %v1963, %v1957
        %v2684 = vpack.c.b16 %v1964, %v1958
        %v2685 = vpack.c.b16 %v1971, %v1965
        %v2686 = vpack.c.b16 %v1972, %v1966
        %v2687 = vpack.c.b16 %v1973, %v1967
        %v2688 = vpack.c.b16 %v1974, %v1968
        %v2689 = vpack.c.b16 %v1975, %v1969
        %v2690 = vpack.c.b16 %v1976, %v1970
        %v2691 = vpack.c.b16 %v1983, %v1977
        %v2692 = vpack.c.b16 %v1984, %v1978
        %v2693 = vpack.c.b16 %v1985, %v1979
        %v2694 = vpack.c.b16 %v1986, %v1980
        %v2695 = vpack.c.b16 %v1987, %v1981
        %v2696 = vpack.c.b16 %v1988, %v1982
        %v2697 = vpack.c.b16 %v1995, %v1989
        %v2698 = vpack.c.b16 %v1996, %v1990
        %v2699 = vpack.c.b16 %v1997, %v1991
        %v2700 = vpack.c.b16 %v1998, %v1992
        %v2701 = vpack.c.b16 %v1999, %v1993
        %v2702 = vpack.c.b16 %v2000, %v1994
        %v2703 = vpack.c.b16 %v2007, %v2001
        %v2704 = vpack.c.b16 %v2008, %v2002
        %v2705 = vpack.c.b16 %v2009, %v2003
        %v2706 = vpack.c.b16 %v2010, %v2004
        %v2707 = vpack.c.b16 %v2011, %v2005
        %v2708 = vpack.c.b16 %v2012, %v2006
        %v2709 = vpack.c.b16 %v2019, %v2013
        %v2710 = vpack.c.b16 %v2020, %v2014
        %v2711 = vpack.c.b16 %v2021, %v2015
        %v2712 = vpack.c.b16 %v2022, %v2016
        %v2713 = vpack.c.b16 %v2023, %v2017
        %v2714 = vpack.c.b16 %v2024, %v2018
        %v2715 = vpack.c.b16 %v2031, %v2025
        %v2716 = vpack.c.b16 %v2032, %v2026
        %v2717 = vpack.c.b16 %v2033, %v2027
        %v2718 = vpack.c.b16 %v2034, %v2028
        %v2719 = vpack.c.b16 %v2035, %v2029
        %v2720 = vpack.c.b16 %v2036, %v2030
        %v2721 = vpack.c.b16 %v2043, %v2037
        %v2722 = vpack.c.b16 %v2044, %v2038
        %v2723 = vpack.c.b16 %v2045, %v2039
        %v2724 = vpack.c.b16 %v2046, %v2040
        %v2725 = vpack.c.b16 %v2047, %v2041
        %v2726 = vpack.c.b16 %v2048, %v2042
        %v2727 = vpack.c.b16 %v2055, %v2049
        %v2728 = vpack.c.b16 %v2056, %v2050
        %v2729 = vpack.c.b16 %v2057, %v2051
        %v2730 = vpack.c.b16 %v2058, %v2052
        %v2731 = vpack.c.b16 %v2059, %v2053
        %v2732 = vpack.c.b16 %v2060, %v2054
        %v2733 = vpack.c.b16 %v2067, %v2061
        %v2734 = vpack.c.b16 %v2068, %v2062
        %v2735 = vpack.c.b16 %v2069, %v2063
        %v2736 = vpack.c.b16 %v2070, %v2064
        %v2737 = vpack.c.b16 %v2071, %v2065
        %v2738 = vpack.c.b16 %v2072, %v2066
        %v2739 = vpack.c.b16 %v2079, %v2073
        %v2740 = vpack.c.b16 %v2080, %v2074
        %v2741 = vpack.c.b16 %v2081, %v2075
        %v2742 = vpack.c.b16 %v2082, %v2076
        %v2743 = vpack.c.b16 %v2083, %v2077
        %v2744 = vpack.c.b16 %v2084, %v2078
        %v2745 = vpack.c.b16 %v2091, %v2085
        %v2746 = vpack.c.b16 %v2092, %v2086
        %v2747 = vpack.c.b16 %v2093, %v2087
        %v2748 = vpack.c.b16 %v2094, %v2088
        %v2749 = vpack.c.b16 %v2095, %v2089
        %v2750 = vpack.c.b16 %v2096, %v2090
        %v2751 = vpack.c.b16 %v2103, %v2097
        %v2752 = vpack.c.b16 %v2104, %v2098
        %v2753 = vpack.c.b16 %v2105, %v2099
        %v2754 = vpack.c.b16 %v2106, %v2100
        %v2755 = vpack.c.b16 %v2107, %v2101
        %v2756 = vpack.c.b16 %v2108, %v2102
        %v2757 = vpack.c.b16 %v2115, %v2109
        %v2758 = vpack.c.b16 %v2116, %v2110
        %v2759 = vpack.c.b16 %v2117, %v2111
        %v2760 = vpack.c.b16 %v2118, %v2112
        %v2761 = vpack.c.b16 %v2119, %v2113
        %v2762 = vpack.c.b16 %v2120, %v2114
        %v2763 = vpack.c.b16 %v2127, %v2121
        %v2764 = vpack.c.b16 %v2128, %v2122
        %v2765 = vpack.c.b16 %v2129, %v2123
        %v2766 = vpack.c.b16 %v2130, %v2124
        %v2767 = vpack.c.b16 %v2131, %v2125
        %v2768 = vpack.c.b16 %v2132, %v2126
        %v2769 = vpack.c.b16 %v2139, %v2133
        %v2770 = vpack.c.b16 %v2140, %v2134
        %v2771 = vpack.c.b16 %v2141, %v2135
        %v2772 = vpack.c.b16 %v2142, %v2136
        %v2773 = vpack.c.b16 %v2143, %v2137
        %v2774 = vpack.c.b16 %v2144, %v2138
        %v2775 = vpack.c.b16 %v2151, %v2145
        %v2776 = vpack.c.b16 %v2152, %v2146
        %v2777 = vpack.c.b16 %v2153, %v2147
        %v2778 = vpack.c.b16 %v2154, %v2148
        %v2779 = vpack.c.b16 %v2155, %v2149
        %v2780 = vpack.c.b16 %v2156, %v2150
        %v2781 = vpack.c.b16 %v2163, %v2157
        %v2782 = vpack.c.b16 %v2164, %v2158
        %v2783 = vpack.c.b16 %v2165, %v2159
        %v2784 = vpack.c.b16 %v2166, %v2160
        %v2785 = vpack.c.b16 %v2167, %v2161
        %v2786 = vpack.c.b16 %v2168, %v2162
        %v2787 = vpack.c.b16 %v2175, %v2169
        %v2788 = vpack.c.b16 %v2176, %v2170
        %v2789 = vpack.c.b16 %v2177, %v2171
        %v2790 = vpack.c.b16 %v2178, %v2172
        %v2791 = vpack.c.b16 %v2179, %v2173
        %v2792 = vpack.c.b16 %v2180, %v2174
        %v2793 = vpack.c.b16 %v2187, %v2181
        %v2794 = vpack.c.b16 %v2188, %v2182
        %v2795 = vpack.c.b16 %v2189, %v2183
        %v2796 = vpack.c.b16 %v2190, %v2184
        %v2797 = vpack.c.b16 %v2191, %v2185
        %v2798 = vpack.c.b16 %v2192, %v2186
        %v2799 = vpack.c.b16 %v2199, %v2193
        %v2800 = vpack.c.b16 %v2200, %v2194
        %v2801 = vpack.c.b16 %v2201, %v2195
        %v2802 = vpack.c.b16 %v2202, %v2196
        %v2803 = vpack.c.b16 %v2203, %v2197
        %v2804 = vpack.c.b16 %v2204, %v2198
        %v2805 = vpack.c.b16 %v2211, %v2205
        %v2806 = vpack.c.b16 %v2212, %v2206
        %v2807 = vpack.c.b16 %v2213, %v2207
        %v2808 = vpack.c.b16 %v2214, %v2208
        %v2809 = vpack.c.b16 %v2215, %v2209
        %v2810 = vpack.c.b16 %v2216, %v2210
        %v2811 = vpack.c.b16 %v2223, %v2217
        %v2812 = vpack.c.b16 %v2224, %v2218
        %v2813 = vpack.c.b16 %v2225, %v2219
        %v2814 = vpack.c.b16 %v2226, %v2220
        %v2815 = vpack.c.b16 %v2227, %v2221
        %v2816 = vpack.c.b16 %v2228, %v2222
        %v2817 = vpack.c.b16 %v2235, %v2229
        %v2818 = vpack.c.b16 %v2236, %v2230
        %v2819 = vpack.c.b16 %v2237, %v2231
        %v2820 = vpack.c.b16 %v2238, %v2232
        %v2821 = vpack.c.b16 %v2239, %v2233
        %v2822 = vpack.c.b16 %v2240, %v2234
        %v2823 = vpack.c.b16 %v2247, %v2241
        %v2824 = vpack.c.b16 %v2248, %v2242
        %v2825 = vpack.c.b16 %v2249, %v2243
        %v2826 = vpack.c.b16 %v2250, %v2244
        %v2827 = vpack.c.b16 %v2251, %v2245
        %v2828 = vpack.c.b16 %v2252, %v2246
        %v2829 = vpack.c.b16 %v2259, %v2253
        %v2830 = vpack.c.b16 %v2260, %v2254
        %v2831 = vpack.c.b16 %v2261, %v2255
        %v2832 = vpack.c.b16 %v2262, %v2256
        %v2833 = vpack.c.b16 %v2263, %v2257
        %v2834 = vpack.c.b16 %v2264, %v2258
        %v2835 = vpack.c.b16 %v2271, %v2265
        %v2836 = vpack.c.b16 %v2272, %v2266
        %v2837 = vpack.c.b16 %v2273, %v2267
        %v2838 = vpack.c.b16 %v2274, %v2268
        %v2839 = vpack.c.b16 %v2275, %v2269
        %v2840 = vpack.c.b16 %v2276, %v2270
        %v2841 = vpack.c.b16 %v2283, %v2277
        %v2842 = vpack.c.b16 %v2284, %v2278
        %v2843 = vpack.c.b16 %v2285, %v2279
        %v2844 = vpack.c.b16 %v2286, %v2280
        %v2845 = vpack.c.b16 %v2287, %v2281
        %v2846 = vpack.c.b16 %v2288, %v2282
        %v2847 = vpack.c.b16 %v2295, %v2289
        %v2848 = vpack.c.b16 %v2296, %v2290
        %v2849 = vpack.c.b16 %v2297, %v2291
        %v2850 = vpack.c.b16 %v2298, %v2292
        %v2851 = vpack.c.b16 %v2299, %v2293
        %v2852 = vpack.c.b16 %v2300, %v2294
        %v2853 = vpack.c.b16 %v2307, %v2301
        %v2854 = vpack.c.b16 %v2308, %v2302
        %v2855 = vpack.c.b16 %v2309, %v2303
        %v2856 = vpack.c.b16 %v2310, %v2304
        %v2857 = vpack.c.b16 %v2311, %v2305
        %v2858 = vpack.c.b16 %v2312, %v2306
        %v2859 = vpack.c.b16 %v2319, %v2313
        %v2860 = vpack.c.b16 %v2320, %v2314
        %v2861 = vpack.c.b16 %v2321, %v2315
        %v2862 = vpack.c.b16 %v2322, %v2316
        %v2863 = vpack.c.b16 %v2323, %v2317
        %v2864 = vpack.c.b16 %v2324, %v2318
        %v2865 = vpack.c.b16 %v2331, %v2325
        %v2866 = vpack.c.b16 %v2332, %v2326
        %v2867 = vpack.c.b16 %v2333, %v2327
        %v2868 = vpack.c.b16 %v2334, %v2328
        %v2869 = vpack.c.b16 %v2335, %v2329
        %v2870 = vpack.c.b16 %v2336, %v2330
        %v2871 = vpack.c.b16 %v2343, %v2337
        %v2872 = vpack.c.b16 %v2344, %v2338
        %v2873 = vpack.c.b16 %v2345, %v2339
        %v2874 = vpack.c.b16 %v2346, %v2340
        %v2875 = vpack.c.b16 %v2347, %v2341
        %v2876 = vpack.c.b16 %v2348, %v2342
        %v2877 = vpack.c.b16 %v2355, %v2349
        %v2878 = vpack.c.b16 %v2356, %v2350
        %v2879 = vpack.c.b16 %v2357, %v2351
        %v2880 = vpack.c.b16 %v2358, %v2352
        %v2881 = vpack.c.b16 %v2359, %v2353
        %v2882 = vpack.c.b16 %v2360, %v2354
        %v2883 = vpack.c.b16 %v2367, %v2361
        %v2884 = vpack.c.b16 %v2368, %v2362
        %v2885 = vpack.c.b16 %v2369, %v2363
        %v2886 = vpack.c.b16 %v2370, %v2364
        %v2887 = vpack.c.b16 %v2371, %v2365
        %v2888 = vpack.c.b16 %v2372, %v2366
        %v2889 = vpack.c.b16 %v2379, %v2373
        %v2890 = vpack.c.b16 %v2380, %v2374
        %v2891 = vpack.c.b16 %v2381, %v2375
        %v2892 = vpack.c.b16 %v2382, %v2376
        %v2893 = vpack.c.b16 %v2383, %v2377
        %v2894 = vpack.c.b16 %v2384, %v2378
        %v2895 = vpack.c.b16 %v2391, %v2385
        %v2896 = vpack.c.b16 %v2392, %v2386
        %v2897 = vpack.c.b16 %v2393, %v2387
        %v2898 = vpack.c.b16 %v2394, %v2388
        %v2899 = vpack.c.b16 %v2395, %v2389
        %v2900 = vpack.c.b16 %v2396, %v2390
        %v2901 = vpack.c.b16 %v2403, %v2397
        %v2902 = vpack.c.b16 %v2404, %v2398
        %v2903 = vpack.c.b16 %v2405, %v2399
        %v2904 = vpack.c.b16 %v2406, %v2400
        %v2905 = vpack.c.b16 %v2407, %v2401
        %v2906 = vpack.c.b16 %v2408, %v2402
        %v2907 = vpack.c.b16 %v2415, %v2409
        %v2908 = vpack.c.b16 %v2416, %v2410
        %v2909 = vpack.c.b16 %v2417, %v2411
        %v2910 = vpack.c.b16 %v2418, %v2412
        %v2911 = vpack.c.b16 %v2419, %v2413
        %v2912 = vpack.c.b16 %v2420, %v2414
        %v2913 = vpack.c.b16 %v2427, %v2421
        %v2914 = vpack.c.b16 %v2428, %v2422
        %v2915 = vpack.c.b16 %v2429, %v2423
        %v2916 = vpack.c.b16 %v2430, %v2424
        %v2917 = vpack.c.b16 %v2431, %v2425
        %v2918 = vpack.c.b16 %v2432, %v2426
        %v2919 = vpack.c.b16 %v2439, %v2433
        %v2920 = vpack.c.b16 %v2440, %v2434
        %v2921 = vpack.c.b16 %v2441, %v2435
        %v2922 = vpack.c.b16 %v2442, %v2436
        %v2923 = vpack.c.b16 %v2443, %v2437
        %v2924 = vpack.c.b16 %v2444, %v2438
        %v2925 = vpack.c.b16 %v2451, %v2445
        %v2926 = vpack.c.b16 %v2452, %v2446
        %v2927 = vpack.c.b16 %v2453, %v2447
        %v2928 = vpack.c.b16 %v2454, %v2448
        %v2929 = vpack.c.b16 %v2455, %v2449
        %v2930 = vpack.c.b16 %v2456, %v2450
        %v2931 = vpack.c.b16 %v2463, %v2457
        %v2932 = vpack.c.b16 %v2464, %v2458
        %v2933 = vpack.c.b16 %v2465, %v2459
        %v2934 = vpack.c.b16 %v2466, %v2460
        %v2935 = vpack.c.b16 %v2467, %v2461
        %v2936 = vpack.c.b16 %v2468, %v2462
        %v2937 = vpack.c.b16 %v2475, %v2469
        %v2938 = vpack.c.b16 %v2476, %v2470
        %v2939 = vpack.c.b16 %v2477, %v2471
        %v2940 = vpack.c.b16 %v2478, %v2472
        %v2941 = vpack.c.b16 %v2479, %v2473
        %v2942 = vpack.c.b16 %v2480, %v2474
        %v2943 = vpack.c.b16 %v2487, %v2481
        %v2944 = vpack.c.b16 %v2488, %v2482
        %v2945 = vpack.c.b16 %v2489, %v2483
        %v2946 = vpack.c.b16 %v2490, %v2484
        %v2947 = vpack.c.b16 %v2491, %v2485
        %v2948 = vpack.c.b16 %v2492, %v2486
        %v2949 = vpack.c.b16 %v2499, %v2493
        %v2950 = vpack.c.b16 %v2500, %v2494
        %v2951 = vpack.c.b16 %v2501, %v2495
        %v2952 = vpack.c.b16 %v2502, %v2496
        %v2953 = vpack.c.b16 %v2503, %v2497
        %v2954 = vpack.c.b16 %v2504, %v2498
        %v2955 = vpack.c.b16 %v2511, %v2505
        %v2956 = vpack.c.b16 %v2512, %v2506
        %v2957 = vpack.c.b16 %v2513, %v2507
        %v2958 = vpack.c.b16 %v2514, %v2508
        %v2959 = vpack.c.b16 %v2515, %v2509
        %v2960 = vpack.c.b16 %v2516, %v2510
        %v2961 = vpack.c.b16 %v2523, %v2517
        %v2962 = vpack.c.b16 %v2524, %v2518
        %v2963 = vpack.c.b16 %v2525, %v2519
        %v2964 = vpack.c.b16 %v2526, %v2520
        %v2965 = vpack.c.b16 %v2527, %v2521
        %v2966 = vpack.c.b16 %v2528, %v2522
        %v2967 = vpack.c.b16 %v2535, %v2529
        %v2968 = vpack.c.b16 %v2536, %v2530
        %v2969 = vpack.c.b16 %v2537, %v2531
        %v2970 = vpack.c.b16 %v2538, %v2532
        %v2971 = vpack.c.b16 %v2539, %v2533
        %v2972 = vpack.c.b16 %v2540, %v2534
        %v2973 = vpack.c.b16 %v2547, %v2541
        %v2974 = vpack.c.b16 %v2548, %v2542
        %v2975 = vpack.c.b16 %v2549, %v2543
        %v2976 = vpack.c.b16 %v2550, %v2544
        %v2977 = vpack.c.b16 %v2551, %v2545
        %v2978 = vpack.c.b16 %v2552, %v2546
        %v2979 = vpack.c.b16 %v2559, %v2553
        %v2980 = vpack.c.b16 %v2560, %v2554
        %v2981 = vpack.c.b16 %v2561, %v2555
        %v2982 = vpack.c.b16 %v2562, %v2556
        %v2983 = vpack.c.b16 %v2563, %v2557
        %v2984 = vpack.c.b16 %v2564, %v2558
        %v2985 = vpack.c.b16 %v2571, %v2565
        %v2986 = vpack.c.b16 %v2572, %v2566
        %v2987 = vpack.c.b16 %v2573, %v2567
        %v2988 = vpack.c.b16 %v2574, %v2568
        %v2989 = vpack.c.b16 %v2575, %v2569
        %v2990 = vpack.c.b16 %v2576, %v2570
        %v2991 = vpack.c.b16 %v2583, %v2577
        %v2992 = vpack.c.b16 %v2584, %v2578
        %v2993 = vpack.c.b16 %v2585, %v2579
        %v2994 = vpack.c.b16 %v2586, %v2580
        %v2995 = vpack.c.b16 %v2587, %v2581
        %v2996 = vpack.c.b16 %v2588, %v2582
        %v2997 = vpack.c.b16 %v2595, %v2589
        %v2998 = vpack.c.b16 %v2596, %v2590
        %v2999 = vpack.c.b16 %v2597, %v2591
        %v3000 = vpack.c.b16 %v2598, %v2592
        %v3001 = vpack.c.b16 %v2599, %v2593
        %v3002 = vpack.c.b16 %v2600, %v2594
        %v3003 = vpack.c.b16 %v2607, %v2601
        %v3004 = vpack.c.b16 %v2608, %v2602
        %v3005 = vpack.c.b16 %v2609, %v2603
        %v3006 = vpack.c.b16 %v2610, %v2604
        %v3007 = vpack.c.b16 %v2611, %v2605
        %v3008 = vpack.c.b16 %v2612, %v2606
        %v3009 = vpack.c.b16 %v2619, %v2613
        %v3010 = vpack.c.b16 %v2620, %v2614
        %v3011 = vpack.c.b16 %v2621, %v2615
        %v3012 = vpack.c.b16 %v2622, %v2616
        %v3013 = vpack.c.b16 %v2623, %v2617
        %v3014 = vpack.c.b16 %v2624, %v2618
        %v3015 = vpack.c.b16 %v2631, %v2625
        %v3016 = vpack.c.b16 %v2632, %v2626
        %v3017 = vpack.c.b16 %v2633, %v2627
        %v3018 = vpack.c.b16 %v2634, %v2628
        %v3019 = vpack.c.b16 %v2635, %v2629
        %v3020 = vpack.c.b16 %v2636, %v2630
        %v3501 = vunpack.c.l.b16 %v1382
        %v3502 = vunpack.c.l.b16 %v1383
        %v3503 = vunpack.c.l.b16 %v1384
        %v3504 = vunpack.c.l.b16 %v1385
        %v3505 = vunpack.c.l.b16 %v1386
        %v3506 = vunpack.c.l.b16 %v1387
        %v3507 = vunpack.c.l.b16 %v1388
        %v3508 = vunpack.c.l.b16 %v1389
        %v3509 = vunpack.c.l.b16 %v1390
        %v3510 = vunpack.c.l.b16 %v1391
        %v3511 = vunpack.c.l.b16 %v1392
        %v3512 = vunpack.c.l.b16 %v1393
        %v3513 = vunpack.c.l.b16 %v1394
        %v3514 = vunpack.c.l.b16 %v1395
        %v3515 = vunpack.c.l.b16 %v1396
        %v3516 = vunpack.c.l.b16 %v1397
        %v3517 = vunpack.c.l.b16 %v1398
        %v3518 = vunpack.c.l.b16 %v1399
        %v3519 = vunpack.c.l.b16 %v1400
        %v3520 = vunpack.c.l.b16 %v1401
        %v3521 = vunpack.c.l.b16 %v1402
        %v3522 = vunpack.c.l.b16 %v1403
        %v3523 = vunpack.c.l.b16 %v1404
        %v3524 = vunpack.c.l.b16 %v1405
        %v3525 = vunpack.c.l.b16 %v1406
        %v3526 = vunpack.c.l.b16 %v1407
        %v3527 = vunpack.c.l.b16 %v1408
        %v3528 = vunpack.c.l.b16 %v1409
        %v3529 = vunpack.c.l.b16 %v1410
        %v3530 = vunpack.c.l.b16 %v1411
        %v3531 = vunpack.c.l.b16 %v1412
        %v3532 = vunpack.c.l.b16 %v1413
        %v3533 = vunpack.c.l.b16 %v1414
        %v3534 = vunpack.c.l.b16 %v1415
        %v3535 = vunpack.c.l.b16 %v1416
        %v3536 = vunpack.c.l.b16 %v1417
        %v3537 = vunpack.c.l.b16 %v1418
        %v3538 = vunpack.c.l.b16 %v1419
        %v3539 = vunpack.c.l.b16 %v1420
        %v3540 = vunpack.c.l.b16 %v1421
        %v3541 = vunpack.c.l.b16 %v1422
        %v3542 = vunpack.c.l.b16 %v1423
        %v3543 = vunpack.c.l.b16 %v1424
        %v3544 = vunpack.c.l.b16 %v1425
        %v3545 = vunpack.c.l.b16 %v1426
        %v3546 = vunpack.c.l.b16 %v1427
        %v3547 = vunpack.c.l.b16 %v1428
        %v3548 = vunpack.c.l.b16 %v1429
        %v3549 = vunpack.c.l.b16 %v1430
        %v3550 = vunpack.c.l.b16 %v1431
        %v3551 = vunpack.c.l.b16 %v1432
        %v3552 = vunpack.c.l.b16 %v1433
        %v3553 = vunpack.c.l.b16 %v1434
        %v3554 = vunpack.c.l.b16 %v1435
        %v3555 = vunpack.c.l.b16 %v1436
        %v3556 = vunpack.c.l.b16 %v1437
        %v3557 = vunpack.c.l.b16 %v1438
        %v3558 = vunpack.c.l.b16 %v1439
        %v3559 = vunpack.c.l.b16 %v1440
        %v3560 = vunpack.c.l.b16 %v1441
        %v3561 = vunpack.c.l.b16 %v1442
        %v3562 = vunpack.c.l.b16 %v1443
        %v3563 = vunpack.c.l.b16 %v1444
        %v3564 = vunpack.c.l.b16 %v1445
        %v3565 = vunpack.c.l.b16 %v1446
        %v3566 = vunpack.c.l.b16 %v1447
        %v3567 = vunpack.c.l.b16 %v1448
        %v3568 = vunpack.c.l.b16 %v1449
        %v3569 = vunpack.c.l.b16 %v1450
        %v3570 = vunpack.c.l.b16 %v1451
        %v3571 = vunpack.c.l.b16 %v1452
        %v3572 = vunpack.c.l.b16 %v1453
        %v3573 = vunpack.c.l.b16 %v1454
        %v3574 = vunpack.c.l.b16 %v1455
        %v3575 = vunpack.c.l.b16 %v1456
        %v3576 = vunpack.c.l.b16 %v1457
        %v3577 = vunpack.c.l.b16 %v1458
        %v3578 = vunpack.c.l.b16 %v1459
        %v3579 = vunpack.c.l.b16 %v1460
        %v3580 = vunpack.c.l.b16 %v1461
        %v3581 = vunpack.c.l.b16 %v1462
        %v3582 = vunpack.c.l.b16 %v1463
        %v3583 = vunpack.c.l.b16 %v1464
        %v3584 = vunpack.c.l.b16 %v1465
        %v3585 = vunpack.c.l.b16 %v1466
        %v3586 = vunpack.c.l.b16 %v1467
        %v3587 = vunpack.c.l.b16 %v1468
        %v3588 = vunpack.c.l.b16 %v1469
        %v3589 = vunpack.c.l.b16 %v1470
        %v3590 = vunpack.c.l.b16 %v1471
        %v3591 = vunpack.c.l.b16 %v1472
        %v3592 = vunpack.c.l.b16 %v1473
        %v3593 = vunpack.c.l.b16 %v1474
        %v3594 = vunpack.c.l.b16 %v1475
        %v3595 = vunpack.c.l.b16 %v1476
        %v3596 = vunpack.c.l.b16 %v1477
        %v3597 = vpack.c.b16 %v3502, %v3501
        %v3598 = vpack.c.b16 %v3504, %v3503
        %v3599 = vpack.c.b16 %v3506, %v3505
        %v3600 = vpack.c.b16 %v3508, %v3507
        %v3601 = vpack.c.b16 %v3510, %v3509
        %v3602 = vpack.c.b16 %v3512, %v3511
        %v3603 = vpack.c.b16 %v3514, %v3513
        %v3604 = vpack.c.b16 %v3516, %v3515
        %v3605 = vpack.c.b16 %v3518, %v3517
        %v3606 = vpack.c.b16 %v3520, %v3519
        %v3607 = vpack.c.b16 %v3522, %v3521
        %v3608 = vpack.c.b16 %v3524, %v3523
        %v3609 = vpack.c.b16 %v3526, %v3525
        %v3610 = vpack.c.b16 %v3528, %v3527
        %v3611 = vpack.c.b16 %v3530, %v3529
        %v3612 = vpack.c.b16 %v3532, %v3531
        %v3613 = vpack.c.b16 %v3534, %v3533
        %v3614 = vpack.c.b16 %v3536, %v3535
        %v3615 = vpack.c.b16 %v3538, %v3537
        %v3616 = vpack.c.b16 %v3540, %v3539
        %v3617 = vpack.c.b16 %v3542, %v3541
        %v3618 = vpack.c.b16 %v3544, %v3543
        %v3619 = vpack.c.b16 %v3546, %v3545
        %v3620 = vpack.c.b16 %v3548, %v3547
        %v3621 = vpack.c.b16 %v3550, %v3549
        %v3622 = vpack.c.b16 %v3552, %v3551
        %v3623 = vpack.c.b16 %v3554, %v3553
        %v3624 = vpack.c.b16 %v3556, %v3555
        %v3625 = vpack.c.b16 %v3558, %v3557
        %v3626 = vpack.c.b16 %v3560, %v3559
        %v3627 = vpack.c.b16 %v3562, %v3561
        %v3628 = vpack.c.b16 %v3564, %v3563
        %v3629 = vpack.c.b16 %v3566, %v3565
        %v3630 = vpack.c.b16 %v3568, %v3567
        %v3631 = vpack.c.b16 %v3570, %v3569
        %v3632 = vpack.c.b16 %v3572, %v3571
        %v3633 = vpack.c.b16 %v3574, %v3573
        %v3634 = vpack.c.b16 %v3576, %v3575
        %v3635 = vpack.c.b16 %v3578, %v3577
        %v3636 = vpack.c.b16 %v3580, %v3579
        %v3637 = vpack.c.b16 %v3582, %v3581
        %v3638 = vpack.c.b16 %v3584, %v3583
        %v3639 = vpack.c.b16 %v3586, %v3585
        %v3640 = vpack.c.b16 %v3588, %v3587
        %v3641 = vpack.c.b16 %v3590, %v3589
        %v3642 = vpack.c.b16 %v3592, %v3591
        %v3643 = vpack.c.b16 %v3594, %v3593
        %v3644 = vpack.c.b16 %v3596, %v3595
        %3693 = vmatprep.subr.bf16.mxu0 0
        %3694 = vmatpush1.bf16.msra.mxu0 %v3597
        %3695 = vmatprep.subr.bf16.mxu0 0
        %3696 = vmatpush1.bf16.msra.mxu0 %v3598
        %3697 = vmatprep.subr.bf16.mxu0 0
        %3698 = vmatpush1.bf16.msra.mxu0 %v3599
        %3699 = vmatprep.subr.bf16.mxu0 0
        %3700 = vmatpush1.bf16.msra.mxu0 %v3600
        %3701 = vmatprep.subr.bf16.mxu0 0
        %3702 = vmatpush1.bf16.msra.mxu0 %v3601
        %3703 = vmatprep.subr.bf16.mxu0 0
        %3704 = vmatpush1.bf16.msra.mxu0 %v3602
        %3705 = vmatprep.subr.bf16.mxu0 0
        %3706 = vmatpush1.bf16.msra.mxu0 %v3603
        %3707 = vmatprep.subr.bf16.mxu0 0
        %3708 = vmatpush1.bf16.msra.mxu0 %v3604
        %3709 = vmatprep.subr.bf16.mxu0 0
        %3710 = vmatpush1.bf16.msra.mxu0 %v3605
        %3711 = vmatprep.subr.bf16.mxu0 0
        %3712 = vmatpush1.bf16.msra.mxu0 %v3606
        %3713 = vmatprep.subr.bf16.mxu0 0
        %3714 = vmatpush1.bf16.msra.mxu0 %v3607
        %3715 = vmatprep.subr.bf16.mxu0 0
        %3716 = vmatpush1.bf16.msra.mxu0 %v3608
        %3717 = vmatprep.subr.bf16.mxu0 0
        %3718 = vmatpush1.bf16.msra.mxu0 %v3609
        %3719 = vmatprep.subr.bf16.mxu0 0
        %3720 = vmatpush1.bf16.msra.mxu0 %v3610
        %3721 = vmatprep.subr.bf16.mxu0 0
        %3722 = vmatpush1.bf16.msra.mxu0 %v3611
        %3723 = vmatprep.subr.bf16.mxu0 0
        %3724 = vmatpush1.bf16.msra.mxu0 %v3612
        %3725 = vmatprep.mubr.bf16.mxu0 %v2638
        %3726 = vmatmul.mubr.bf16.gmra.mrb[0].mxu0 %v2637
        %v3727 = vpop.f32.mrb[0].mxu0
        %v3728 = vadd.f32 %v1483, %v3727
        %v3729 = vpop.f32.mrb[0].mxu0
        %v3730 = vpop.f32.mrb[0].mxu0
        %v3731 = vadd.f32 %v1483, %v3730
        %v3732 = vpop.f32.mrb[0].mxu0
        %3733 = vmatprep.mubr.bf16.mxu0 %v2644
        %3734 = vmatmul.mubr.bf16.gmra.mrb[0].mxu0 %v2643
        %v3735 = vpop.f32.mrb[0].mxu0
        %v3736 = vadd.f32 %v1483, %v3735
        %v3737 = vpop.f32.mrb[0].mxu0
        %v3738 = vpop.f32.mrb[0].mxu0
        %v3739 = vadd.f32 %v1483, %v3738
        %v3740 = vpop.f32.mrb[0].mxu0
        %3741 = vmatprep.mubr.bf16.mxu0 %v2650
        %3742 = vmatmul.mubr.bf16.gmra.mrb[0].mxu0 %v2649
        %v3743 = vpop.f32.mrb[0].mxu0
        %v3744 = vadd.f32 %v1483, %v3743
        %v3745 = vpop.f32.mrb[0].mxu0
        %v3746 = vpop.f32.mrb[0].mxu0
        %v3747 = vadd.f32 %v1483, %v3746
        %v3748 = vpop.f32.mrb[0].mxu0
        %3749 = vmatprep.mubr.bf16.mxu0 %v2656
        %3750 = vmatmul.mubr.bf16.gmra.mrb[0].mxu0 %v2655
        %v3751 = vpop.f32.mrb[0].mxu0
        %v3752 = vadd.f32 %v1483, %v3751
        %v3753 = vpop.f32.mrb[0].mxu0
        %v3754 = vpop.f32.mrb[0].mxu0
        %v3755 = vadd.f32 %v1483, %v3754
        %v3756 = vpop.f32.mrb[0].mxu0
        %3757 = vmatprep.mubr.bf16.mxu0 %v2662
        %3758 = vmatmul.mubr.bf16.gmra.mrb[0].mxu0 %v2661
        %v3759 = vpop.f32.mrb[0].mxu0
        %v3760 = vadd.f32 %v1483, %v3759
        %v3761 = vpop.f32.mrb[0].mxu0
        %v3762 = vpop.f32.mrb[0].mxu0
        %v3763 = vadd.f32 %v1483, %v3762
        %v3764 = vpop.f32.mrb[0].mxu0
        %3765 = vmatprep.mubr.bf16.mxu0 %v2668
        %3766 = vmatmul.mubr.bf16.gmra.mrb[0].mxu0 %v2667
        %v3767 = vpop.f32.mrb[0].mxu0
        %v3768 = vadd.f32 %v1483, %v3767
        %v3769 = vpop.f32.mrb[0].mxu0
        %v3770 = vpop.f32.mrb[0].mxu0
        %v3771 = vadd.f32 %v1483, %v3770
        %v3772 = vpop.f32.mrb[0].mxu0
        %3773 = vmatprep.mubr.bf16.mxu0 %v2674
        %3774 = vmatmul.mubr.bf16.gmra.mrb[0].mxu0 %v2673
        %v3775 = vpop.f32.mrb[0].mxu0
        %v3776 = vadd.f32 %v1483, %v3775
        %v3777 = vpop.f32.mrb[0].mxu0
        %v3778 = vpop.f32.mrb[0].mxu0
        %v3779 = vadd.f32 %v1483, %v3778
        %v3780 = vpop.f32.mrb[0].mxu0
        %3781 = vmatprep.mubr.bf16.mxu0 %v2680
        %3782 = vmatmul.mubr.bf16.gmra.mrb[0].mxu0 %v2679
        %v3783 = vpop.f32.mrb[0].mxu0
        %v3784 = vadd.f32 %v1483, %v3783
        %v3785 = vpop.f32.mrb[0].mxu0
        %v3786 = vpop.f32.mrb[0].mxu0
        %v3787 = vadd.f32 %v1483, %v3786
        %v3788 = vpop.f32.mrb[0].mxu0
        %3789 = vmatprep.mubr.bf16.mxu0 %v2686
        %3790 = vmatmul.mubr.bf16.gmra.mrb[0].mxu0 %v2685
        %v3791 = vpop.f32.mrb[0].mxu0
        %v3792 = vadd.f32 %v1483, %v3791
        %v3793 = vpop.f32.mrb[0].mxu0
        %v3794 = vpop.f32.mrb[0].mxu0
        %v3795 = vadd.f32 %v1483, %v3794
        %v3796 = vpop.f32.mrb[0].mxu0
        %3797 = vmatprep.mubr.bf16.mxu0 %v2692
        %3798 = vmatmul.mubr.bf16.gmra.mrb[0].mxu0 %v2691
        %v3799 = vpop.f32.mrb[0].mxu0
        %v3800 = vadd.f32 %v1483, %v3799
        %v3801 = vpop.f32.mrb[0].mxu0
        %v3802 = vpop.f32.mrb[0].mxu0
        %v3803 = vadd.f32 %v1483, %v3802
        %v3804 = vpop.f32.mrb[0].mxu0
        %3805 = vmatprep.mubr.bf16.mxu0 %v2698
        %3806 = vmatmul.mubr.bf16.gmra.mrb[0].mxu0 %v2697
        %v3807 = vpop.f32.mrb[0].mxu0
        %v3808 = vadd.f32 %v1483, %v3807
        %v3809 = vpop.f32.mrb[0].mxu0
        %v3810 = vpop.f32.mrb[0].mxu0
        %v3811 = vadd.f32 %v1483, %v3810
        %v3812 = vpop.f32.mrb[0].mxu0
        %3813 = vmatprep.mubr.bf16.mxu0 %v2704
        %3814 = vmatmul.mubr.bf16.gmra.mrb[0].mxu0 %v2703
        %v3815 = vpop.f32.mrb[0].mxu0
        %v3816 = vadd.f32 %v1483, %v3815
        %v3817 = vpop.f32.mrb[0].mxu0
        %v3818 = vpop.f32.mrb[0].mxu0
        %v3819 = vadd.f32 %v1483, %v3818
        %v3820 = vpop.f32.mrb[0].mxu0
        %3821 = vmatprep.mubr.bf16.mxu0 %v2710
        %3822 = vmatmul.mubr.bf16.gmra.mrb[0].mxu0 %v2709
        %v3823 = vpop.f32.mrb[0].mxu0
        %v3824 = vadd.f32 %v1483, %v3823
        %v3825 = vpop.f32.mrb[0].mxu0
        %v3826 = vpop.f32.mrb[0].mxu0
        %v3827 = vadd.f32 %v1483, %v3826
        %v3828 = vpop.f32.mrb[0].mxu0
        %3829 = vmatprep.mubr.bf16.mxu0 %v2716
        %3830 = vmatmul.mubr.bf16.gmra.mrb[0].mxu0 %v2715
        %v3831 = vpop.f32.mrb[0].mxu0
        %v3832 = vadd.f32 %v1483, %v3831
        %v3833 = vpop.f32.mrb[0].mxu0
        %v3834 = vpop.f32.mrb[0].mxu0
        %v3835 = vadd.f32 %v1483, %v3834
        %v3836 = vpop.f32.mrb[0].mxu0
        %3837 = vmatprep.mubr.bf16.mxu0 %v2722
        %3838 = vmatmul.mubr.bf16.gmra.mrb[0].mxu0 %v2721
        %v3839 = vpop.f32.mrb[0].mxu0
        %v3840 = vadd.f32 %v1483, %v3839
        %v3841 = vpop.f32.mrb[0].mxu0
        %v3842 = vpop.f32.mrb[0].mxu0
        %v3843 = vadd.f32 %v1483, %v3842
        %v3844 = vpop.f32.mrb[0].mxu0
        %3845 = vmatprep.mubr.bf16.mxu0 %v2728
        %3846 = vmatmul.mubr.bf16.gmra.mrb[0].mxu0 %v2727
        %v3847 = vpop.f32.mrb[0].mxu0
        %v3848 = vadd.f32 %v1483, %v3847
        %v3849 = vpop.f32.mrb[0].mxu0
        %v3850 = vpop.f32.mrb[0].mxu0
        %v3851 = vadd.f32 %v1483, %v3850
        %v3852 = vpop.f32.mrb[0].mxu0
        %3853 = vmatprep.mubr.bf16.mxu0 %v2734
        %3854 = vmatmul.mubr.bf16.gmra.mrb[0].mxu0 %v2733
        %v3855 = vpop.f32.mrb[0].mxu0
        %v3856 = vadd.f32 %v1483, %v3855
        %v3857 = vpop.f32.mrb[0].mxu0
        %v3858 = vpop.f32.mrb[0].mxu0
        %v3859 = vadd.f32 %v1483, %v3858
        %v3860 = vpop.f32.mrb[0].mxu0
        %3861 = vmatprep.mubr.bf16.mxu0 %v2740
        %3862 = vmatmul.mubr.bf16.gmra.mrb[0].mxu0 %v2739
        %v3863 = vpop.f32.mrb[0].mxu0
        %v3864 = vadd.f32 %v1483, %v3863
        %v3865 = vpop.f32.mrb[0].mxu0
        %v3866 = vpop.f32.mrb[0].mxu0
        %v3867 = vadd.f32 %v1483, %v3866
        %v3868 = vpop.f32.mrb[0].mxu0
        %3869 = vmatprep.mubr.bf16.mxu0 %v2746
        %3870 = vmatmul.mubr.bf16.gmra.mrb[0].mxu0 %v2745
        %v3871 = vpop.f32.mrb[0].mxu0
        %v3872 = vadd.f32 %v1483, %v3871
        %v3873 = vpop.f32.mrb[0].mxu0
        %v3874 = vpop.f32.mrb[0].mxu0
        %v3875 = vadd.f32 %v1483, %v3874
        %v3876 = vpop.f32.mrb[0].mxu0
        %3877 = vmatprep.mubr.bf16.mxu0 %v2752
        %3878 = vmatmul.mubr.bf16.gmra.mrb[0].mxu0 %v2751
        %v3879 = vpop.f32.mrb[0].mxu0
        %v3880 = vadd.f32 %v1483, %v3879
        %v3881 = vpop.f32.mrb[0].mxu0
        %v3882 = vpop.f32.mrb[0].mxu0
        %v3883 = vadd.f32 %v1483, %v3882
        %v3884 = vpop.f32.mrb[0].mxu0
        %3885 = vmatprep.mubr.bf16.mxu0 %v2758
        %3886 = vmatmul.mubr.bf16.gmra.mrb[0].mxu0 %v2757
        %v3887 = vpop.f32.mrb[0].mxu0
        %v3888 = vadd.f32 %v1483, %v3887
        %v3889 = vpop.f32.mrb[0].mxu0
        %v3890 = vpop.f32.mrb[0].mxu0
        %v3891 = vadd.f32 %v1483, %v3890
        %v3892 = vpop.f32.mrb[0].mxu0
        %3893 = vmatprep.mubr.bf16.mxu0 %v2764
        %3894 = vmatmul.mubr.bf16.gmra.mrb[0].mxu0 %v2763
        %v3895 = vpop.f32.mrb[0].mxu0
        %v3896 = vadd.f32 %v1483, %v3895
        %v3897 = vpop.f32.mrb[0].mxu0
        %v3898 = vpop.f32.mrb[0].mxu0
        %v3899 = vadd.f32 %v1483, %v3898
        %v3900 = vpop.f32.mrb[0].mxu0
        %3901 = vmatprep.mubr.bf16.mxu0 %v2770
        %3902 = vmatmul.mubr.bf16.gmra.mrb[0].mxu0 %v2769
        %v3903 = vpop.f32.mrb[0].mxu0
        %v3904 = vadd.f32 %v1483, %v3903
        %v3905 = vpop.f32.mrb[0].mxu0
        %v3906 = vpop.f32.mrb[0].mxu0
        %v3907 = vadd.f32 %v1483, %v3906
        %v3908 = vpop.f32.mrb[0].mxu0
        %3909 = vmatprep.mubr.bf16.mxu0 %v2776
        %3910 = vmatmul.mubr.bf16.gmra.mrb[0].mxu0 %v2775
        %v3911 = vpop.f32.mrb[0].mxu0
        %v3912 = vadd.f32 %v1483, %v3911
        %v3913 = vpop.f32.mrb[0].mxu0
        %v3914 = vpop.f32.mrb[0].mxu0
        %v3915 = vadd.f32 %v1483, %v3914
        %v3916 = vpop.f32.mrb[0].mxu0
        %3917 = vmatprep.mubr.bf16.mxu0 %v2782
        %3918 = vmatmul.mubr.bf16.gmra.mrb[0].mxu0 %v2781
        %v3919 = vpop.f32.mrb[0].mxu0
        %v3920 = vadd.f32 %v1483, %v3919
        %v3921 = vpop.f32.mrb[0].mxu0
        %v3922 = vpop.f32.mrb[0].mxu0
        %v3923 = vadd.f32 %v1483, %v3922
        %v3924 = vpop.f32.mrb[0].mxu0
        %3925 = vmatprep.mubr.bf16.mxu0 %v2788
        %3926 = vmatmul.mubr.bf16.gmra.mrb[0].mxu0 %v2787
        %v3927 = vpop.f32.mrb[0].mxu0
        %v3928 = vadd.f32 %v1483, %v3927
        %v3929 = vpop.f32.mrb[0].mxu0
        %v3930 = vpop.f32.mrb[0].mxu0
        %v3931 = vadd.f32 %v1483, %v3930
        %v3932 = vpop.f32.mrb[0].mxu0
        %3933 = vmatprep.mubr.bf16.mxu0 %v2794
        %3934 = vmatmul.mubr.bf16.gmra.mrb[0].mxu0 %v2793
        %v3935 = vpop.f32.mrb[0].mxu0
        %v3936 = vadd.f32 %v1483, %v3935
        %v3937 = vpop.f32.mrb[0].mxu0
        %v3938 = vpop.f32.mrb[0].mxu0
        %v3939 = vadd.f32 %v1483, %v3938
        %v3940 = vpop.f32.mrb[0].mxu0
        %3941 = vmatprep.mubr.bf16.mxu0 %v2800
        %3942 = vmatmul.mubr.bf16.gmra.mrb[0].mxu0 %v2799
        %v3943 = vpop.f32.mrb[0].mxu0
        %v3944 = vadd.f32 %v1483, %v3943
        %v3945 = vpop.f32.mrb[0].mxu0
        %v3946 = vpop.f32.mrb[0].mxu0
        %v3947 = vadd.f32 %v1483, %v3946
        %v3948 = vpop.f32.mrb[0].mxu0
        %3949 = vmatprep.mubr.bf16.mxu0 %v2806
        %3950 = vmatmul.mubr.bf16.gmra.mrb[0].mxu0 %v2805
        %v3951 = vpop.f32.mrb[0].mxu0
        %v3952 = vadd.f32 %v1483, %v3951
        %v3953 = vpop.f32.mrb[0].mxu0
        %v3954 = vpop.f32.mrb[0].mxu0
        %v3955 = vadd.f32 %v1483, %v3954
        %v3956 = vpop.f32.mrb[0].mxu0
        %3957 = vmatprep.mubr.bf16.mxu0 %v2812
        %3958 = vmatmul.mubr.bf16.gmra.mrb[0].mxu0 %v2811
        %v3959 = vpop.f32.mrb[0].mxu0
        %v3960 = vadd.f32 %v1483, %v3959
        %v3961 = vpop.f32.mrb[0].mxu0
        %v3962 = vpop.f32.mrb[0].mxu0
        %v3963 = vadd.f32 %v1483, %v3962
        %v3964 = vpop.f32.mrb[0].mxu0
        %3965 = vmatprep.mubr.bf16.mxu0 %v2818
        %3966 = vmatmul.mubr.bf16.gmra.mrb[0].mxu0 %v2817
        %v3967 = vpop.f32.mrb[0].mxu0
        %v3968 = vadd.f32 %v1483, %v3967
        %v3969 = vpop.f32.mrb[0].mxu0
        %v3970 = vpop.f32.mrb[0].mxu0
        %v3971 = vadd.f32 %v1483, %v3970
        %v3972 = vpop.f32.mrb[0].mxu0
        %3973 = vmatprep.mubr.bf16.mxu0 %v2824
        %3974 = vmatmul.mubr.bf16.gmra.mrb[0].mxu0 %v2823
        %v3975 = vpop.f32.mrb[0].mxu0
        %v3976 = vadd.f32 %v1483, %v3975
        %v3977 = vpop.f32.mrb[0].mxu0
        %v3978 = vpop.f32.mrb[0].mxu0
        %v3979 = vadd.f32 %v1483, %v3978
        %v3980 = vpop.f32.mrb[0].mxu0
        %3981 = vmatprep.mubr.bf16.mxu0 %v2830
        %3982 = vmatmul.mubr.bf16.gmra.mrb[0].mxu0 %v2829
        %v3983 = vpop.f32.mrb[0].mxu0
        %v3984 = vadd.f32 %v1483, %v3983
        %v3985 = vpop.f32.mrb[0].mxu0
        %v3986 = vpop.f32.mrb[0].mxu0
        %v3987 = vadd.f32 %v1483, %v3986
        %v3988 = vpop.f32.mrb[0].mxu0
        %3989 = vmatprep.mubr.bf16.mxu0 %v2836
        %3990 = vmatmul.mubr.bf16.gmra.mrb[0].mxu0 %v2835
        %v3991 = vpop.f32.mrb[0].mxu0
        %v3992 = vadd.f32 %v1483, %v3991
        %v3993 = vpop.f32.mrb[0].mxu0
        %v3994 = vpop.f32.mrb[0].mxu0
        %v3995 = vadd.f32 %v1483, %v3994
        %v3996 = vpop.f32.mrb[0].mxu0
        %3997 = vmatprep.mubr.bf16.mxu0 %v2842
        %3998 = vmatmul.mubr.bf16.gmra.mrb[0].mxu0 %v2841
        %v3999 = vpop.f32.mrb[0].mxu0
        %v4000 = vadd.f32 %v1483, %v3999
        %v4001 = vpop.f32.mrb[0].mxu0
        %v4002 = vpop.f32.mrb[0].mxu0
        %v4003 = vadd.f32 %v1483, %v4002
        %v4004 = vpop.f32.mrb[0].mxu0
        %4005 = vmatprep.mubr.bf16.mxu0 %v2848
        %4006 = vmatmul.mubr.bf16.gmra.mrb[0].mxu0 %v2847
        %v4007 = vpop.f32.mrb[0].mxu0
        %v4008 = vadd.f32 %v1483, %v4007
        %v4009 = vpop.f32.mrb[0].mxu0
        %v4010 = vpop.f32.mrb[0].mxu0
        %v4011 = vadd.f32 %v1483, %v4010
        %v4012 = vpop.f32.mrb[0].mxu0
        %4013 = vmatprep.mubr.bf16.mxu0 %v2854
        %4014 = vmatmul.mubr.bf16.gmra.mrb[0].mxu0 %v2853
        %v4015 = vpop.f32.mrb[0].mxu0
        %v4016 = vadd.f32 %v1483, %v4015
        %v4017 = vpop.f32.mrb[0].mxu0
        %v4018 = vpop.f32.mrb[0].mxu0
        %v4019 = vadd.f32 %v1483, %v4018
        %v4020 = vpop.f32.mrb[0].mxu0
        %4021 = vmatprep.mubr.bf16.mxu0 %v2860
        %4022 = vmatmul.mubr.bf16.gmra.mrb[0].mxu0 %v2859
        %v4023 = vpop.f32.mrb[0].mxu0
        %v4024 = vadd.f32 %v1483, %v4023
        %v4025 = vpop.f32.mrb[0].mxu0
        %v4026 = vpop.f32.mrb[0].mxu0
        %v4027 = vadd.f32 %v1483, %v4026
        %v4028 = vpop.f32.mrb[0].mxu0
        %4029 = vmatprep.mubr.bf16.mxu0 %v2866
        %4030 = vmatmul.mubr.bf16.gmra.mrb[0].mxu0 %v2865
        %v4031 = vpop.f32.mrb[0].mxu0
        %v4032 = vadd.f32 %v1483, %v4031
        %v4033 = vpop.f32.mrb[0].mxu0
        %v4034 = vpop.f32.mrb[0].mxu0
        %v4035 = vadd.f32 %v1483, %v4034
        %v4036 = vpop.f32.mrb[0].mxu0
        %4037 = vmatprep.mubr.bf16.mxu0 %v2872
        %4038 = vmatmul.mubr.bf16.gmra.mrb[0].mxu0 %v2871
        %v4039 = vpop.f32.mrb[0].mxu0
        %v4040 = vadd.f32 %v1483, %v4039
        %v4041 = vpop.f32.mrb[0].mxu0
        %v4042 = vpop.f32.mrb[0].mxu0
        %v4043 = vadd.f32 %v1483, %v4042
        %v4044 = vpop.f32.mrb[0].mxu0
        %4045 = vmatprep.mubr.bf16.mxu0 %v2878
        %4046 = vmatmul.mubr.bf16.gmra.mrb[0].mxu0 %v2877
        %v4047 = vpop.f32.mrb[0].mxu0
        %v4048 = vadd.f32 %v1483, %v4047
        %v4049 = vpop.f32.mrb[0].mxu0
        %v4050 = vpop.f32.mrb[0].mxu0
        %v4051 = vadd.f32 %v1483, %v4050
        %v4052 = vpop.f32.mrb[0].mxu0
        %4053 = vmatprep.mubr.bf16.mxu0 %v2884
        %4054 = vmatmul.mubr.bf16.gmra.mrb[0].mxu0 %v2883
        %v4055 = vpop.f32.mrb[0].mxu0
        %v4056 = vadd.f32 %v1483, %v4055
        %v4057 = vpop.f32.mrb[0].mxu0
        %v4058 = vpop.f32.mrb[0].mxu0
        %v4059 = vadd.f32 %v1483, %v4058
        %v4060 = vpop.f32.mrb[0].mxu0
        %4061 = vmatprep.mubr.bf16.mxu0 %v2890
        %4062 = vmatmul.mubr.bf16.gmra.mrb[0].mxu0 %v2889
        %v4063 = vpop.f32.mrb[0].mxu0
        %v4064 = vadd.f32 %v1483, %v4063
        %v4065 = vpop.f32.mrb[0].mxu0
        %v4066 = vpop.f32.mrb[0].mxu0
        %v4067 = vadd.f32 %v1483, %v4066
        %v4068 = vpop.f32.mrb[0].mxu0
        %4069 = vmatprep.mubr.bf16.mxu0 %v2896
        %4070 = vmatmul.mubr.bf16.gmra.mrb[0].mxu0 %v2895
        %v4071 = vpop.f32.mrb[0].mxu0
        %v4072 = vadd.f32 %v1483, %v4071
        %v4073 = vpop.f32.mrb[0].mxu0
        %v4074 = vpop.f32.mrb[0].mxu0
        %v4075 = vadd.f32 %v1483, %v4074
        %v4076 = vpop.f32.mrb[0].mxu0
        %4077 = vmatprep.mubr.bf16.mxu0 %v2902
        %4078 = vmatmul.mubr.bf16.gmra.mrb[0].mxu0 %v2901
        %v4079 = vpop.f32.mrb[0].mxu0
        %v4080 = vadd.f32 %v1483, %v4079
        %v4081 = vpop.f32.mrb[0].mxu0
        %v4082 = vpop.f32.mrb[0].mxu0
        %v4083 = vadd.f32 %v1483, %v4082
        %v4084 = vpop.f32.mrb[0].mxu0
        %4085 = vmatprep.mubr.bf16.mxu0 %v2908
        %4086 = vmatmul.mubr.bf16.gmra.mrb[0].mxu0 %v2907
        %v4087 = vpop.f32.mrb[0].mxu0
        %v4088 = vadd.f32 %v1483, %v4087
        %v4089 = vpop.f32.mrb[0].mxu0
        %v4090 = vpop.f32.mrb[0].mxu0
        %v4091 = vadd.f32 %v1483, %v4090
        %v4092 = vpop.f32.mrb[0].mxu0
        %4093 = vmatprep.mubr.bf16.mxu0 %v2914
        %4094 = vmatmul.mubr.bf16.gmra.mrb[0].mxu0 %v2913
        %v4095 = vpop.f32.mrb[0].mxu0
        %v4096 = vadd.f32 %v1483, %v4095
        %v4097 = vpop.f32.mrb[0].mxu0
        %v4098 = vpop.f32.mrb[0].mxu0
        %v4099 = vadd.f32 %v1483, %v4098
        %v4100 = vpop.f32.mrb[0].mxu0
        %4101 = vmatprep.mubr.bf16.mxu0 %v2920
        %4102 = vmatmul.mubr.bf16.gmra.mrb[0].mxu0 %v2919
        %v4103 = vpop.f32.mrb[0].mxu0
        %v4104 = vadd.f32 %v1483, %v4103
        %v4105 = vpop.f32.mrb[0].mxu0
        %v4106 = vpop.f32.mrb[0].mxu0
        %v4107 = vadd.f32 %v1483, %v4106
        %v4108 = vpop.f32.mrb[0].mxu0
        %4109 = vmatprep.mubr.bf16.mxu0 %v2926
        %4110 = vmatmul.mubr.bf16.gmra.mrb[0].mxu0 %v2925
        %v4111 = vpop.f32.mrb[0].mxu0
        %v4112 = vadd.f32 %v1483, %v4111
        %v4113 = vpop.f32.mrb[0].mxu0
        %v4114 = vpop.f32.mrb[0].mxu0
        %v4115 = vadd.f32 %v1483, %v4114
        %v4116 = vpop.f32.mrb[0].mxu0
        %4117 = vmatprep.mubr.bf16.mxu0 %v2932
        %4118 = vmatmul.mubr.bf16.gmra.mrb[0].mxu0 %v2931
        %v4119 = vpop.f32.mrb[0].mxu0
        %v4120 = vadd.f32 %v1483, %v4119
        %v4121 = vpop.f32.mrb[0].mxu0
        %v4122 = vpop.f32.mrb[0].mxu0
        %v4123 = vadd.f32 %v1483, %v4122
        %v4124 = vpop.f32.mrb[0].mxu0
        %4125 = vmatprep.mubr.bf16.mxu0 %v2938
        %4126 = vmatmul.mubr.bf16.gmra.mrb[0].mxu0 %v2937
        %v4127 = vpop.f32.mrb[0].mxu0
        %v4128 = vadd.f32 %v1483, %v4127
        %v4129 = vpop.f32.mrb[0].mxu0
        %v4130 = vpop.f32.mrb[0].mxu0
        %v4131 = vadd.f32 %v1483, %v4130
        %v4132 = vpop.f32.mrb[0].mxu0
        %4133 = vmatprep.mubr.bf16.mxu0 %v2944
        %4134 = vmatmul.mubr.bf16.gmra.mrb[0].mxu0 %v2943
        %v4135 = vpop.f32.mrb[0].mxu0
        %v4136 = vadd.f32 %v1483, %v4135
        %v4137 = vpop.f32.mrb[0].mxu0
        %v4138 = vpop.f32.mrb[0].mxu0
        %v4139 = vadd.f32 %v1483, %v4138
        %v4140 = vpop.f32.mrb[0].mxu0
        %4141 = vmatprep.mubr.bf16.mxu0 %v2950
        %4142 = vmatmul.mubr.bf16.gmra.mrb[0].mxu0 %v2949
        %v4143 = vpop.f32.mrb[0].mxu0
        %v4144 = vadd.f32 %v1483, %v4143
        %v4145 = vpop.f32.mrb[0].mxu0
        %v4146 = vpop.f32.mrb[0].mxu0
        %v4147 = vadd.f32 %v1483, %v4146
        %v4148 = vpop.f32.mrb[0].mxu0
        %4149 = vmatprep.mubr.bf16.mxu0 %v2956
        %4150 = vmatmul.mubr.bf16.gmra.mrb[0].mxu0 %v2955
        %v4151 = vpop.f32.mrb[0].mxu0
        %v4152 = vadd.f32 %v1483, %v4151
        %v4153 = vpop.f32.mrb[0].mxu0
        %v4154 = vpop.f32.mrb[0].mxu0
        %v4155 = vadd.f32 %v1483, %v4154
        %v4156 = vpop.f32.mrb[0].mxu0
        %4157 = vmatprep.mubr.bf16.mxu0 %v2962
        %4158 = vmatmul.mubr.bf16.gmra.mrb[0].mxu0 %v2961
        %v4159 = vpop.f32.mrb[0].mxu0
        %v4160 = vadd.f32 %v1483, %v4159
        %v4161 = vpop.f32.mrb[0].mxu0
        %v4162 = vpop.f32.mrb[0].mxu0
        %v4163 = vadd.f32 %v1483, %v4162
        %v4164 = vpop.f32.mrb[0].mxu0
        %4165 = vmatprep.mubr.bf16.mxu0 %v2968
        %4166 = vmatmul.mubr.bf16.gmra.mrb[0].mxu0 %v2967
        %v4167 = vpop.f32.mrb[0].mxu0
        %v4168 = vadd.f32 %v1483, %v4167
        %v4169 = vpop.f32.mrb[0].mxu0
        %v4170 = vpop.f32.mrb[0].mxu0
        %v4171 = vadd.f32 %v1483, %v4170
        %v4172 = vpop.f32.mrb[0].mxu0
        %4173 = vmatprep.mubr.bf16.mxu0 %v2974
        %4174 = vmatmul.mubr.bf16.gmra.mrb[0].mxu0 %v2973
        %v4175 = vpop.f32.mrb[0].mxu0
        %v4176 = vadd.f32 %v1483, %v4175
        %v4177 = vpop.f32.mrb[0].mxu0
        %v4178 = vpop.f32.mrb[0].mxu0
        %v4179 = vadd.f32 %v1483, %v4178
        %v4180 = vpop.f32.mrb[0].mxu0
        %4181 = vmatprep.mubr.bf16.mxu0 %v2980
        %4182 = vmatmul.mubr.bf16.gmra.mrb[0].mxu0 %v2979
        %v4183 = vpop.f32.mrb[0].mxu0
        %v4184 = vadd.f32 %v1483, %v4183
        %v4185 = vpop.f32.mrb[0].mxu0
        %v4186 = vpop.f32.mrb[0].mxu0
        %v4187 = vadd.f32 %v1483, %v4186
        %v4188 = vpop.f32.mrb[0].mxu0
        %4189 = vmatprep.mubr.bf16.mxu0 %v2986
        %4190 = vmatmul.mubr.bf16.gmra.mrb[0].mxu0 %v2985
        %v4191 = vpop.f32.mrb[0].mxu0
        %v4192 = vadd.f32 %v1483, %v4191
        %v4193 = vpop.f32.mrb[0].mxu0
        %v4194 = vpop.f32.mrb[0].mxu0
        %v4195 = vadd.f32 %v1483, %v4194
        %v4196 = vpop.f32.mrb[0].mxu0
        %4197 = vmatprep.mubr.bf16.mxu0 %v2992
        %4198 = vmatmul.mubr.bf16.gmra.mrb[0].mxu0 %v2991
        %v4199 = vpop.f32.mrb[0].mxu0
        %v4200 = vadd.f32 %v1483, %v4199
        %v4201 = vpop.f32.mrb[0].mxu0
        %v4202 = vpop.f32.mrb[0].mxu0
        %v4203 = vadd.f32 %v1483, %v4202
        %v4204 = vpop.f32.mrb[0].mxu0
        %4205 = vmatprep.mubr.bf16.mxu0 %v2998
        %4206 = vmatmul.mubr.bf16.gmra.mrb[0].mxu0 %v2997
        %v4207 = vpop.f32.mrb[0].mxu0
        %v4208 = vadd.f32 %v1483, %v4207
        %v4209 = vpop.f32.mrb[0].mxu0
        %v4210 = vpop.f32.mrb[0].mxu0
        %v4211 = vadd.f32 %v1483, %v4210
        %v4212 = vpop.f32.mrb[0].mxu0
        %4213 = vmatprep.mubr.bf16.mxu0 %v3004
        %4214 = vmatmul.mubr.bf16.gmra.mrb[0].mxu0 %v3003
        %v4215 = vpop.f32.mrb[0].mxu0
        %v4216 = vadd.f32 %v1483, %v4215
        %v4217 = vpop.f32.mrb[0].mxu0
        %v4218 = vpop.f32.mrb[0].mxu0
        %v4219 = vadd.f32 %v1483, %v4218
        %v4220 = vpop.f32.mrb[0].mxu0
        %4221 = vmatprep.mubr.bf16.mxu0 %v3010
        %4222 = vmatmul.mubr.bf16.gmra.mrb[0].mxu0 %v3009
        %v4223 = vpop.f32.mrb[0].mxu0
        %v4224 = vadd.f32 %v1483, %v4223
        %v4225 = vpop.f32.mrb[0].mxu0
        %v4226 = vpop.f32.mrb[0].mxu0
        %v4227 = vadd.f32 %v1483, %v4226
        %v4228 = vpop.f32.mrb[0].mxu0
        %4229 = vmatprep.mubr.bf16.mxu0 %v3016
        %4230 = vmatmul.mubr.bf16.gmra.mrb[0].mxu0 %v3015
        %v4231 = vpop.f32.mrb[0].mxu0
        %v4232 = vadd.f32 %v1483, %v4231
        %v4233 = vpop.f32.mrb[0].mxu0
        %v4234 = vpop.f32.mrb[0].mxu0
        %v4235 = vadd.f32 %v1483, %v4234
        %v4236 = vpop.f32.mrb[0].mxu0
        %4237 = vdwg.mxu0
        %4238 = vmatprep.subr.bf16.mxu0 0
        %4239 = vmatpush1.bf16.msra.mxu0 %v3613
        %4240 = vmatprep.subr.bf16.mxu0 0
        %4241 = vmatpush1.bf16.msra.mxu0 %v3614
        %4242 = vmatprep.subr.bf16.mxu0 0
        %4243 = vmatpush1.bf16.msra.mxu0 %v3615
        %4244 = vmatprep.subr.bf16.mxu0 0
        %4245 = vmatpush1.bf16.msra.mxu0 %v3616
        %4246 = vmatprep.subr.bf16.mxu0 0
        %4247 = vmatpush1.bf16.msra.mxu0 %v3617
        %4248 = vmatprep.subr.bf16.mxu0 0
        %4249 = vmatpush1.bf16.msra.mxu0 %v3618
        %4250 = vmatprep.subr.bf16.mxu0 0
        %4251 = vmatpush1.bf16.msra.mxu0 %v3619
        %4252 = vmatprep.subr.bf16.mxu0 0
        %4253 = vmatpush1.bf16.msra.mxu0 %v3620
        %4254 = vmatprep.subr.bf16.mxu0 0
        %4255 = vmatpush1.bf16.msra.mxu0 %v3621
        %4256 = vmatprep.subr.bf16.mxu0 0
        %4257 = vmatpush1.bf16.msra.mxu0 %v3622
        %4258 = vmatprep.subr.bf16.mxu0 0
        %4259 = vmatpush1.bf16.msra.mxu0 %v3623
        %4260 = vmatprep.subr.bf16.mxu0 0
        %4261 = vmatpush1.bf16.msra.mxu0 %v3624
        %4262 = vmatprep.subr.bf16.mxu0 0
        %4263 = vmatpush1.bf16.msra.mxu0 %v3625
        %4264 = vmatprep.subr.bf16.mxu0 0
        %4265 = vmatpush1.bf16.msra.mxu0 %v3626
        %4266 = vmatprep.subr.bf16.mxu0 0
        %4267 = vmatpush1.bf16.msra.mxu0 %v3627
        %4268 = vmatprep.subr.bf16.mxu0 0
        %4269 = vmatpush1.bf16.msra.mxu0 %v3628
        %4270 = vmatprep.mubr.bf16.mxu0 %v2640
        %4271 = vmatmul.mubr.bf16.gmra.mrb[0].mxu0 %v2639
        %v4272 = vpop.f32.mrb[0].mxu0
        %v4273 = vadd.f32 %v3728, %v4272
        %v4274 = vpop.f32.mrb[0].mxu0
        %v4275 = vpop.f32.mrb[0].mxu0
        %v4276 = vadd.f32 %v3731, %v4275
        %v4277 = vpop.f32.mrb[0].mxu0
        %4278 = vmatprep.mubr.bf16.mxu0 %v2646
        %4279 = vmatmul.mubr.bf16.gmra.mrb[0].mxu0 %v2645
        %v4280 = vpop.f32.mrb[0].mxu0
        %v4281 = vadd.f32 %v3736, %v4280
        %v4282 = vpop.f32.mrb[0].mxu0
        %v4283 = vpop.f32.mrb[0].mxu0
        %v4284 = vadd.f32 %v3739, %v4283
        %v4285 = vpop.f32.mrb[0].mxu0
        %4286 = vmatprep.mubr.bf16.mxu0 %v2652
        %4287 = vmatmul.mubr.bf16.gmra.mrb[0].mxu0 %v2651
        %v4288 = vpop.f32.mrb[0].mxu0
        %v4289 = vadd.f32 %v3744, %v4288
        %v4290 = vpop.f32.mrb[0].mxu0
        %v4291 = vpop.f32.mrb[0].mxu0
        %v4292 = vadd.f32 %v3747, %v4291
        %v4293 = vpop.f32.mrb[0].mxu0
        %4294 = vmatprep.mubr.bf16.mxu0 %v2658
        %4295 = vmatmul.mubr.bf16.gmra.mrb[0].mxu0 %v2657
        %v4296 = vpop.f32.mrb[0].mxu0
        %v4297 = vadd.f32 %v3752, %v4296
        %v4298 = vpop.f32.mrb[0].mxu0
        %v4299 = vpop.f32.mrb[0].mxu0
        %v4300 = vadd.f32 %v3755, %v4299
        %v4301 = vpop.f32.mrb[0].mxu0
        %4302 = vmatprep.mubr.bf16.mxu0 %v2664
        %4303 = vmatmul.mubr.bf16.gmra.mrb[0].mxu0 %v2663
        %v4304 = vpop.f32.mrb[0].mxu0
        %v4305 = vadd.f32 %v3760, %v4304
        %v4306 = vpop.f32.mrb[0].mxu0
        %v4307 = vpop.f32.mrb[0].mxu0
        %v4308 = vadd.f32 %v3763, %v4307
        %v4309 = vpop.f32.mrb[0].mxu0
        %4310 = vmatprep.mubr.bf16.mxu0 %v2670
        %4311 = vmatmul.mubr.bf16.gmra.mrb[0].mxu0 %v2669
        %v4312 = vpop.f32.mrb[0].mxu0
        %v4313 = vadd.f32 %v3768, %v4312
        %v4314 = vpop.f32.mrb[0].mxu0
        %v4315 = vpop.f32.mrb[0].mxu0
        %v4316 = vadd.f32 %v3771, %v4315
        %v4317 = vpop.f32.mrb[0].mxu0
        %4318 = vmatprep.mubr.bf16.mxu0 %v2676
        %4319 = vmatmul.mubr.bf16.gmra.mrb[0].mxu0 %v2675
        %v4320 = vpop.f32.mrb[0].mxu0
        %v4321 = vadd.f32 %v3776, %v4320
        %v4322 = vpop.f32.mrb[0].mxu0
        %v4323 = vpop.f32.mrb[0].mxu0
        %v4324 = vadd.f32 %v3779, %v4323
        %v4325 = vpop.f32.mrb[0].mxu0
        %4326 = vmatprep.mubr.bf16.mxu0 %v2682
        %4327 = vmatmul.mubr.bf16.gmra.mrb[0].mxu0 %v2681
        %v4328 = vpop.f32.mrb[0].mxu0
        %v4329 = vadd.f32 %v3784, %v4328
        %v4330 = vpop.f32.mrb[0].mxu0
        %v4331 = vpop.f32.mrb[0].mxu0
        %v4332 = vadd.f32 %v3787, %v4331
        %v4333 = vpop.f32.mrb[0].mxu0
        %4334 = vmatprep.mubr.bf16.mxu0 %v2688
        %4335 = vmatmul.mubr.bf16.gmra.mrb[0].mxu0 %v2687
        %v4336 = vpop.f32.mrb[0].mxu0
        %v4337 = vadd.f32 %v3792, %v4336
        %v4338 = vpop.f32.mrb[0].mxu0
        %v4339 = vpop.f32.mrb[0].mxu0
        %v4340 = vadd.f32 %v3795, %v4339
        %v4341 = vpop.f32.mrb[0].mxu0
        %4342 = vmatprep.mubr.bf16.mxu0 %v2694
        %4343 = vmatmul.mubr.bf16.gmra.mrb[0].mxu0 %v2693
        %v4344 = vpop.f32.mrb[0].mxu0
        %v4345 = vadd.f32 %v3800, %v4344
        %v4346 = vpop.f32.mrb[0].mxu0
        %v4347 = vpop.f32.mrb[0].mxu0
        %v4348 = vadd.f32 %v3803, %v4347
        %v4349 = vpop.f32.mrb[0].mxu0
        %4350 = vmatprep.mubr.bf16.mxu0 %v2700
        %4351 = vmatmul.mubr.bf16.gmra.mrb[0].mxu0 %v2699
        %v4352 = vpop.f32.mrb[0].mxu0
        %v4353 = vadd.f32 %v3808, %v4352
        %v4354 = vpop.f32.mrb[0].mxu0
        %v4355 = vpop.f32.mrb[0].mxu0
        %v4356 = vadd.f32 %v3811, %v4355
        %v4357 = vpop.f32.mrb[0].mxu0
        %4358 = vmatprep.mubr.bf16.mxu0 %v2706
        %4359 = vmatmul.mubr.bf16.gmra.mrb[0].mxu0 %v2705
        %v4360 = vpop.f32.mrb[0].mxu0
        %v4361 = vadd.f32 %v3816, %v4360
        %v4362 = vpop.f32.mrb[0].mxu0
        %v4363 = vpop.f32.mrb[0].mxu0
        %v4364 = vadd.f32 %v3819, %v4363
        %v4365 = vpop.f32.mrb[0].mxu0
        %4366 = vmatprep.mubr.bf16.mxu0 %v2712
        %4367 = vmatmul.mubr.bf16.gmra.mrb[0].mxu0 %v2711
        %v4368 = vpop.f32.mrb[0].mxu0
        %v4369 = vadd.f32 %v3824, %v4368
        %v4370 = vpop.f32.mrb[0].mxu0
        %v4371 = vpop.f32.mrb[0].mxu0
        %v4372 = vadd.f32 %v3827, %v4371
        %v4373 = vpop.f32.mrb[0].mxu0
        %4374 = vmatprep.mubr.bf16.mxu0 %v2718
        %4375 = vmatmul.mubr.bf16.gmra.mrb[0].mxu0 %v2717
        %v4376 = vpop.f32.mrb[0].mxu0
        %v4377 = vadd.f32 %v3832, %v4376
        %v4378 = vpop.f32.mrb[0].mxu0
        %v4379 = vpop.f32.mrb[0].mxu0
        %v4380 = vadd.f32 %v3835, %v4379
        %v4381 = vpop.f32.mrb[0].mxu0
        %4382 = vmatprep.mubr.bf16.mxu0 %v2724
        %4383 = vmatmul.mubr.bf16.gmra.mrb[0].mxu0 %v2723
        %v4384 = vpop.f32.mrb[0].mxu0
        %v4385 = vadd.f32 %v3840, %v4384
        %v4386 = vpop.f32.mrb[0].mxu0
        %v4387 = vpop.f32.mrb[0].mxu0
        %v4388 = vadd.f32 %v3843, %v4387
        %v4389 = vpop.f32.mrb[0].mxu0
        %4390 = vmatprep.mubr.bf16.mxu0 %v2730
        %4391 = vmatmul.mubr.bf16.gmra.mrb[0].mxu0 %v2729
        %v4392 = vpop.f32.mrb[0].mxu0
        %v4393 = vadd.f32 %v3848, %v4392
        %v4394 = vpop.f32.mrb[0].mxu0
        %v4395 = vpop.f32.mrb[0].mxu0
        %v4396 = vadd.f32 %v3851, %v4395
        %v4397 = vpop.f32.mrb[0].mxu0
        %4398 = vmatprep.mubr.bf16.mxu0 %v2736
        %4399 = vmatmul.mubr.bf16.gmra.mrb[0].mxu0 %v2735
        %v4400 = vpop.f32.mrb[0].mxu0
        %v4401 = vadd.f32 %v3856, %v4400
        %v4402 = vpop.f32.mrb[0].mxu0
        %v4403 = vpop.f32.mrb[0].mxu0
        %v4404 = vadd.f32 %v3859, %v4403
        %v4405 = vpop.f32.mrb[0].mxu0
        %4406 = vmatprep.mubr.bf16.mxu0 %v2742
        %4407 = vmatmul.mubr.bf16.gmra.mrb[0].mxu0 %v2741
        %v4408 = vpop.f32.mrb[0].mxu0
        %v4409 = vadd.f32 %v3864, %v4408
        %v4410 = vpop.f32.mrb[0].mxu0
        %v4411 = vpop.f32.mrb[0].mxu0
        %v4412 = vadd.f32 %v3867, %v4411
        %v4413 = vpop.f32.mrb[0].mxu0
        %4414 = vmatprep.mubr.bf16.mxu0 %v2748
        %4415 = vmatmul.mubr.bf16.gmra.mrb[0].mxu0 %v2747
        %v4416 = vpop.f32.mrb[0].mxu0
        %v4417 = vadd.f32 %v3872, %v4416
        %v4418 = vpop.f32.mrb[0].mxu0
        %v4419 = vpop.f32.mrb[0].mxu0
        %v4420 = vadd.f32 %v3875, %v4419
        %v4421 = vpop.f32.mrb[0].mxu0
        %4422 = vmatprep.mubr.bf16.mxu0 %v2754
        %4423 = vmatmul.mubr.bf16.gmra.mrb[0].mxu0 %v2753
        %v4424 = vpop.f32.mrb[0].mxu0
        %v4425 = vadd.f32 %v3880, %v4424
        %v4426 = vpop.f32.mrb[0].mxu0
        %v4427 = vpop.f32.mrb[0].mxu0
        %v4428 = vadd.f32 %v3883, %v4427
        %v4429 = vpop.f32.mrb[0].mxu0
        %4430 = vmatprep.mubr.bf16.mxu0 %v2760
        %4431 = vmatmul.mubr.bf16.gmra.mrb[0].mxu0 %v2759
        %v4432 = vpop.f32.mrb[0].mxu0
        %v4433 = vadd.f32 %v3888, %v4432
        %v4434 = vpop.f32.mrb[0].mxu0
        %v4435 = vpop.f32.mrb[0].mxu0
        %v4436 = vadd.f32 %v3891, %v4435
        %v4437 = vpop.f32.mrb[0].mxu0
        %4438 = vmatprep.mubr.bf16.mxu0 %v2766
        %4439 = vmatmul.mubr.bf16.gmra.mrb[0].mxu0 %v2765
        %v4440 = vpop.f32.mrb[0].mxu0
        %v4441 = vadd.f32 %v3896, %v4440
        %v4442 = vpop.f32.mrb[0].mxu0
        %v4443 = vpop.f32.mrb[0].mxu0
        %v4444 = vadd.f32 %v3899, %v4443
        %v4445 = vpop.f32.mrb[0].mxu0
        %4446 = vmatprep.mubr.bf16.mxu0 %v2772
        %4447 = vmatmul.mubr.bf16.gmra.mrb[0].mxu0 %v2771
        %v4448 = vpop.f32.mrb[0].mxu0
        %v4449 = vadd.f32 %v3904, %v4448
        %v4450 = vpop.f32.mrb[0].mxu0
        %v4451 = vpop.f32.mrb[0].mxu0
        %v4452 = vadd.f32 %v3907, %v4451
        %v4453 = vpop.f32.mrb[0].mxu0
        %4454 = vmatprep.mubr.bf16.mxu0 %v2778
        %4455 = vmatmul.mubr.bf16.gmra.mrb[0].mxu0 %v2777
        %v4456 = vpop.f32.mrb[0].mxu0
        %v4457 = vadd.f32 %v3912, %v4456
        %v4458 = vpop.f32.mrb[0].mxu0
        %v4459 = vpop.f32.mrb[0].mxu0
        %v4460 = vadd.f32 %v3915, %v4459
        %v4461 = vpop.f32.mrb[0].mxu0
        %4462 = vmatprep.mubr.bf16.mxu0 %v2784
        %4463 = vmatmul.mubr.bf16.gmra.mrb[0].mxu0 %v2783
        %v4464 = vpop.f32.mrb[0].mxu0
        %v4465 = vadd.f32 %v3920, %v4464
        %v4466 = vpop.f32.mrb[0].mxu0
        %v4467 = vpop.f32.mrb[0].mxu0
        %v4468 = vadd.f32 %v3923, %v4467
        %v4469 = vpop.f32.mrb[0].mxu0
        %4470 = vmatprep.mubr.bf16.mxu0 %v2790
        %4471 = vmatmul.mubr.bf16.gmra.mrb[0].mxu0 %v2789
        %v4472 = vpop.f32.mrb[0].mxu0
        %v4473 = vadd.f32 %v3928, %v4472
        %v4474 = vpop.f32.mrb[0].mxu0
        %v4475 = vpop.f32.mrb[0].mxu0
        %v4476 = vadd.f32 %v3931, %v4475
        %v4477 = vpop.f32.mrb[0].mxu0
        %4478 = vmatprep.mubr.bf16.mxu0 %v2796
        %4479 = vmatmul.mubr.bf16.gmra.mrb[0].mxu0 %v2795
        %v4480 = vpop.f32.mrb[0].mxu0
        %v4481 = vadd.f32 %v3936, %v4480
        %v4482 = vpop.f32.mrb[0].mxu0
        %v4483 = vpop.f32.mrb[0].mxu0
        %v4484 = vadd.f32 %v3939, %v4483
        %v4485 = vpop.f32.mrb[0].mxu0
        %4486 = vmatprep.mubr.bf16.mxu0 %v2802
        %4487 = vmatmul.mubr.bf16.gmra.mrb[0].mxu0 %v2801
        %v4488 = vpop.f32.mrb[0].mxu0
        %v4489 = vadd.f32 %v3944, %v4488
        %v4490 = vpop.f32.mrb[0].mxu0
        %v4491 = vpop.f32.mrb[0].mxu0
        %v4492 = vadd.f32 %v3947, %v4491
        %v4493 = vpop.f32.mrb[0].mxu0
        %4494 = vmatprep.mubr.bf16.mxu0 %v2808
        %4495 = vmatmul.mubr.bf16.gmra.mrb[0].mxu0 %v2807
        %v4496 = vpop.f32.mrb[0].mxu0
        %v4497 = vadd.f32 %v3952, %v4496
        %v4498 = vpop.f32.mrb[0].mxu0
        %v4499 = vpop.f32.mrb[0].mxu0
        %v4500 = vadd.f32 %v3955, %v4499
        %v4501 = vpop.f32.mrb[0].mxu0
        %4502 = vmatprep.mubr.bf16.mxu0 %v2814
        %4503 = vmatmul.mubr.bf16.gmra.mrb[0].mxu0 %v2813
        %v4504 = vpop.f32.mrb[0].mxu0
        %v4505 = vadd.f32 %v3960, %v4504
        %v4506 = vpop.f32.mrb[0].mxu0
        %v4507 = vpop.f32.mrb[0].mxu0
        %v4508 = vadd.f32 %v3963, %v4507
        %v4509 = vpop.f32.mrb[0].mxu0
        %4510 = vmatprep.mubr.bf16.mxu0 %v2820
        %4511 = vmatmul.mubr.bf16.gmra.mrb[0].mxu0 %v2819
        %v4512 = vpop.f32.mrb[0].mxu0
        %v4513 = vadd.f32 %v3968, %v4512
        %v4514 = vpop.f32.mrb[0].mxu0
        %v4515 = vpop.f32.mrb[0].mxu0
        %v4516 = vadd.f32 %v3971, %v4515
        %v4517 = vpop.f32.mrb[0].mxu0
        %4518 = vmatprep.mubr.bf16.mxu0 %v2826
        %4519 = vmatmul.mubr.bf16.gmra.mrb[0].mxu0 %v2825
        %v4520 = vpop.f32.mrb[0].mxu0
        %v4521 = vadd.f32 %v3976, %v4520
        %v4522 = vpop.f32.mrb[0].mxu0
        %v4523 = vpop.f32.mrb[0].mxu0
        %v4524 = vadd.f32 %v3979, %v4523
        %v4525 = vpop.f32.mrb[0].mxu0
        %4526 = vmatprep.mubr.bf16.mxu0 %v2832
        %4527 = vmatmul.mubr.bf16.gmra.mrb[0].mxu0 %v2831
        %v4528 = vpop.f32.mrb[0].mxu0
        %v4529 = vadd.f32 %v3984, %v4528
        %v4530 = vpop.f32.mrb[0].mxu0
        %v4531 = vpop.f32.mrb[0].mxu0
        %v4532 = vadd.f32 %v3987, %v4531
        %v4533 = vpop.f32.mrb[0].mxu0
        %4534 = vmatprep.mubr.bf16.mxu0 %v2838
        %4535 = vmatmul.mubr.bf16.gmra.mrb[0].mxu0 %v2837
        %v4536 = vpop.f32.mrb[0].mxu0
        %v4537 = vadd.f32 %v3992, %v4536
        %v4538 = vpop.f32.mrb[0].mxu0
        %v4539 = vpop.f32.mrb[0].mxu0
        %v4540 = vadd.f32 %v3995, %v4539
        %v4541 = vpop.f32.mrb[0].mxu0
        %4542 = vmatprep.mubr.bf16.mxu0 %v2844
        %4543 = vmatmul.mubr.bf16.gmra.mrb[0].mxu0 %v2843
        %v4544 = vpop.f32.mrb[0].mxu0
        %v4545 = vadd.f32 %v4000, %v4544
        %v4546 = vpop.f32.mrb[0].mxu0
        %v4547 = vpop.f32.mrb[0].mxu0
        %v4548 = vadd.f32 %v4003, %v4547
        %v4549 = vpop.f32.mrb[0].mxu0
        %4550 = vmatprep.mubr.bf16.mxu0 %v2850
        %4551 = vmatmul.mubr.bf16.gmra.mrb[0].mxu0 %v2849
        %v4552 = vpop.f32.mrb[0].mxu0
        %v4553 = vadd.f32 %v4008, %v4552
        %v4554 = vpop.f32.mrb[0].mxu0
        %v4555 = vpop.f32.mrb[0].mxu0
        %v4556 = vadd.f32 %v4011, %v4555
        %v4557 = vpop.f32.mrb[0].mxu0
        %4558 = vmatprep.mubr.bf16.mxu0 %v2856
        %4559 = vmatmul.mubr.bf16.gmra.mrb[0].mxu0 %v2855
        %v4560 = vpop.f32.mrb[0].mxu0
        %v4561 = vadd.f32 %v4016, %v4560
        %v4562 = vpop.f32.mrb[0].mxu0
        %v4563 = vpop.f32.mrb[0].mxu0
        %v4564 = vadd.f32 %v4019, %v4563
        %v4565 = vpop.f32.mrb[0].mxu0
        %4566 = vmatprep.mubr.bf16.mxu0 %v2862
        %4567 = vmatmul.mubr.bf16.gmra.mrb[0].mxu0 %v2861
        %v4568 = vpop.f32.mrb[0].mxu0
        %v4569 = vadd.f32 %v4024, %v4568
        %v4570 = vpop.f32.mrb[0].mxu0
        %v4571 = vpop.f32.mrb[0].mxu0
        %v4572 = vadd.f32 %v4027, %v4571
        %v4573 = vpop.f32.mrb[0].mxu0
        %4574 = vmatprep.mubr.bf16.mxu0 %v2868
        %4575 = vmatmul.mubr.bf16.gmra.mrb[0].mxu0 %v2867
        %v4576 = vpop.f32.mrb[0].mxu0
        %v4577 = vadd.f32 %v4032, %v4576
        %v4578 = vpop.f32.mrb[0].mxu0
        %v4579 = vpop.f32.mrb[0].mxu0
        %v4580 = vadd.f32 %v4035, %v4579
        %v4581 = vpop.f32.mrb[0].mxu0
        %4582 = vmatprep.mubr.bf16.mxu0 %v2874
        %4583 = vmatmul.mubr.bf16.gmra.mrb[0].mxu0 %v2873
        %v4584 = vpop.f32.mrb[0].mxu0
        %v4585 = vadd.f32 %v4040, %v4584
        %v4586 = vpop.f32.mrb[0].mxu0
        %v4587 = vpop.f32.mrb[0].mxu0
        %v4588 = vadd.f32 %v4043, %v4587
        %v4589 = vpop.f32.mrb[0].mxu0
        %4590 = vmatprep.mubr.bf16.mxu0 %v2880
        %4591 = vmatmul.mubr.bf16.gmra.mrb[0].mxu0 %v2879
        %v4592 = vpop.f32.mrb[0].mxu0
        %v4593 = vadd.f32 %v4048, %v4592
        %v4594 = vpop.f32.mrb[0].mxu0
        %v4595 = vpop.f32.mrb[0].mxu0
        %v4596 = vadd.f32 %v4051, %v4595
        %v4597 = vpop.f32.mrb[0].mxu0
        %4598 = vmatprep.mubr.bf16.mxu0 %v2886
        %4599 = vmatmul.mubr.bf16.gmra.mrb[0].mxu0 %v2885
        %v4600 = vpop.f32.mrb[0].mxu0
        %v4601 = vadd.f32 %v4056, %v4600
        %v4602 = vpop.f32.mrb[0].mxu0
        %v4603 = vpop.f32.mrb[0].mxu0
        %v4604 = vadd.f32 %v4059, %v4603
        %v4605 = vpop.f32.mrb[0].mxu0
        %4606 = vmatprep.mubr.bf16.mxu0 %v2892
        %4607 = vmatmul.mubr.bf16.gmra.mrb[0].mxu0 %v2891
        %v4608 = vpop.f32.mrb[0].mxu0
        %v4609 = vadd.f32 %v4064, %v4608
        %v4610 = vpop.f32.mrb[0].mxu0
        %v4611 = vpop.f32.mrb[0].mxu0
        %v4612 = vadd.f32 %v4067, %v4611
        %v4613 = vpop.f32.mrb[0].mxu0
        %4614 = vmatprep.mubr.bf16.mxu0 %v2898
        %4615 = vmatmul.mubr.bf16.gmra.mrb[0].mxu0 %v2897
        %v4616 = vpop.f32.mrb[0].mxu0
        %v4617 = vadd.f32 %v4072, %v4616
        %v4618 = vpop.f32.mrb[0].mxu0
        %v4619 = vpop.f32.mrb[0].mxu0
        %v4620 = vadd.f32 %v4075, %v4619
        %v4621 = vpop.f32.mrb[0].mxu0
        %4622 = vmatprep.mubr.bf16.mxu0 %v2904
        %4623 = vmatmul.mubr.bf16.gmra.mrb[0].mxu0 %v2903
        %v4624 = vpop.f32.mrb[0].mxu0
        %v4625 = vadd.f32 %v4080, %v4624
        %v4626 = vpop.f32.mrb[0].mxu0
        %v4627 = vpop.f32.mrb[0].mxu0
        %v4628 = vadd.f32 %v4083, %v4627
        %v4629 = vpop.f32.mrb[0].mxu0
        %4630 = vmatprep.mubr.bf16.mxu0 %v2910
        %4631 = vmatmul.mubr.bf16.gmra.mrb[0].mxu0 %v2909
        %v4632 = vpop.f32.mrb[0].mxu0
        %v4633 = vadd.f32 %v4088, %v4632
        %v4634 = vpop.f32.mrb[0].mxu0
        %v4635 = vpop.f32.mrb[0].mxu0
        %v4636 = vadd.f32 %v4091, %v4635
        %v4637 = vpop.f32.mrb[0].mxu0
        %4638 = vmatprep.mubr.bf16.mxu0 %v2916
        %4639 = vmatmul.mubr.bf16.gmra.mrb[0].mxu0 %v2915
        %v4640 = vpop.f32.mrb[0].mxu0
        %v4641 = vadd.f32 %v4096, %v4640
        %v4642 = vpop.f32.mrb[0].mxu0
        %v4643 = vpop.f32.mrb[0].mxu0
        %v4644 = vadd.f32 %v4099, %v4643
        %v4645 = vpop.f32.mrb[0].mxu0
        %4646 = vmatprep.mubr.bf16.mxu0 %v2922
        %4647 = vmatmul.mubr.bf16.gmra.mrb[0].mxu0 %v2921
        %v4648 = vpop.f32.mrb[0].mxu0
        %v4649 = vadd.f32 %v4104, %v4648
        %v4650 = vpop.f32.mrb[0].mxu0
        %v4651 = vpop.f32.mrb[0].mxu0
        %v4652 = vadd.f32 %v4107, %v4651
        %v4653 = vpop.f32.mrb[0].mxu0
        %4654 = vmatprep.mubr.bf16.mxu0 %v2928
        %4655 = vmatmul.mubr.bf16.gmra.mrb[0].mxu0 %v2927
        %v4656 = vpop.f32.mrb[0].mxu0
        %v4657 = vadd.f32 %v4112, %v4656
        %v4658 = vpop.f32.mrb[0].mxu0
        %v4659 = vpop.f32.mrb[0].mxu0
        %v4660 = vadd.f32 %v4115, %v4659
        %v4661 = vpop.f32.mrb[0].mxu0
        %4662 = vmatprep.mubr.bf16.mxu0 %v2934
        %4663 = vmatmul.mubr.bf16.gmra.mrb[0].mxu0 %v2933
        %v4664 = vpop.f32.mrb[0].mxu0
        %v4665 = vadd.f32 %v4120, %v4664
        %v4666 = vpop.f32.mrb[0].mxu0
        %v4667 = vpop.f32.mrb[0].mxu0
        %v4668 = vadd.f32 %v4123, %v4667
        %v4669 = vpop.f32.mrb[0].mxu0
        %4670 = vmatprep.mubr.bf16.mxu0 %v2940
        %4671 = vmatmul.mubr.bf16.gmra.mrb[0].mxu0 %v2939
        %v4672 = vpop.f32.mrb[0].mxu0
        %v4673 = vadd.f32 %v4128, %v4672
        %v4674 = vpop.f32.mrb[0].mxu0
        %v4675 = vpop.f32.mrb[0].mxu0
        %v4676 = vadd.f32 %v4131, %v4675
        %v4677 = vpop.f32.mrb[0].mxu0
        %4678 = vmatprep.mubr.bf16.mxu0 %v2946
        %4679 = vmatmul.mubr.bf16.gmra.mrb[0].mxu0 %v2945
        %v4680 = vpop.f32.mrb[0].mxu0
        %v4681 = vadd.f32 %v4136, %v4680
        %v4682 = vpop.f32.mrb[0].mxu0
        %v4683 = vpop.f32.mrb[0].mxu0
        %v4684 = vadd.f32 %v4139, %v4683
        %v4685 = vpop.f32.mrb[0].mxu0
        %4686 = vmatprep.mubr.bf16.mxu0 %v2952
        %4687 = vmatmul.mubr.bf16.gmra.mrb[0].mxu0 %v2951
        %v4688 = vpop.f32.mrb[0].mxu0
        %v4689 = vadd.f32 %v4144, %v4688
        %v4690 = vpop.f32.mrb[0].mxu0
        %v4691 = vpop.f32.mrb[0].mxu0
        %v4692 = vadd.f32 %v4147, %v4691
        %v4693 = vpop.f32.mrb[0].mxu0
        %4694 = vmatprep.mubr.bf16.mxu0 %v2958
        %4695 = vmatmul.mubr.bf16.gmra.mrb[0].mxu0 %v2957
        %v4696 = vpop.f32.mrb[0].mxu0
        %v4697 = vadd.f32 %v4152, %v4696
        %v4698 = vpop.f32.mrb[0].mxu0
        %v4699 = vpop.f32.mrb[0].mxu0
        %v4700 = vadd.f32 %v4155, %v4699
        %v4701 = vpop.f32.mrb[0].mxu0
        %4702 = vmatprep.mubr.bf16.mxu0 %v2964
        %4703 = vmatmul.mubr.bf16.gmra.mrb[0].mxu0 %v2963
        %v4704 = vpop.f32.mrb[0].mxu0
        %v4705 = vadd.f32 %v4160, %v4704
        %v4706 = vpop.f32.mrb[0].mxu0
        %v4707 = vpop.f32.mrb[0].mxu0
        %v4708 = vadd.f32 %v4163, %v4707
        %v4709 = vpop.f32.mrb[0].mxu0
        %4710 = vmatprep.mubr.bf16.mxu0 %v2970
        %4711 = vmatmul.mubr.bf16.gmra.mrb[0].mxu0 %v2969
        %v4712 = vpop.f32.mrb[0].mxu0
        %v4713 = vadd.f32 %v4168, %v4712
        %v4714 = vpop.f32.mrb[0].mxu0
        %v4715 = vpop.f32.mrb[0].mxu0
        %v4716 = vadd.f32 %v4171, %v4715
        %v4717 = vpop.f32.mrb[0].mxu0
        %4718 = vmatprep.mubr.bf16.mxu0 %v2976
        %4719 = vmatmul.mubr.bf16.gmra.mrb[0].mxu0 %v2975
        %v4720 = vpop.f32.mrb[0].mxu0
        %v4721 = vadd.f32 %v4176, %v4720
        %v4722 = vpop.f32.mrb[0].mxu0
        %v4723 = vpop.f32.mrb[0].mxu0
        %v4724 = vadd.f32 %v4179, %v4723
        %v4725 = vpop.f32.mrb[0].mxu0
        %4726 = vmatprep.mubr.bf16.mxu0 %v2982
        %4727 = vmatmul.mubr.bf16.gmra.mrb[0].mxu0 %v2981
        %v4728 = vpop.f32.mrb[0].mxu0
        %v4729 = vadd.f32 %v4184, %v4728
        %v4730 = vpop.f32.mrb[0].mxu0
        %v4731 = vpop.f32.mrb[0].mxu0
        %v4732 = vadd.f32 %v4187, %v4731
        %v4733 = vpop.f32.mrb[0].mxu0
        %4734 = vmatprep.mubr.bf16.mxu0 %v2988
        %4735 = vmatmul.mubr.bf16.gmra.mrb[0].mxu0 %v2987
        %v4736 = vpop.f32.mrb[0].mxu0
        %v4737 = vadd.f32 %v4192, %v4736
        %v4738 = vpop.f32.mrb[0].mxu0
        %v4739 = vpop.f32.mrb[0].mxu0
        %v4740 = vadd.f32 %v4195, %v4739
        %v4741 = vpop.f32.mrb[0].mxu0
        %4742 = vmatprep.mubr.bf16.mxu0 %v2994
        %4743 = vmatmul.mubr.bf16.gmra.mrb[0].mxu0 %v2993
        %v4744 = vpop.f32.mrb[0].mxu0
        %v4745 = vadd.f32 %v4200, %v4744
        %v4746 = vpop.f32.mrb[0].mxu0
        %v4747 = vpop.f32.mrb[0].mxu0
        %v4748 = vadd.f32 %v4203, %v4747
        %v4749 = vpop.f32.mrb[0].mxu0
        %4750 = vmatprep.mubr.bf16.mxu0 %v3000
        %4751 = vmatmul.mubr.bf16.gmra.mrb[0].mxu0 %v2999
        %v4752 = vpop.f32.mrb[0].mxu0
        %v4753 = vadd.f32 %v4208, %v4752
        %v4754 = vpop.f32.mrb[0].mxu0
        %v4755 = vpop.f32.mrb[0].mxu0
        %v4756 = vadd.f32 %v4211, %v4755
        %v4757 = vpop.f32.mrb[0].mxu0
        %4758 = vmatprep.mubr.bf16.mxu0 %v3006
        %4759 = vmatmul.mubr.bf16.gmra.mrb[0].mxu0 %v3005
        %v4760 = vpop.f32.mrb[0].mxu0
        %v4761 = vadd.f32 %v4216, %v4760
        %v4762 = vpop.f32.mrb[0].mxu0
        %v4763 = vpop.f32.mrb[0].mxu0
        %v4764 = vadd.f32 %v4219, %v4763
        %v4765 = vpop.f32.mrb[0].mxu0
        %4766 = vmatprep.mubr.bf16.mxu0 %v3012
        %4767 = vmatmul.mubr.bf16.gmra.mrb[0].mxu0 %v3011
        %v4768 = vpop.f32.mrb[0].mxu0
        %v4769 = vadd.f32 %v4224, %v4768
        %v4770 = vpop.f32.mrb[0].mxu0
        %v4771 = vpop.f32.mrb[0].mxu0
        %v4772 = vadd.f32 %v4227, %v4771
        %v4773 = vpop.f32.mrb[0].mxu0
        %4774 = vmatprep.mubr.bf16.mxu0 %v3018
        %4775 = vmatmul.mubr.bf16.gmra.mrb[0].mxu0 %v3017
        %v4776 = vpop.f32.mrb[0].mxu0
        %v4777 = vadd.f32 %v4232, %v4776
        %v4778 = vpop.f32.mrb[0].mxu0
        %v4779 = vpop.f32.mrb[0].mxu0
        %v4780 = vadd.f32 %v4235, %v4779
        %v4781 = vpop.f32.mrb[0].mxu0
        %4782 = vdwg.mxu0
        %4783 = vmatprep.subr.bf16.mxu0 0
        %4784 = vmatpush1.bf16.msra.mxu0 %v3629
        %4785 = vmatprep.subr.bf16.mxu0 0
        %4786 = vmatpush1.bf16.msra.mxu0 %v3630
        %4787 = vmatprep.subr.bf16.mxu0 0
        %4788 = vmatpush1.bf16.msra.mxu0 %v3631
        %4789 = vmatprep.subr.bf16.mxu0 0
        %4790 = vmatpush1.bf16.msra.mxu0 %v3632
        %4791 = vmatprep.subr.bf16.mxu0 0
        %4792 = vmatpush1.bf16.msra.mxu0 %v3633
        %4793 = vmatprep.subr.bf16.mxu0 0
        %4794 = vmatpush1.bf16.msra.mxu0 %v3634
        %4795 = vmatprep.subr.bf16.mxu0 0
        %4796 = vmatpush1.bf16.msra.mxu0 %v3635
        %4797 = vmatprep.subr.bf16.mxu0 0
        %4798 = vmatpush1.bf16.msra.mxu0 %v3636
        %4799 = vmatprep.subr.bf16.mxu0 0
        %4800 = vmatpush1.bf16.msra.mxu0 %v3637
        %4801 = vmatprep.subr.bf16.mxu0 0
        %4802 = vmatpush1.bf16.msra.mxu0 %v3638
        %4803 = vmatprep.subr.bf16.mxu0 0
        %4804 = vmatpush1.bf16.msra.mxu0 %v3639
        %4805 = vmatprep.subr.bf16.mxu0 0
        %4806 = vmatpush1.bf16.msra.mxu0 %v3640
        %4807 = vmatprep.subr.bf16.mxu0 0
        %4808 = vmatpush1.bf16.msra.mxu0 %v3641
        %4809 = vmatprep.subr.bf16.mxu0 0
        %4810 = vmatpush1.bf16.msra.mxu0 %v3642
        %4811 = vmatprep.subr.bf16.mxu0 0
        %4812 = vmatpush1.bf16.msra.mxu0 %v3643
        %4813 = vmatprep.subr.bf16.mxu0 0
        %4814 = vmatpush1.bf16.msra.mxu0 %v3644
        %4815 = vmatprep.mubr.bf16.mxu0 %v2642
        %4816 = vmatmul.mubr.bf16.gmra.mrb[0].mxu0 %v2641
        %v4817 = vpop.f32.mrb[0].mxu0
        %v4818 = vadd.f32 %v4273, %v4817
        %v4819 = vpop.f32.mrb[0].mxu0
        %v4820 = vpop.f32.mrb[0].mxu0
        %v4821 = vadd.f32 %v4276, %v4820
        %v4822 = vpop.f32.mrb[0].mxu0
        %4823 = vmatprep.mubr.bf16.mxu0 %v2648
        %4824 = vmatmul.mubr.bf16.gmra.mrb[0].mxu0 %v2647
        %v4825 = vpop.f32.mrb[0].mxu0
        %v4826 = vadd.f32 %v4281, %v4825
        %v4827 = vpop.f32.mrb[0].mxu0
        %v4828 = vpop.f32.mrb[0].mxu0
        %v4829 = vadd.f32 %v4284, %v4828
        %v4830 = vpop.f32.mrb[0].mxu0
        %4831 = vmatprep.mubr.bf16.mxu0 %v2654
        %4832 = vmatmul.mubr.bf16.gmra.mrb[0].mxu0 %v2653
        %v4833 = vpop.f32.mrb[0].mxu0
        %v4834 = vadd.f32 %v4289, %v4833
        %v4835 = vpop.f32.mrb[0].mxu0
        %v4836 = vpop.f32.mrb[0].mxu0
        %v4837 = vadd.f32 %v4292, %v4836
        %v4838 = vpop.f32.mrb[0].mxu0
        %4839 = vmatprep.mubr.bf16.mxu0 %v2660
        %4840 = vmatmul.mubr.bf16.gmra.mrb[0].mxu0 %v2659
        %v4841 = vpop.f32.mrb[0].mxu0
        %v4842 = vadd.f32 %v4297, %v4841
        %v4843 = vpop.f32.mrb[0].mxu0
        %v4844 = vpop.f32.mrb[0].mxu0
        %v4845 = vadd.f32 %v4300, %v4844
        %v4846 = vpop.f32.mrb[0].mxu0
        %4847 = vmatprep.mubr.bf16.mxu0 %v2666
        %4848 = vmatmul.mubr.bf16.gmra.mrb[0].mxu0 %v2665
        %v4849 = vpop.f32.mrb[0].mxu0
        %v4850 = vadd.f32 %v4305, %v4849
        %v4851 = vpop.f32.mrb[0].mxu0
        %v4852 = vpop.f32.mrb[0].mxu0
        %v4853 = vadd.f32 %v4308, %v4852
        %v4854 = vpop.f32.mrb[0].mxu0
        %4855 = vmatprep.mubr.bf16.mxu0 %v2672
        %4856 = vmatmul.mubr.bf16.gmra.mrb[0].mxu0 %v2671
        %v4857 = vpop.f32.mrb[0].mxu0
        %v4858 = vadd.f32 %v4313, %v4857
        %v4859 = vpop.f32.mrb[0].mxu0
        %v4860 = vpop.f32.mrb[0].mxu0
        %v4861 = vadd.f32 %v4316, %v4860
        %v4862 = vpop.f32.mrb[0].mxu0
        %4863 = vmatprep.mubr.bf16.mxu0 %v2678
        %4864 = vmatmul.mubr.bf16.gmra.mrb[0].mxu0 %v2677
        %v4865 = vpop.f32.mrb[0].mxu0
        %v4866 = vadd.f32 %v4321, %v4865
        %v4867 = vpop.f32.mrb[0].mxu0
        %v4868 = vpop.f32.mrb[0].mxu0
        %v4869 = vadd.f32 %v4324, %v4868
        %v4870 = vpop.f32.mrb[0].mxu0
        %4871 = vmatprep.mubr.bf16.mxu0 %v2684
        %4872 = vmatmul.mubr.bf16.gmra.mrb[0].mxu0 %v2683
        %v4873 = vpop.f32.mrb[0].mxu0
        %v4874 = vadd.f32 %v4329, %v4873
        %v4875 = vpop.f32.mrb[0].mxu0
        %v4876 = vpop.f32.mrb[0].mxu0
        %v4877 = vadd.f32 %v4332, %v4876
        %v4878 = vpop.f32.mrb[0].mxu0
        %4879 = vmatprep.mubr.bf16.mxu0 %v2690
        %4880 = vmatmul.mubr.bf16.gmra.mrb[0].mxu0 %v2689
        %v4881 = vpop.f32.mrb[0].mxu0
        %v4882 = vadd.f32 %v4337, %v4881
        %v4883 = vpop.f32.mrb[0].mxu0
        %v4884 = vpop.f32.mrb[0].mxu0
        %v4885 = vadd.f32 %v4340, %v4884
        %v4886 = vpop.f32.mrb[0].mxu0
        %4887 = vmatprep.mubr.bf16.mxu0 %v2696
        %4888 = vmatmul.mubr.bf16.gmra.mrb[0].mxu0 %v2695
        %v4889 = vpop.f32.mrb[0].mxu0
        %v4890 = vadd.f32 %v4345, %v4889
        %v4891 = vpop.f32.mrb[0].mxu0
        %v4892 = vpop.f32.mrb[0].mxu0
        %v4893 = vadd.f32 %v4348, %v4892
        %v4894 = vpop.f32.mrb[0].mxu0
        %4895 = vmatprep.mubr.bf16.mxu0 %v2702
        %4896 = vmatmul.mubr.bf16.gmra.mrb[0].mxu0 %v2701
        %v4897 = vpop.f32.mrb[0].mxu0
        %v4898 = vadd.f32 %v4353, %v4897
        %v4899 = vpop.f32.mrb[0].mxu0
        %v4900 = vpop.f32.mrb[0].mxu0
        %v4901 = vadd.f32 %v4356, %v4900
        %v4902 = vpop.f32.mrb[0].mxu0
        %4903 = vmatprep.mubr.bf16.mxu0 %v2708
        %4904 = vmatmul.mubr.bf16.gmra.mrb[0].mxu0 %v2707
        %v4905 = vpop.f32.mrb[0].mxu0
        %v4906 = vadd.f32 %v4361, %v4905
        %v4907 = vpop.f32.mrb[0].mxu0
        %v4908 = vpop.f32.mrb[0].mxu0
        %v4909 = vadd.f32 %v4364, %v4908
        %v4910 = vpop.f32.mrb[0].mxu0
        %4911 = vmatprep.mubr.bf16.mxu0 %v2714
        %4912 = vmatmul.mubr.bf16.gmra.mrb[0].mxu0 %v2713
        %v4913 = vpop.f32.mrb[0].mxu0
        %v4914 = vadd.f32 %v4369, %v4913
        %v4915 = vpop.f32.mrb[0].mxu0
        %v4916 = vpop.f32.mrb[0].mxu0
        %v4917 = vadd.f32 %v4372, %v4916
        %v4918 = vpop.f32.mrb[0].mxu0
        %4919 = vmatprep.mubr.bf16.mxu0 %v2720
        %4920 = vmatmul.mubr.bf16.gmra.mrb[0].mxu0 %v2719
        %v4921 = vpop.f32.mrb[0].mxu0
        %v4922 = vadd.f32 %v4377, %v4921
        %v4923 = vpop.f32.mrb[0].mxu0
        %v4924 = vpop.f32.mrb[0].mxu0
        %v4925 = vadd.f32 %v4380, %v4924
        %v4926 = vpop.f32.mrb[0].mxu0
        %4927 = vmatprep.mubr.bf16.mxu0 %v2726
        %4928 = vmatmul.mubr.bf16.gmra.mrb[0].mxu0 %v2725
        %v4929 = vpop.f32.mrb[0].mxu0
        %v4930 = vadd.f32 %v4385, %v4929
        %v4931 = vpop.f32.mrb[0].mxu0
        %v4932 = vpop.f32.mrb[0].mxu0
        %v4933 = vadd.f32 %v4388, %v4932
        %v4934 = vpop.f32.mrb[0].mxu0
        %4935 = vmatprep.mubr.bf16.mxu0 %v2732
        %4936 = vmatmul.mubr.bf16.gmra.mrb[0].mxu0 %v2731
        %v4937 = vpop.f32.mrb[0].mxu0
        %v4938 = vadd.f32 %v4393, %v4937
        %v4939 = vpop.f32.mrb[0].mxu0
        %v4940 = vpop.f32.mrb[0].mxu0
        %v4941 = vadd.f32 %v4396, %v4940
        %v4942 = vpop.f32.mrb[0].mxu0
        %4943 = vmatprep.mubr.bf16.mxu0 %v2738
        %4944 = vmatmul.mubr.bf16.gmra.mrb[0].mxu0 %v2737
        %v4945 = vpop.f32.mrb[0].mxu0
        %v4946 = vadd.f32 %v4401, %v4945
        %v4947 = vpop.f32.mrb[0].mxu0
        %v4948 = vpop.f32.mrb[0].mxu0
        %v4949 = vadd.f32 %v4404, %v4948
        %v4950 = vpop.f32.mrb[0].mxu0
        %4951 = vmatprep.mubr.bf16.mxu0 %v2744
        %4952 = vmatmul.mubr.bf16.gmra.mrb[0].mxu0 %v2743
        %v4953 = vpop.f32.mrb[0].mxu0
        %v4954 = vadd.f32 %v4409, %v4953
        %v4955 = vpop.f32.mrb[0].mxu0
        %v4956 = vpop.f32.mrb[0].mxu0
        %v4957 = vadd.f32 %v4412, %v4956
        %v4958 = vpop.f32.mrb[0].mxu0
        %4959 = vmatprep.mubr.bf16.mxu0 %v2750
        %4960 = vmatmul.mubr.bf16.gmra.mrb[0].mxu0 %v2749
        %v4961 = vpop.f32.mrb[0].mxu0
        %v4962 = vadd.f32 %v4417, %v4961
        %v4963 = vpop.f32.mrb[0].mxu0
        %v4964 = vpop.f32.mrb[0].mxu0
        %v4965 = vadd.f32 %v4420, %v4964
        %v4966 = vpop.f32.mrb[0].mxu0
        %4967 = vmatprep.mubr.bf16.mxu0 %v2756
        %4968 = vmatmul.mubr.bf16.gmra.mrb[0].mxu0 %v2755
        %v4969 = vpop.f32.mrb[0].mxu0
        %v4970 = vadd.f32 %v4425, %v4969
        %v4971 = vpop.f32.mrb[0].mxu0
        %v4972 = vpop.f32.mrb[0].mxu0
        %v4973 = vadd.f32 %v4428, %v4972
        %v4974 = vpop.f32.mrb[0].mxu0
        %4975 = vmatprep.mubr.bf16.mxu0 %v2762
        %4976 = vmatmul.mubr.bf16.gmra.mrb[0].mxu0 %v2761
        %v4977 = vpop.f32.mrb[0].mxu0
        %v4978 = vadd.f32 %v4433, %v4977
        %v4979 = vpop.f32.mrb[0].mxu0
        %v4980 = vpop.f32.mrb[0].mxu0
        %v4981 = vadd.f32 %v4436, %v4980
        %v4982 = vpop.f32.mrb[0].mxu0
        %4983 = vmatprep.mubr.bf16.mxu0 %v2768
        %4984 = vmatmul.mubr.bf16.gmra.mrb[0].mxu0 %v2767
        %v4985 = vpop.f32.mrb[0].mxu0
        %v4986 = vadd.f32 %v4441, %v4985
        %v4987 = vpop.f32.mrb[0].mxu0
        %v4988 = vpop.f32.mrb[0].mxu0
        %v4989 = vadd.f32 %v4444, %v4988
        %v4990 = vpop.f32.mrb[0].mxu0
        %4991 = vmatprep.mubr.bf16.mxu0 %v2774
        %4992 = vmatmul.mubr.bf16.gmra.mrb[0].mxu0 %v2773
        %v4993 = vpop.f32.mrb[0].mxu0
        %v4994 = vadd.f32 %v4449, %v4993
        %v4995 = vpop.f32.mrb[0].mxu0
        %v4996 = vpop.f32.mrb[0].mxu0
        %v4997 = vadd.f32 %v4452, %v4996
        %v4998 = vpop.f32.mrb[0].mxu0
        %4999 = vmatprep.mubr.bf16.mxu0 %v2780
        %5000 = vmatmul.mubr.bf16.gmra.mrb[0].mxu0 %v2779
        %v5001 = vpop.f32.mrb[0].mxu0
        %v5002 = vadd.f32 %v4457, %v5001
        %v5003 = vpop.f32.mrb[0].mxu0
        %v5004 = vpop.f32.mrb[0].mxu0
        %v5005 = vadd.f32 %v4460, %v5004
        %v5006 = vpop.f32.mrb[0].mxu0
        %5007 = vmatprep.mubr.bf16.mxu0 %v2786
        %5008 = vmatmul.mubr.bf16.gmra.mrb[0].mxu0 %v2785
        %v5009 = vpop.f32.mrb[0].mxu0
        %v5010 = vadd.f32 %v4465, %v5009
        %v5011 = vpop.f32.mrb[0].mxu0
        %v5012 = vpop.f32.mrb[0].mxu0
        %v5013 = vadd.f32 %v4468, %v5012
        %v5014 = vpop.f32.mrb[0].mxu0
        %5015 = vmatprep.mubr.bf16.mxu0 %v2792
        %5016 = vmatmul.mubr.bf16.gmra.mrb[0].mxu0 %v2791
        %v5017 = vpop.f32.mrb[0].mxu0
        %v5018 = vadd.f32 %v4473, %v5017
        %v5019 = vpop.f32.mrb[0].mxu0
        %v5020 = vpop.f32.mrb[0].mxu0
        %v5021 = vadd.f32 %v4476, %v5020
        %v5022 = vpop.f32.mrb[0].mxu0
        %5023 = vmatprep.mubr.bf16.mxu0 %v2798
        %5024 = vmatmul.mubr.bf16.gmra.mrb[0].mxu0 %v2797
        %v5025 = vpop.f32.mrb[0].mxu0
        %v5026 = vadd.f32 %v4481, %v5025
        %v5027 = vpop.f32.mrb[0].mxu0
        %v5028 = vpop.f32.mrb[0].mxu0
        %v5029 = vadd.f32 %v4484, %v5028
        %v5030 = vpop.f32.mrb[0].mxu0
        %5031 = vmatprep.mubr.bf16.mxu0 %v2804
        %5032 = vmatmul.mubr.bf16.gmra.mrb[0].mxu0 %v2803
        %v5033 = vpop.f32.mrb[0].mxu0
        %v5034 = vadd.f32 %v4489, %v5033
        %v5035 = vpop.f32.mrb[0].mxu0
        %v5036 = vpop.f32.mrb[0].mxu0
        %v5037 = vadd.f32 %v4492, %v5036
        %v5038 = vpop.f32.mrb[0].mxu0
        %5039 = vmatprep.mubr.bf16.mxu0 %v2810
        %5040 = vmatmul.mubr.bf16.gmra.mrb[0].mxu0 %v2809
        %v5041 = vpop.f32.mrb[0].mxu0
        %v5042 = vadd.f32 %v4497, %v5041
        %v5043 = vpop.f32.mrb[0].mxu0
        %v5044 = vpop.f32.mrb[0].mxu0
        %v5045 = vadd.f32 %v4500, %v5044
        %v5046 = vpop.f32.mrb[0].mxu0
        %5047 = vmatprep.mubr.bf16.mxu0 %v2816
        %5048 = vmatmul.mubr.bf16.gmra.mrb[0].mxu0 %v2815
        %v5049 = vpop.f32.mrb[0].mxu0
        %v5050 = vadd.f32 %v4505, %v5049
        %v5051 = vpop.f32.mrb[0].mxu0
        %v5052 = vpop.f32.mrb[0].mxu0
        %v5053 = vadd.f32 %v4508, %v5052
        %v5054 = vpop.f32.mrb[0].mxu0
        %5055 = vmatprep.mubr.bf16.mxu0 %v2822
        %5056 = vmatmul.mubr.bf16.gmra.mrb[0].mxu0 %v2821
        %v5057 = vpop.f32.mrb[0].mxu0
        %v5058 = vadd.f32 %v4513, %v5057
        %v5059 = vpop.f32.mrb[0].mxu0
        %v5060 = vpop.f32.mrb[0].mxu0
        %v5061 = vadd.f32 %v4516, %v5060
        %v5062 = vpop.f32.mrb[0].mxu0
        %5063 = vmatprep.mubr.bf16.mxu0 %v2828
        %5064 = vmatmul.mubr.bf16.gmra.mrb[0].mxu0 %v2827
        %v5065 = vpop.f32.mrb[0].mxu0
        %v5066 = vadd.f32 %v4521, %v5065
        %v5067 = vpop.f32.mrb[0].mxu0
        %v5068 = vpop.f32.mrb[0].mxu0
        %v5069 = vadd.f32 %v4524, %v5068
        %v5070 = vpop.f32.mrb[0].mxu0
        %5071 = vmatprep.mubr.bf16.mxu0 %v2834
        %5072 = vmatmul.mubr.bf16.gmra.mrb[0].mxu0 %v2833
        %v5073 = vpop.f32.mrb[0].mxu0
        %v5074 = vadd.f32 %v4529, %v5073
        %v5075 = vpop.f32.mrb[0].mxu0
        %v5076 = vpop.f32.mrb[0].mxu0
        %v5077 = vadd.f32 %v4532, %v5076
        %v5078 = vpop.f32.mrb[0].mxu0
        %5079 = vmatprep.mubr.bf16.mxu0 %v2840
        %5080 = vmatmul.mubr.bf16.gmra.mrb[0].mxu0 %v2839
        %v5081 = vpop.f32.mrb[0].mxu0
        %v5082 = vadd.f32 %v4537, %v5081
        %v5083 = vpop.f32.mrb[0].mxu0
        %v5084 = vpop.f32.mrb[0].mxu0
        %v5085 = vadd.f32 %v4540, %v5084
        %v5086 = vpop.f32.mrb[0].mxu0
        %5087 = vmatprep.mubr.bf16.mxu0 %v2846
        %5088 = vmatmul.mubr.bf16.gmra.mrb[0].mxu0 %v2845
        %v5089 = vpop.f32.mrb[0].mxu0
        %v5090 = vadd.f32 %v4545, %v5089
        %v5091 = vpop.f32.mrb[0].mxu0
        %v5092 = vpop.f32.mrb[0].mxu0
        %v5093 = vadd.f32 %v4548, %v5092
        %v5094 = vpop.f32.mrb[0].mxu0
        %5095 = vmatprep.mubr.bf16.mxu0 %v2852
        %5096 = vmatmul.mubr.bf16.gmra.mrb[0].mxu0 %v2851
        %v5097 = vpop.f32.mrb[0].mxu0
        %v5098 = vadd.f32 %v4553, %v5097
        %v5099 = vpop.f32.mrb[0].mxu0
        %v5100 = vpop.f32.mrb[0].mxu0
        %v5101 = vadd.f32 %v4556, %v5100
        %v5102 = vpop.f32.mrb[0].mxu0
        %5103 = vmatprep.mubr.bf16.mxu0 %v2858
        %5104 = vmatmul.mubr.bf16.gmra.mrb[0].mxu0 %v2857
        %v5105 = vpop.f32.mrb[0].mxu0
        %v5106 = vadd.f32 %v4561, %v5105
        %v5107 = vpop.f32.mrb[0].mxu0
        %v5108 = vpop.f32.mrb[0].mxu0
        %v5109 = vadd.f32 %v4564, %v5108
        %v5110 = vpop.f32.mrb[0].mxu0
        %5111 = vmatprep.mubr.bf16.mxu0 %v2864
        %5112 = vmatmul.mubr.bf16.gmra.mrb[0].mxu0 %v2863
        %v5113 = vpop.f32.mrb[0].mxu0
        %v5114 = vadd.f32 %v4569, %v5113
        %v5115 = vpop.f32.mrb[0].mxu0
        %v5116 = vpop.f32.mrb[0].mxu0
        %v5117 = vadd.f32 %v4572, %v5116
        %v5118 = vpop.f32.mrb[0].mxu0
        %5119 = vmatprep.mubr.bf16.mxu0 %v2870
        %5120 = vmatmul.mubr.bf16.gmra.mrb[0].mxu0 %v2869
        %v5121 = vpop.f32.mrb[0].mxu0
        %v5122 = vadd.f32 %v4577, %v5121
        %v5123 = vpop.f32.mrb[0].mxu0
        %v5124 = vpop.f32.mrb[0].mxu0
        %v5125 = vadd.f32 %v4580, %v5124
        %v5126 = vpop.f32.mrb[0].mxu0
        %5127 = vmatprep.mubr.bf16.mxu0 %v2876
        %5128 = vmatmul.mubr.bf16.gmra.mrb[0].mxu0 %v2875
        %v5129 = vpop.f32.mrb[0].mxu0
        %v5130 = vadd.f32 %v4585, %v5129
        %v5131 = vpop.f32.mrb[0].mxu0
        %v5132 = vpop.f32.mrb[0].mxu0
        %v5133 = vadd.f32 %v4588, %v5132
        %v5134 = vpop.f32.mrb[0].mxu0
        %5135 = vmatprep.mubr.bf16.mxu0 %v2882
        %5136 = vmatmul.mubr.bf16.gmra.mrb[0].mxu0 %v2881
        %v5137 = vpop.f32.mrb[0].mxu0
        %v5138 = vadd.f32 %v4593, %v5137
        %v5139 = vpop.f32.mrb[0].mxu0
        %v5140 = vpop.f32.mrb[0].mxu0
        %v5141 = vadd.f32 %v4596, %v5140
        %v5142 = vpop.f32.mrb[0].mxu0
        %5143 = vmatprep.mubr.bf16.mxu0 %v2888
        %5144 = vmatmul.mubr.bf16.gmra.mrb[0].mxu0 %v2887
        %v5145 = vpop.f32.mrb[0].mxu0
        %v5146 = vadd.f32 %v4601, %v5145
        %v5147 = vpop.f32.mrb[0].mxu0
        %v5148 = vpop.f32.mrb[0].mxu0
        %v5149 = vadd.f32 %v4604, %v5148
        %v5150 = vpop.f32.mrb[0].mxu0
        %5151 = vmatprep.mubr.bf16.mxu0 %v2894
        %5152 = vmatmul.mubr.bf16.gmra.mrb[0].mxu0 %v2893
        %v5153 = vpop.f32.mrb[0].mxu0
        %v5154 = vadd.f32 %v4609, %v5153
        %v5155 = vpop.f32.mrb[0].mxu0
        %v5156 = vpop.f32.mrb[0].mxu0
        %v5157 = vadd.f32 %v4612, %v5156
        %v5158 = vpop.f32.mrb[0].mxu0
        %5159 = vmatprep.mubr.bf16.mxu0 %v2900
        %5160 = vmatmul.mubr.bf16.gmra.mrb[0].mxu0 %v2899
        %v5161 = vpop.f32.mrb[0].mxu0
        %v5162 = vadd.f32 %v4617, %v5161
        %v5163 = vpop.f32.mrb[0].mxu0
        %v5164 = vpop.f32.mrb[0].mxu0
        %v5165 = vadd.f32 %v4620, %v5164
        %v5166 = vpop.f32.mrb[0].mxu0
        %5167 = vmatprep.mubr.bf16.mxu0 %v2906
        %5168 = vmatmul.mubr.bf16.gmra.mrb[0].mxu0 %v2905
        %v5169 = vpop.f32.mrb[0].mxu0
        %v5170 = vadd.f32 %v4625, %v5169
        %v5171 = vpop.f32.mrb[0].mxu0
        %v5172 = vpop.f32.mrb[0].mxu0
        %v5173 = vadd.f32 %v4628, %v5172
        %v5174 = vpop.f32.mrb[0].mxu0
        %5175 = vmatprep.mubr.bf16.mxu0 %v2912
        %5176 = vmatmul.mubr.bf16.gmra.mrb[0].mxu0 %v2911
        %v5177 = vpop.f32.mrb[0].mxu0
        %v5178 = vadd.f32 %v4633, %v5177
        %v5179 = vpop.f32.mrb[0].mxu0
        %v5180 = vpop.f32.mrb[0].mxu0
        %v5181 = vadd.f32 %v4636, %v5180
        %v5182 = vpop.f32.mrb[0].mxu0
        %5183 = vmatprep.mubr.bf16.mxu0 %v2918
        %5184 = vmatmul.mubr.bf16.gmra.mrb[0].mxu0 %v2917
        %v5185 = vpop.f32.mrb[0].mxu0
        %v5186 = vadd.f32 %v4641, %v5185
        %v5187 = vpop.f32.mrb[0].mxu0
        %v5188 = vpop.f32.mrb[0].mxu0
        %v5189 = vadd.f32 %v4644, %v5188
        %v5190 = vpop.f32.mrb[0].mxu0
        %5191 = vmatprep.mubr.bf16.mxu0 %v2924
        %5192 = vmatmul.mubr.bf16.gmra.mrb[0].mxu0 %v2923
        %v5193 = vpop.f32.mrb[0].mxu0
        %v5194 = vadd.f32 %v4649, %v5193
        %v5195 = vpop.f32.mrb[0].mxu0
        %v5196 = vpop.f32.mrb[0].mxu0
        %v5197 = vadd.f32 %v4652, %v5196
        %v5198 = vpop.f32.mrb[0].mxu0
        %5199 = vmatprep.mubr.bf16.mxu0 %v2930
        %5200 = vmatmul.mubr.bf16.gmra.mrb[0].mxu0 %v2929
        %v5201 = vpop.f32.mrb[0].mxu0
        %v5202 = vadd.f32 %v4657, %v5201
        %v5203 = vpop.f32.mrb[0].mxu0
        %v5204 = vpop.f32.mrb[0].mxu0
        %v5205 = vadd.f32 %v4660, %v5204
        %v5206 = vpop.f32.mrb[0].mxu0
        %5207 = vmatprep.mubr.bf16.mxu0 %v2936
        %5208 = vmatmul.mubr.bf16.gmra.mrb[0].mxu0 %v2935
        %v5209 = vpop.f32.mrb[0].mxu0
        %v5210 = vadd.f32 %v4665, %v5209
        %v5211 = vpop.f32.mrb[0].mxu0
        %v5212 = vpop.f32.mrb[0].mxu0
        %v5213 = vadd.f32 %v4668, %v5212
        %v5214 = vpop.f32.mrb[0].mxu0
        %5215 = vmatprep.mubr.bf16.mxu0 %v2942
        %5216 = vmatmul.mubr.bf16.gmra.mrb[0].mxu0 %v2941
        %v5217 = vpop.f32.mrb[0].mxu0
        %v5218 = vadd.f32 %v4673, %v5217
        %v5219 = vpop.f32.mrb[0].mxu0
        %v5220 = vpop.f32.mrb[0].mxu0
        %v5221 = vadd.f32 %v4676, %v5220
        %v5222 = vpop.f32.mrb[0].mxu0
        %5223 = vmatprep.mubr.bf16.mxu0 %v2948
        %5224 = vmatmul.mubr.bf16.gmra.mrb[0].mxu0 %v2947
        %v5225 = vpop.f32.mrb[0].mxu0
        %v5226 = vadd.f32 %v4681, %v5225
        %v5227 = vpop.f32.mrb[0].mxu0
        %v5228 = vpop.f32.mrb[0].mxu0
        %v5229 = vadd.f32 %v4684, %v5228
        %v5230 = vpop.f32.mrb[0].mxu0
        %5231 = vmatprep.mubr.bf16.mxu0 %v2954
        %5232 = vmatmul.mubr.bf16.gmra.mrb[0].mxu0 %v2953
        %v5233 = vpop.f32.mrb[0].mxu0
        %v5234 = vadd.f32 %v4689, %v5233
        %v5235 = vpop.f32.mrb[0].mxu0
        %v5236 = vpop.f32.mrb[0].mxu0
        %v5237 = vadd.f32 %v4692, %v5236
        %v5238 = vpop.f32.mrb[0].mxu0
        %5239 = vmatprep.mubr.bf16.mxu0 %v2960
        %5240 = vmatmul.mubr.bf16.gmra.mrb[0].mxu0 %v2959
        %v5241 = vpop.f32.mrb[0].mxu0
        %v5242 = vadd.f32 %v4697, %v5241
        %v5243 = vpop.f32.mrb[0].mxu0
        %v5244 = vpop.f32.mrb[0].mxu0
        %v5245 = vadd.f32 %v4700, %v5244
        %v5246 = vpop.f32.mrb[0].mxu0
        %5247 = vmatprep.mubr.bf16.mxu0 %v2966
        %5248 = vmatmul.mubr.bf16.gmra.mrb[0].mxu0 %v2965
        %v5249 = vpop.f32.mrb[0].mxu0
        %v5250 = vadd.f32 %v4705, %v5249
        %v5251 = vpop.f32.mrb[0].mxu0
        %v5252 = vpop.f32.mrb[0].mxu0
        %v5253 = vadd.f32 %v4708, %v5252
        %v5254 = vpop.f32.mrb[0].mxu0
        %5255 = vmatprep.mubr.bf16.mxu0 %v2972
        %5256 = vmatmul.mubr.bf16.gmra.mrb[0].mxu0 %v2971
        %v5257 = vpop.f32.mrb[0].mxu0
        %v5258 = vadd.f32 %v4713, %v5257
        %v5259 = vpop.f32.mrb[0].mxu0
        %v5260 = vpop.f32.mrb[0].mxu0
        %v5261 = vadd.f32 %v4716, %v5260
        %v5262 = vpop.f32.mrb[0].mxu0
        %5263 = vmatprep.mubr.bf16.mxu0 %v2978
        %5264 = vmatmul.mubr.bf16.gmra.mrb[0].mxu0 %v2977
        %v5265 = vpop.f32.mrb[0].mxu0
        %v5266 = vadd.f32 %v4721, %v5265
        %v5267 = vpop.f32.mrb[0].mxu0
        %v5268 = vpop.f32.mrb[0].mxu0
        %v5269 = vadd.f32 %v4724, %v5268
        %v5270 = vpop.f32.mrb[0].mxu0
        %5271 = vmatprep.mubr.bf16.mxu0 %v2984
        %5272 = vmatmul.mubr.bf16.gmra.mrb[0].mxu0 %v2983
        %v5273 = vpop.f32.mrb[0].mxu0
        %v5274 = vadd.f32 %v4729, %v5273
        %v5275 = vpop.f32.mrb[0].mxu0
        %v5276 = vpop.f32.mrb[0].mxu0
        %v5277 = vadd.f32 %v4732, %v5276
        %v5278 = vpop.f32.mrb[0].mxu0
        %5279 = vmatprep.mubr.bf16.mxu0 %v2990
        %5280 = vmatmul.mubr.bf16.gmra.mrb[0].mxu0 %v2989
        %v5281 = vpop.f32.mrb[0].mxu0
        %v5282 = vadd.f32 %v4737, %v5281
        %v5283 = vpop.f32.mrb[0].mxu0
        %v5284 = vpop.f32.mrb[0].mxu0
        %v5285 = vadd.f32 %v4740, %v5284
        %v5286 = vpop.f32.mrb[0].mxu0
        %5287 = vmatprep.mubr.bf16.mxu0 %v2996
        %5288 = vmatmul.mubr.bf16.gmra.mrb[0].mxu0 %v2995
        %v5289 = vpop.f32.mrb[0].mxu0
        %v5290 = vadd.f32 %v4745, %v5289
        %v5291 = vpop.f32.mrb[0].mxu0
        %v5292 = vpop.f32.mrb[0].mxu0
        %v5293 = vadd.f32 %v4748, %v5292
        %v5294 = vpop.f32.mrb[0].mxu0
        %5295 = vmatprep.mubr.bf16.mxu0 %v3002
        %5296 = vmatmul.mubr.bf16.gmra.mrb[0].mxu0 %v3001
        %v5297 = vpop.f32.mrb[0].mxu0
        %v5298 = vadd.f32 %v4753, %v5297
        %v5299 = vpop.f32.mrb[0].mxu0
        %v5300 = vpop.f32.mrb[0].mxu0
        %v5301 = vadd.f32 %v4756, %v5300
        %v5302 = vpop.f32.mrb[0].mxu0
        %5303 = vmatprep.mubr.bf16.mxu0 %v3008
        %5304 = vmatmul.mubr.bf16.gmra.mrb[0].mxu0 %v3007
        %v5305 = vpop.f32.mrb[0].mxu0
        %v5306 = vadd.f32 %v4761, %v5305
        %v5307 = vpop.f32.mrb[0].mxu0
        %v5308 = vpop.f32.mrb[0].mxu0
        %v5309 = vadd.f32 %v4764, %v5308
        %v5310 = vpop.f32.mrb[0].mxu0
        %5311 = vmatprep.mubr.bf16.mxu0 %v3014
        %5312 = vmatmul.mubr.bf16.gmra.mrb[0].mxu0 %v3013
        %v5313 = vpop.f32.mrb[0].mxu0
        %v5314 = vadd.f32 %v4769, %v5313
        %v5315 = vpop.f32.mrb[0].mxu0
        %v5316 = vpop.f32.mrb[0].mxu0
        %v5317 = vadd.f32 %v4772, %v5316
        %v5318 = vpop.f32.mrb[0].mxu0
        %5319 = vmatprep.mubr.bf16.mxu0 %v3020
        %5320 = vmatmul.mubr.bf16.gmra.mrb[0].mxu0 %v3019
        %v5321 = vpop.f32.mrb[0].mxu0
        %v5322 = vadd.f32 %v4777, %v5321
        %v5323 = vpop.f32.mrb[0].mxu0
        %v5324 = vpop.f32.mrb[0].mxu0
        %v5325 = vadd.f32 %v4780, %v5324
        %v5326 = vpop.f32.mrb[0].mxu0
        %5327 = vdwg.mxu0
        %v5328 = vld [vmem:[#allocation12] sm:$0x1]
        %v5329 = vld [vmem:[#allocation14] sm:$0x1]
        %v5330 = vlaneseq
        %v5331 = vand.u32 %v5330, 127
        %v5332 = vld [vmem:[%s925] sm:$0xff]
        %v5333 = vld [vmem:[%s925 + $0x8] sm:$0xff]
        %v5334 = vld [vmem:[%s925 + $0x10] sm:$0xff]
        %v5335 = vld [vmem:[%s925 + $0x18] sm:$0xff]
        %v5336 = vld [vmem:[%s925 + $0x20] sm:$0xff]
        %v5337 = vld [vmem:[%s925 + $0x28] sm:$0xff]
        %v5338 = vld [vmem:[%s925 + $0x30] sm:$0xff]
        %v5339 = vld [vmem:[%s925 + $0x38] sm:$0xff]
        %v5340 = vld [vmem:[%s925 + $0x40] sm:$0xff]
        %v5341 = vld [vmem:[%s925 + $0x48] sm:$0xff]
        %v5342 = vld [vmem:[%s925 + $0x50] sm:$0xff]
        %v5343 = vld [vmem:[%s925 + $0x58] sm:$0xff]
        %v5344 = vld [vmem:[%s925 + $0x60] sm:$0xff]
        %v5345 = vld [vmem:[%s925 + $0x68] sm:$0xff]
        %v5346 = vld [vmem:[%s925 + $0x70] sm:$0xff]
        %v5347 = vld [vmem:[%s925 + $0x78] sm:$0xff]
        %v5348 = vld [vmem:[%s925 + $0x80] sm:$0xff]
        %v5349 = vld [vmem:[%s925 + $0x88] sm:$0xff]
        %v5350 = vld [vmem:[%s925 + $0x90] sm:$0xff]
        %v5351 = vld [vmem:[%s925 + $0x98] sm:$0xff]
        %v5352 = vld [vmem:[%s925 + $0xa0] sm:$0xff]
        %v5353 = vld [vmem:[%s925 + $0xa8] sm:$0xff]
        %v5354 = vld [vmem:[%s925 + $0xb0] sm:$0xff]
        %v5355 = vld [vmem:[%s925 + $0xb8] sm:$0xff]
        %v5356 = vld [vmem:[%s925 + $0xc0] sm:$0xff]
        %v5357 = vld [vmem:[%s925 + $0xc8] sm:$0xff]
        %v5358 = vld [vmem:[%s925 + $0xd0] sm:$0xff]
        %v5359 = vld [vmem:[%s925 + $0xd8] sm:$0xff]
        %v5360 = vld [vmem:[%s925 + $0xe0] sm:$0xff]
        %v5361 = vld [vmem:[%s925 + $0xe8] sm:$0xff]
        %v5362 = vld [vmem:[%s925 + $0xf0] sm:$0xff]
        %v5363 = vld [vmem:[%s925 + $0xf8] sm:$0xff]
        %v5364 = vld [vmem:[%s925 + $0x100] sm:$0xff]
        %v5365 = vld [vmem:[%s925 + $0x108] sm:$0xff]
        %v5366 = vld [vmem:[%s925 + $0x110] sm:$0xff]
        %v5367 = vld [vmem:[%s925 + $0x118] sm:$0xff]
        %v5368 = vld [vmem:[%s925 + $0x120] sm:$0xff]
        %v5369 = vld [vmem:[%s925 + $0x128] sm:$0xff]
        %v5370 = vld [vmem:[%s925 + $0x130] sm:$0xff]
        %v5371 = vld [vmem:[%s925 + $0x138] sm:$0xff]
        %v5372 = vld [vmem:[%s925 + $0x140] sm:$0xff]
        %v5373 = vld [vmem:[%s925 + $0x148] sm:$0xff]
        %v5374 = vld [vmem:[%s925 + $0x150] sm:$0xff]
        %v5375 = vld [vmem:[%s925 + $0x158] sm:$0xff]
        %v5376 = vld [vmem:[%s925 + $0x160] sm:$0xff]
        %v5377 = vld [vmem:[%s925 + $0x168] sm:$0xff]
        %v5378 = vld [vmem:[%s925 + $0x170] sm:$0xff]
        %v5379 = vld [vmem:[%s925 + $0x178] sm:$0xff]
        %v5380 = vld [vmem:[%s925 + $0x180] sm:$0xff]
        %v5381 = vld [vmem:[%s925 + $0x188] sm:$0xff]
        %v5382 = vld [vmem:[%s925 + $0x190] sm:$0xff]
        %v5383 = vld [vmem:[%s925 + $0x198] sm:$0xff]
        %v5384 = vld [vmem:[%s925 + $0x1a0] sm:$0xff]
        %v5385 = vld [vmem:[%s925 + $0x1a8] sm:$0xff]
        %v5386 = vld [vmem:[%s925 + $0x1b0] sm:$0xff]
        %v5387 = vld [vmem:[%s925 + $0x1b8] sm:$0xff]
        %v5388 = vld [vmem:[%s925 + $0x1c0] sm:$0xff]
        %v5389 = vld [vmem:[%s925 + $0x1c8] sm:$0xff]
        %v5390 = vld [vmem:[%s925 + $0x1d0] sm:$0xff]
        %v5391 = vld [vmem:[%s925 + $0x1d8] sm:$0xff]
        %v5392 = vld [vmem:[%s925 + $0x1e0] sm:$0xff]
        %v5393 = vld [vmem:[%s925 + $0x1e8] sm:$0xff]
        %v5394 = vld [vmem:[%s925 + $0x1f0] sm:$0xff]
        %v5395 = vld [vmem:[%s925 + $0x1f8] sm:$0xff]
        %v5396 = vld [vmem:[%s925 + $0x200] sm:$0xff]
        %v5397 = vld [vmem:[%s925 + $0x208] sm:$0xff]
        %v5398 = vld [vmem:[%s925 + $0x210] sm:$0xff]
        %v5399 = vld [vmem:[%s925 + $0x218] sm:$0xff]
        %v5400 = vld [vmem:[%s925 + $0x220] sm:$0xff]
        %v5401 = vld [vmem:[%s925 + $0x228] sm:$0xff]
        %v5402 = vld [vmem:[%s925 + $0x230] sm:$0xff]
        %v5403 = vld [vmem:[%s925 + $0x238] sm:$0xff]
        %v5404 = vld [vmem:[%s925 + $0x240] sm:$0xff]
        %v5405 = vld [vmem:[%s925 + $0x248] sm:$0xff]
        %v5406 = vld [vmem:[%s925 + $0x250] sm:$0xff]
        %v5407 = vld [vmem:[%s925 + $0x258] sm:$0xff]
        %v5408 = vld [vmem:[%s925 + $0x260] sm:$0xff]
        %v5409 = vld [vmem:[%s925 + $0x268] sm:$0xff]
        %v5410 = vld [vmem:[%s925 + $0x270] sm:$0xff]
        %v5411 = vld [vmem:[%s925 + $0x278] sm:$0xff]
        %v5412 = vld [vmem:[%s925 + $0x280] sm:$0xff]
        %v5413 = vld [vmem:[%s925 + $0x288] sm:$0xff]
        %v5414 = vld [vmem:[%s925 + $0x290] sm:$0xff]
        %v5415 = vld [vmem:[%s925 + $0x298] sm:$0xff]
        %v5416 = vld [vmem:[%s925 + $0x2a0] sm:$0xff]
        %v5417 = vld [vmem:[%s925 + $0x2a8] sm:$0xff]
        %v5418 = vld [vmem:[%s925 + $0x2b0] sm:$0xff]
        %v5419 = vld [vmem:[%s925 + $0x2b8] sm:$0xff]
        %v5420 = vld [vmem:[%s925 + $0x2c0] sm:$0xff]
        %v5421 = vld [vmem:[%s925 + $0x2c8] sm:$0xff]
        %v5422 = vld [vmem:[%s925 + $0x2d0] sm:$0xff]
        %v5423 = vld [vmem:[%s925 + $0x2d8] sm:$0xff]
        %v5424 = vld [vmem:[%s925 + $0x2e0] sm:$0xff]
        %v5425 = vld [vmem:[%s925 + $0x2e8] sm:$0xff]
        %v5426 = vld [vmem:[%s925 + $0x2f0] sm:$0xff]
        %v5427 = vld [vmem:[%s925 + $0x2f8] sm:$0xff]
        %v5428 = vld [vmem:[%s925 + $0x300] sm:$0xff]
        %v5429 = vld [vmem:[%s925 + $0x308] sm:$0xff]
        %v5430 = vld [vmem:[%s925 + $0x310] sm:$0xff]
        %v5431 = vld [vmem:[%s925 + $0x318] sm:$0xff]
        %v5432 = vld [vmem:[%s925 + $0x320] sm:$0xff]
        %v5433 = vld [vmem:[%s925 + $0x328] sm:$0xff]
        %v5434 = vld [vmem:[%s925 + $0x330] sm:$0xff]
        %v5435 = vld [vmem:[%s925 + $0x338] sm:$0xff]
        %v5436 = vld [vmem:[%s925 + $0x340] sm:$0xff]
        %v5437 = vld [vmem:[%s925 + $0x348] sm:$0xff]
        %v5438 = vld [vmem:[%s925 + $0x350] sm:$0xff]
        %v5439 = vld [vmem:[%s925 + $0x358] sm:$0xff]
        %v5440 = vld [vmem:[%s925 + $0x360] sm:$0xff]
        %v5441 = vld [vmem:[%s925 + $0x368] sm:$0xff]
        %v5442 = vld [vmem:[%s925 + $0x370] sm:$0xff]
        %v5443 = vld [vmem:[%s925 + $0x378] sm:$0xff]
        %v5444 = vld [vmem:[%s925 + $0x380] sm:$0xff]
        %v5445 = vld [vmem:[%s925 + $0x388] sm:$0xff]
        %v5446 = vld [vmem:[%s925 + $0x390] sm:$0xff]
        %v5447 = vld [vmem:[%s925 + $0x398] sm:$0xff]
        %v5448 = vld [vmem:[%s925 + $0x3a0] sm:$0xff]
        %v5449 = vld [vmem:[%s925 + $0x3a8] sm:$0xff]
        %v5450 = vld [vmem:[%s925 + $0x3b0] sm:$0xff]
        %v5451 = vld [vmem:[%s925 + $0x3b8] sm:$0xff]
        %v5452 = vld [vmem:[%s925 + $0x3c0] sm:$0xff]
        %v5453 = vld [vmem:[%s925 + $0x3c8] sm:$0xff]
        %v5454 = vld [vmem:[%s925 + $0x3d0] sm:$0xff]
        %v5455 = vld [vmem:[%s925 + $0x3d8] sm:$0xff]
        %v5456 = vld [vmem:[%s925 + $0x3e0] sm:$0xff]
        %v5457 = vld [vmem:[%s925 + $0x3e8] sm:$0xff]
        %v5458 = vld [vmem:[%s925 + $0x3f0] sm:$0xff]
        %v5459 = vld [vmem:[%s925 + $0x3f8] sm:$0xff]
        %5460 = vset.pattern.permute.xlu0 0
        %5461 = vperm.xlu0 %5460, %v5332
        %v5462 = vpop.permute.xlu0 %5461
        %5463 = vset.pattern.permute.xlu0 0
        %5464 = vperm.xlu0 %5463, %v5333
        %v5465 = vpop.permute.xlu0 %5464
        %5466 = vset.pattern.permute.xlu0 0
        %5467 = vperm.xlu0 %5466, %v5334
        %v5468 = vpop.permute.xlu0 %5467
        %5469 = vset.pattern.permute.xlu0 0
        %5470 = vperm.xlu0 %5469, %v5335
        %v5471 = vpop.permute.xlu0 %5470
        %5472 = vset.pattern.permute.xlu0 0
        %5473 = vperm.xlu0 %5472, %v5336
        %v5474 = vpop.permute.xlu0 %5473
        %5475 = vset.pattern.permute.xlu0 0
        %5476 = vperm.xlu0 %5475, %v5337
        %v5477 = vpop.permute.xlu0 %5476
        %5478 = vset.pattern.permute.xlu0 0
        %5479 = vperm.xlu0 %5478, %v5338
        %v5480 = vpop.permute.xlu0 %5479
        %5481 = vset.pattern.permute.xlu0 0
        %5482 = vperm.xlu0 %5481, %v5339
        %v5483 = vpop.permute.xlu0 %5482
        %5484 = vset.pattern.permute.xlu0 0
        %5485 = vperm.xlu0 %5484, %v5340
        %v5486 = vpop.permute.xlu0 %5485
        %5487 = vset.pattern.permute.xlu0 0
        %5488 = vperm.xlu0 %5487, %v5341
        %v5489 = vpop.permute.xlu0 %5488
        %5490 = vset.pattern.permute.xlu0 0
        %5491 = vperm.xlu0 %5490, %v5342
        %v5492 = vpop.permute.xlu0 %5491
        %5493 = vset.pattern.permute.xlu0 0
        %5494 = vperm.xlu0 %5493, %v5343
        %v5495 = vpop.permute.xlu0 %5494
        %5496 = vset.pattern.permute.xlu0 0
        %5497 = vperm.xlu0 %5496, %v5344
        %v5498 = vpop.permute.xlu0 %5497
        %5499 = vset.pattern.permute.xlu0 0
        %5500 = vperm.xlu0 %5499, %v5345
        %v5501 = vpop.permute.xlu0 %5500
        %5502 = vset.pattern.permute.xlu0 0
        %5503 = vperm.xlu0 %5502, %v5346
        %v5504 = vpop.permute.xlu0 %5503
        %5505 = vset.pattern.permute.xlu0 0
        %5506 = vperm.xlu0 %5505, %v5347
        %v5507 = vpop.permute.xlu0 %5506
        %5508 = vset.pattern.permute.xlu0 0
        %5509 = vperm.xlu0 %5508, %v5348
        %v5510 = vpop.permute.xlu0 %5509
        %5511 = vset.pattern.permute.xlu0 0
        %5512 = vperm.xlu0 %5511, %v5349
        %v5513 = vpop.permute.xlu0 %5512
        %5514 = vset.pattern.permute.xlu0 0
        %5515 = vperm.xlu0 %5514, %v5350
        %v5516 = vpop.permute.xlu0 %5515
        %5517 = vset.pattern.permute.xlu0 0
        %5518 = vperm.xlu0 %5517, %v5351
        %v5519 = vpop.permute.xlu0 %5518
        %5520 = vset.pattern.permute.xlu0 0
        %5521 = vperm.xlu0 %5520, %v5352
        %v5522 = vpop.permute.xlu0 %5521
        %5523 = vset.pattern.permute.xlu0 0
        %5524 = vperm.xlu0 %5523, %v5353
        %v5525 = vpop.permute.xlu0 %5524
        %5526 = vset.pattern.permute.xlu0 0
        %5527 = vperm.xlu0 %5526, %v5354
        %v5528 = vpop.permute.xlu0 %5527
        %5529 = vset.pattern.permute.xlu0 0
        %5530 = vperm.xlu0 %5529, %v5355
        %v5531 = vpop.permute.xlu0 %5530
        %5532 = vset.pattern.permute.xlu0 0
        %5533 = vperm.xlu0 %5532, %v5356
        %v5534 = vpop.permute.xlu0 %5533
        %5535 = vset.pattern.permute.xlu0 0
        %5536 = vperm.xlu0 %5535, %v5357
        %v5537 = vpop.permute.xlu0 %5536
        %5538 = vset.pattern.permute.xlu0 0
        %5539 = vperm.xlu0 %5538, %v5358
        %v5540 = vpop.permute.xlu0 %5539
        %5541 = vset.pattern.permute.xlu0 0
        %5542 = vperm.xlu0 %5541, %v5359
        %v5543 = vpop.permute.xlu0 %5542
        %5544 = vset.pattern.permute.xlu0 0
        %5545 = vperm.xlu0 %5544, %v5360
        %v5546 = vpop.permute.xlu0 %5545
        %5547 = vset.pattern.permute.xlu0 0
        %5548 = vperm.xlu0 %5547, %v5361
        %v5549 = vpop.permute.xlu0 %5548
        %5550 = vset.pattern.permute.xlu0 0
        %5551 = vperm.xlu0 %5550, %v5362
        %v5552 = vpop.permute.xlu0 %5551
        %5553 = vset.pattern.permute.xlu0 0
        %5554 = vperm.xlu0 %5553, %v5363
        %v5555 = vpop.permute.xlu0 %5554
        %5556 = vset.pattern.permute.xlu0 0
        %5557 = vperm.xlu0 %5556, %v5364
        %v5558 = vpop.permute.xlu0 %5557
        %5559 = vset.pattern.permute.xlu0 0
        %5560 = vperm.xlu0 %5559, %v5365
        %v5561 = vpop.permute.xlu0 %5560
        %5562 = vset.pattern.permute.xlu0 0
        %5563 = vperm.xlu0 %5562, %v5366
        %v5564 = vpop.permute.xlu0 %5563
        %5565 = vset.pattern.permute.xlu0 0
        %5566 = vperm.xlu0 %5565, %v5367
        %v5567 = vpop.permute.xlu0 %5566
        %5568 = vset.pattern.permute.xlu0 0
        %5569 = vperm.xlu0 %5568, %v5368
        %v5570 = vpop.permute.xlu0 %5569
        %5571 = vset.pattern.permute.xlu0 0
        %5572 = vperm.xlu0 %5571, %v5369
        %v5573 = vpop.permute.xlu0 %5572
        %5574 = vset.pattern.permute.xlu0 0
        %5575 = vperm.xlu0 %5574, %v5370
        %v5576 = vpop.permute.xlu0 %5575
        %5577 = vset.pattern.permute.xlu0 0
        %5578 = vperm.xlu0 %5577, %v5371
        %v5579 = vpop.permute.xlu0 %5578
        %5580 = vset.pattern.permute.xlu0 0
        %5581 = vperm.xlu0 %5580, %v5372
        %v5582 = vpop.permute.xlu0 %5581
        %5583 = vset.pattern.permute.xlu0 0
        %5584 = vperm.xlu0 %5583, %v5373
        %v5585 = vpop.permute.xlu0 %5584
        %5586 = vset.pattern.permute.xlu0 0
        %5587 = vperm.xlu0 %5586, %v5374
        %v5588 = vpop.permute.xlu0 %5587
        %5589 = vset.pattern.permute.xlu0 0
        %5590 = vperm.xlu0 %5589, %v5375
        %v5591 = vpop.permute.xlu0 %5590
        %5592 = vset.pattern.permute.xlu0 0
        %5593 = vperm.xlu0 %5592, %v5376
        %v5594 = vpop.permute.xlu0 %5593
        %5595 = vset.pattern.permute.xlu0 0
        %5596 = vperm.xlu0 %5595, %v5377
        %v5597 = vpop.permute.xlu0 %5596
        %5598 = vset.pattern.permute.xlu0 0
        %5599 = vperm.xlu0 %5598, %v5378
        %v5600 = vpop.permute.xlu0 %5599
        %5601 = vset.pattern.permute.xlu0 0
        %5602 = vperm.xlu0 %5601, %v5379
        %v5603 = vpop.permute.xlu0 %5602
        %5604 = vset.pattern.permute.xlu0 0
        %5605 = vperm.xlu0 %5604, %v5380
        %v5606 = vpop.permute.xlu0 %5605
        %5607 = vset.pattern.permute.xlu0 0
        %5608 = vperm.xlu0 %5607, %v5381
        %v5609 = vpop.permute.xlu0 %5608
        %5610 = vset.pattern.permute.xlu0 0
        %5611 = vperm.xlu0 %5610, %v5382
        %v5612 = vpop.permute.xlu0 %5611
        %5613 = vset.pattern.permute.xlu0 0
        %5614 = vperm.xlu0 %5613, %v5383
        %v5615 = vpop.permute.xlu0 %5614
        %5616 = vset.pattern.permute.xlu0 0
        %5617 = vperm.xlu0 %5616, %v5384
        %v5618 = vpop.permute.xlu0 %5617
        %5619 = vset.pattern.permute.xlu0 0
        %5620 = vperm.xlu0 %5619, %v5385
        %v5621 = vpop.permute.xlu0 %5620
        %5622 = vset.pattern.permute.xlu0 0
        %5623 = vperm.xlu0 %5622, %v5386
        %v5624 = vpop.permute.xlu0 %5623
        %5625 = vset.pattern.permute.xlu0 0
        %5626 = vperm.xlu0 %5625, %v5387
        %v5627 = vpop.permute.xlu0 %5626
        %5628 = vset.pattern.permute.xlu0 0
        %5629 = vperm.xlu0 %5628, %v5388
        %v5630 = vpop.permute.xlu0 %5629
        %5631 = vset.pattern.permute.xlu0 0
        %5632 = vperm.xlu0 %5631, %v5389
        %v5633 = vpop.permute.xlu0 %5632
        %5634 = vset.pattern.permute.xlu0 0
        %5635 = vperm.xlu0 %5634, %v5390
        %v5636 = vpop.permute.xlu0 %5635
        %5637 = vset.pattern.permute.xlu0 0
        %5638 = vperm.xlu0 %5637, %v5391
        %v5639 = vpop.permute.xlu0 %5638
        %5640 = vset.pattern.permute.xlu0 0
        %5641 = vperm.xlu0 %5640, %v5392
        %v5642 = vpop.permute.xlu0 %5641
        %5643 = vset.pattern.permute.xlu0 0
        %5644 = vperm.xlu0 %5643, %v5393
        %v5645 = vpop.permute.xlu0 %5644
        %5646 = vset.pattern.permute.xlu0 0
        %5647 = vperm.xlu0 %5646, %v5394
        %v5648 = vpop.permute.xlu0 %5647
        %5649 = vset.pattern.permute.xlu0 0
        %5650 = vperm.xlu0 %5649, %v5395
        %v5651 = vpop.permute.xlu0 %5650
        %5652 = vset.pattern.permute.xlu0 0
        %5653 = vperm.xlu0 %5652, %v5396
        %v5654 = vpop.permute.xlu0 %5653
        %5655 = vset.pattern.permute.xlu0 0
        %5656 = vperm.xlu0 %5655, %v5397
        %v5657 = vpop.permute.xlu0 %5656
        %5658 = vset.pattern.permute.xlu0 0
        %5659 = vperm.xlu0 %5658, %v5398
        %v5660 = vpop.permute.xlu0 %5659
        %5661 = vset.pattern.permute.xlu0 0
        %5662 = vperm.xlu0 %5661, %v5399
        %v5663 = vpop.permute.xlu0 %5662
        %5664 = vset.pattern.permute.xlu0 0
        %5665 = vperm.xlu0 %5664, %v5400
        %v5666 = vpop.permute.xlu0 %5665
        %5667 = vset.pattern.permute.xlu0 0
        %5668 = vperm.xlu0 %5667, %v5401
        %v5669 = vpop.permute.xlu0 %5668
        %5670 = vset.pattern.permute.xlu0 0
        %5671 = vperm.xlu0 %5670, %v5402
        %v5672 = vpop.permute.xlu0 %5671
        %5673 = vset.pattern.permute.xlu0 0
        %5674 = vperm.xlu0 %5673, %v5403
        %v5675 = vpop.permute.xlu0 %5674
        %5676 = vset.pattern.permute.xlu0 0
        %5677 = vperm.xlu0 %5676, %v5404
        %v5678 = vpop.permute.xlu0 %5677
        %5679 = vset.pattern.permute.xlu0 0
        %5680 = vperm.xlu0 %5679, %v5405
        %v5681 = vpop.permute.xlu0 %5680
        %5682 = vset.pattern.permute.xlu0 0
        %5683 = vperm.xlu0 %5682, %v5406
        %v5684 = vpop.permute.xlu0 %5683
        %5685 = vset.pattern.permute.xlu0 0
        %5686 = vperm.xlu0 %5685, %v5407
        %v5687 = vpop.permute.xlu0 %5686
        %5688 = vset.pattern.permute.xlu0 0
        %5689 = vperm.xlu0 %5688, %v5408
        %v5690 = vpop.permute.xlu0 %5689
        %5691 = vset.pattern.permute.xlu0 0
        %5692 = vperm.xlu0 %5691, %v5409
        %v5693 = vpop.permute.xlu0 %5692
        %5694 = vset.pattern.permute.xlu0 0
        %5695 = vperm.xlu0 %5694, %v5410
        %v5696 = vpop.permute.xlu0 %5695
        %5697 = vset.pattern.permute.xlu0 0
        %5698 = vperm.xlu0 %5697, %v5411
        %v5699 = vpop.permute.xlu0 %5698
        %5700 = vset.pattern.permute.xlu0 0
        %5701 = vperm.xlu0 %5700, %v5412
        %v5702 = vpop.permute.xlu0 %5701
        %5703 = vset.pattern.permute.xlu0 0
        %5704 = vperm.xlu0 %5703, %v5413
        %v5705 = vpop.permute.xlu0 %5704
        %5706 = vset.pattern.permute.xlu0 0
        %5707 = vperm.xlu0 %5706, %v5414
        %v5708 = vpop.permute.xlu0 %5707
        %5709 = vset.pattern.permute.xlu0 0
        %5710 = vperm.xlu0 %5709, %v5415
        %v5711 = vpop.permute.xlu0 %5710
        %5712 = vset.pattern.permute.xlu0 0
        %5713 = vperm.xlu0 %5712, %v5416
        %v5714 = vpop.permute.xlu0 %5713
        %5715 = vset.pattern.permute.xlu0 0
        %5716 = vperm.xlu0 %5715, %v5417
        %v5717 = vpop.permute.xlu0 %5716
        %5718 = vset.pattern.permute.xlu0 0
        %5719 = vperm.xlu0 %5718, %v5418
        %v5720 = vpop.permute.xlu0 %5719
        %5721 = vset.pattern.permute.xlu0 0
        %5722 = vperm.xlu0 %5721, %v5419
        %v5723 = vpop.permute.xlu0 %5722
        %5724 = vset.pattern.permute.xlu0 0
        %5725 = vperm.xlu0 %5724, %v5420
        %v5726 = vpop.permute.xlu0 %5725
        %5727 = vset.pattern.permute.xlu0 0
        %5728 = vperm.xlu0 %5727, %v5421
        %v5729 = vpop.permute.xlu0 %5728
        %5730 = vset.pattern.permute.xlu0 0
        %5731 = vperm.xlu0 %5730, %v5422
        %v5732 = vpop.permute.xlu0 %5731
        %5733 = vset.pattern.permute.xlu0 0
        %5734 = vperm.xlu0 %5733, %v5423
        %v5735 = vpop.permute.xlu0 %5734
        %5736 = vset.pattern.permute.xlu0 0
        %5737 = vperm.xlu0 %5736, %v5424
        %v5738 = vpop.permute.xlu0 %5737
        %5739 = vset.pattern.permute.xlu0 0
        %5740 = vperm.xlu0 %5739, %v5425
        %v5741 = vpop.permute.xlu0 %5740
        %5742 = vset.pattern.permute.xlu0 0
        %5743 = vperm.xlu0 %5742, %v5426
        %v5744 = vpop.permute.xlu0 %5743
        %5745 = vset.pattern.permute.xlu0 0
        %5746 = vperm.xlu0 %5745, %v5427
        %v5747 = vpop.permute.xlu0 %5746
        %5748 = vset.pattern.permute.xlu0 0
        %5749 = vperm.xlu0 %5748, %v5428
        %v5750 = vpop.permute.xlu0 %5749
        %5751 = vset.pattern.permute.xlu0 0
        %5752 = vperm.xlu0 %5751, %v5429
        %v5753 = vpop.permute.xlu0 %5752
        %5754 = vset.pattern.permute.xlu0 0
        %5755 = vperm.xlu0 %5754, %v5430
        %v5756 = vpop.permute.xlu0 %5755
        %5757 = vset.pattern.permute.xlu0 0
        %5758 = vperm.xlu0 %5757, %v5431
        %v5759 = vpop.permute.xlu0 %5758
        %5760 = vset.pattern.permute.xlu0 0
        %5761 = vperm.xlu0 %5760, %v5432
        %v5762 = vpop.permute.xlu0 %5761
        %5763 = vset.pattern.permute.xlu0 0
        %5764 = vperm.xlu0 %5763, %v5433
        %v5765 = vpop.permute.xlu0 %5764
        %5766 = vset.pattern.permute.xlu0 0
        %5767 = vperm.xlu0 %5766, %v5434
        %v5768 = vpop.permute.xlu0 %5767
        %5769 = vset.pattern.permute.xlu0 0
        %5770 = vperm.xlu0 %5769, %v5435
        %v5771 = vpop.permute.xlu0 %5770
        %5772 = vset.pattern.permute.xlu0 0
        %5773 = vperm.xlu0 %5772, %v5436
        %v5774 = vpop.permute.xlu0 %5773
        %5775 = vset.pattern.permute.xlu0 0
        %5776 = vperm.xlu0 %5775, %v5437
        %v5777 = vpop.permute.xlu0 %5776
        %5778 = vset.pattern.permute.xlu0 0
        %5779 = vperm.xlu0 %5778, %v5438
        %v5780 = vpop.permute.xlu0 %5779
        %5781 = vset.pattern.permute.xlu0 0
        %5782 = vperm.xlu0 %5781, %v5439
        %v5783 = vpop.permute.xlu0 %5782
        %5784 = vset.pattern.permute.xlu0 0
        %5785 = vperm.xlu0 %5784, %v5440
        %v5786 = vpop.permute.xlu0 %5785
        %5787 = vset.pattern.permute.xlu0 0
        %5788 = vperm.xlu0 %5787, %v5441
        %v5789 = vpop.permute.xlu0 %5788
        %5790 = vset.pattern.permute.xlu0 0
        %5791 = vperm.xlu0 %5790, %v5442
        %v5792 = vpop.permute.xlu0 %5791
        %5793 = vset.pattern.permute.xlu0 0
        %5794 = vperm.xlu0 %5793, %v5443
        %v5795 = vpop.permute.xlu0 %5794
        %5796 = vset.pattern.permute.xlu0 0
        %5797 = vperm.xlu0 %5796, %v5444
        %v5798 = vpop.permute.xlu0 %5797
        %5799 = vset.pattern.permute.xlu0 0
        %5800 = vperm.xlu0 %5799, %v5445
        %v5801 = vpop.permute.xlu0 %5800
        %5802 = vset.pattern.permute.xlu0 0
        %5803 = vperm.xlu0 %5802, %v5446
        %v5804 = vpop.permute.xlu0 %5803
        %5805 = vset.pattern.permute.xlu0 0
        %5806 = vperm.xlu0 %5805, %v5447
        %v5807 = vpop.permute.xlu0 %5806
        %5808 = vset.pattern.permute.xlu0 0
        %5809 = vperm.xlu0 %5808, %v5448
        %v5810 = vpop.permute.xlu0 %5809
        %5811 = vset.pattern.permute.xlu0 0
        %5812 = vperm.xlu0 %5811, %v5449
        %v5813 = vpop.permute.xlu0 %5812
        %5814 = vset.pattern.permute.xlu0 0
        %5815 = vperm.xlu0 %5814, %v5450
        %v5816 = vpop.permute.xlu0 %5815
        %5817 = vset.pattern.permute.xlu0 0
        %5818 = vperm.xlu0 %5817, %v5451
        %v5819 = vpop.permute.xlu0 %5818
        %5820 = vset.pattern.permute.xlu0 0
        %5821 = vperm.xlu0 %5820, %v5452
        %v5822 = vpop.permute.xlu0 %5821
        %5823 = vset.pattern.permute.xlu0 0
        %5824 = vperm.xlu0 %5823, %v5453
        %v5825 = vpop.permute.xlu0 %5824
        %5826 = vset.pattern.permute.xlu0 0
        %5827 = vperm.xlu0 %5826, %v5454
        %v5828 = vpop.permute.xlu0 %5827
        %5829 = vset.pattern.permute.xlu0 0
        %5830 = vperm.xlu0 %5829, %v5455
        %v5831 = vpop.permute.xlu0 %5830
        %5832 = vset.pattern.permute.xlu0 0
        %5833 = vperm.xlu0 %5832, %v5456
        %v5834 = vpop.permute.xlu0 %5833
        %5835 = vset.pattern.permute.xlu0 0
        %5836 = vperm.xlu0 %5835, %v5457
        %v5837 = vpop.permute.xlu0 %5836
        %5838 = vset.pattern.permute.xlu0 0
        %5839 = vperm.xlu0 %5838, %v5458
        %v5840 = vpop.permute.xlu0 %5839
        %5841 = vset.pattern.permute.xlu0 0
        %5842 = vperm.xlu0 %5841, %v5459
        %v5843 = vpop.permute.xlu0 %5842
        %vm5844 = vcmp.eq.s32.totalorder %v5331, %v5462
        %vm5845 = vcmp.eq.s32.totalorder %v5331, %v5465
        %vm5846 = vcmp.eq.s32.totalorder %v5331, %v5468
        %vm5847 = vcmp.eq.s32.totalorder %v5331, %v5471
        %vm5848 = vcmp.eq.s32.totalorder %v5331, %v5474
        %vm5849 = vcmp.eq.s32.totalorder %v5331, %v5477
        %vm5850 = vcmp.eq.s32.totalorder %v5331, %v5480
        %vm5851 = vcmp.eq.s32.totalorder %v5331, %v5483
        %vm5852 = vcmp.eq.s32.totalorder %v5331, %v5486
        %vm5853 = vcmp.eq.s32.totalorder %v5331, %v5489
        %vm5854 = vcmp.eq.s32.totalorder %v5331, %v5492
        %vm5855 = vcmp.eq.s32.totalorder %v5331, %v5495
        %vm5856 = vcmp.eq.s32.totalorder %v5331, %v5498
        %vm5857 = vcmp.eq.s32.totalorder %v5331, %v5501
        %vm5858 = vcmp.eq.s32.totalorder %v5331, %v5504
        %vm5859 = vcmp.eq.s32.totalorder %v5331, %v5507
        %vm5860 = vcmp.eq.s32.totalorder %v5331, %v5510
        %vm5861 = vcmp.eq.s32.totalorder %v5331, %v5513
        %vm5862 = vcmp.eq.s32.totalorder %v5331, %v5516
        %vm5863 = vcmp.eq.s32.totalorder %v5331, %v5519
        %vm5864 = vcmp.eq.s32.totalorder %v5331, %v5522
        %vm5865 = vcmp.eq.s32.totalorder %v5331, %v5525
        %vm5866 = vcmp.eq.s32.totalorder %v5331, %v5528
        %vm5867 = vcmp.eq.s32.totalorder %v5331, %v5531
        %vm5868 = vcmp.eq.s32.totalorder %v5331, %v5534
        %vm5869 = vcmp.eq.s32.totalorder %v5331, %v5537
        %vm5870 = vcmp.eq.s32.totalorder %v5331, %v5540
        %vm5871 = vcmp.eq.s32.totalorder %v5331, %v5543
        %vm5872 = vcmp.eq.s32.totalorder %v5331, %v5546
        %vm5873 = vcmp.eq.s32.totalorder %v5331, %v5549
        %vm5874 = vcmp.eq.s32.totalorder %v5331, %v5552
        %vm5875 = vcmp.eq.s32.totalorder %v5331, %v5555
        %vm5876 = vcmp.eq.s32.totalorder %v5331, %v5558
        %vm5877 = vcmp.eq.s32.totalorder %v5331, %v5561
        %vm5878 = vcmp.eq.s32.totalorder %v5331, %v5564
        %vm5879 = vcmp.eq.s32.totalorder %v5331, %v5567
        %vm5880 = vcmp.eq.s32.totalorder %v5331, %v5570
        %vm5881 = vcmp.eq.s32.totalorder %v5331, %v5573
        %vm5882 = vcmp.eq.s32.totalorder %v5331, %v5576
        %vm5883 = vcmp.eq.s32.totalorder %v5331, %v5579
        %vm5884 = vcmp.eq.s32.totalorder %v5331, %v5582
        %vm5885 = vcmp.eq.s32.totalorder %v5331, %v5585
        %vm5886 = vcmp.eq.s32.totalorder %v5331, %v5588
        %vm5887 = vcmp.eq.s32.totalorder %v5331, %v5591
        %vm5888 = vcmp.eq.s32.totalorder %v5331, %v5594
        %vm5889 = vcmp.eq.s32.totalorder %v5331, %v5597
        %vm5890 = vcmp.eq.s32.totalorder %v5331, %v5600
        %vm5891 = vcmp.eq.s32.totalorder %v5331, %v5603
        %vm5892 = vcmp.eq.s32.totalorder %v5331, %v5606
        %vm5893 = vcmp.eq.s32.totalorder %v5331, %v5609
        %vm5894 = vcmp.eq.s32.totalorder %v5331, %v5612
        %vm5895 = vcmp.eq.s32.totalorder %v5331, %v5615
        %vm5896 = vcmp.eq.s32.totalorder %v5331, %v5618
        %vm5897 = vcmp.eq.s32.totalorder %v5331, %v5621
        %vm5898 = vcmp.eq.s32.totalorder %v5331, %v5624
        %vm5899 = vcmp.eq.s32.totalorder %v5331, %v5627
        %vm5900 = vcmp.eq.s32.totalorder %v5331, %v5630
        %vm5901 = vcmp.eq.s32.totalorder %v5331, %v5633
        %vm5902 = vcmp.eq.s32.totalorder %v5331, %v5636
        %vm5903 = vcmp.eq.s32.totalorder %v5331, %v5639
        %vm5904 = vcmp.eq.s32.totalorder %v5331, %v5642
        %vm5905 = vcmp.eq.s32.totalorder %v5331, %v5645
        %vm5906 = vcmp.eq.s32.totalorder %v5331, %v5648
        %vm5907 = vcmp.eq.s32.totalorder %v5331, %v5651
        %vm5908 = vcmp.eq.s32.totalorder %v5331, %v5654
        %vm5909 = vcmp.eq.s32.totalorder %v5331, %v5657
        %vm5910 = vcmp.eq.s32.totalorder %v5331, %v5660
        %vm5911 = vcmp.eq.s32.totalorder %v5331, %v5663
        %vm5912 = vcmp.eq.s32.totalorder %v5331, %v5666
        %vm5913 = vcmp.eq.s32.totalorder %v5331, %v5669
        %vm5914 = vcmp.eq.s32.totalorder %v5331, %v5672
        %vm5915 = vcmp.eq.s32.totalorder %v5331, %v5675
        %vm5916 = vcmp.eq.s32.totalorder %v5331, %v5678
        %vm5917 = vcmp.eq.s32.totalorder %v5331, %v5681
        %vm5918 = vcmp.eq.s32.totalorder %v5331, %v5684
        %vm5919 = vcmp.eq.s32.totalorder %v5331, %v5687
        %vm5920 = vcmp.eq.s32.totalorder %v5331, %v5690
        %vm5921 = vcmp.eq.s32.totalorder %v5331, %v5693
        %vm5922 = vcmp.eq.s32.totalorder %v5331, %v5696
        %vm5923 = vcmp.eq.s32.totalorder %v5331, %v5699
        %vm5924 = vcmp.eq.s32.totalorder %v5331, %v5702
        %vm5925 = vcmp.eq.s32.totalorder %v5331, %v5705
        %vm5926 = vcmp.eq.s32.totalorder %v5331, %v5708
        %vm5927 = vcmp.eq.s32.totalorder %v5331, %v5711
        %vm5928 = vcmp.eq.s32.totalorder %v5331, %v5714
        %vm5929 = vcmp.eq.s32.totalorder %v5331, %v5717
        %vm5930 = vcmp.eq.s32.totalorder %v5331, %v5720
        %vm5931 = vcmp.eq.s32.totalorder %v5331, %v5723
        %vm5932 = vcmp.eq.s32.totalorder %v5331, %v5726
        %vm5933 = vcmp.eq.s32.totalorder %v5331, %v5729
        %vm5934 = vcmp.eq.s32.totalorder %v5331, %v5732
        %vm5935 = vcmp.eq.s32.totalorder %v5331, %v5735
        %vm5936 = vcmp.eq.s32.totalorder %v5331, %v5738
        %vm5937 = vcmp.eq.s32.totalorder %v5331, %v5741
        %vm5938 = vcmp.eq.s32.totalorder %v5331, %v5744
        %vm5939 = vcmp.eq.s32.totalorder %v5331, %v5747
        %vm5940 = vcmp.eq.s32.totalorder %v5331, %v5750
        %vm5941 = vcmp.eq.s32.totalorder %v5331, %v5753
        %vm5942 = vcmp.eq.s32.totalorder %v5331, %v5756
        %vm5943 = vcmp.eq.s32.totalorder %v5331, %v5759
        %vm5944 = vcmp.eq.s32.totalorder %v5331, %v5762
        %vm5945 = vcmp.eq.s32.totalorder %v5331, %v5765
        %vm5946 = vcmp.eq.s32.totalorder %v5331, %v5768
        %vm5947 = vcmp.eq.s32.totalorder %v5331, %v5771
        %vm5948 = vcmp.eq.s32.totalorder %v5331, %v5774
        %vm5949 = vcmp.eq.s32.totalorder %v5331, %v5777
        %vm5950 = vcmp.eq.s32.totalorder %v5331, %v5780
        %vm5951 = vcmp.eq.s32.totalorder %v5331, %v5783
        %vm5952 = vcmp.eq.s32.totalorder %v5331, %v5786
        %vm5953 = vcmp.eq.s32.totalorder %v5331, %v5789
        %vm5954 = vcmp.eq.s32.totalorder %v5331, %v5792
        %vm5955 = vcmp.eq.s32.totalorder %v5331, %v5795
        %vm5956 = vcmp.eq.s32.totalorder %v5331, %v5798
        %vm5957 = vcmp.eq.s32.totalorder %v5331, %v5801
        %vm5958 = vcmp.eq.s32.totalorder %v5331, %v5804
        %vm5959 = vcmp.eq.s32.totalorder %v5331, %v5807
        %vm5960 = vcmp.eq.s32.totalorder %v5331, %v5810
        %vm5961 = vcmp.eq.s32.totalorder %v5331, %v5813
        %vm5962 = vcmp.eq.s32.totalorder %v5331, %v5816
        %vm5963 = vcmp.eq.s32.totalorder %v5331, %v5819
        %vm5964 = vcmp.eq.s32.totalorder %v5331, %v5822
        %vm5965 = vcmp.eq.s32.totalorder %v5331, %v5825
        %vm5966 = vcmp.eq.s32.totalorder %v5331, %v5828
        %vm5967 = vcmp.eq.s32.totalorder %v5331, %v5831
        %vm5968 = vcmp.eq.s32.totalorder %v5331, %v5834
        %vm5969 = vcmp.eq.s32.totalorder %v5331, %v5837
        %vm5970 = vcmp.eq.s32.totalorder %v5331, %v5840
        %vm5971 = vcmp.eq.s32.totalorder %v5331, %v5843
        %v5972 = vsel %vm5844, 1, 0
        %v5973 = vsel %vm5845, 1, 0
        %v5974 = vsel %vm5846, 1, 0
        %v5975 = vsel %vm5847, 1, 0
        %v5976 = vsel %vm5848, 1, 0
        %v5977 = vsel %vm5849, 1, 0
        %v5978 = vsel %vm5850, 1, 0
        %v5979 = vsel %vm5851, 1, 0
        %v5980 = vsel %vm5852, 1, 0
        %v5981 = vsel %vm5853, 1, 0
        %v5982 = vsel %vm5854, 1, 0
        %v5983 = vsel %vm5855, 1, 0
        %v5984 = vsel %vm5856, 1, 0
        %v5985 = vsel %vm5857, 1, 0
        %v5986 = vsel %vm5858, 1, 0
        %v5987 = vsel %vm5859, 1, 0
        %v5988 = vsel %vm5860, 1, 0
        %v5989 = vsel %vm5861, 1, 0
        %v5990 = vsel %vm5862, 1, 0
        %v5991 = vsel %vm5863, 1, 0
        %v5992 = vsel %vm5864, 1, 0
        %v5993 = vsel %vm5865, 1, 0
        %v5994 = vsel %vm5866, 1, 0
        %v5995 = vsel %vm5867, 1, 0
        %v5996 = vsel %vm5868, 1, 0
        %v5997 = vsel %vm5869, 1, 0
        %v5998 = vsel %vm5870, 1, 0
        %v5999 = vsel %vm5871, 1, 0
        %v6000 = vsel %vm5872, 1, 0
        %v6001 = vsel %vm5873, 1, 0
        %v6002 = vsel %vm5874, 1, 0
        %v6003 = vsel %vm5875, 1, 0
        %v6004 = vsel %vm5876, 1, 0
        %v6005 = vsel %vm5877, 1, 0
        %v6006 = vsel %vm5878, 1, 0
        %v6007 = vsel %vm5879, 1, 0
        %v6008 = vsel %vm5880, 1, 0
        %v6009 = vsel %vm5881, 1, 0
        %v6010 = vsel %vm5882, 1, 0
        %v6011 = vsel %vm5883, 1, 0
        %v6012 = vsel %vm5884, 1, 0
        %v6013 = vsel %vm5885, 1, 0
        %v6014 = vsel %vm5886, 1, 0
        %v6015 = vsel %vm5887, 1, 0
        %v6016 = vsel %vm5888, 1, 0
        %v6017 = vsel %vm5889, 1, 0
        %v6018 = vsel %vm5890, 1, 0
        %v6019 = vsel %vm5891, 1, 0
        %v6020 = vsel %vm5892, 1, 0
        %v6021 = vsel %vm5893, 1, 0
        %v6022 = vsel %vm5894, 1, 0
        %v6023 = vsel %vm5895, 1, 0
        %v6024 = vsel %vm5896, 1, 0
        %v6025 = vsel %vm5897, 1, 0
        %v6026 = vsel %vm5898, 1, 0
        %v6027 = vsel %vm5899, 1, 0
        %v6028 = vsel %vm5900, 1, 0
        %v6029 = vsel %vm5901, 1, 0
        %v6030 = vsel %vm5902, 1, 0
        %v6031 = vsel %vm5903, 1, 0
        %v6032 = vsel %vm5904, 1, 0
        %v6033 = vsel %vm5905, 1, 0
        %v6034 = vsel %vm5906, 1, 0
        %v6035 = vsel %vm5907, 1, 0
        %v6036 = vsel %vm5908, 1, 0
        %v6037 = vsel %vm5909, 1, 0
        %v6038 = vsel %vm5910, 1, 0
        %v6039 = vsel %vm5911, 1, 0
        %v6040 = vsel %vm5912, 1, 0
        %v6041 = vsel %vm5913, 1, 0
        %v6042 = vsel %vm5914, 1, 0
        %v6043 = vsel %vm5915, 1, 0
        %v6044 = vsel %vm5916, 1, 0
        %v6045 = vsel %vm5917, 1, 0
        %v6046 = vsel %vm5918, 1, 0
        %v6047 = vsel %vm5919, 1, 0
        %v6048 = vsel %vm5920, 1, 0
        %v6049 = vsel %vm5921, 1, 0
        %v6050 = vsel %vm5922, 1, 0
        %v6051 = vsel %vm5923, 1, 0
        %v6052 = vsel %vm5924, 1, 0
        %v6053 = vsel %vm5925, 1, 0
        %v6054 = vsel %vm5926, 1, 0
        %v6055 = vsel %vm5927, 1, 0
        %v6056 = vsel %vm5928, 1, 0
        %v6057 = vsel %vm5929, 1, 0
        %v6058 = vsel %vm5930, 1, 0
        %v6059 = vsel %vm5931, 1, 0
        %v6060 = vsel %vm5932, 1, 0
        %v6061 = vsel %vm5933, 1, 0
        %v6062 = vsel %vm5934, 1, 0
        %v6063 = vsel %vm5935, 1, 0
        %v6064 = vsel %vm5936, 1, 0
        %v6065 = vsel %vm5937, 1, 0
        %v6066 = vsel %vm5938, 1, 0
        %v6067 = vsel %vm5939, 1, 0
        %v6068 = vsel %vm5940, 1, 0
        %v6069 = vsel %vm5941, 1, 0
        %v6070 = vsel %vm5942, 1, 0
        %v6071 = vsel %vm5943, 1, 0
        %v6072 = vsel %vm5944, 1, 0
        %v6073 = vsel %vm5945, 1, 0
        %v6074 = vsel %vm5946, 1, 0
        %v6075 = vsel %vm5947, 1, 0
        %v6076 = vsel %vm5948, 1, 0
        %v6077 = vsel %vm5949, 1, 0
        %v6078 = vsel %vm5950, 1, 0
        %v6079 = vsel %vm5951, 1, 0
        %v6080 = vsel %vm5952, 1, 0
        %v6081 = vsel %vm5953, 1, 0
        %v6082 = vsel %vm5954, 1, 0
        %v6083 = vsel %vm5955, 1, 0
        %v6084 = vsel %vm5956, 1, 0
        %v6085 = vsel %vm5957, 1, 0
        %v6086 = vsel %vm5958, 1, 0
        %v6087 = vsel %vm5959, 1, 0
        %v6088 = vsel %vm5960, 1, 0
        %v6089 = vsel %vm5961, 1, 0
        %v6090 = vsel %vm5962, 1, 0
        %v6091 = vsel %vm5963, 1, 0
        %v6092 = vsel %vm5964, 1, 0
        %v6093 = vsel %vm5965, 1, 0
        %v6094 = vsel %vm5966, 1, 0
        %v6095 = vsel %vm5967, 1, 0
        %v6096 = vsel %vm5968, 1, 0
        %v6097 = vsel %vm5969, 1, 0
        %v6098 = vsel %vm5970, 1, 0
        %v6099 = vsel %vm5971, 1, 0
        %v6100 = vcvt.s32.f32 %v5972
        %v6101 = vcvt.s32.f32 %v5973
        %v6102 = vcvt.s32.f32 %v5974
        %v6103 = vcvt.s32.f32 %v5975
        %v6104 = vcvt.s32.f32 %v5976
        %v6105 = vcvt.s32.f32 %v5977
        %v6106 = vcvt.s32.f32 %v5978
        %v6107 = vcvt.s32.f32 %v5979
        %v6108 = vcvt.s32.f32 %v5980
        %v6109 = vcvt.s32.f32 %v5981
        %v6110 = vcvt.s32.f32 %v5982
        %v6111 = vcvt.s32.f32 %v5983
        %v6112 = vcvt.s32.f32 %v5984
        %v6113 = vcvt.s32.f32 %v5985
        %v6114 = vcvt.s32.f32 %v5986
        %v6115 = vcvt.s32.f32 %v5987
        %v6116 = vcvt.s32.f32 %v5988
        %v6117 = vcvt.s32.f32 %v5989
        %v6118 = vcvt.s32.f32 %v5990
        %v6119 = vcvt.s32.f32 %v5991
        %v6120 = vcvt.s32.f32 %v5992
        %v6121 = vcvt.s32.f32 %v5993
        %v6122 = vcvt.s32.f32 %v5994
        %v6123 = vcvt.s32.f32 %v5995
        %v6124 = vcvt.s32.f32 %v5996
        %v6125 = vcvt.s32.f32 %v5997
        %v6126 = vcvt.s32.f32 %v5998
        %v6127 = vcvt.s32.f32 %v5999
        %v6128 = vcvt.s32.f32 %v6000
        %v6129 = vcvt.s32.f32 %v6001
        %v6130 = vcvt.s32.f32 %v6002
        %v6131 = vcvt.s32.f32 %v6003
        %v6132 = vcvt.s32.f32 %v6004
        %v6133 = vcvt.s32.f32 %v6005
        %v6134 = vcvt.s32.f32 %v6006
        %v6135 = vcvt.s32.f32 %v6007
        %v6136 = vcvt.s32.f32 %v6008
        %v6137 = vcvt.s32.f32 %v6009
        %v6138 = vcvt.s32.f32 %v6010
        %v6139 = vcvt.s32.f32 %v6011
        %v6140 = vcvt.s32.f32 %v6012
        %v6141 = vcvt.s32.f32 %v6013
        %v6142 = vcvt.s32.f32 %v6014
        %v6143 = vcvt.s32.f32 %v6015
        %v6144 = vcvt.s32.f32 %v6016
        %v6145 = vcvt.s32.f32 %v6017
        %v6146 = vcvt.s32.f32 %v6018
        %v6147 = vcvt.s32.f32 %v6019
        %v6148 = vcvt.s32.f32 %v6020
        %v6149 = vcvt.s32.f32 %v6021
        %v6150 = vcvt.s32.f32 %v6022
        %v6151 = vcvt.s32.f32 %v6023
        %v6152 = vcvt.s32.f32 %v6024
        %v6153 = vcvt.s32.f32 %v6025
        %v6154 = vcvt.s32.f32 %v6026
        %v6155 = vcvt.s32.f32 %v6027
        %v6156 = vcvt.s32.f32 %v6028
        %v6157 = vcvt.s32.f32 %v6029
        %v6158 = vcvt.s32.f32 %v6030
        %v6159 = vcvt.s32.f32 %v6031
        %v6160 = vcvt.s32.f32 %v6032
        %v6161 = vcvt.s32.f32 %v6033
        %v6162 = vcvt.s32.f32 %v6034
        %v6163 = vcvt.s32.f32 %v6035
        %v6164 = vcvt.s32.f32 %v6036
        %v6165 = vcvt.s32.f32 %v6037
        %v6166 = vcvt.s32.f32 %v6038
        %v6167 = vcvt.s32.f32 %v6039
        %v6168 = vcvt.s32.f32 %v6040
        %v6169 = vcvt.s32.f32 %v6041
        %v6170 = vcvt.s32.f32 %v6042
        %v6171 = vcvt.s32.f32 %v6043
        %v6172 = vcvt.s32.f32 %v6044
        %v6173 = vcvt.s32.f32 %v6045
        %v6174 = vcvt.s32.f32 %v6046
        %v6175 = vcvt.s32.f32 %v6047
        %v6176 = vcvt.s32.f32 %v6048
        %v6177 = vcvt.s32.f32 %v6049
        %v6178 = vcvt.s32.f32 %v6050
        %v6179 = vcvt.s32.f32 %v6051
        %v6180 = vcvt.s32.f32 %v6052
        %v6181 = vcvt.s32.f32 %v6053
        %v6182 = vcvt.s32.f32 %v6054
        %v6183 = vcvt.s32.f32 %v6055
        %v6184 = vcvt.s32.f32 %v6056
        %v6185 = vcvt.s32.f32 %v6057
        %v6186 = vcvt.s32.f32 %v6058
        %v6187 = vcvt.s32.f32 %v6059
        %v6188 = vcvt.s32.f32 %v6060
        %v6189 = vcvt.s32.f32 %v6061
        %v6190 = vcvt.s32.f32 %v6062
        %v6191 = vcvt.s32.f32 %v6063
        %v6192 = vcvt.s32.f32 %v6064
        %v6193 = vcvt.s32.f32 %v6065
        %v6194 = vcvt.s32.f32 %v6066
        %v6195 = vcvt.s32.f32 %v6067
        %v6196 = vcvt.s32.f32 %v6068
        %v6197 = vcvt.s32.f32 %v6069
        %v6198 = vcvt.s32.f32 %v6070
        %v6199 = vcvt.s32.f32 %v6071
        %v6200 = vcvt.s32.f32 %v6072
        %v6201 = vcvt.s32.f32 %v6073
        %v6202 = vcvt.s32.f32 %v6074
        %v6203 = vcvt.s32.f32 %v6075
        %v6204 = vcvt.s32.f32 %v6076
        %v6205 = vcvt.s32.f32 %v6077
        %v6206 = vcvt.s32.f32 %v6078
        %v6207 = vcvt.s32.f32 %v6079
        %v6208 = vcvt.s32.f32 %v6080
        %v6209 = vcvt.s32.f32 %v6081
        %v6210 = vcvt.s32.f32 %v6082
        %v6211 = vcvt.s32.f32 %v6083
        %v6212 = vcvt.s32.f32 %v6084
        %v6213 = vcvt.s32.f32 %v6085
        %v6214 = vcvt.s32.f32 %v6086
        %v6215 = vcvt.s32.f32 %v6087
        %v6216 = vcvt.s32.f32 %v6088
        %v6217 = vcvt.s32.f32 %v6089
        %v6218 = vcvt.s32.f32 %v6090
        %v6219 = vcvt.s32.f32 %v6091
        %v6220 = vcvt.s32.f32 %v6092
        %v6221 = vcvt.s32.f32 %v6093
        %v6222 = vcvt.s32.f32 %v6094
        %v6223 = vcvt.s32.f32 %v6095
        %v6224 = vcvt.s32.f32 %v6096
        %v6225 = vcvt.s32.f32 %v6097
        %v6226 = vcvt.s32.f32 %v6098
        %v6227 = vcvt.s32.f32 %v6099
        %v6228 = vpack.c.bf16 %v6101, %v6100
        %v6229 = vpack.c.bf16 %v6103, %v6102
        %v6230 = vpack.c.bf16 %v6105, %v6104
        %v6231 = vpack.c.bf16 %v6107, %v6106
        %v6232 = vpack.c.bf16 %v6109, %v6108
        %v6233 = vpack.c.bf16 %v6111, %v6110
        %v6234 = vpack.c.bf16 %v6113, %v6112
        %v6235 = vpack.c.bf16 %v6115, %v6114
        %v6236 = vpack.c.bf16 %v6117, %v6116
        %v6237 = vpack.c.bf16 %v6119, %v6118
        %v6238 = vpack.c.bf16 %v6121, %v6120
        %v6239 = vpack.c.bf16 %v6123, %v6122
        %v6240 = vpack.c.bf16 %v6125, %v6124
        %v6241 = vpack.c.bf16 %v6127, %v6126
        %v6242 = vpack.c.bf16 %v6129, %v6128
        %v6243 = vpack.c.bf16 %v6131, %v6130
        %v6244 = vpack.c.bf16 %v6133, %v6132
        %v6245 = vpack.c.bf16 %v6135, %v6134
        %v6246 = vpack.c.bf16 %v6137, %v6136
        %v6247 = vpack.c.bf16 %v6139, %v6138
        %v6248 = vpack.c.bf16 %v6141, %v6140
        %v6249 = vpack.c.bf16 %v6143, %v6142
        %v6250 = vpack.c.bf16 %v6145, %v6144
        %v6251 = vpack.c.bf16 %v6147, %v6146
        %v6252 = vpack.c.bf16 %v6149, %v6148
        %v6253 = vpack.c.bf16 %v6151, %v6150
        %v6254 = vpack.c.bf16 %v6153, %v6152
        %v6255 = vpack.c.bf16 %v6155, %v6154
        %v6256 = vpack.c.bf16 %v6157, %v6156
        %v6257 = vpack.c.bf16 %v6159, %v6158
        %v6258 = vpack.c.bf16 %v6161, %v6160
        %v6259 = vpack.c.bf16 %v6163, %v6162
        %v6260 = vpack.c.bf16 %v6165, %v6164
        %v6261 = vpack.c.bf16 %v6167, %v6166
        %v6262 = vpack.c.bf16 %v6169, %v6168
        %v6263 = vpack.c.bf16 %v6171, %v6170
        %v6264 = vpack.c.bf16 %v6173, %v6172
        %v6265 = vpack.c.bf16 %v6175, %v6174
        %v6266 = vpack.c.bf16 %v6177, %v6176
        %v6267 = vpack.c.bf16 %v6179, %v6178
        %v6268 = vpack.c.bf16 %v6181, %v6180
        %v6269 = vpack.c.bf16 %v6183, %v6182
        %v6270 = vpack.c.bf16 %v6185, %v6184
        %v6271 = vpack.c.bf16 %v6187, %v6186
        %v6272 = vpack.c.bf16 %v6189, %v6188
        %v6273 = vpack.c.bf16 %v6191, %v6190
        %v6274 = vpack.c.bf16 %v6193, %v6192
        %v6275 = vpack.c.bf16 %v6195, %v6194
        %v6276 = vpack.c.bf16 %v6197, %v6196
        %v6277 = vpack.c.bf16 %v6199, %v6198
        %v6278 = vpack.c.bf16 %v6201, %v6200
        %v6279 = vpack.c.bf16 %v6203, %v6202
        %v6280 = vpack.c.bf16 %v6205, %v6204
        %v6281 = vpack.c.bf16 %v6207, %v6206
        %v6282 = vpack.c.bf16 %v6209, %v6208
        %v6283 = vpack.c.bf16 %v6211, %v6210
        %v6284 = vpack.c.bf16 %v6213, %v6212
        %v6285 = vpack.c.bf16 %v6215, %v6214
        %v6286 = vpack.c.bf16 %v6217, %v6216
        %v6287 = vpack.c.bf16 %v6219, %v6218
        %v6288 = vpack.c.bf16 %v6221, %v6220
        %v6289 = vpack.c.bf16 %v6223, %v6222
        %v6290 = vpack.c.bf16 %v6225, %v6224
        %v6291 = vpack.c.bf16 %v6227, %v6226
        %v6292 = vld [vmem:[#allocation9] sm:$0xf]
        %v6293 = vld [vmem:[#allocation9 + $0x4] sm:$0xf]
        %v6294 = vld [vmem:[#allocation9 + $0x8] sm:$0xf]
        %v6295 = vld [vmem:[#allocation9 + $0xc] sm:$0xf]
        %v6296 = vld [vmem:[#allocation9 + $0x10] sm:$0xf]
        %v6297 = vld [vmem:[#allocation9 + $0x14] sm:$0xf]
        %v6298 = vld [vmem:[#allocation9 + $0x18] sm:$0xf]
        %v6299 = vld [vmem:[#allocation9 + $0x1c] sm:$0xf]
        %v6300 = vld [vmem:[#allocation9 + $0x20] sm:$0xf]
        %v6301 = vld [vmem:[#allocation9 + $0x24] sm:$0xf]
        %v6302 = vld [vmem:[#allocation9 + $0x28] sm:$0xf]
        %v6303 = vld [vmem:[#allocation9 + $0x2c] sm:$0xf]
        %v6304 = vld [vmem:[#allocation9 + $0x30] sm:$0xf]
        %v6305 = vld [vmem:[#allocation9 + $0x34] sm:$0xf]
        %v6306 = vld [vmem:[#allocation9 + $0x38] sm:$0xf]
        %v6307 = vld [vmem:[#allocation9 + $0x3c] sm:$0xf]
        %v6324 = vunpack.c.l.b16 %v6292
        %v6325 = vunpack.c.l.b16 %v6293
        %v6326 = vunpack.c.l.b16 %v6294
        %v6327 = vunpack.c.l.b16 %v6295
        %v6328 = vunpack.c.l.b16 %v6296
        %v6329 = vunpack.c.l.b16 %v6297
        %v6330 = vunpack.c.l.b16 %v6298
        %v6331 = vunpack.c.l.b16 %v6299
        %v6332 = vunpack.c.l.b16 %v6300
        %v6333 = vunpack.c.l.b16 %v6301
        %v6334 = vunpack.c.l.b16 %v6302
        %v6335 = vunpack.c.l.b16 %v6303
        %v6336 = vunpack.c.l.b16 %v6304
        %v6337 = vunpack.c.l.b16 %v6305
        %v6338 = vunpack.c.l.b16 %v6306
        %v6339 = vunpack.c.l.b16 %v6307
        %v6340 = vpack.c.b16 %v6325, %v6324
        %v6341 = vpack.c.b16 %v6327, %v6326
        %v6342 = vpack.c.b16 %v6329, %v6328
        %v6343 = vpack.c.b16 %v6331, %v6330
        %v6344 = vpack.c.b16 %v6333, %v6332
        %v6345 = vpack.c.b16 %v6335, %v6334
        %v6346 = vpack.c.b16 %v6337, %v6336
        %v6347 = vpack.c.b16 %v6339, %v6338
        %6356 = vmatprep.subr.bf16.mxu0 0
        %6357 = vmatpush1.bf16.msra.mxu0 %v6340
        %6358 = vmatprep.subr.bf16.mxu0 0
        %6359 = vmatpush1.bf16.msra.mxu0 %v6341
        %6360 = vmatprep.subr.bf16.mxu0 0
        %6361 = vmatpush1.bf16.msra.mxu0 %v6342
        %6362 = vmatprep.subr.bf16.mxu0 0
        %6363 = vmatpush1.bf16.msra.mxu0 %v6343
        %6364 = vmatprep.subr.bf16.mxu0 0
        %6365 = vmatpush1.bf16.msra.mxu0 %v6344
        %6366 = vmatprep.subr.bf16.mxu0 0
        %6367 = vmatpush1.bf16.msra.mxu0 %v6345
        %6368 = vmatprep.subr.bf16.mxu0 0
        %6369 = vmatpush1.bf16.msra.mxu0 %v6346
        %6370 = vmatprep.subr.bf16.mxu0 0
        %6371 = vmatpush1.bf16.msra.mxu0 %v6347
        %6372 = vmatprep.subr.bf16.mxu0 0
        %6373 = vmatpush1.bf16.msra.mxu0 0
        %6374 = vmatprep.subr.bf16.mxu0 0
        %6375 = vmatpush1.bf16.msra.mxu0 0
        %6376 = vmatprep.subr.bf16.mxu0 0
        %6377 = vmatpush1.bf16.msra.mxu0 0
        %6378 = vmatprep.subr.bf16.mxu0 0
        %6379 = vmatpush1.bf16.msra.mxu0 0
        %6380 = vmatprep.subr.bf16.mxu0 0
        %6381 = vmatpush1.bf16.msra.mxu0 0
        %6382 = vmatprep.subr.bf16.mxu0 0
        %6383 = vmatpush1.bf16.msra.mxu0 0
        %6384 = vmatprep.subr.bf16.mxu0 0
        %6385 = vmatpush1.bf16.msra.mxu0 0
        %6386 = vmatprep.subr.bf16.mxu0 0
        %6387 = vmatpush1.bf16.msra.mxu0 0
        %6388 = vmatprep.mubr.bf16.mxu0 0
        %6389 = vmatmul.mubr.bf16.gmra.mrb[0].mxu0 %v6228
        %v6390 = vpop.f32.mrb[0].mxu0
        %v6391 = vadd.f32 0.0, %v6390
        %v6392 = vpop.f32.mrb[0].mxu0
        %v6393 = vpop.f32.mrb[0].mxu0
        %v6394 = vadd.f32 0.0, %v6393
        %v6395 = vpop.f32.mrb[0].mxu0
        %6396 = vmatprep.mubr.bf16.mxu0 0
        %6397 = vmatmul.mubr.bf16.gmra.mrb[0].mxu0 %v6229
        %v6398 = vpop.f32.mrb[0].mxu0
        %v6399 = vadd.f32 0.0, %v6398
        %v6400 = vpop.f32.mrb[0].mxu0
        %v6401 = vpop.f32.mrb[0].mxu0
        %v6402 = vadd.f32 0.0, %v6401
        %v6403 = vpop.f32.mrb[0].mxu0
        %6404 = vmatprep.mubr.bf16.mxu0 0
        %6405 = vmatmul.mubr.bf16.gmra.mrb[0].mxu0 %v6230
        %v6406 = vpop.f32.mrb[0].mxu0
        %v6407 = vadd.f32 0.0, %v6406
        %v6408 = vpop.f32.mrb[0].mxu0
        %v6409 = vpop.f32.mrb[0].mxu0
        %v6410 = vadd.f32 0.0, %v6409
        %v6411 = vpop.f32.mrb[0].mxu0
        %6412 = vmatprep.mubr.bf16.mxu0 0
        %6413 = vmatmul.mubr.bf16.gmra.mrb[0].mxu0 %v6231
        %v6414 = vpop.f32.mrb[0].mxu0
        %v6415 = vadd.f32 0.0, %v6414
        %v6416 = vpop.f32.mrb[0].mxu0
        %v6417 = vpop.f32.mrb[0].mxu0
        %v6418 = vadd.f32 0.0, %v6417
        %v6419 = vpop.f32.mrb[0].mxu0
        %6420 = vmatprep.mubr.bf16.mxu0 0
        %6421 = vmatmul.mubr.bf16.gmra.mrb[0].mxu0 %v6232
        %v6422 = vpop.f32.mrb[0].mxu0
        %v6423 = vadd.f32 0.0, %v6422
        %v6424 = vpop.f32.mrb[0].mxu0
        %v6425 = vpop.f32.mrb[0].mxu0
        %v6426 = vadd.f32 0.0, %v6425
        %v6427 = vpop.f32.mrb[0].mxu0
        %6428 = vmatprep.mubr.bf16.mxu0 0
        %6429 = vmatmul.mubr.bf16.gmra.mrb[0].mxu0 %v6233
        %v6430 = vpop.f32.mrb[0].mxu0
        %v6431 = vadd.f32 0.0, %v6430
        %v6432 = vpop.f32.mrb[0].mxu0
        %v6433 = vpop.f32.mrb[0].mxu0
        %v6434 = vadd.f32 0.0, %v6433
        %v6435 = vpop.f32.mrb[0].mxu0
        %6436 = vmatprep.mubr.bf16.mxu0 0
        %6437 = vmatmul.mubr.bf16.gmra.mrb[0].mxu0 %v6234
        %v6438 = vpop.f32.mrb[0].mxu0
        %v6439 = vadd.f32 0.0, %v6438
        %v6440 = vpop.f32.mrb[0].mxu0
        %v6441 = vpop.f32.mrb[0].mxu0
        %v6442 = vadd.f32 0.0, %v6441
        %v6443 = vpop.f32.mrb[0].mxu0
        %6444 = vmatprep.mubr.bf16.mxu0 0
        %6445 = vmatmul.mubr.bf16.gmra.mrb[0].mxu0 %v6235
        %v6446 = vpop.f32.mrb[0].mxu0
        %v6447 = vadd.f32 0.0, %v6446
        %v6448 = vpop.f32.mrb[0].mxu0
        %v6449 = vpop.f32.mrb[0].mxu0
        %v6450 = vadd.f32 0.0, %v6449
        %v6451 = vpop.f32.mrb[0].mxu0
        %6452 = vmatprep.mubr.bf16.mxu0 0
        %6453 = vmatmul.mubr.bf16.gmra.mrb[0].mxu0 %v6236
        %v6454 = vpop.f32.mrb[0].mxu0
        %v6455 = vadd.f32 0.0, %v6454
        %v6456 = vpop.f32.mrb[0].mxu0
        %v6457 = vpop.f32.mrb[0].mxu0
        %v6458 = vadd.f32 0.0, %v6457
        %v6459 = vpop.f32.mrb[0].mxu0
        %6460 = vmatprep.mubr.bf16.mxu0 0
        %6461 = vmatmul.mubr.bf16.gmra.mrb[0].mxu0 %v6237
        %v6462 = vpop.f32.mrb[0].mxu0
        %v6463 = vadd.f32 0.0, %v6462
        %v6464 = vpop.f32.mrb[0].mxu0
        %v6465 = vpop.f32.mrb[0].mxu0
        %v6466 = vadd.f32 0.0, %v6465
        %v6467 = vpop.f32.mrb[0].mxu0
        %6468 = vmatprep.mubr.bf16.mxu0 0
        %6469 = vmatmul.mubr.bf16.gmra.mrb[0].mxu0 %v6238
        %v6470 = vpop.f32.mrb[0].mxu0
        %v6471 = vadd.f32 0.0, %v6470
        %v6472 = vpop.f32.mrb[0].mxu0
        %v6473 = vpop.f32.mrb[0].mxu0
        %v6474 = vadd.f32 0.0, %v6473
        %v6475 = vpop.f32.mrb[0].mxu0
        %6476 = vmatprep.mubr.bf16.mxu0 0
        %6477 = vmatmul.mubr.bf16.gmra.mrb[0].mxu0 %v6239
        %v6478 = vpop.f32.mrb[0].mxu0
        %v6479 = vadd.f32 0.0, %v6478
        %v6480 = vpop.f32.mrb[0].mxu0
        %v6481 = vpop.f32.mrb[0].mxu0
        %v6482 = vadd.f32 0.0, %v6481
        %v6483 = vpop.f32.mrb[0].mxu0
        %6484 = vmatprep.mubr.bf16.mxu0 0
        %6485 = vmatmul.mubr.bf16.gmra.mrb[0].mxu0 %v6240
        %v6486 = vpop.f32.mrb[0].mxu0
        %v6487 = vadd.f32 0.0, %v6486
        %v6488 = vpop.f32.mrb[0].mxu0
        %v6489 = vpop.f32.mrb[0].mxu0
        %v6490 = vadd.f32 0.0, %v6489
        %v6491 = vpop.f32.mrb[0].mxu0
        %6492 = vmatprep.mubr.bf16.mxu0 0
        %6493 = vmatmul.mubr.bf16.gmra.mrb[0].mxu0 %v6241
        %v6494 = vpop.f32.mrb[0].mxu0
        %v6495 = vadd.f32 0.0, %v6494
        %v6496 = vpop.f32.mrb[0].mxu0
        %v6497 = vpop.f32.mrb[0].mxu0
        %v6498 = vadd.f32 0.0, %v6497
        %v6499 = vpop.f32.mrb[0].mxu0
        %6500 = vmatprep.mubr.bf16.mxu0 0
        %6501 = vmatmul.mubr.bf16.gmra.mrb[0].mxu0 %v6242
        %v6502 = vpop.f32.mrb[0].mxu0
        %v6503 = vadd.f32 0.0, %v6502
        %v6504 = vpop.f32.mrb[0].mxu0
        %v6505 = vpop.f32.mrb[0].mxu0
        %v6506 = vadd.f32 0.0, %v6505
        %v6507 = vpop.f32.mrb[0].mxu0
        %6508 = vmatprep.mubr.bf16.mxu0 0
        %6509 = vmatmul.mubr.bf16.gmra.mrb[0].mxu0 %v6243
        %v6510 = vpop.f32.mrb[0].mxu0
        %v6511 = vadd.f32 0.0, %v6510
        %v6512 = vpop.f32.mrb[0].mxu0
        %v6513 = vpop.f32.mrb[0].mxu0
        %v6514 = vadd.f32 0.0, %v6513
        %v6515 = vpop.f32.mrb[0].mxu0
        %6516 = vmatprep.mubr.bf16.mxu0 0
        %6517 = vmatmul.mubr.bf16.gmra.mrb[0].mxu0 %v6244
        %v6518 = vpop.f32.mrb[0].mxu0
        %v6519 = vadd.f32 0.0, %v6518
        %v6520 = vpop.f32.mrb[0].mxu0
        %v6521 = vpop.f32.mrb[0].mxu0
        %v6522 = vadd.f32 0.0, %v6521
        %v6523 = vpop.f32.mrb[0].mxu0
        %6524 = vmatprep.mubr.bf16.mxu0 0
        %6525 = vmatmul.mubr.bf16.gmra.mrb[0].mxu0 %v6245
        %v6526 = vpop.f32.mrb[0].mxu0
        %v6527 = vadd.f32 0.0, %v6526
        %v6528 = vpop.f32.mrb[0].mxu0
        %v6529 = vpop.f32.mrb[0].mxu0
        %v6530 = vadd.f32 0.0, %v6529
        %v6531 = vpop.f32.mrb[0].mxu0
        %6532 = vmatprep.mubr.bf16.mxu0 0
        %6533 = vmatmul.mubr.bf16.gmra.mrb[0].mxu0 %v6246
        %v6534 = vpop.f32.mrb[0].mxu0
        %v6535 = vadd.f32 0.0, %v6534
        %v6536 = vpop.f32.mrb[0].mxu0
        %v6537 = vpop.f32.mrb[0].mxu0
        %v6538 = vadd.f32 0.0, %v6537
        %v6539 = vpop.f32.mrb[0].mxu0
        %6540 = vmatprep.mubr.bf16.mxu0 0
        %6541 = vmatmul.mubr.bf16.gmra.mrb[0].mxu0 %v6247
        %v6542 = vpop.f32.mrb[0].mxu0
        %v6543 = vadd.f32 0.0, %v6542
        %v6544 = vpop.f32.mrb[0].mxu0
        %v6545 = vpop.f32.mrb[0].mxu0
        %v6546 = vadd.f32 0.0, %v6545
        %v6547 = vpop.f32.mrb[0].mxu0
        %6548 = vmatprep.mubr.bf16.mxu0 0
        %6549 = vmatmul.mubr.bf16.gmra.mrb[0].mxu0 %v6248
        %v6550 = vpop.f32.mrb[0].mxu0
        %v6551 = vadd.f32 0.0, %v6550
        %v6552 = vpop.f32.mrb[0].mxu0
        %v6553 = vpop.f32.mrb[0].mxu0
        %v6554 = vadd.f32 0.0, %v6553
        %v6555 = vpop.f32.mrb[0].mxu0
        %6556 = vmatprep.mubr.bf16.mxu0 0
        %6557 = vmatmul.mubr.bf16.gmra.mrb[0].mxu0 %v6249
        %v6558 = vpop.f32.mrb[0].mxu0
        %v6559 = vadd.f32 0.0, %v6558
        %v6560 = vpop.f32.mrb[0].mxu0
        %v6561 = vpop.f32.mrb[0].mxu0
        %v6562 = vadd.f32 0.0, %v6561
        %v6563 = vpop.f32.mrb[0].mxu0
        %6564 = vmatprep.mubr.bf16.mxu0 0
        %6565 = vmatmul.mubr.bf16.gmra.mrb[0].mxu0 %v6250
        %v6566 = vpop.f32.mrb[0].mxu0
        %v6567 = vadd.f32 0.0, %v6566
        %v6568 = vpop.f32.mrb[0].mxu0
        %v6569 = vpop.f32.mrb[0].mxu0
        %v6570 = vadd.f32 0.0, %v6569
        %v6571 = vpop.f32.mrb[0].mxu0
        %6572 = vmatprep.mubr.bf16.mxu0 0
        %6573 = vmatmul.mubr.bf16.gmra.mrb[0].mxu0 %v6251
        %v6574 = vpop.f32.mrb[0].mxu0
        %v6575 = vadd.f32 0.0, %v6574
        %v6576 = vpop.f32.mrb[0].mxu0
        %v6577 = vpop.f32.mrb[0].mxu0
        %v6578 = vadd.f32 0.0, %v6577
        %v6579 = vpop.f32.mrb[0].mxu0
        %6580 = vmatprep.mubr.bf16.mxu0 0
        %6581 = vmatmul.mubr.bf16.gmra.mrb[0].mxu0 %v6252
        %v6582 = vpop.f32.mrb[0].mxu0
        %v6583 = vadd.f32 0.0, %v6582
        %v6584 = vpop.f32.mrb[0].mxu0
        %v6585 = vpop.f32.mrb[0].mxu0
        %v6586 = vadd.f32 0.0, %v6585
        %v6587 = vpop.f32.mrb[0].mxu0
        %6588 = vmatprep.mubr.bf16.mxu0 0
        %6589 = vmatmul.mubr.bf16.gmra.mrb[0].mxu0 %v6253
        %v6590 = vpop.f32.mrb[0].mxu0
        %v6591 = vadd.f32 0.0, %v6590
        %v6592 = vpop.f32.mrb[0].mxu0
        %v6593 = vpop.f32.mrb[0].mxu0
        %v6594 = vadd.f32 0.0, %v6593
        %v6595 = vpop.f32.mrb[0].mxu0
        %6596 = vmatprep.mubr.bf16.mxu0 0
        %6597 = vmatmul.mubr.bf16.gmra.mrb[0].mxu0 %v6254
        %v6598 = vpop.f32.mrb[0].mxu0
        %v6599 = vadd.f32 0.0, %v6598
        %v6600 = vpop.f32.mrb[0].mxu0
        %v6601 = vpop.f32.mrb[0].mxu0
        %v6602 = vadd.f32 0.0, %v6601
        %v6603 = vpop.f32.mrb[0].mxu0
        %6604 = vmatprep.mubr.bf16.mxu0 0
        %6605 = vmatmul.mubr.bf16.gmra.mrb[0].mxu0 %v6255
        %v6606 = vpop.f32.mrb[0].mxu0
        %v6607 = vadd.f32 0.0, %v6606
        %v6608 = vpop.f32.mrb[0].mxu0
        %v6609 = vpop.f32.mrb[0].mxu0
        %v6610 = vadd.f32 0.0, %v6609
        %v6611 = vpop.f32.mrb[0].mxu0
        %6612 = vmatprep.mubr.bf16.mxu0 0
        %6613 = vmatmul.mubr.bf16.gmra.mrb[0].mxu0 %v6256
        %v6614 = vpop.f32.mrb[0].mxu0
        %v6615 = vadd.f32 0.0, %v6614
        %v6616 = vpop.f32.mrb[0].mxu0
        %v6617 = vpop.f32.mrb[0].mxu0
        %v6618 = vadd.f32 0.0, %v6617
        %v6619 = vpop.f32.mrb[0].mxu0
        %6620 = vmatprep.mubr.bf16.mxu0 0
        %6621 = vmatmul.mubr.bf16.gmra.mrb[0].mxu0 %v6257
        %v6622 = vpop.f32.mrb[0].mxu0
        %v6623 = vadd.f32 0.0, %v6622
        %v6624 = vpop.f32.mrb[0].mxu0
        %v6625 = vpop.f32.mrb[0].mxu0
        %v6626 = vadd.f32 0.0, %v6625
        %v6627 = vpop.f32.mrb[0].mxu0
        %6628 = vmatprep.mubr.bf16.mxu0 0
        %6629 = vmatmul.mubr.bf16.gmra.mrb[0].mxu0 %v6258
        %v6630 = vpop.f32.mrb[0].mxu0
        %v6631 = vadd.f32 0.0, %v6630
        %v6632 = vpop.f32.mrb[0].mxu0
        %v6633 = vpop.f32.mrb[0].mxu0
        %v6634 = vadd.f32 0.0, %v6633
        %v6635 = vpop.f32.mrb[0].mxu0
        %6636 = vmatprep.mubr.bf16.mxu0 0
        %6637 = vmatmul.mubr.bf16.gmra.mrb[0].mxu0 %v6259
        %v6638 = vpop.f32.mrb[0].mxu0
        %v6639 = vadd.f32 0.0, %v6638
        %v6640 = vpop.f32.mrb[0].mxu0
        %v6641 = vpop.f32.mrb[0].mxu0
        %v6642 = vadd.f32 0.0, %v6641
        %v6643 = vpop.f32.mrb[0].mxu0
        %6644 = vmatprep.mubr.bf16.mxu0 0
        %6645 = vmatmul.mubr.bf16.gmra.mrb[0].mxu0 %v6260
        %v6646 = vpop.f32.mrb[0].mxu0
        %v6647 = vadd.f32 0.0, %v6646
        %v6648 = vpop.f32.mrb[0].mxu0
        %v6649 = vpop.f32.mrb[0].mxu0
        %v6650 = vadd.f32 0.0, %v6649
        %v6651 = vpop.f32.mrb[0].mxu0
        %6652 = vmatprep.mubr.bf16.mxu0 0
        %6653 = vmatmul.mubr.bf16.gmra.mrb[0].mxu0 %v6261
        %v6654 = vpop.f32.mrb[0].mxu0
        %v6655 = vadd.f32 0.0, %v6654
        %v6656 = vpop.f32.mrb[0].mxu0
        %v6657 = vpop.f32.mrb[0].mxu0
        %v6658 = vadd.f32 0.0, %v6657
        %v6659 = vpop.f32.mrb[0].mxu0
        %6660 = vmatprep.mubr.bf16.mxu0 0
        %6661 = vmatmul.mubr.bf16.gmra.mrb[0].mxu0 %v6262
        %v6662 = vpop.f32.mrb[0].mxu0
        %v6663 = vadd.f32 0.0, %v6662
        %v6664 = vpop.f32.mrb[0].mxu0
        %v6665 = vpop.f32.mrb[0].mxu0
        %v6666 = vadd.f32 0.0, %v6665
        %v6667 = vpop.f32.mrb[0].mxu0
        %6668 = vmatprep.mubr.bf16.mxu0 0
        %6669 = vmatmul.mubr.bf16.gmra.mrb[0].mxu0 %v6263
        %v6670 = vpop.f32.mrb[0].mxu0
        %v6671 = vadd.f32 0.0, %v6670
        %v6672 = vpop.f32.mrb[0].mxu0
        %v6673 = vpop.f32.mrb[0].mxu0
        %v6674 = vadd.f32 0.0, %v6673
        %v6675 = vpop.f32.mrb[0].mxu0
        %6676 = vmatprep.mubr.bf16.mxu0 0
        %6677 = vmatmul.mubr.bf16.gmra.mrb[0].mxu0 %v6264
        %v6678 = vpop.f32.mrb[0].mxu0
        %v6679 = vadd.f32 0.0, %v6678
        %v6680 = vpop.f32.mrb[0].mxu0
        %v6681 = vpop.f32.mrb[0].mxu0
        %v6682 = vadd.f32 0.0, %v6681
        %v6683 = vpop.f32.mrb[0].mxu0
        %6684 = vmatprep.mubr.bf16.mxu0 0
        %6685 = vmatmul.mubr.bf16.gmra.mrb[0].mxu0 %v6265
        %v6686 = vpop.f32.mrb[0].mxu0
        %v6687 = vadd.f32 0.0, %v6686
        %v6688 = vpop.f32.mrb[0].mxu0
        %v6689 = vpop.f32.mrb[0].mxu0
        %v6690 = vadd.f32 0.0, %v6689
        %v6691 = vpop.f32.mrb[0].mxu0
        %6692 = vmatprep.mubr.bf16.mxu0 0
        %6693 = vmatmul.mubr.bf16.gmra.mrb[0].mxu0 %v6266
        %v6694 = vpop.f32.mrb[0].mxu0
        %v6695 = vadd.f32 0.0, %v6694
        %v6696 = vpop.f32.mrb[0].mxu0
        %v6697 = vpop.f32.mrb[0].mxu0
        %v6698 = vadd.f32 0.0, %v6697
        %v6699 = vpop.f32.mrb[0].mxu0
        %6700 = vmatprep.mubr.bf16.mxu0 0
        %6701 = vmatmul.mubr.bf16.gmra.mrb[0].mxu0 %v6267
        %v6702 = vpop.f32.mrb[0].mxu0
        %v6703 = vadd.f32 0.0, %v6702
        %v6704 = vpop.f32.mrb[0].mxu0
        %v6705 = vpop.f32.mrb[0].mxu0
        %v6706 = vadd.f32 0.0, %v6705
        %v6707 = vpop.f32.mrb[0].mxu0
        %6708 = vmatprep.mubr.bf16.mxu0 0
        %6709 = vmatmul.mubr.bf16.gmra.mrb[0].mxu0 %v6268
        %v6710 = vpop.f32.mrb[0].mxu0
        %v6711 = vadd.f32 0.0, %v6710
        %v6712 = vpop.f32.mrb[0].mxu0
        %v6713 = vpop.f32.mrb[0].mxu0
        %v6714 = vadd.f32 0.0, %v6713
        %v6715 = vpop.f32.mrb[0].mxu0
        %6716 = vmatprep.mubr.bf16.mxu0 0
        %6717 = vmatmul.mubr.bf16.gmra.mrb[0].mxu0 %v6269
        %v6718 = vpop.f32.mrb[0].mxu0
        %v6719 = vadd.f32 0.0, %v6718
        %v6720 = vpop.f32.mrb[0].mxu0
        %v6721 = vpop.f32.mrb[0].mxu0
        %v6722 = vadd.f32 0.0, %v6721
        %v6723 = vpop.f32.mrb[0].mxu0
        %6724 = vmatprep.mubr.bf16.mxu0 0
        %6725 = vmatmul.mubr.bf16.gmra.mrb[0].mxu0 %v6270
        %v6726 = vpop.f32.mrb[0].mxu0
        %v6727 = vadd.f32 0.0, %v6726
        %v6728 = vpop.f32.mrb[0].mxu0
        %v6729 = vpop.f32.mrb[0].mxu0
        %v6730 = vadd.f32 0.0, %v6729
        %v6731 = vpop.f32.mrb[0].mxu0
        %6732 = vmatprep.mubr.bf16.mxu0 0
        %6733 = vmatmul.mubr.bf16.gmra.mrb[0].mxu0 %v6271
        %v6734 = vpop.f32.mrb[0].mxu0
        %v6735 = vadd.f32 0.0, %v6734
        %v6736 = vpop.f32.mrb[0].mxu0
        %v6737 = vpop.f32.mrb[0].mxu0
        %v6738 = vadd.f32 0.0, %v6737
        %v6739 = vpop.f32.mrb[0].mxu0
        %6740 = vmatprep.mubr.bf16.mxu0 0
        %6741 = vmatmul.mubr.bf16.gmra.mrb[0].mxu0 %v6272
        %v6742 = vpop.f32.mrb[0].mxu0
        %v6743 = vadd.f32 0.0, %v6742
        %v6744 = vpop.f32.mrb[0].mxu0
        %v6745 = vpop.f32.mrb[0].mxu0
        %v6746 = vadd.f32 0.0, %v6745
        %v6747 = vpop.f32.mrb[0].mxu0
        %6748 = vmatprep.mubr.bf16.mxu0 0
        %6749 = vmatmul.mubr.bf16.gmra.mrb[0].mxu0 %v6273
        %v6750 = vpop.f32.mrb[0].mxu0
        %v6751 = vadd.f32 0.0, %v6750
        %v6752 = vpop.f32.mrb[0].mxu0
        %v6753 = vpop.f32.mrb[0].mxu0
        %v6754 = vadd.f32 0.0, %v6753
        %v6755 = vpop.f32.mrb[0].mxu0
        %6756 = vmatprep.mubr.bf16.mxu0 0
        %6757 = vmatmul.mubr.bf16.gmra.mrb[0].mxu0 %v6274
        %v6758 = vpop.f32.mrb[0].mxu0
        %v6759 = vadd.f32 0.0, %v6758
        %v6760 = vpop.f32.mrb[0].mxu0
        %v6761 = vpop.f32.mrb[0].mxu0
        %v6762 = vadd.f32 0.0, %v6761
        %v6763 = vpop.f32.mrb[0].mxu0
        %6764 = vmatprep.mubr.bf16.mxu0 0
        %6765 = vmatmul.mubr.bf16.gmra.mrb[0].mxu0 %v6275
        %v6766 = vpop.f32.mrb[0].mxu0
        %v6767 = vadd.f32 0.0, %v6766
        %v6768 = vpop.f32.mrb[0].mxu0
        %v6769 = vpop.f32.mrb[0].mxu0
        %v6770 = vadd.f32 0.0, %v6769
        %v6771 = vpop.f32.mrb[0].mxu0
        %6772 = vmatprep.mubr.bf16.mxu0 0
        %6773 = vmatmul.mubr.bf16.gmra.mrb[0].mxu0 %v6276
        %v6774 = vpop.f32.mrb[0].mxu0
        %v6775 = vadd.f32 0.0, %v6774
        %v6776 = vpop.f32.mrb[0].mxu0
        %v6777 = vpop.f32.mrb[0].mxu0
        %v6778 = vadd.f32 0.0, %v6777
        %v6779 = vpop.f32.mrb[0].mxu0
        %6780 = vmatprep.mubr.bf16.mxu0 0
        %6781 = vmatmul.mubr.bf16.gmra.mrb[0].mxu0 %v6277
        %v6782 = vpop.f32.mrb[0].mxu0
        %v6783 = vadd.f32 0.0, %v6782
        %v6784 = vpop.f32.mrb[0].mxu0
        %v6785 = vpop.f32.mrb[0].mxu0
        %v6786 = vadd.f32 0.0, %v6785
        %v6787 = vpop.f32.mrb[0].mxu0
        %6788 = vmatprep.mubr.bf16.mxu0 0
        %6789 = vmatmul.mubr.bf16.gmra.mrb[0].mxu0 %v6278
        %v6790 = vpop.f32.mrb[0].mxu0
        %v6791 = vadd.f32 0.0, %v6790
        %v6792 = vpop.f32.mrb[0].mxu0
        %v6793 = vpop.f32.mrb[0].mxu0
        %v6794 = vadd.f32 0.0, %v6793
        %v6795 = vpop.f32.mrb[0].mxu0
        %6796 = vmatprep.mubr.bf16.mxu0 0
        %6797 = vmatmul.mubr.bf16.gmra.mrb[0].mxu0 %v6279
        %v6798 = vpop.f32.mrb[0].mxu0
        %v6799 = vadd.f32 0.0, %v6798
        %v6800 = vpop.f32.mrb[0].mxu0
        %v6801 = vpop.f32.mrb[0].mxu0
        %v6802 = vadd.f32 0.0, %v6801
        %v6803 = vpop.f32.mrb[0].mxu0
        %6804 = vmatprep.mubr.bf16.mxu0 0
        %6805 = vmatmul.mubr.bf16.gmra.mrb[0].mxu0 %v6280
        %v6806 = vpop.f32.mrb[0].mxu0
        %v6807 = vadd.f32 0.0, %v6806
        %v6808 = vpop.f32.mrb[0].mxu0
        %v6809 = vpop.f32.mrb[0].mxu0
        %v6810 = vadd.f32 0.0, %v6809
        %v6811 = vpop.f32.mrb[0].mxu0
        %6812 = vmatprep.mubr.bf16.mxu0 0
        %6813 = vmatmul.mubr.bf16.gmra.mrb[0].mxu0 %v6281
        %v6814 = vpop.f32.mrb[0].mxu0
        %v6815 = vadd.f32 0.0, %v6814
        %v6816 = vpop.f32.mrb[0].mxu0
        %v6817 = vpop.f32.mrb[0].mxu0
        %v6818 = vadd.f32 0.0, %v6817
        %v6819 = vpop.f32.mrb[0].mxu0
        %6820 = vmatprep.mubr.bf16.mxu0 0
        %6821 = vmatmul.mubr.bf16.gmra.mrb[0].mxu0 %v6282
        %v6822 = vpop.f32.mrb[0].mxu0
        %v6823 = vadd.f32 0.0, %v6822
        %v6824 = vpop.f32.mrb[0].mxu0
        %v6825 = vpop.f32.mrb[0].mxu0
        %v6826 = vadd.f32 0.0, %v6825
        %v6827 = vpop.f32.mrb[0].mxu0
        %6828 = vmatprep.mubr.bf16.mxu0 0
        %6829 = vmatmul.mubr.bf16.gmra.mrb[0].mxu0 %v6283
        %v6830 = vpop.f32.mrb[0].mxu0
        %v6831 = vadd.f32 0.0, %v6830
        %v6832 = vpop.f32.mrb[0].mxu0
        %v6833 = vpop.f32.mrb[0].mxu0
        %v6834 = vadd.f32 0.0, %v6833
        %v6835 = vpop.f32.mrb[0].mxu0
        %6836 = vdwg.mxu0
        %v6837 = vunpack.c.l.bf16 %v6228
        %v6838 = vunpack.c.h.bf16 %v6228
        %v6839 = vunpack.c.l.bf16 %v6229
        %v6840 = vunpack.c.h.bf16 %v6229
        %v6841 = vunpack.c.l.bf16 %v6230
        %v6842 = vunpack.c.h.bf16 %v6230
        %v6843 = vunpack.c.l.bf16 %v6231
        %v6844 = vunpack.c.h.bf16 %v6231
        %v6845 = vunpack.c.l.bf16 %v6232
        %v6846 = vunpack.c.h.bf16 %v6232
        %v6847 = vunpack.c.l.bf16 %v6233
        %v6848 = vunpack.c.h.bf16 %v6233
        %v6849 = vunpack.c.l.bf16 %v6234
        %v6850 = vunpack.c.h.bf16 %v6234
        %v6851 = vunpack.c.l.bf16 %v6235
        %v6852 = vunpack.c.h.bf16 %v6235
        %v6854 = vlaneseq
        %v6855 = vshrl.u32 %v6854, 7
        %v6856 = vsub.s32 0, %v6855
        %v6857 = vrot.slane %v5328, %v6856
        %v6859 = vmul.f32 %v6857, %v6837
        %v6860 = vmul.f32 %v6857, %v6838
        %v6861 = vmul.f32 %v6857, %v6839
        %v6862 = vmul.f32 %v6857, %v6840
        %v6863 = vmul.f32 %v6857, %v6841
        %v6864 = vmul.f32 %v6857, %v6842
        %v6865 = vmul.f32 %v6857, %v6843
        %v6866 = vmul.f32 %v6857, %v6844
        %v6867 = vmul.f32 %v6857, %v6845
        %v6868 = vmul.f32 %v6857, %v6846
        %v6869 = vmul.f32 %v6857, %v6847
        %v6870 = vmul.f32 %v6857, %v6848
        %v6871 = vmul.f32 %v6857, %v6849
        %v6872 = vmul.f32 %v6857, %v6850
        %v6873 = vmul.f32 %v6857, %v6851
        %v6874 = vmul.f32 %v6857, %v6852
        %v6875 = vunpack.c.l.bf16 %v6284
        %v6876 = vunpack.c.h.bf16 %v6284
        %v6877 = vunpack.c.l.bf16 %v6285
        %v6878 = vunpack.c.h.bf16 %v6285
        %v6879 = vunpack.c.l.bf16 %v6286
        %v6880 = vunpack.c.h.bf16 %v6286
        %v6881 = vunpack.c.l.bf16 %v6287
        %v6882 = vunpack.c.h.bf16 %v6287
        %v6883 = vunpack.c.l.bf16 %v6288
        %v6884 = vunpack.c.h.bf16 %v6288
        %v6885 = vunpack.c.l.bf16 %v6289
        %v6886 = vunpack.c.h.bf16 %v6289
        %v6887 = vunpack.c.l.bf16 %v6290
        %v6888 = vunpack.c.h.bf16 %v6290
        %v6889 = vunpack.c.l.bf16 %v6291
        %v6890 = vunpack.c.h.bf16 %v6291
        %v6892 = vlaneseq
        %v6893 = vshrl.u32 %v6892, 7
        %v6894 = vsub.s32 0, %v6893
        %v6895 = vrot.slane %v5329, %v6894
        %v6897 = vmul.f32 %v6895, %v6875
        %v6898 = vmul.f32 %v6895, %v6876
        %v6899 = vmul.f32 %v6895, %v6877
        %v6900 = vmul.f32 %v6895, %v6878
        %v6901 = vmul.f32 %v6895, %v6879
        %v6902 = vmul.f32 %v6895, %v6880
        %v6903 = vmul.f32 %v6895, %v6881
        %v6904 = vmul.f32 %v6895, %v6882
        %v6905 = vmul.f32 %v6895, %v6883
        %v6906 = vmul.f32 %v6895, %v6884
        %v6907 = vmul.f32 %v6895, %v6885
        %v6908 = vmul.f32 %v6895, %v6886
        %v6909 = vmul.f32 %v6895, %v6887
        %v6910 = vmul.f32 %v6895, %v6888
        %v6911 = vmul.f32 %v6895, %v6889
        %v6912 = vmul.f32 %v6895, %v6890
        %v6913 = vadd.f32 %v6859, %v6897
        %v6914 = vadd.f32 %v6860, %v6898
        %v6915 = vadd.f32 %v6861, %v6899
        %v6916 = vadd.f32 %v6862, %v6900
        %v6917 = vadd.f32 %v6863, %v6901
        %v6918 = vadd.f32 %v6864, %v6902
        %v6919 = vadd.f32 %v6865, %v6903
        %v6920 = vadd.f32 %v6866, %v6904
        %v6921 = vadd.f32 %v6867, %v6905
        %v6922 = vadd.f32 %v6868, %v6906
        %v6923 = vadd.f32 %v6869, %v6907
        %v6924 = vadd.f32 %v6870, %v6908
        %v6925 = vadd.f32 %v6871, %v6909
        %v6926 = vadd.f32 %v6872, %v6910
        %v6927 = vadd.f32 %v6873, %v6911
        %v6928 = vadd.f32 %v6874, %v6912
        %v6929 = vunpack.c.l.bf16 %v6236
        %v6930 = vunpack.c.h.bf16 %v6236
        %v6931 = vunpack.c.l.bf16 %v6237
        %v6932 = vunpack.c.h.bf16 %v6237
        %v6933 = vunpack.c.l.bf16 %v6238
        %v6934 = vunpack.c.h.bf16 %v6238
        %v6935 = vunpack.c.l.bf16 %v6239
        %v6936 = vunpack.c.h.bf16 %v6239
        %v6937 = vunpack.c.l.bf16 %v6240
        %v6938 = vunpack.c.h.bf16 %v6240
        %v6939 = vunpack.c.l.bf16 %v6241
        %v6940 = vunpack.c.h.bf16 %v6241
        %v6941 = vunpack.c.l.bf16 %v6242
        %v6942 = vunpack.c.h.bf16 %v6242
        %v6943 = vunpack.c.l.bf16 %v6243
        %v6944 = vunpack.c.h.bf16 %v6243
        %v6945 = vunpack.c.l.bf16 %v6244
        %v6946 = vunpack.c.h.bf16 %v6244
        %v6947 = vunpack.c.l.bf16 %v6245
        %v6948 = vunpack.c.h.bf16 %v6245
        %v6949 = vunpack.c.l.bf16 %v6246
        %v6950 = vunpack.c.h.bf16 %v6246
        %v6951 = vunpack.c.l.bf16 %v6247
        %v6952 = vunpack.c.h.bf16 %v6247
        %v6953 = vunpack.c.l.bf16 %v6248
        %v6954 = vunpack.c.h.bf16 %v6248
        %v6955 = vunpack.c.l.bf16 %v6249
        %v6956 = vunpack.c.h.bf16 %v6249
        %v6957 = vunpack.c.l.bf16 %v6250
        %v6958 = vunpack.c.h.bf16 %v6250
        %v6959 = vunpack.c.l.bf16 %v6251
        %v6960 = vunpack.c.h.bf16 %v6251
        %v6961 = vunpack.c.l.bf16 %v6252
        %v6962 = vunpack.c.h.bf16 %v6252
        %v6963 = vunpack.c.l.bf16 %v6253
        %v6964 = vunpack.c.h.bf16 %v6253
        %v6965 = vunpack.c.l.bf16 %v6254
        %v6966 = vunpack.c.h.bf16 %v6254
        %v6967 = vunpack.c.l.bf16 %v6255
        %v6968 = vunpack.c.h.bf16 %v6255
        %v6969 = vunpack.c.l.bf16 %v6256
        %v6970 = vunpack.c.h.bf16 %v6256
        %v6971 = vunpack.c.l.bf16 %v6257
        %v6972 = vunpack.c.h.bf16 %v6257
        %v6973 = vunpack.c.l.bf16 %v6258
        %v6974 = vunpack.c.h.bf16 %v6258
        %v6975 = vunpack.c.l.bf16 %v6259
        %v6976 = vunpack.c.h.bf16 %v6259
        %v6977 = vunpack.c.l.bf16 %v6260
        %v6978 = vunpack.c.h.bf16 %v6260
        %v6979 = vunpack.c.l.bf16 %v6261
        %v6980 = vunpack.c.h.bf16 %v6261
        %v6981 = vunpack.c.l.bf16 %v6262
        %v6982 = vunpack.c.h.bf16 %v6262
        %v6983 = vunpack.c.l.bf16 %v6263
        %v6984 = vunpack.c.h.bf16 %v6263
        %v6985 = vunpack.c.l.bf16 %v6264
        %v6986 = vunpack.c.h.bf16 %v6264
        %v6987 = vunpack.c.l.bf16 %v6265
        %v6988 = vunpack.c.h.bf16 %v6265
        %v6989 = vunpack.c.l.bf16 %v6266
        %v6990 = vunpack.c.h.bf16 %v6266
        %v6991 = vunpack.c.l.bf16 %v6267
        %v6992 = vunpack.c.h.bf16 %v6267
        %v6993 = vunpack.c.l.bf16 %v6268
        %v6994 = vunpack.c.h.bf16 %v6268
        %v6995 = vunpack.c.l.bf16 %v6269
        %v6996 = vunpack.c.h.bf16 %v6269
        %v6997 = vunpack.c.l.bf16 %v6270
        %v6998 = vunpack.c.h.bf16 %v6270
        %v6999 = vunpack.c.l.bf16 %v6271
        %v7000 = vunpack.c.h.bf16 %v6271
        %v7001 = vunpack.c.l.bf16 %v6272
        %v7002 = vunpack.c.h.bf16 %v6272
        %v7003 = vunpack.c.l.bf16 %v6273
        %v7004 = vunpack.c.h.bf16 %v6273
        %v7005 = vunpack.c.l.bf16 %v6274
        %v7006 = vunpack.c.h.bf16 %v6274
        %v7007 = vunpack.c.l.bf16 %v6275
        %v7008 = vunpack.c.h.bf16 %v6275
        %v7009 = vunpack.c.l.bf16 %v6276
        %v7010 = vunpack.c.h.bf16 %v6276
        %v7011 = vunpack.c.l.bf16 %v6277
        %v7012 = vunpack.c.h.bf16 %v6277
        %v7013 = vunpack.c.l.bf16 %v6278
        %v7014 = vunpack.c.h.bf16 %v6278
        %v7015 = vunpack.c.l.bf16 %v6279
        %v7016 = vunpack.c.h.bf16 %v6279
        %v7017 = vunpack.c.l.bf16 %v6280
        %v7018 = vunpack.c.h.bf16 %v6280
        %v7019 = vunpack.c.l.bf16 %v6281
        %v7020 = vunpack.c.h.bf16 %v6281
        %v7021 = vunpack.c.l.bf16 %v6282
        %v7022 = vunpack.c.h.bf16 %v6282
        %v7023 = vunpack.c.l.bf16 %v6283
        %v7024 = vunpack.c.h.bf16 %v6283
        %v7025 = vmul.f32 %v6837, %v4818
        %v7026 = vmul.f32 %v6838, %v4821
        %v7027 = vmul.f32 %v6839, %v4826
        %v7028 = vmul.f32 %v6840, %v4829
        %v7029 = vmul.f32 %v6841, %v4834
        %v7030 = vmul.f32 %v6842, %v4837
        %v7031 = vmul.f32 %v6843, %v4842
        %v7032 = vmul.f32 %v6844, %v4845
        %v7033 = vmul.f32 %v6845, %v4850
        %v7034 = vmul.f32 %v6846, %v4853
        %v7035 = vmul.f32 %v6847, %v4858
        %v7036 = vmul.f32 %v6848, %v4861
        %v7037 = vmul.f32 %v6849, %v4866
        %v7038 = vmul.f32 %v6850, %v4869
        %v7039 = vmul.f32 %v6851, %v4874
        %v7040 = vmul.f32 %v6852, %v4877
        %v7041 = vmul.f32 %v6929, %v4882
        %v7042 = vmul.f32 %v6930, %v4885
        %v7043 = vmul.f32 %v6931, %v4890
        %v7044 = vmul.f32 %v6932, %v4893
        %v7045 = vmul.f32 %v6933, %v4898
        %v7046 = vmul.f32 %v6934, %v4901
        %v7047 = vmul.f32 %v6935, %v4906
        %v7048 = vmul.f32 %v6936, %v4909
        %v7049 = vmul.f32 %v6937, %v4914
        %v7050 = vmul.f32 %v6938, %v4917
        %v7051 = vmul.f32 %v6939, %v4922
        %v7052 = vmul.f32 %v6940, %v4925
        %v7053 = vmul.f32 %v6941, %v4930
        %v7054 = vmul.f32 %v6942, %v4933
        %v7055 = vmul.f32 %v6943, %v4938
        %v7056 = vmul.f32 %v6944, %v4941
        %v7057 = vmul.f32 %v6945, %v4946
        %v7058 = vmul.f32 %v6946, %v4949
        %v7059 = vmul.f32 %v6947, %v4954
        %v7060 = vmul.f32 %v6948, %v4957
        %v7061 = vmul.f32 %v6949, %v4962
        %v7062 = vmul.f32 %v6950, %v4965
        %v7063 = vmul.f32 %v6951, %v4970
        %v7064 = vmul.f32 %v6952, %v4973
        %v7065 = vmul.f32 %v6953, %v4978
        %v7066 = vmul.f32 %v6954, %v4981
        %v7067 = vmul.f32 %v6955, %v4986
        %v7068 = vmul.f32 %v6956, %v4989
        %v7069 = vmul.f32 %v6957, %v4994
        %v7070 = vmul.f32 %v6958, %v4997
        %v7071 = vmul.f32 %v6959, %v5002
        %v7072 = vmul.f32 %v6960, %v5005
        %v7073 = vmul.f32 %v6961, %v5010
        %v7074 = vmul.f32 %v6962, %v5013
        %v7075 = vmul.f32 %v6963, %v5018
        %v7076 = vmul.f32 %v6964, %v5021
        %v7077 = vmul.f32 %v6965, %v5026
        %v7078 = vmul.f32 %v6966, %v5029
        %v7079 = vmul.f32 %v6967, %v5034
        %v7080 = vmul.f32 %v6968, %v5037
        %v7081 = vmul.f32 %v6969, %v5042
        %v7082 = vmul.f32 %v6970, %v5045
        %v7083 = vmul.f32 %v6971, %v5050
        %v7084 = vmul.f32 %v6972, %v5053
        %v7085 = vmul.f32 %v6973, %v5058
        %v7086 = vmul.f32 %v6974, %v5061
        %v7087 = vmul.f32 %v6975, %v5066
        %v7088 = vmul.f32 %v6976, %v5069
        %v7089 = vmul.f32 %v6977, %v5074
        %v7090 = vmul.f32 %v6978, %v5077
        %v7091 = vmul.f32 %v6979, %v5082
        %v7092 = vmul.f32 %v6980, %v5085
        %v7093 = vmul.f32 %v6981, %v5090
        %v7094 = vmul.f32 %v6982, %v5093
        %v7095 = vmul.f32 %v6983, %v5098
        %v7096 = vmul.f32 %v6984, %v5101
        %v7097 = vmul.f32 %v6985, %v5106
        %v7098 = vmul.f32 %v6986, %v5109
        %v7099 = vmul.f32 %v6987, %v5114
        %v7100 = vmul.f32 %v6988, %v5117
        %v7101 = vmul.f32 %v6989, %v5122
        %v7102 = vmul.f32 %v6990, %v5125
        %v7103 = vmul.f32 %v6991, %v5130
        %v7104 = vmul.f32 %v6992, %v5133
        %v7105 = vmul.f32 %v6993, %v5138
        %v7106 = vmul.f32 %v6994, %v5141
        %v7107 = vmul.f32 %v6995, %v5146
        %v7108 = vmul.f32 %v6996, %v5149
        %v7109 = vmul.f32 %v6997, %v5154
        %v7110 = vmul.f32 %v6998, %v5157
        %v7111 = vmul.f32 %v6999, %v5162
        %v7112 = vmul.f32 %v7000, %v5165
        %v7113 = vmul.f32 %v7001, %v5170
        %v7114 = vmul.f32 %v7002, %v5173
        %v7115 = vmul.f32 %v7003, %v5178
        %v7116 = vmul.f32 %v7004, %v5181
        %v7117 = vmul.f32 %v7005, %v5186
        %v7118 = vmul.f32 %v7006, %v5189
        %v7119 = vmul.f32 %v7007, %v5194
        %v7120 = vmul.f32 %v7008, %v5197
        %v7121 = vmul.f32 %v7009, %v5202
        %v7122 = vmul.f32 %v7010, %v5205
        %v7123 = vmul.f32 %v7011, %v5210
        %v7124 = vmul.f32 %v7012, %v5213
        %v7125 = vmul.f32 %v7013, %v5218
        %v7126 = vmul.f32 %v7014, %v5221
        %v7127 = vmul.f32 %v7015, %v5226
        %v7128 = vmul.f32 %v7016, %v5229
        %v7129 = vmul.f32 %v7017, %v5234
        %v7130 = vmul.f32 %v7018, %v5237
        %v7131 = vmul.f32 %v7019, %v5242
        %v7132 = vmul.f32 %v7020, %v5245
        %v7133 = vmul.f32 %v7021, %v5250
        %v7134 = vmul.f32 %v7022, %v5253
        %v7135 = vmul.f32 %v7023, %v5258
        %v7136 = vmul.f32 %v7024, %v5261
        %v7137 = vmul.f32 %v6875, %v5266
        %v7138 = vmul.f32 %v6876, %v5269
        %v7139 = vmul.f32 %v6877, %v5274
        %v7140 = vmul.f32 %v6878, %v5277
        %v7141 = vmul.f32 %v6879, %v5282
        %v7142 = vmul.f32 %v6880, %v5285
        %v7143 = vmul.f32 %v6881, %v5290
        %v7144 = vmul.f32 %v6882, %v5293
        %v7145 = vmul.f32 %v6883, %v5298
        %v7146 = vmul.f32 %v6884, %v5301
        %v7147 = vmul.f32 %v6885, %v5306
        %v7148 = vmul.f32 %v6886, %v5309
        %v7149 = vmul.f32 %v6887, %v5314
        %v7150 = vmul.f32 %v6888, %v5317
        %v7151 = vmul.f32 %v6889, %v5322
        %v7152 = vmul.f32 %v6890, %v5325
        %v7153 = vadd.f32 %v7025, %v7041
        %v7154 = vadd.f32 %v7153, %v7057
        %v7155 = vadd.f32 %v7154, %v7073
        %v7156 = vadd.f32 %v7155, %v7089
        %v7157 = vadd.f32 %v7156, %v7105
        %v7158 = vadd.f32 %v7157, %v7121
        %v7159 = vadd.f32 %v7158, %v7137
        %v7160 = vadd.f32 %v7026, %v7042
        %v7161 = vadd.f32 %v7160, %v7058
        %v7162 = vadd.f32 %v7161, %v7074
        %v7163 = vadd.f32 %v7162, %v7090
        %v7164 = vadd.f32 %v7163, %v7106
        %v7165 = vadd.f32 %v7164, %v7122
        %v7166 = vadd.f32 %v7165, %v7138
        %v7167 = vadd.f32 %v7027, %v7043
        %v7168 = vadd.f32 %v7167, %v7059
        %v7169 = vadd.f32 %v7168, %v7075
        %v7170 = vadd.f32 %v7169, %v7091
        %v7171 = vadd.f32 %v7170, %v7107
        %v7172 = vadd.f32 %v7171, %v7123
        %v7173 = vadd.f32 %v7172, %v7139
        %v7174 = vadd.f32 %v7028, %v7044
        %v7175 = vadd.f32 %v7174, %v7060
        %v7176 = vadd.f32 %v7175, %v7076
        %v7177 = vadd.f32 %v7176, %v7092
        %v7178 = vadd.f32 %v7177, %v7108
        %v7179 = vadd.f32 %v7178, %v7124
        %v7180 = vadd.f32 %v7179, %v7140
        %v7181 = vadd.f32 %v7029, %v7045
        %v7182 = vadd.f32 %v7181, %v7061
        %v7183 = vadd.f32 %v7182, %v7077
        %v7184 = vadd.f32 %v7183, %v7093
        %v7185 = vadd.f32 %v7184, %v7109
        %v7186 = vadd.f32 %v7185, %v7125
        %v7187 = vadd.f32 %v7186, %v7141
        %v7188 = vadd.f32 %v7030, %v7046
        %v7189 = vadd.f32 %v7188, %v7062
        %v7190 = vadd.f32 %v7189, %v7078
        %v7191 = vadd.f32 %v7190, %v7094
        %v7192 = vadd.f32 %v7191, %v7110
        %v7193 = vadd.f32 %v7192, %v7126
        %v7194 = vadd.f32 %v7193, %v7142
        %v7195 = vadd.f32 %v7031, %v7047
        %v7196 = vadd.f32 %v7195, %v7063
        %v7197 = vadd.f32 %v7196, %v7079
        %v7198 = vadd.f32 %v7197, %v7095
        %v7199 = vadd.f32 %v7198, %v7111
        %v7200 = vadd.f32 %v7199, %v7127
        %v7201 = vadd.f32 %v7200, %v7143
        %v7202 = vadd.f32 %v7032, %v7048
        %v7203 = vadd.f32 %v7202, %v7064
        %v7204 = vadd.f32 %v7203, %v7080
        %v7205 = vadd.f32 %v7204, %v7096
        %v7206 = vadd.f32 %v7205, %v7112
        %v7207 = vadd.f32 %v7206, %v7128
        %v7208 = vadd.f32 %v7207, %v7144
        %v7209 = vadd.f32 %v7033, %v7049
        %v7210 = vadd.f32 %v7209, %v7065
        %v7211 = vadd.f32 %v7210, %v7081
        %v7212 = vadd.f32 %v7211, %v7097
        %v7213 = vadd.f32 %v7212, %v7113
        %v7214 = vadd.f32 %v7213, %v7129
        %v7215 = vadd.f32 %v7214, %v7145
        %v7216 = vadd.f32 %v7034, %v7050
        %v7217 = vadd.f32 %v7216, %v7066
        %v7218 = vadd.f32 %v7217, %v7082
        %v7219 = vadd.f32 %v7218, %v7098
        %v7220 = vadd.f32 %v7219, %v7114
        %v7221 = vadd.f32 %v7220, %v7130
        %v7222 = vadd.f32 %v7221, %v7146
        %v7223 = vadd.f32 %v7035, %v7051
        %v7224 = vadd.f32 %v7223, %v7067
        %v7225 = vadd.f32 %v7224, %v7083
        %v7226 = vadd.f32 %v7225, %v7099
        %v7227 = vadd.f32 %v7226, %v7115
        %v7228 = vadd.f32 %v7227, %v7131
        %v7229 = vadd.f32 %v7228, %v7147
        %v7230 = vadd.f32 %v7036, %v7052
        %v7231 = vadd.f32 %v7230, %v7068
        %v7232 = vadd.f32 %v7231, %v7084
        %v7233 = vadd.f32 %v7232, %v7100
        %v7234 = vadd.f32 %v7233, %v7116
        %v7235 = vadd.f32 %v7234, %v7132
        %v7236 = vadd.f32 %v7235, %v7148
        %v7237 = vadd.f32 %v7037, %v7053
        %v7238 = vadd.f32 %v7237, %v7069
        %v7239 = vadd.f32 %v7238, %v7085
        %v7240 = vadd.f32 %v7239, %v7101
        %v7241 = vadd.f32 %v7240, %v7117
        %v7242 = vadd.f32 %v7241, %v7133
        %v7243 = vadd.f32 %v7242, %v7149
        %v7244 = vadd.f32 %v7038, %v7054
        %v7245 = vadd.f32 %v7244, %v7070
        %v7246 = vadd.f32 %v7245, %v7086
        %v7247 = vadd.f32 %v7246, %v7102
        %v7248 = vadd.f32 %v7247, %v7118
        %v7249 = vadd.f32 %v7248, %v7134
        %v7250 = vadd.f32 %v7249, %v7150
        %v7251 = vadd.f32 %v7039, %v7055
        %v7252 = vadd.f32 %v7251, %v7071
        %v7253 = vadd.f32 %v7252, %v7087
        %v7254 = vadd.f32 %v7253, %v7103
        %v7255 = vadd.f32 %v7254, %v7119
        %v7256 = vadd.f32 %v7255, %v7135
        %v7257 = vadd.f32 %v7256, %v7151
        %v7258 = vadd.f32 %v7040, %v7056
        %v7259 = vadd.f32 %v7258, %v7072
        %v7260 = vadd.f32 %v7259, %v7088
        %v7261 = vadd.f32 %v7260, %v7104
        %v7262 = vadd.f32 %v7261, %v7120
        %v7263 = vadd.f32 %v7262, %v7136
        %v7264 = vadd.f32 %v7263, %v7152
        %v7265 = vadd.f32 %v6913, %v7159
        %v7266 = vadd.f32 %v6914, %v7166
        %v7267 = vadd.f32 %v6915, %v7173
        %v7268 = vadd.f32 %v6916, %v7180
        %v7269 = vadd.f32 %v6917, %v7187
        %v7270 = vadd.f32 %v6918, %v7194
        %v7271 = vadd.f32 %v6919, %v7201
        %v7272 = vadd.f32 %v6920, %v7208
        %v7273 = vadd.f32 %v6921, %v7215
        %v7274 = vadd.f32 %v6922, %v7222
        %v7275 = vadd.f32 %v6923, %v7229
        %v7276 = vadd.f32 %v6924, %v7236
        %v7277 = vadd.f32 %v6925, %v7243
        %v7278 = vadd.f32 %v6926, %v7250
        %v7279 = vadd.f32 %v6927, %v7257
        %v7280 = vadd.f32 %v6928, %v7264
        %v7281 = vmul.f32 %v6391, %v6929
        %v7282 = vmul.f32 %v6394, %v6930
        %v7283 = vmul.f32 %v6399, %v6931
        %v7284 = vmul.f32 %v6402, %v6932
        %v7285 = vmul.f32 %v6407, %v6933
        %v7286 = vmul.f32 %v6410, %v6934
        %v7287 = vmul.f32 %v6415, %v6935
        %v7288 = vmul.f32 %v6418, %v6936
        %v7289 = vmul.f32 %v6423, %v6937
        %v7290 = vmul.f32 %v6426, %v6938
        %v7291 = vmul.f32 %v6431, %v6939
        %v7292 = vmul.f32 %v6434, %v6940
        %v7293 = vmul.f32 %v6439, %v6941
        %v7294 = vmul.f32 %v6442, %v6942
        %v7295 = vmul.f32 %v6447, %v6943
        %v7296 = vmul.f32 %v6450, %v6944
        %v7297 = vmul.f32 %v6455, %v6945
        %v7298 = vmul.f32 %v6458, %v6946
        %v7299 = vmul.f32 %v6463, %v6947
        %v7300 = vmul.f32 %v6466, %v6948
        %v7301 = vmul.f32 %v6471, %v6949
        %v7302 = vmul.f32 %v6474, %v6950
        %v7303 = vmul.f32 %v6479, %v6951
        %v7304 = vmul.f32 %v6482, %v6952
        %v7305 = vmul.f32 %v6487, %v6953
        %v7306 = vmul.f32 %v6490, %v6954
        %v7307 = vmul.f32 %v6495, %v6955
        %v7308 = vmul.f32 %v6498, %v6956
        %v7309 = vmul.f32 %v6503, %v6957
        %v7310 = vmul.f32 %v6506, %v6958
        %v7311 = vmul.f32 %v6511, %v6959
        %v7312 = vmul.f32 %v6514, %v6960
        %v7313 = vmul.f32 %v6519, %v6961
        %v7314 = vmul.f32 %v6522, %v6962
        %v7315 = vmul.f32 %v6527, %v6963
        %v7316 = vmul.f32 %v6530, %v6964
        %v7317 = vmul.f32 %v6535, %v6965
        %v7318 = vmul.f32 %v6538, %v6966
        %v7319 = vmul.f32 %v6543, %v6967
        %v7320 = vmul.f32 %v6546, %v6968
        %v7321 = vmul.f32 %v6551, %v6969
        %v7322 = vmul.f32 %v6554, %v6970
        %v7323 = vmul.f32 %v6559, %v6971
        %v7324 = vmul.f32 %v6562, %v6972
        %v7325 = vmul.f32 %v6567, %v6973
        %v7326 = vmul.f32 %v6570, %v6974
        %v7327 = vmul.f32 %v6575, %v6975
        %v7328 = vmul.f32 %v6578, %v6976
        %v7329 = vmul.f32 %v6583, %v6977
        %v7330 = vmul.f32 %v6586, %v6978
        %v7331 = vmul.f32 %v6591, %v6979
        %v7332 = vmul.f32 %v6594, %v6980
        %v7333 = vmul.f32 %v6599, %v6981
        %v7334 = vmul.f32 %v6602, %v6982
        %v7335 = vmul.f32 %v6607, %v6983
        %v7336 = vmul.f32 %v6610, %v6984
        %v7337 = vmul.f32 %v6615, %v6985
        %v7338 = vmul.f32 %v6618, %v6986
        %v7339 = vmul.f32 %v6623, %v6987
        %v7340 = vmul.f32 %v6626, %v6988
        %v7341 = vmul.f32 %v6631, %v6989
        %v7342 = vmul.f32 %v6634, %v6990
        %v7343 = vmul.f32 %v6639, %v6991
        %v7344 = vmul.f32 %v6642, %v6992
        %v7345 = vmul.f32 %v6647, %v6993
        %v7346 = vmul.f32 %v6650, %v6994
        %v7347 = vmul.f32 %v6655, %v6995
        %v7348 = vmul.f32 %v6658, %v6996
        %v7349 = vmul.f32 %v6663, %v6997
        %v7350 = vmul.f32 %v6666, %v6998
        %v7351 = vmul.f32 %v6671, %v6999
        %v7352 = vmul.f32 %v6674, %v7000
        %v7353 = vmul.f32 %v6679, %v7001
        %v7354 = vmul.f32 %v6682, %v7002
        %v7355 = vmul.f32 %v6687, %v7003
        %v7356 = vmul.f32 %v6690, %v7004
        %v7357 = vmul.f32 %v6695, %v7005
        %v7358 = vmul.f32 %v6698, %v7006
        %v7359 = vmul.f32 %v6703, %v7007
        %v7360 = vmul.f32 %v6706, %v7008
        %v7361 = vmul.f32 %v6711, %v7009
        %v7362 = vmul.f32 %v6714, %v7010
        %v7363 = vmul.f32 %v6719, %v7011
        %v7364 = vmul.f32 %v6722, %v7012
        %v7365 = vmul.f32 %v6727, %v7013
        %v7366 = vmul.f32 %v6730, %v7014
        %v7367 = vmul.f32 %v6735, %v7015
        %v7368 = vmul.f32 %v6738, %v7016
        %v7369 = vmul.f32 %v6743, %v7017
        %v7370 = vmul.f32 %v6746, %v7018
        %v7371 = vmul.f32 %v6751, %v7019
        %v7372 = vmul.f32 %v6754, %v7020
        %v7373 = vmul.f32 %v6759, %v7021
        %v7374 = vmul.f32 %v6762, %v7022
        %v7375 = vmul.f32 %v6767, %v7023
        %v7376 = vmul.f32 %v6770, %v7024
        %v7377 = vmul.f32 %v6775, %v6875
        %v7378 = vmul.f32 %v6778, %v6876
        %v7379 = vmul.f32 %v6783, %v6877
        %v7380 = vmul.f32 %v6786, %v6878
        %v7381 = vmul.f32 %v6791, %v6879
        %v7382 = vmul.f32 %v6794, %v6880
        %v7383 = vmul.f32 %v6799, %v6881
        %v7384 = vmul.f32 %v6802, %v6882
        %v7385 = vmul.f32 %v6807, %v6883
        %v7386 = vmul.f32 %v6810, %v6884
        %v7387 = vmul.f32 %v6815, %v6885
        %v7388 = vmul.f32 %v6818, %v6886
        %v7389 = vmul.f32 %v6823, %v6887
        %v7390 = vmul.f32 %v6826, %v6888
        %v7391 = vmul.f32 %v6831, %v6889
        %v7392 = vmul.f32 %v6834, %v6890
        %v7393 = vadd.f32 %v7281, %v7297
        %v7394 = vadd.f32 %v7393, %v7313
        %v7395 = vadd.f32 %v7394, %v7329
        %v7396 = vadd.f32 %v7395, %v7345
        %v7397 = vadd.f32 %v7396, %v7361
        %v7398 = vadd.f32 %v7397, %v7377
        %v7399 = vadd.f32 %v7282, %v7298
        %v7400 = vadd.f32 %v7399, %v7314
        %v7401 = vadd.f32 %v7400, %v7330
        %v7402 = vadd.f32 %v7401, %v7346
        %v7403 = vadd.f32 %v7402, %v7362
        %v7404 = vadd.f32 %v7403, %v7378
        %v7405 = vadd.f32 %v7283, %v7299
        %v7406 = vadd.f32 %v7405, %v7315
        %v7407 = vadd.f32 %v7406, %v7331
        %v7408 = vadd.f32 %v7407, %v7347
        %v7409 = vadd.f32 %v7408, %v7363
        %v7410 = vadd.f32 %v7409, %v7379
        %v7411 = vadd.f32 %v7284, %v7300
        %v7412 = vadd.f32 %v7411, %v7316
        %v7413 = vadd.f32 %v7412, %v7332
        %v7414 = vadd.f32 %v7413, %v7348
        %v7415 = vadd.f32 %v7414, %v7364
        %v7416 = vadd.f32 %v7415, %v7380
        %v7417 = vadd.f32 %v7285, %v7301
        %v7418 = vadd.f32 %v7417, %v7317
        %v7419 = vadd.f32 %v7418, %v7333
        %v7420 = vadd.f32 %v7419, %v7349
        %v7421 = vadd.f32 %v7420, %v7365
        %v7422 = vadd.f32 %v7421, %v7381
        %v7423 = vadd.f32 %v7286, %v7302
        %v7424 = vadd.f32 %v7423, %v7318
        %v7425 = vadd.f32 %v7424, %v7334
        %v7426 = vadd.f32 %v7425, %v7350
        %v7427 = vadd.f32 %v7426, %v7366
        %v7428 = vadd.f32 %v7427, %v7382
        %v7429 = vadd.f32 %v7287, %v7303
        %v7430 = vadd.f32 %v7429, %v7319
        %v7431 = vadd.f32 %v7430, %v7335
        %v7432 = vadd.f32 %v7431, %v7351
        %v7433 = vadd.f32 %v7432, %v7367
        %v7434 = vadd.f32 %v7433, %v7383
        %v7435 = vadd.f32 %v7288, %v7304
        %v7436 = vadd.f32 %v7435, %v7320
        %v7437 = vadd.f32 %v7436, %v7336
        %v7438 = vadd.f32 %v7437, %v7352
        %v7439 = vadd.f32 %v7438, %v7368
        %v7440 = vadd.f32 %v7439, %v7384
        %v7441 = vadd.f32 %v7289, %v7305
        %v7442 = vadd.f32 %v7441, %v7321
        %v7443 = vadd.f32 %v7442, %v7337
        %v7444 = vadd.f32 %v7443, %v7353
        %v7445 = vadd.f32 %v7444, %v7369
        %v7446 = vadd.f32 %v7445, %v7385
        %v7447 = vadd.f32 %v7290, %v7306
        %v7448 = vadd.f32 %v7447, %v7322
        %v7449 = vadd.f32 %v7448, %v7338
        %v7450 = vadd.f32 %v7449, %v7354
        %v7451 = vadd.f32 %v7450, %v7370
        %v7452 = vadd.f32 %v7451, %v7386
        %v7453 = vadd.f32 %v7291, %v7307
        %v7454 = vadd.f32 %v7453, %v7323
        %v7455 = vadd.f32 %v7454, %v7339
        %v7456 = vadd.f32 %v7455, %v7355
        %v7457 = vadd.f32 %v7456, %v7371
        %v7458 = vadd.f32 %v7457, %v7387
        %v7459 = vadd.f32 %v7292, %v7308
        %v7460 = vadd.f32 %v7459, %v7324
        %v7461 = vadd.f32 %v7460, %v7340
        %v7462 = vadd.f32 %v7461, %v7356
        %v7463 = vadd.f32 %v7462, %v7372
        %v7464 = vadd.f32 %v7463, %v7388
        %v7465 = vadd.f32 %v7293, %v7309
        %v7466 = vadd.f32 %v7465, %v7325
        %v7467 = vadd.f32 %v7466, %v7341
        %v7468 = vadd.f32 %v7467, %v7357
        %v7469 = vadd.f32 %v7468, %v7373
        %v7470 = vadd.f32 %v7469, %v7389
        %v7471 = vadd.f32 %v7294, %v7310
        %v7472 = vadd.f32 %v7471, %v7326
        %v7473 = vadd.f32 %v7472, %v7342
        %v7474 = vadd.f32 %v7473, %v7358
        %v7475 = vadd.f32 %v7474, %v7374
        %v7476 = vadd.f32 %v7475, %v7390
        %v7477 = vadd.f32 %v7295, %v7311
        %v7478 = vadd.f32 %v7477, %v7327
        %v7479 = vadd.f32 %v7478, %v7343
        %v7480 = vadd.f32 %v7479, %v7359
        %v7481 = vadd.f32 %v7480, %v7375
        %v7482 = vadd.f32 %v7481, %v7391
        %v7483 = vadd.f32 %v7296, %v7312
        %v7484 = vadd.f32 %v7483, %v7328
        %v7485 = vadd.f32 %v7484, %v7344
        %v7486 = vadd.f32 %v7485, %v7360
        %v7487 = vadd.f32 %v7486, %v7376
        %v7488 = vadd.f32 %v7487, %v7392
        %v7489 = vadd.f32 %v7265, %v7398
        %v7490 = vadd.f32 %v7266, %v7404
        %v7491 = vadd.f32 %v7267, %v7410
        %v7492 = vadd.f32 %v7268, %v7416
        %v7493 = vadd.f32 %v7269, %v7422
        %v7494 = vadd.f32 %v7270, %v7428
        %v7495 = vadd.f32 %v7271, %v7434
        %v7496 = vadd.f32 %v7272, %v7440
        %v7497 = vadd.f32 %v7273, %v7446
        %v7498 = vadd.f32 %v7274, %v7452
        %v7499 = vadd.f32 %v7275, %v7458
        %v7500 = vadd.f32 %v7276, %v7464
        %v7501 = vadd.f32 %v7277, %v7470
        %v7502 = vadd.f32 %v7278, %v7476
        %v7503 = vadd.f32 %v7279, %v7482
        %v7504 = vadd.f32 %v7280, %v7488
        %7505 = vadd.xlane.f32.xlu0 %v7489
        %v7506 = vpop.xlane.xlu0 %7505
        %7507 = vadd.xlane.f32.xlu0 %v7490
        %v7508 = vpop.xlane.xlu0 %7507
        %7509 = vadd.xlane.f32.xlu0 %v7491
        %v7510 = vpop.xlane.xlu0 %7509
        %7511 = vadd.xlane.f32.xlu0 %v7492
        %v7512 = vpop.xlane.xlu0 %7511
        %7513 = vadd.xlane.f32.xlu0 %v7493
        %v7514 = vpop.xlane.xlu0 %7513
        %7515 = vadd.xlane.f32.xlu0 %v7494
        %v7516 = vpop.xlane.xlu0 %7515
        %7517 = vadd.xlane.f32.xlu0 %v7495
        %v7518 = vpop.xlane.xlu0 %7517
        %7519 = vadd.xlane.f32.xlu0 %v7496
        %v7520 = vpop.xlane.xlu0 %7519
        %7521 = vadd.xlane.f32.xlu0 %v7497
        %v7522 = vpop.xlane.xlu0 %7521
        %7523 = vadd.xlane.f32.xlu0 %v7498
        %v7524 = vpop.xlane.xlu0 %7523
        %7525 = vadd.xlane.f32.xlu0 %v7499
        %v7526 = vpop.xlane.xlu0 %7525
        %7527 = vadd.xlane.f32.xlu0 %v7500
        %v7528 = vpop.xlane.xlu0 %7527
        %7529 = vadd.xlane.f32.xlu0 %v7501
        %v7530 = vpop.xlane.xlu0 %7529
        %7531 = vadd.xlane.f32.xlu0 %v7502
        %v7532 = vpop.xlane.xlu0 %7531
        %7533 = vadd.xlane.f32.xlu0 %v7503
        %v7534 = vpop.xlane.xlu0 %7533
        %7535 = vadd.xlane.f32.xlu0 %v7504
        %v7536 = vpop.xlane.xlu0 %7535
        %7537 = vmax.xlane.f32.xlu0 %v4818
        %v7538 = vpop.xlane.xlu0 %7537
        %7539 = vmax.xlane.f32.xlu0 %v4821
        %v7540 = vpop.xlane.xlu0 %7539
        %7541 = vmax.xlane.f32.xlu0 %v4826
        %v7542 = vpop.xlane.xlu0 %7541
        %7543 = vmax.xlane.f32.xlu0 %v4829
        %v7544 = vpop.xlane.xlu0 %7543
        %7545 = vmax.xlane.f32.xlu0 %v4834
        %v7546 = vpop.xlane.xlu0 %7545
        %7547 = vmax.xlane.f32.xlu0 %v4837
        %v7548 = vpop.xlane.xlu0 %7547
        %7549 = vmax.xlane.f32.xlu0 %v4842
        %v7550 = vpop.xlane.xlu0 %7549
        %7551 = vmax.xlane.f32.xlu0 %v4845
        %v7552 = vpop.xlane.xlu0 %7551
        %7553 = vmax.xlane.f32.xlu0 %v4850
        %v7554 = vpop.xlane.xlu0 %7553
        %7555 = vmax.xlane.f32.xlu0 %v4853
        %v7556 = vpop.xlane.xlu0 %7555
        %7557 = vmax.xlane.f32.xlu0 %v4858
        %v7558 = vpop.xlane.xlu0 %7557
        %7559 = vmax.xlane.f32.xlu0 %v4861
        %v7560 = vpop.xlane.xlu0 %7559
        %7561 = vmax.xlane.f32.xlu0 %v4866
        %v7562 = vpop.xlane.xlu0 %7561
        %7563 = vmax.xlane.f32.xlu0 %v4869
        %v7564 = vpop.xlane.xlu0 %7563
        %7565 = vmax.xlane.f32.xlu0 %v4874
        %v7566 = vpop.xlane.xlu0 %7565
        %7567 = vmax.xlane.f32.xlu0 %v4877
        %v7568 = vpop.xlane.xlu0 %7567
        %7569 = vmax.xlane.f32.xlu0 %v4882
        %v7570 = vpop.xlane.xlu0 %7569
        %7571 = vmax.xlane.f32.xlu0 %v4885
        %v7572 = vpop.xlane.xlu0 %7571
        %7573 = vmax.xlane.f32.xlu0 %v4890
        %v7574 = vpop.xlane.xlu0 %7573
        %7575 = vmax.xlane.f32.xlu0 %v4893
        %v7576 = vpop.xlane.xlu0 %7575
        %7577 = vmax.xlane.f32.xlu0 %v4898
        %v7578 = vpop.xlane.xlu0 %7577
        %7579 = vmax.xlane.f32.xlu0 %v4901
        %v7580 = vpop.xlane.xlu0 %7579
        %7581 = vmax.xlane.f32.xlu0 %v4906
        %v7582 = vpop.xlane.xlu0 %7581
        %7583 = vmax.xlane.f32.xlu0 %v4909
        %v7584 = vpop.xlane.xlu0 %7583
        %7585 = vmax.xlane.f32.xlu0 %v4914
        %v7586 = vpop.xlane.xlu0 %7585
        %7587 = vmax.xlane.f32.xlu0 %v4917
        %v7588 = vpop.xlane.xlu0 %7587
        %7589 = vmax.xlane.f32.xlu0 %v4922
        %v7590 = vpop.xlane.xlu0 %7589
        %7591 = vmax.xlane.f32.xlu0 %v4925
        %v7592 = vpop.xlane.xlu0 %7591
        %7593 = vmax.xlane.f32.xlu0 %v4930
        %v7594 = vpop.xlane.xlu0 %7593
        %7595 = vmax.xlane.f32.xlu0 %v4933
        %v7596 = vpop.xlane.xlu0 %7595
        %7597 = vmax.xlane.f32.xlu0 %v4938
        %v7598 = vpop.xlane.xlu0 %7597
        %7599 = vmax.xlane.f32.xlu0 %v4941
        %v7600 = vpop.xlane.xlu0 %7599
        %7601 = vmax.xlane.f32.xlu0 %v4946
        %v7602 = vpop.xlane.xlu0 %7601
        %7603 = vmax.xlane.f32.xlu0 %v4949
        %v7604 = vpop.xlane.xlu0 %7603
        %7605 = vmax.xlane.f32.xlu0 %v4954
        %v7606 = vpop.xlane.xlu0 %7605
        %7607 = vmax.xlane.f32.xlu0 %v4957
        %v7608 = vpop.xlane.xlu0 %7607
        %7609 = vmax.xlane.f32.xlu0 %v4962
        %v7610 = vpop.xlane.xlu0 %7609
        %7611 = vmax.xlane.f32.xlu0 %v4965
        %v7612 = vpop.xlane.xlu0 %7611
        %7613 = vmax.xlane.f32.xlu0 %v4970
        %v7614 = vpop.xlane.xlu0 %7613
        %7615 = vmax.xlane.f32.xlu0 %v4973
        %v7616 = vpop.xlane.xlu0 %7615
        %7617 = vmax.xlane.f32.xlu0 %v4978
        %v7618 = vpop.xlane.xlu0 %7617
        %7619 = vmax.xlane.f32.xlu0 %v4981
        %v7620 = vpop.xlane.xlu0 %7619
        %7621 = vmax.xlane.f32.xlu0 %v4986
        %v7622 = vpop.xlane.xlu0 %7621
        %7623 = vmax.xlane.f32.xlu0 %v4989
        %v7624 = vpop.xlane.xlu0 %7623
        %7625 = vmax.xlane.f32.xlu0 %v4994
        %v7626 = vpop.xlane.xlu0 %7625
        %7627 = vmax.xlane.f32.xlu0 %v4997
        %v7628 = vpop.xlane.xlu0 %7627
        %7629 = vmax.xlane.f32.xlu0 %v5002
        %v7630 = vpop.xlane.xlu0 %7629
        %7631 = vmax.xlane.f32.xlu0 %v5005
        %v7632 = vpop.xlane.xlu0 %7631
        %7633 = vmax.xlane.f32.xlu0 %v5010
        %v7634 = vpop.xlane.xlu0 %7633
        %7635 = vmax.xlane.f32.xlu0 %v5013
        %v7636 = vpop.xlane.xlu0 %7635
        %7637 = vmax.xlane.f32.xlu0 %v5018
        %v7638 = vpop.xlane.xlu0 %7637
        %7639 = vmax.xlane.f32.xlu0 %v5021
        %v7640 = vpop.xlane.xlu0 %7639
        %7641 = vmax.xlane.f32.xlu0 %v5026
        %v7642 = vpop.xlane.xlu0 %7641
        %7643 = vmax.xlane.f32.xlu0 %v5029
        %v7644 = vpop.xlane.xlu0 %7643
        %7645 = vmax.xlane.f32.xlu0 %v5034
        %v7646 = vpop.xlane.xlu0 %7645
        %7647 = vmax.xlane.f32.xlu0 %v5037
        %v7648 = vpop.xlane.xlu0 %7647
        %7649 = vmax.xlane.f32.xlu0 %v5042
        %v7650 = vpop.xlane.xlu0 %7649
        %7651 = vmax.xlane.f32.xlu0 %v5045
        %v7652 = vpop.xlane.xlu0 %7651
        %7653 = vmax.xlane.f32.xlu0 %v5050
        %v7654 = vpop.xlane.xlu0 %7653
        %7655 = vmax.xlane.f32.xlu0 %v5053
        %v7656 = vpop.xlane.xlu0 %7655
        %7657 = vmax.xlane.f32.xlu0 %v5058
        %v7658 = vpop.xlane.xlu0 %7657
        %7659 = vmax.xlane.f32.xlu0 %v5061
        %v7660 = vpop.xlane.xlu0 %7659
        %7661 = vmax.xlane.f32.xlu0 %v5066
        %v7662 = vpop.xlane.xlu0 %7661
        %7663 = vmax.xlane.f32.xlu0 %v5069
        %v7664 = vpop.xlane.xlu0 %7663
        %7665 = vmax.xlane.f32.xlu0 %v5074
        %v7666 = vpop.xlane.xlu0 %7665
        %7667 = vmax.xlane.f32.xlu0 %v5077
        %v7668 = vpop.xlane.xlu0 %7667
        %7669 = vmax.xlane.f32.xlu0 %v5082
        %v7670 = vpop.xlane.xlu0 %7669
        %7671 = vmax.xlane.f32.xlu0 %v5085
        %v7672 = vpop.xlane.xlu0 %7671
        %7673 = vmax.xlane.f32.xlu0 %v5090
        %v7674 = vpop.xlane.xlu0 %7673
        %7675 = vmax.xlane.f32.xlu0 %v5093
        %v7676 = vpop.xlane.xlu0 %7675
        %7677 = vmax.xlane.f32.xlu0 %v5098
        %v7678 = vpop.xlane.xlu0 %7677
        %7679 = vmax.xlane.f32.xlu0 %v5101
        %v7680 = vpop.xlane.xlu0 %7679
        %7681 = vmax.xlane.f32.xlu0 %v5106
        %v7682 = vpop.xlane.xlu0 %7681
        %7683 = vmax.xlane.f32.xlu0 %v5109
        %v7684 = vpop.xlane.xlu0 %7683
        %7685 = vmax.xlane.f32.xlu0 %v5114
        %v7686 = vpop.xlane.xlu0 %7685
        %7687 = vmax.xlane.f32.xlu0 %v5117
        %v7688 = vpop.xlane.xlu0 %7687
        %7689 = vmax.xlane.f32.xlu0 %v5122
        %v7690 = vpop.xlane.xlu0 %7689
        %7691 = vmax.xlane.f32.xlu0 %v5125
        %v7692 = vpop.xlane.xlu0 %7691
        %7693 = vmax.xlane.f32.xlu0 %v5130
        %v7694 = vpop.xlane.xlu0 %7693
        %7695 = vmax.xlane.f32.xlu0 %v5133
        %v7696 = vpop.xlane.xlu0 %7695
        %7697 = vmax.xlane.f32.xlu0 %v5138
        %v7698 = vpop.xlane.xlu0 %7697
        %7699 = vmax.xlane.f32.xlu0 %v5141
        %v7700 = vpop.xlane.xlu0 %7699
        %7701 = vmax.xlane.f32.xlu0 %v5146
        %v7702 = vpop.xlane.xlu0 %7701
        %7703 = vmax.xlane.f32.xlu0 %v5149
        %v7704 = vpop.xlane.xlu0 %7703
        %7705 = vmax.xlane.f32.xlu0 %v5154
        %v7706 = vpop.xlane.xlu0 %7705
        %7707 = vmax.xlane.f32.xlu0 %v5157
        %v7708 = vpop.xlane.xlu0 %7707
        %7709 = vmax.xlane.f32.xlu0 %v5162
        %v7710 = vpop.xlane.xlu0 %7709
        %7711 = vmax.xlane.f32.xlu0 %v5165
        %v7712 = vpop.xlane.xlu0 %7711
        %7713 = vmax.xlane.f32.xlu0 %v5170
        %v7714 = vpop.xlane.xlu0 %7713
        %7715 = vmax.xlane.f32.xlu0 %v5173
        %v7716 = vpop.xlane.xlu0 %7715
        %7717 = vmax.xlane.f32.xlu0 %v5178
        %v7718 = vpop.xlane.xlu0 %7717
        %7719 = vmax.xlane.f32.xlu0 %v5181
        %v7720 = vpop.xlane.xlu0 %7719
        %7721 = vmax.xlane.f32.xlu0 %v5186
        %v7722 = vpop.xlane.xlu0 %7721
        %7723 = vmax.xlane.f32.xlu0 %v5189
        %v7724 = vpop.xlane.xlu0 %7723
        %7725 = vmax.xlane.f32.xlu0 %v5194
        %v7726 = vpop.xlane.xlu0 %7725
        %7727 = vmax.xlane.f32.xlu0 %v5197
        %v7728 = vpop.xlane.xlu0 %7727
        %7729 = vmax.xlane.f32.xlu0 %v5202
        %v7730 = vpop.xlane.xlu0 %7729
        %7731 = vmax.xlane.f32.xlu0 %v5205
        %v7732 = vpop.xlane.xlu0 %7731
        %7733 = vmax.xlane.f32.xlu0 %v5210
        %v7734 = vpop.xlane.xlu0 %7733
        %7735 = vmax.xlane.f32.xlu0 %v5213
        %v7736 = vpop.xlane.xlu0 %7735
        %7737 = vmax.xlane.f32.xlu0 %v5218
        %v7738 = vpop.xlane.xlu0 %7737
        %7739 = vmax.xlane.f32.xlu0 %v5221
        %v7740 = vpop.xlane.xlu0 %7739
        %7741 = vmax.xlane.f32.xlu0 %v5226
        %v7742 = vpop.xlane.xlu0 %7741
        %7743 = vmax.xlane.f32.xlu0 %v5229
        %v7744 = vpop.xlane.xlu0 %7743
        %7745 = vmax.xlane.f32.xlu0 %v5234
        %v7746 = vpop.xlane.xlu0 %7745
        %7747 = vmax.xlane.f32.xlu0 %v5237
        %v7748 = vpop.xlane.xlu0 %7747
        %7749 = vmax.xlane.f32.xlu0 %v5242
        %v7750 = vpop.xlane.xlu0 %7749
        %7751 = vmax.xlane.f32.xlu0 %v5245
        %v7752 = vpop.xlane.xlu0 %7751
        %7753 = vmax.xlane.f32.xlu0 %v5250
        %v7754 = vpop.xlane.xlu0 %7753
        %7755 = vmax.xlane.f32.xlu0 %v5253
        %v7756 = vpop.xlane.xlu0 %7755
        %7757 = vmax.xlane.f32.xlu0 %v5258
        %v7758 = vpop.xlane.xlu0 %7757
        %7759 = vmax.xlane.f32.xlu0 %v5261
        %v7760 = vpop.xlane.xlu0 %7759
        %7761 = vmax.xlane.f32.xlu0 %v5266
        %v7762 = vpop.xlane.xlu0 %7761
        %7763 = vmax.xlane.f32.xlu0 %v5269
        %v7764 = vpop.xlane.xlu0 %7763
        %7765 = vmax.xlane.f32.xlu0 %v5274
        %v7766 = vpop.xlane.xlu0 %7765
        %7767 = vmax.xlane.f32.xlu0 %v5277
        %v7768 = vpop.xlane.xlu0 %7767
        %7769 = vmax.xlane.f32.xlu0 %v5282
        %v7770 = vpop.xlane.xlu0 %7769
        %7771 = vmax.xlane.f32.xlu0 %v5285
        %v7772 = vpop.xlane.xlu0 %7771
        %7773 = vmax.xlane.f32.xlu0 %v5290
        %v7774 = vpop.xlane.xlu0 %7773
        %7775 = vmax.xlane.f32.xlu0 %v5293
        %v7776 = vpop.xlane.xlu0 %7775
        %7777 = vmax.xlane.f32.xlu0 %v5298
        %v7778 = vpop.xlane.xlu0 %7777
        %7779 = vmax.xlane.f32.xlu0 %v5301
        %v7780 = vpop.xlane.xlu0 %7779
        %7781 = vmax.xlane.f32.xlu0 %v5306
        %v7782 = vpop.xlane.xlu0 %7781
        %7783 = vmax.xlane.f32.xlu0 %v5309
        %v7784 = vpop.xlane.xlu0 %7783
        %7785 = vmax.xlane.f32.xlu0 %v5314
        %v7786 = vpop.xlane.xlu0 %7785
        %7787 = vmax.xlane.f32.xlu0 %v5317
        %v7788 = vpop.xlane.xlu0 %7787
        %7789 = vmax.xlane.f32.xlu0 %v5322
        %v7790 = vpop.xlane.xlu0 %7789
        %7791 = vmax.xlane.f32.xlu0 %v5325
        %v7792 = vpop.xlane.xlu0 %7791
        %v7793 = vsub.f32 %v4818, %v7538
        %v7794 = vsub.f32 %v4821, %v7540
        %v7795 = vsub.f32 %v4826, %v7542
        %v7796 = vsub.f32 %v4829, %v7544
        %v7797 = vsub.f32 %v4834, %v7546
        %v7798 = vsub.f32 %v4837, %v7548
        %v7799 = vsub.f32 %v4842, %v7550
        %v7800 = vsub.f32 %v4845, %v7552
        %v7801 = vsub.f32 %v4850, %v7554
        %v7802 = vsub.f32 %v4853, %v7556
        %v7803 = vsub.f32 %v4858, %v7558
        %v7804 = vsub.f32 %v4861, %v7560
        %v7805 = vsub.f32 %v4866, %v7562
        %v7806 = vsub.f32 %v4869, %v7564
        %v7807 = vsub.f32 %v4874, %v7566
        %v7808 = vsub.f32 %v4877, %v7568
        %v7809 = vsub.f32 %v4882, %v7570
        %v7810 = vsub.f32 %v4885, %v7572
        %v7811 = vsub.f32 %v4890, %v7574
        %v7812 = vsub.f32 %v4893, %v7576
        %v7813 = vsub.f32 %v4898, %v7578
        %v7814 = vsub.f32 %v4901, %v7580
        %v7815 = vsub.f32 %v4906, %v7582
        %v7816 = vsub.f32 %v4909, %v7584
        %v7817 = vsub.f32 %v4914, %v7586
        %v7818 = vsub.f32 %v4917, %v7588
        %v7819 = vsub.f32 %v4922, %v7590
        %v7820 = vsub.f32 %v4925, %v7592
        %v7821 = vsub.f32 %v4930, %v7594
        %v7822 = vsub.f32 %v4933, %v7596
        %v7823 = vsub.f32 %v4938, %v7598
        %v7824 = vsub.f32 %v4941, %v7600
        %v7825 = vsub.f32 %v4946, %v7602
        %v7826 = vsub.f32 %v4949, %v7604
        %v7827 = vsub.f32 %v4954, %v7606
        %v7828 = vsub.f32 %v4957, %v7608
        %v7829 = vsub.f32 %v4962, %v7610
        %v7830 = vsub.f32 %v4965, %v7612
        %v7831 = vsub.f32 %v4970, %v7614
        %v7832 = vsub.f32 %v4973, %v7616
        %v7833 = vsub.f32 %v4978, %v7618
        %v7834 = vsub.f32 %v4981, %v7620
        %v7835 = vsub.f32 %v4986, %v7622
        %v7836 = vsub.f32 %v4989, %v7624
        %v7837 = vsub.f32 %v4994, %v7626
        %v7838 = vsub.f32 %v4997, %v7628
        %v7839 = vsub.f32 %v5002, %v7630
        %v7840 = vsub.f32 %v5005, %v7632
        %v7841 = vsub.f32 %v5010, %v7634
        %v7842 = vsub.f32 %v5013, %v7636
        %v7843 = vsub.f32 %v5018, %v7638
        %v7844 = vsub.f32 %v5021, %v7640
        %v7845 = vsub.f32 %v5026, %v7642
        %v7846 = vsub.f32 %v5029, %v7644
        %v7847 = vsub.f32 %v5034, %v7646
        %v7848 = vsub.f32 %v5037, %v7648
        %v7849 = vsub.f32 %v5042, %v7650
        %v7850 = vsub.f32 %v5045, %v7652
        %v7851 = vsub.f32 %v5050, %v7654
        %v7852 = vsub.f32 %v5053, %v7656
        %v7853 = vsub.f32 %v5058, %v7658
        %v7854 = vsub.f32 %v5061, %v7660
        %v7855 = vsub.f32 %v5066, %v7662
        %v7856 = vsub.f32 %v5069, %v7664
        %v7857 = vsub.f32 %v5074, %v7666
        %v7858 = vsub.f32 %v5077, %v7668
        %v7859 = vsub.f32 %v5082, %v7670
        %v7860 = vsub.f32 %v5085, %v7672
        %v7861 = vsub.f32 %v5090, %v7674
        %v7862 = vsub.f32 %v5093, %v7676
        %v7863 = vsub.f32 %v5098, %v7678
        %v7864 = vsub.f32 %v5101, %v7680
        %v7865 = vsub.f32 %v5106, %v7682
        %v7866 = vsub.f32 %v5109, %v7684
        %v7867 = vsub.f32 %v5114, %v7686
        %v7868 = vsub.f32 %v5117, %v7688
        %v7869 = vsub.f32 %v5122, %v7690
        %v7870 = vsub.f32 %v5125, %v7692
        %v7871 = vsub.f32 %v5130, %v7694
        %v7872 = vsub.f32 %v5133, %v7696
        %v7873 = vsub.f32 %v5138, %v7698
        %v7874 = vsub.f32 %v5141, %v7700
        %v7875 = vsub.f32 %v5146, %v7702
        %v7876 = vsub.f32 %v5149, %v7704
        %v7877 = vsub.f32 %v5154, %v7706
        %v7878 = vsub.f32 %v5157, %v7708
        %v7879 = vsub.f32 %v5162, %v7710
        %v7880 = vsub.f32 %v5165, %v7712
        %v7881 = vsub.f32 %v5170, %v7714
        %v7882 = vsub.f32 %v5173, %v7716
        %v7883 = vsub.f32 %v5178, %v7718
        %v7884 = vsub.f32 %v5181, %v7720
        %v7885 = vsub.f32 %v5186, %v7722
        %v7886 = vsub.f32 %v5189, %v7724
        %v7887 = vsub.f32 %v5194, %v7726
        %v7888 = vsub.f32 %v5197, %v7728
        %v7889 = vsub.f32 %v5202, %v7730
        %v7890 = vsub.f32 %v5205, %v7732
        %v7891 = vsub.f32 %v5210, %v7734
        %v7892 = vsub.f32 %v5213, %v7736
        %v7893 = vsub.f32 %v5218, %v7738
        %v7894 = vsub.f32 %v5221, %v7740
        %v7895 = vsub.f32 %v5226, %v7742
        %v7896 = vsub.f32 %v5229, %v7744
        %v7897 = vsub.f32 %v5234, %v7746
        %v7898 = vsub.f32 %v5237, %v7748
        %v7899 = vsub.f32 %v5242, %v7750
        %v7900 = vsub.f32 %v5245, %v7752
        %v7901 = vsub.f32 %v5250, %v7754
        %v7902 = vsub.f32 %v5253, %v7756
        %v7903 = vsub.f32 %v5258, %v7758
        %v7904 = vsub.f32 %v5261, %v7760
        %v7905 = vsub.f32 %v5266, %v7762
        %v7906 = vsub.f32 %v5269, %v7764
        %v7907 = vsub.f32 %v5274, %v7766
        %v7908 = vsub.f32 %v5277, %v7768
        %v7909 = vsub.f32 %v5282, %v7770
        %v7910 = vsub.f32 %v5285, %v7772
        %v7911 = vsub.f32 %v5290, %v7774
        %v7912 = vsub.f32 %v5293, %v7776
        %v7913 = vsub.f32 %v5298, %v7778
        %v7914 = vsub.f32 %v5301, %v7780
        %v7915 = vsub.f32 %v5306, %v7782
        %v7916 = vsub.f32 %v5309, %v7784
        %v7917 = vsub.f32 %v5314, %v7786
        %v7918 = vsub.f32 %v5317, %v7788
        %v7919 = vsub.f32 %v5322, %v7790
        %v7920 = vsub.f32 %v5325, %v7792
        %v7921 = vmul.f32 %v7793, 1.442695
        %v7922 = vpow.pop %v7921
        %v7923 = vmul.f32 %v7794, 1.442695
        %v7924 = vpow.pop %v7923
        %v7925 = vmul.f32 %v7795, 1.442695
        %v7926 = vpow.pop %v7925
        %v7927 = vmul.f32 %v7796, 1.442695
        %v7928 = vpow.pop %v7927
        %v7929 = vmul.f32 %v7797, 1.442695
        %v7930 = vpow.pop %v7929
        %v7931 = vmul.f32 %v7798, 1.442695
        %v7932 = vpow.pop %v7931
        %v7933 = vmul.f32 %v7799, 1.442695
        %v7934 = vpow.pop %v7933
        %v7935 = vmul.f32 %v7800, 1.442695
        %v7936 = vpow.pop %v7935
        %v7937 = vmul.f32 %v7801, 1.442695
        %v7938 = vpow.pop %v7937
        %v7939 = vmul.f32 %v7802, 1.442695
        %v7940 = vpow.pop %v7939
        %v7941 = vmul.f32 %v7803, 1.442695
        %v7942 = vpow.pop %v7941
        %v7943 = vmul.f32 %v7804, 1.442695
        %v7944 = vpow.pop %v7943
        %v7945 = vmul.f32 %v7805, 1.442695
        %v7946 = vpow.pop %v7945
        %v7947 = vmul.f32 %v7806, 1.442695
        %v7948 = vpow.pop %v7947
        %v7949 = vmul.f32 %v7807, 1.442695
        %v7950 = vpow.pop %v7949
        %v7951 = vmul.f32 %v7808, 1.442695
        %v7952 = vpow.pop %v7951
        %v7953 = vmul.f32 %v7809, 1.442695
        %v7954 = vpow.pop %v7953
        %v7955 = vmul.f32 %v7810, 1.442695
        %v7956 = vpow.pop %v7955
        %v7957 = vmul.f32 %v7811, 1.442695
        %v7958 = vpow.pop %v7957
        %v7959 = vmul.f32 %v7812, 1.442695
        %v7960 = vpow.pop %v7959
        %v7961 = vmul.f32 %v7813, 1.442695
        %v7962 = vpow.pop %v7961
        %v7963 = vmul.f32 %v7814, 1.442695
        %v7964 = vpow.pop %v7963
        %v7965 = vmul.f32 %v7815, 1.442695
        %v7966 = vpow.pop %v7965
        %v7967 = vmul.f32 %v7816, 1.442695
        %v7968 = vpow.pop %v7967
        %v7969 = vmul.f32 %v7817, 1.442695
        %v7970 = vpow.pop %v7969
        %v7971 = vmul.f32 %v7818, 1.442695
        %v7972 = vpow.pop %v7971
        %v7973 = vmul.f32 %v7819, 1.442695
        %v7974 = vpow.pop %v7973
        %v7975 = vmul.f32 %v7820, 1.442695
        %v7976 = vpow.pop %v7975
        %v7977 = vmul.f32 %v7821, 1.442695
        %v7978 = vpow.pop %v7977
        %v7979 = vmul.f32 %v7822, 1.442695
        %v7980 = vpow.pop %v7979
        %v7981 = vmul.f32 %v7823, 1.442695
        %v7982 = vpow.pop %v7981
        %v7983 = vmul.f32 %v7824, 1.442695
        %v7984 = vpow.pop %v7983
        %v7985 = vmul.f32 %v7825, 1.442695
        %v7986 = vpow.pop %v7985
        %v7987 = vmul.f32 %v7826, 1.442695
        %v7988 = vpow.pop %v7987
        %v7989 = vmul.f32 %v7827, 1.442695
        %v7990 = vpow.pop %v7989
        %v7991 = vmul.f32 %v7828, 1.442695
        %v7992 = vpow.pop %v7991
        %v7993 = vmul.f32 %v7829, 1.442695
        %v7994 = vpow.pop %v7993
        %v7995 = vmul.f32 %v7830, 1.442695
        %v7996 = vpow.pop %v7995
        %v7997 = vmul.f32 %v7831, 1.442695
        %v7998 = vpow.pop %v7997
        %v7999 = vmul.f32 %v7832, 1.442695
        %v8000 = vpow.pop %v7999
        %v8001 = vmul.f32 %v7833, 1.442695
        %v8002 = vpow.pop %v8001
        %v8003 = vmul.f32 %v7834, 1.442695
        %v8004 = vpow.pop %v8003
        %v8005 = vmul.f32 %v7835, 1.442695
        %v8006 = vpow.pop %v8005
        %v8007 = vmul.f32 %v7836, 1.442695
        %v8008 = vpow.pop %v8007
        %v8009 = vmul.f32 %v7837, 1.442695
        %v8010 = vpow.pop %v8009
        %v8011 = vmul.f32 %v7838, 1.442695
        %v8012 = vpow.pop %v8011
        %v8013 = vmul.f32 %v7839, 1.442695
        %v8014 = vpow.pop %v8013
        %v8015 = vmul.f32 %v7840, 1.442695
        %v8016 = vpow.pop %v8015
        %v8017 = vmul.f32 %v7841, 1.442695
        %v8018 = vpow.pop %v8017
        %v8019 = vmul.f32 %v7842, 1.442695
        %v8020 = vpow.pop %v8019
        %v8021 = vmul.f32 %v7843, 1.442695
        %v8022 = vpow.pop %v8021
        %v8023 = vmul.f32 %v7844, 1.442695
        %v8024 = vpow.pop %v8023
        %v8025 = vmul.f32 %v7845, 1.442695
        %v8026 = vpow.pop %v8025
        %v8027 = vmul.f32 %v7846, 1.442695
        %v8028 = vpow.pop %v8027
        %v8029 = vmul.f32 %v7847, 1.442695
        %v8030 = vpow.pop %v8029
        %v8031 = vmul.f32 %v7848, 1.442695
        %v8032 = vpow.pop %v8031
        %v8033 = vmul.f32 %v7849, 1.442695
        %v8034 = vpow.pop %v8033
        %v8035 = vmul.f32 %v7850, 1.442695
        %v8036 = vpow.pop %v8035
        %v8037 = vmul.f32 %v7851, 1.442695
        %v8038 = vpow.pop %v8037
        %v8039 = vmul.f32 %v7852, 1.442695
        %v8040 = vpow.pop %v8039
        %v8041 = vmul.f32 %v7853, 1.442695
        %v8042 = vpow.pop %v8041
        %v8043 = vmul.f32 %v7854, 1.442695
        %v8044 = vpow.pop %v8043
        %v8045 = vmul.f32 %v7855, 1.442695
        %v8046 = vpow.pop %v8045
        %v8047 = vmul.f32 %v7856, 1.442695
        %v8048 = vpow.pop %v8047
        %v8049 = vmul.f32 %v7857, 1.442695
        %v8050 = vpow.pop %v8049
        %v8051 = vmul.f32 %v7858, 1.442695
        %v8052 = vpow.pop %v8051
        %v8053 = vmul.f32 %v7859, 1.442695
        %v8054 = vpow.pop %v8053
        %v8055 = vmul.f32 %v7860, 1.442695
        %v8056 = vpow.pop %v8055
        %v8057 = vmul.f32 %v7861, 1.442695
        %v8058 = vpow.pop %v8057
        %v8059 = vmul.f32 %v7862, 1.442695
        %v8060 = vpow.pop %v8059
        %v8061 = vmul.f32 %v7863, 1.442695
        %v8062 = vpow.pop %v8061
        %v8063 = vmul.f32 %v7864, 1.442695
        %v8064 = vpow.pop %v8063
        %v8065 = vmul.f32 %v7865, 1.442695
        %v8066 = vpow.pop %v8065
        %v8067 = vmul.f32 %v7866, 1.442695
        %v8068 = vpow.pop %v8067
        %v8069 = vmul.f32 %v7867, 1.442695
        %v8070 = vpow.pop %v8069
        %v8071 = vmul.f32 %v7868, 1.442695
        %v8072 = vpow.pop %v8071
        %v8073 = vmul.f32 %v7869, 1.442695
        %v8074 = vpow.pop %v8073
        %v8075 = vmul.f32 %v7870, 1.442695
        %v8076 = vpow.pop %v8075
        %v8077 = vmul.f32 %v7871, 1.442695
        %v8078 = vpow.pop %v8077
        %v8079 = vmul.f32 %v7872, 1.442695
        %v8080 = vpow.pop %v8079
        %v8081 = vmul.f32 %v7873, 1.442695
        %v8082 = vpow.pop %v8081
        %v8083 = vmul.f32 %v7874, 1.442695
        %v8084 = vpow.pop %v8083
        %v8085 = vmul.f32 %v7875, 1.442695
        %v8086 = vpow.pop %v8085
        %v8087 = vmul.f32 %v7876, 1.442695
        %v8088 = vpow.pop %v8087
        %v8089 = vmul.f32 %v7877, 1.442695
        %v8090 = vpow.pop %v8089
        %v8091 = vmul.f32 %v7878, 1.442695
        %v8092 = vpow.pop %v8091
        %v8093 = vmul.f32 %v7879, 1.442695
        %v8094 = vpow.pop %v8093
        %v8095 = vmul.f32 %v7880, 1.442695
        %v8096 = vpow.pop %v8095
        %v8097 = vmul.f32 %v7881, 1.442695
        %v8098 = vpow.pop %v8097
        %v8099 = vmul.f32 %v7882, 1.442695
        %v8100 = vpow.pop %v8099
        %v8101 = vmul.f32 %v7883, 1.442695
        %v8102 = vpow.pop %v8101
        %v8103 = vmul.f32 %v7884, 1.442695
        %v8104 = vpow.pop %v8103
        %v8105 = vmul.f32 %v7885, 1.442695
        %v8106 = vpow.pop %v8105
        %v8107 = vmul.f32 %v7886, 1.442695
        %v8108 = vpow.pop %v8107
        %v8109 = vmul.f32 %v7887, 1.442695
        %v8110 = vpow.pop %v8109
        %v8111 = vmul.f32 %v7888, 1.442695
        %v8112 = vpow.pop %v8111
        %v8113 = vmul.f32 %v7889, 1.442695
        %v8114 = vpow.pop %v8113
        %v8115 = vmul.f32 %v7890, 1.442695
        %v8116 = vpow.pop %v8115
        %v8117 = vmul.f32 %v7891, 1.442695
        %v8118 = vpow.pop %v8117
        %v8119 = vmul.f32 %v7892, 1.442695
        %v8120 = vpow.pop %v8119
        %v8121 = vmul.f32 %v7893, 1.442695
        %v8122 = vpow.pop %v8121
        %v8123 = vmul.f32 %v7894, 1.442695
        %v8124 = vpow.pop %v8123
        %v8125 = vmul.f32 %v7895, 1.442695
        %v8126 = vpow.pop %v8125
        %v8127 = vmul.f32 %v7896, 1.442695
        %v8128 = vpow.pop %v8127
        %v8129 = vmul.f32 %v7897, 1.442695
        %v8130 = vpow.pop %v8129
        %v8131 = vmul.f32 %v7898, 1.442695
        %v8132 = vpow.pop %v8131
        %v8133 = vmul.f32 %v7899, 1.442695
        %v8134 = vpow.pop %v8133
        %v8135 = vmul.f32 %v7900, 1.442695
        %v8136 = vpow.pop %v8135
        %v8137 = vmul.f32 %v7901, 1.442695
        %v8138 = vpow.pop %v8137
        %v8139 = vmul.f32 %v7902, 1.442695
        %v8140 = vpow.pop %v8139
        %v8141 = vmul.f32 %v7903, 1.442695
        %v8142 = vpow.pop %v8141
        %v8143 = vmul.f32 %v7904, 1.442695
        %v8144 = vpow.pop %v8143
        %v8145 = vmul.f32 %v7905, 1.442695
        %v8146 = vpow.pop %v8145
        %v8147 = vmul.f32 %v7906, 1.442695
        %v8148 = vpow.pop %v8147
        %v8149 = vmul.f32 %v7907, 1.442695
        %v8150 = vpow.pop %v8149
        %v8151 = vmul.f32 %v7908, 1.442695
        %v8152 = vpow.pop %v8151
        %v8153 = vmul.f32 %v7909, 1.442695
        %v8154 = vpow.pop %v8153
        %v8155 = vmul.f32 %v7910, 1.442695
        %v8156 = vpow.pop %v8155
        %v8157 = vmul.f32 %v7911, 1.442695
        %v8158 = vpow.pop %v8157
        %v8159 = vmul.f32 %v7912, 1.442695
        %v8160 = vpow.pop %v8159
        %v8161 = vmul.f32 %v7913, 1.442695
        %v8162 = vpow.pop %v8161
        %v8163 = vmul.f32 %v7914, 1.442695
        %v8164 = vpow.pop %v8163
        %v8165 = vmul.f32 %v7915, 1.442695
        %v8166 = vpow.pop %v8165
        %v8167 = vmul.f32 %v7916, 1.442695
        %v8168 = vpow.pop %v8167
        %v8169 = vmul.f32 %v7917, 1.442695
        %v8170 = vpow.pop %v8169
        %v8171 = vmul.f32 %v7918, 1.442695
        %v8172 = vpow.pop %v8171
        %v8173 = vmul.f32 %v7919, 1.442695
        %v8174 = vpow.pop %v8173
        %v8175 = vmul.f32 %v7920, 1.442695
        %v8176 = vpow.pop %v8175
        %v8177 = vld [vmem:[#allocation11] sm:$0xf]
        %v8178 = vld [vmem:[#allocation11 + $0x4] sm:$0xf]
        %v8179 = vld [vmem:[#allocation11 + $0x8] sm:$0xf]
        %v8180 = vld [vmem:[#allocation11 + $0xc] sm:$0xf]
        %v8181 = vld [vmem:[#allocation11 + $0x10] sm:$0xf]
        %v8182 = vld [vmem:[#allocation11 + $0x14] sm:$0xf]
        %v8183 = vld [vmem:[#allocation11 + $0x18] sm:$0xf]
        %v8184 = vld [vmem:[#allocation11 + $0x1c] sm:$0xf]
        %v8185 = vld [vmem:[#allocation11 + $0x20] sm:$0xf]
        %v8186 = vld [vmem:[#allocation11 + $0x24] sm:$0xf]
        %v8187 = vld [vmem:[#allocation11 + $0x28] sm:$0xf]
        %v8188 = vld [vmem:[#allocation11 + $0x2c] sm:$0xf]
        %v8189 = vld [vmem:[#allocation11 + $0x30] sm:$0xf]
        %v8190 = vld [vmem:[#allocation11 + $0x34] sm:$0xf]
        %v8191 = vld [vmem:[#allocation11 + $0x38] sm:$0xf]
        %v8192 = vld [vmem:[#allocation11 + $0x3c] sm:$0xf]
        %v8193 = vmul.f32 %v5328, 1.442695
        %v8194 = vpow.pop %v8193
        %v8196 = vlaneseq
        %v8197 = vshrl.u32 %v8196, 7
        %v8198 = vsub.s32 0, %v8197
        %v8199 = vrot.slane %v8194, %v8198
        %v8201 = vmul.f32 %v8199, %v7922
        %v8202 = vmul.f32 %v8199, %v7924
        %v8203 = vmul.f32 %v8199, %v7926
        %v8204 = vmul.f32 %v8199, %v7928
        %v8205 = vmul.f32 %v8199, %v7930
        %v8206 = vmul.f32 %v8199, %v7932
        %v8207 = vmul.f32 %v8199, %v7934
        %v8208 = vmul.f32 %v8199, %v7936
        %v8209 = vmul.f32 %v8199, %v7938
        %v8210 = vmul.f32 %v8199, %v7940
        %v8211 = vmul.f32 %v8199, %v7942
        %v8212 = vmul.f32 %v8199, %v7944
        %v8213 = vmul.f32 %v8199, %v7946
        %v8214 = vmul.f32 %v8199, %v7948
        %v8215 = vmul.f32 %v8199, %v7950
        %v8216 = vmul.f32 %v8199, %v7952
        %v8217 = vpack.c.bf16 %v8202, %v8201
        %v8218 = vpack.c.bf16 %v8204, %v8203
        %v8219 = vpack.c.bf16 %v8206, %v8205
        %v8220 = vpack.c.bf16 %v8208, %v8207
        %v8221 = vpack.c.bf16 %v8210, %v8209
        %v8222 = vpack.c.bf16 %v8212, %v8211
        %v8223 = vpack.c.bf16 %v8214, %v8213
        %v8224 = vpack.c.bf16 %v8216, %v8215
        %v8241 = vunpack.c.l.b16 %v8177
        %v8242 = vunpack.c.l.b16 %v8178
        %v8243 = vunpack.c.l.b16 %v8179
        %v8244 = vunpack.c.l.b16 %v8180
        %v8245 = vunpack.c.l.b16 %v8181
        %v8246 = vunpack.c.l.b16 %v8182
        %v8247 = vunpack.c.l.b16 %v8183
        %v8248 = vunpack.c.l.b16 %v8184
        %v8249 = vunpack.c.l.b16 %v8185
        %v8250 = vunpack.c.l.b16 %v8186
        %v8251 = vunpack.c.l.b16 %v8187
        %v8252 = vunpack.c.l.b16 %v8188
        %v8253 = vunpack.c.l.b16 %v8189
        %v8254 = vunpack.c.l.b16 %v8190
        %v8255 = vunpack.c.l.b16 %v8191
        %v8256 = vunpack.c.l.b16 %v8192
        %v8257 = vpack.c.b16 %v8242, %v8241
        %v8258 = vpack.c.b16 %v8244, %v8243
        %v8259 = vpack.c.b16 %v8246, %v8245
        %v8260 = vpack.c.b16 %v8248, %v8247
        %v8261 = vpack.c.b16 %v8250, %v8249
        %v8262 = vpack.c.b16 %v8252, %v8251
        %v8263 = vpack.c.b16 %v8254, %v8253
        %v8264 = vpack.c.b16 %v8256, %v8255
        %8273 = vmatprep.subr.bf16.mxu0 0
        %8274 = vmatpush1.bf16.msra.mxu0 %v8257
        %8275 = vmatprep.subr.bf16.mxu0 0
        %8276 = vmatpush1.bf16.msra.mxu0 %v8258
        %8277 = vmatprep.subr.bf16.mxu0 0
        %8278 = vmatpush1.bf16.msra.mxu0 %v8259
        %8279 = vmatprep.subr.bf16.mxu0 0
        %8280 = vmatpush1.bf16.msra.mxu0 %v8260
        %8281 = vmatprep.subr.bf16.mxu0 0
        %8282 = vmatpush1.bf16.msra.mxu0 %v8261
        %8283 = vmatprep.subr.bf16.mxu0 0
        %8284 = vmatpush1.bf16.msra.mxu0 %v8262
        %8285 = vmatprep.subr.bf16.mxu0 0
        %8286 = vmatpush1.bf16.msra.mxu0 %v8263
        %8287 = vmatprep.subr.bf16.mxu0 0
        %8288 = vmatpush1.bf16.msra.mxu0 %v8264
        %8289 = vmatprep.subr.bf16.mxu0 0
        %8290 = vmatpush1.bf16.msra.mxu0 0
        %8291 = vmatprep.subr.bf16.mxu0 0
        %8292 = vmatpush1.bf16.msra.mxu0 0
        %8293 = vmatprep.subr.bf16.mxu0 0
        %8294 = vmatpush1.bf16.msra.mxu0 0
        %8295 = vmatprep.subr.bf16.mxu0 0
        %8296 = vmatpush1.bf16.msra.mxu0 0
        %8297 = vmatprep.subr.bf16.mxu0 0
        %8298 = vmatpush1.bf16.msra.mxu0 0
        %8299 = vmatprep.subr.bf16.mxu0 0
        %8300 = vmatpush1.bf16.msra.mxu0 0
        %8301 = vmatprep.subr.bf16.mxu0 0
        %8302 = vmatpush1.bf16.msra.mxu0 0
        %8303 = vmatprep.subr.bf16.mxu0 0
        %8304 = vmatpush1.bf16.msra.mxu0 0
        %8305 = vmatprep.mubr.bf16.mxu0 0
        %8306 = vmatmul.mubr.bf16.gmra.mrb[0].mxu0 %v8217
        %v8307 = vpop.f32.mrb[0].mxu0
        %v8308 = vadd.f32 0.0, %v8307
        %v8309 = vpop.f32.mrb[0].mxu0
        %v8310 = vpop.f32.mrb[0].mxu0
        %v8311 = vadd.f32 0.0, %v8310
        %v8312 = vpop.f32.mrb[0].mxu0
        %8313 = vmatprep.mubr.bf16.mxu0 0
        %8314 = vmatmul.mubr.bf16.gmra.mrb[0].mxu0 %v8218
        %v8315 = vpop.f32.mrb[0].mxu0
        %v8316 = vadd.f32 0.0, %v8315
        %v8317 = vpop.f32.mrb[0].mxu0
        %v8318 = vpop.f32.mrb[0].mxu0
        %v8319 = vadd.f32 0.0, %v8318
        %v8320 = vpop.f32.mrb[0].mxu0
        %8321 = vmatprep.mubr.bf16.mxu0 0
        %8322 = vmatmul.mubr.bf16.gmra.mrb[0].mxu0 %v8219
        %v8323 = vpop.f32.mrb[0].mxu0
        %v8324 = vadd.f32 0.0, %v8323
        %v8325 = vpop.f32.mrb[0].mxu0
        %v8326 = vpop.f32.mrb[0].mxu0
        %v8327 = vadd.f32 0.0, %v8326
        %v8328 = vpop.f32.mrb[0].mxu0
        %8329 = vmatprep.mubr.bf16.mxu0 0
        %8330 = vmatmul.mubr.bf16.gmra.mrb[0].mxu0 %v8220
        %v8331 = vpop.f32.mrb[0].mxu0
        %v8332 = vadd.f32 0.0, %v8331
        %v8333 = vpop.f32.mrb[0].mxu0
        %v8334 = vpop.f32.mrb[0].mxu0
        %v8335 = vadd.f32 0.0, %v8334
        %v8336 = vpop.f32.mrb[0].mxu0
        %8337 = vmatprep.mubr.bf16.mxu0 0
        %8338 = vmatmul.mubr.bf16.gmra.mrb[0].mxu0 %v8221
        %v8339 = vpop.f32.mrb[0].mxu0
        %v8340 = vadd.f32 0.0, %v8339
        %v8341 = vpop.f32.mrb[0].mxu0
        %v8342 = vpop.f32.mrb[0].mxu0
        %v8343 = vadd.f32 0.0, %v8342
        %v8344 = vpop.f32.mrb[0].mxu0
        %8345 = vmatprep.mubr.bf16.mxu0 0
        %8346 = vmatmul.mubr.bf16.gmra.mrb[0].mxu0 %v8222
        %v8347 = vpop.f32.mrb[0].mxu0
        %v8348 = vadd.f32 0.0, %v8347
        %v8349 = vpop.f32.mrb[0].mxu0
        %v8350 = vpop.f32.mrb[0].mxu0
        %v8351 = vadd.f32 0.0, %v8350
        %v8352 = vpop.f32.mrb[0].mxu0
        %8353 = vmatprep.mubr.bf16.mxu0 0
        %8354 = vmatmul.mubr.bf16.gmra.mrb[0].mxu0 %v8223
        %v8355 = vpop.f32.mrb[0].mxu0
        %v8356 = vadd.f32 0.0, %v8355
        %v8357 = vpop.f32.mrb[0].mxu0
        %v8358 = vpop.f32.mrb[0].mxu0
        %v8359 = vadd.f32 0.0, %v8358
        %v8360 = vpop.f32.mrb[0].mxu0
        %8361 = vmatprep.mubr.bf16.mxu0 0
        %8362 = vmatmul.mubr.bf16.gmra.mrb[0].mxu0 %v8224
        %v8363 = vpop.f32.mrb[0].mxu0
        %v8364 = vadd.f32 0.0, %v8363
        %v8365 = vpop.f32.mrb[0].mxu0
        %v8366 = vpop.f32.mrb[0].mxu0
        %v8367 = vadd.f32 0.0, %v8366
        %v8368 = vpop.f32.mrb[0].mxu0
        %8369 = vdwg.mxu0
        %v8370 = vmul.f32 %v8308, %v7954
        %v8371 = vmul.f32 %v8311, %v7956
        %v8372 = vmul.f32 %v8316, %v7958
        %v8373 = vmul.f32 %v8319, %v7960
        %v8374 = vmul.f32 %v8324, %v7962
        %v8375 = vmul.f32 %v8327, %v7964
        %v8376 = vmul.f32 %v8332, %v7966
        %v8377 = vmul.f32 %v8335, %v7968
        %v8378 = vmul.f32 %v8340, %v7970
        %v8379 = vmul.f32 %v8343, %v7972
        %v8380 = vmul.f32 %v8348, %v7974
        %v8381 = vmul.f32 %v8351, %v7976
        %v8382 = vmul.f32 %v8356, %v7978
        %v8383 = vmul.f32 %v8359, %v7980
        %v8384 = vmul.f32 %v8364, %v7982
        %v8385 = vmul.f32 %v8367, %v7984
        %8386 = vmax.xlane.f32.xlu0 %v8370
        %v8387 = vpop.xlane.xlu0 %8386
        %8388 = vmax.xlane.f32.xlu0 %v8371
        %v8389 = vpop.xlane.xlu0 %8388
        %8390 = vmax.xlane.f32.xlu0 %v8372
        %v8391 = vpop.xlane.xlu0 %8390
        %8392 = vmax.xlane.f32.xlu0 %v8373
        %v8393 = vpop.xlane.xlu0 %8392
        %8394 = vmax.xlane.f32.xlu0 %v8374
        %v8395 = vpop.xlane.xlu0 %8394
        %8396 = vmax.xlane.f32.xlu0 %v8375
        %v8397 = vpop.xlane.xlu0 %8396
        %8398 = vmax.xlane.f32.xlu0 %v8376
        %v8399 = vpop.xlane.xlu0 %8398
        %8400 = vmax.xlane.f32.xlu0 %v8377
        %v8401 = vpop.xlane.xlu0 %8400
        %8402 = vmax.xlane.f32.xlu0 %v8378
        %v8403 = vpop.xlane.xlu0 %8402
        %8404 = vmax.xlane.f32.xlu0 %v8379
        %v8405 = vpop.xlane.xlu0 %8404
        %8406 = vmax.xlane.f32.xlu0 %v8380
        %v8407 = vpop.xlane.xlu0 %8406
        %8408 = vmax.xlane.f32.xlu0 %v8381
        %v8409 = vpop.xlane.xlu0 %8408
        %8410 = vmax.xlane.f32.xlu0 %v8382
        %v8411 = vpop.xlane.xlu0 %8410
        %8412 = vmax.xlane.f32.xlu0 %v8383
        %v8413 = vpop.xlane.xlu0 %8412
        %8414 = vmax.xlane.f32.xlu0 %v8384
        %v8415 = vpop.xlane.xlu0 %8414
        %8416 = vmax.xlane.f32.xlu0 %v8385
        %v8417 = vpop.xlane.xlu0 %8416
        %v8418 = vrcp.pop %v8387
        %v8419 = vrcp.pop %v8389
        %v8420 = vrcp.pop %v8391
        %v8421 = vrcp.pop %v8393
        %v8422 = vrcp.pop %v8395
        %v8423 = vrcp.pop %v8397
        %v8424 = vrcp.pop %v8399
        %v8425 = vrcp.pop %v8401
        %v8426 = vrcp.pop %v8403
        %v8427 = vrcp.pop %v8405
        %v8428 = vrcp.pop %v8407
        %v8429 = vrcp.pop %v8409
        %v8430 = vrcp.pop %v8411
        %v8431 = vrcp.pop %v8413
        %v8432 = vrcp.pop %v8415
        %v8433 = vrcp.pop %v8417
        %v8434 = vmul.f32 %v8370, %v8418
        %v8435 = vmul.f32 %v8371, %v8419
        %v8436 = vmul.f32 %v8372, %v8420
        %v8437 = vmul.f32 %v8373, %v8421
        %v8438 = vmul.f32 %v8374, %v8422
        %v8439 = vmul.f32 %v8375, %v8423
        %v8440 = vmul.f32 %v8376, %v8424
        %v8441 = vmul.f32 %v8377, %v8425
        %v8442 = vmul.f32 %v8378, %v8426
        %v8443 = vmul.f32 %v8379, %v8427
        %v8444 = vmul.f32 %v8380, %v8428
        %v8445 = vmul.f32 %v8381, %v8429
        %v8446 = vmul.f32 %v8382, %v8430
        %v8447 = vmul.f32 %v8383, %v8431
        %v8448 = vmul.f32 %v8384, %v8432
        %v8449 = vmul.f32 %v8385, %v8433
        %v8450 = vadd.f32 %v7538, %v7570
        %v8451 = vadd.f32 %v7540, %v7572
        %v8452 = vadd.f32 %v7542, %v7574
        %v8453 = vadd.f32 %v7544, %v7576
        %v8454 = vadd.f32 %v7546, %v7578
        %v8455 = vadd.f32 %v7548, %v7580
        %v8456 = vadd.f32 %v7550, %v7582
        %v8457 = vadd.f32 %v7552, %v7584
        %v8458 = vadd.f32 %v7554, %v7586
        %v8459 = vadd.f32 %v7556, %v7588
        %v8460 = vadd.f32 %v7558, %v7590
        %v8461 = vadd.f32 %v7560, %v7592
        %v8462 = vadd.f32 %v7562, %v7594
        %v8463 = vadd.f32 %v7564, %v7596
        %v8464 = vadd.f32 %v7566, %v7598
        %v8465 = vadd.f32 %v7568, %v7600
        %v8466 = vlog2.pop %v8418
        %v8467 = vmul.f32 %v8466, 0.6931472
        %v8468 = vlog2.pop %v8419
        %v8469 = vmul.f32 %v8468, 0.6931472
        %v8470 = vlog2.pop %v8420
        %v8471 = vmul.f32 %v8470, 0.6931472
        %v8472 = vlog2.pop %v8421
        %v8473 = vmul.f32 %v8472, 0.6931472
        %v8474 = vlog2.pop %v8422
        %v8475 = vmul.f32 %v8474, 0.6931472
        %v8476 = vlog2.pop %v8423
        %v8477 = vmul.f32 %v8476, 0.6931472
        %v8478 = vlog2.pop %v8424
        %v8479 = vmul.f32 %v8478, 0.6931472
        %v8480 = vlog2.pop %v8425
        %v8481 = vmul.f32 %v8480, 0.6931472
        %v8482 = vlog2.pop %v8426
        %v8483 = vmul.f32 %v8482, 0.6931472
        %v8484 = vlog2.pop %v8427
        %v8485 = vmul.f32 %v8484, 0.6931472
        %v8486 = vlog2.pop %v8428
        %v8487 = vmul.f32 %v8486, 0.6931472
        %v8488 = vlog2.pop %v8429
        %v8489 = vmul.f32 %v8488, 0.6931472
        %v8490 = vlog2.pop %v8430
        %v8491 = vmul.f32 %v8490, 0.6931472
        %v8492 = vlog2.pop %v8431
        %v8493 = vmul.f32 %v8492, 0.6931472
        %v8494 = vlog2.pop %v8432
        %v8495 = vmul.f32 %v8494, 0.6931472
        %v8496 = vlog2.pop %v8433
        %v8497 = vmul.f32 %v8496, 0.6931472
        %v8498 = vsub.f32 %v8450, %v8467
        %v8499 = vsub.f32 %v8451, %v8469
        %v8500 = vsub.f32 %v8452, %v8471
        %v8501 = vsub.f32 %v8453, %v8473
        %v8502 = vsub.f32 %v8454, %v8475
        %v8503 = vsub.f32 %v8455, %v8477
        %v8504 = vsub.f32 %v8456, %v8479
        %v8505 = vsub.f32 %v8457, %v8481
        %v8506 = vsub.f32 %v8458, %v8483
        %v8507 = vsub.f32 %v8459, %v8485
        %v8508 = vsub.f32 %v8460, %v8487
        %v8509 = vsub.f32 %v8461, %v8489
        %v8510 = vsub.f32 %v8462, %v8491
        %v8511 = vsub.f32 %v8463, %v8493
        %v8512 = vsub.f32 %v8464, %v8495
        %v8513 = vsub.f32 %v8465, %v8497
        %v8514 = vpack.c.bf16 %v8435, %v8434
        %v8515 = vpack.c.bf16 %v8437, %v8436
        %v8516 = vpack.c.bf16 %v8439, %v8438
        %v8517 = vpack.c.bf16 %v8441, %v8440
        %v8518 = vpack.c.bf16 %v8443, %v8442
        %v8519 = vpack.c.bf16 %v8445, %v8444
        %v8520 = vpack.c.bf16 %v8447, %v8446
        %v8521 = vpack.c.bf16 %v8449, %v8448
        %8522 = vmatprep.subr.bf16.mxu0 0
        %8523 = vmatpush1.bf16.msra.mxu0 %v8257
        %8524 = vmatprep.subr.bf16.mxu0 0
        %8525 = vmatpush1.bf16.msra.mxu0 %v8258
        %8526 = vmatprep.subr.bf16.mxu0 0
        %8527 = vmatpush1.bf16.msra.mxu0 %v8259
        %8528 = vmatprep.subr.bf16.mxu0 0
        %8529 = vmatpush1.bf16.msra.mxu0 %v8260
        %8530 = vmatprep.subr.bf16.mxu0 0
        %8531 = vmatpush1.bf16.msra.mxu0 %v8261
        %8532 = vmatprep.subr.bf16.mxu0 0
        %8533 = vmatpush1.bf16.msra.mxu0 %v8262
        %8534 = vmatprep.subr.bf16.mxu0 0
        %8535 = vmatpush1.bf16.msra.mxu0 %v8263
        %8536 = vmatprep.subr.bf16.mxu0 0
        %8537 = vmatpush1.bf16.msra.mxu0 %v8264
        %8538 = vmatprep.subr.bf16.mxu0 0
        %8539 = vmatpush1.bf16.msra.mxu0 0
        %8540 = vmatprep.subr.bf16.mxu0 0
        %8541 = vmatpush1.bf16.msra.mxu0 0
        %8542 = vmatprep.subr.bf16.mxu0 0
        %8543 = vmatpush1.bf16.msra.mxu0 0
        %8544 = vmatprep.subr.bf16.mxu0 0
        %8545 = vmatpush1.bf16.msra.mxu0 0
        %8546 = vmatprep.subr.bf16.mxu0 0
        %8547 = vmatpush1.bf16.msra.mxu0 0
        %8548 = vmatprep.subr.bf16.mxu0 0
        %8549 = vmatpush1.bf16.msra.mxu0 0
        %8550 = vmatprep.subr.bf16.mxu0 0
        %8551 = vmatpush1.bf16.msra.mxu0 0
        %8552 = vmatprep.subr.bf16.mxu0 0
        %8553 = vmatpush1.bf16.msra.mxu0 0
        %8554 = vmatprep.mubr.bf16.mxu0 0
        %8555 = vmatmul.mubr.bf16.gmra.mrb[0].mxu0 %v8514
        %v8556 = vpop.f32.mrb[0].mxu0
        %v8557 = vadd.f32 0.0, %v8556
        %v8558 = vpop.f32.mrb[0].mxu0
        %v8559 = vpop.f32.mrb[0].mxu0
        %v8560 = vadd.f32 0.0, %v8559
        %v8561 = vpop.f32.mrb[0].mxu0
        %8562 = vmatprep.mubr.bf16.mxu0 0
        %8563 = vmatmul.mubr.bf16.gmra.mrb[0].mxu0 %v8515
        %v8564 = vpop.f32.mrb[0].mxu0
        %v8565 = vadd.f32 0.0, %v8564
        %v8566 = vpop.f32.mrb[0].mxu0
        %v8567 = vpop.f32.mrb[0].mxu0
        %v8568 = vadd.f32 0.0, %v8567
        %v8569 = vpop.f32.mrb[0].mxu0
        %8570 = vmatprep.mubr.bf16.mxu0 0
        %8571 = vmatmul.mubr.bf16.gmra.mrb[0].mxu0 %v8516
        %v8572 = vpop.f32.mrb[0].mxu0
        %v8573 = vadd.f32 0.0, %v8572
        %v8574 = vpop.f32.mrb[0].mxu0
        %v8575 = vpop.f32.mrb[0].mxu0
        %v8576 = vadd.f32 0.0, %v8575
        %v8577 = vpop.f32.mrb[0].mxu0
        %8578 = vmatprep.mubr.bf16.mxu0 0
        %8579 = vmatmul.mubr.bf16.gmra.mrb[0].mxu0 %v8517
        %v8580 = vpop.f32.mrb[0].mxu0
        %v8581 = vadd.f32 0.0, %v8580
        %v8582 = vpop.f32.mrb[0].mxu0
        %v8583 = vpop.f32.mrb[0].mxu0
        %v8584 = vadd.f32 0.0, %v8583
        %v8585 = vpop.f32.mrb[0].mxu0
        %8586 = vmatprep.mubr.bf16.mxu0 0
        %8587 = vmatmul.mubr.bf16.gmra.mrb[0].mxu0 %v8518
        %v8588 = vpop.f32.mrb[0].mxu0
        %v8589 = vadd.f32 0.0, %v8588
        %v8590 = vpop.f32.mrb[0].mxu0
        %v8591 = vpop.f32.mrb[0].mxu0
        %v8592 = vadd.f32 0.0, %v8591
        %v8593 = vpop.f32.mrb[0].mxu0
        %8594 = vmatprep.mubr.bf16.mxu0 0
        %8595 = vmatmul.mubr.bf16.gmra.mrb[0].mxu0 %v8519
        %v8596 = vpop.f32.mrb[0].mxu0
        %v8597 = vadd.f32 0.0, %v8596
        %v8598 = vpop.f32.mrb[0].mxu0
        %v8599 = vpop.f32.mrb[0].mxu0
        %v8600 = vadd.f32 0.0, %v8599
        %v8601 = vpop.f32.mrb[0].mxu0
        %8602 = vmatprep.mubr.bf16.mxu0 0
        %8603 = vmatmul.mubr.bf16.gmra.mrb[0].mxu0 %v8520
        %v8604 = vpop.f32.mrb[0].mxu0
        %v8605 = vadd.f32 0.0, %v8604
        %v8606 = vpop.f32.mrb[0].mxu0
        %v8607 = vpop.f32.mrb[0].mxu0
        %v8608 = vadd.f32 0.0, %v8607
        %v8609 = vpop.f32.mrb[0].mxu0
        %8610 = vmatprep.mubr.bf16.mxu0 0
        %8611 = vmatmul.mubr.bf16.gmra.mrb[0].mxu0 %v8521
        %v8612 = vpop.f32.mrb[0].mxu0
        %v8613 = vadd.f32 0.0, %v8612
        %v8614 = vpop.f32.mrb[0].mxu0
        %v8615 = vpop.f32.mrb[0].mxu0
        %v8616 = vadd.f32 0.0, %v8615
        %v8617 = vpop.f32.mrb[0].mxu0
        %8618 = vdwg.mxu0
        %v8619 = vmul.f32 %v8557, %v7986
        %v8620 = vmul.f32 %v8560, %v7988
        %v8621 = vmul.f32 %v8565, %v7990
        %v8622 = vmul.f32 %v8568, %v7992
        %v8623 = vmul.f32 %v8573, %v7994
        %v8624 = vmul.f32 %v8576, %v7996
        %v8625 = vmul.f32 %v8581, %v7998
        %v8626 = vmul.f32 %v8584, %v8000
        %v8627 = vmul.f32 %v8589, %v8002
        %v8628 = vmul.f32 %v8592, %v8004
        %v8629 = vmul.f32 %v8597, %v8006
        %v8630 = vmul.f32 %v8600, %v8008
        %v8631 = vmul.f32 %v8605, %v8010
        %v8632 = vmul.f32 %v8608, %v8012
        %v8633 = vmul.f32 %v8613, %v8014
        %v8634 = vmul.f32 %v8616, %v8016
        %8635 = vmax.xlane.f32.xlu0 %v8619
        %v8636 = vpop.xlane.xlu0 %8635
        %8637 = vmax.xlane.f32.xlu0 %v8620
        %v8638 = vpop.xlane.xlu0 %8637
        %8639 = vmax.xlane.f32.xlu0 %v8621
        %v8640 = vpop.xlane.xlu0 %8639
        %8641 = vmax.xlane.f32.xlu0 %v8622
        %v8642 = vpop.xlane.xlu0 %8641
        %8643 = vmax.xlane.f32.xlu0 %v8623
        %v8644 = vpop.xlane.xlu0 %8643
        %8645 = vmax.xlane.f32.xlu0 %v8624
        %v8646 = vpop.xlane.xlu0 %8645
        %8647 = vmax.xlane.f32.xlu0 %v8625
        %v8648 = vpop.xlane.xlu0 %8647
        %8649 = vmax.xlane.f32.xlu0 %v8626
        %v8650 = vpop.xlane.xlu0 %8649
        %8651 = vmax.xlane.f32.xlu0 %v8627
        %v8652 = vpop.xlane.xlu0 %8651
        %8653 = vmax.xlane.f32.xlu0 %v8628
        %v8654 = vpop.xlane.xlu0 %8653
        %8655 = vmax.xlane.f32.xlu0 %v8629
        %v8656 = vpop.xlane.xlu0 %8655
        %8657 = vmax.xlane.f32.xlu0 %v8630
        %v8658 = vpop.xlane.xlu0 %8657
        %8659 = vmax.xlane.f32.xlu0 %v8631
        %v8660 = vpop.xlane.xlu0 %8659
        %8661 = vmax.xlane.f32.xlu0 %v8632
        %v8662 = vpop.xlane.xlu0 %8661
        %8663 = vmax.xlane.f32.xlu0 %v8633
        %v8664 = vpop.xlane.xlu0 %8663
        %8665 = vmax.xlane.f32.xlu0 %v8634
        %v8666 = vpop.xlane.xlu0 %8665
        %v8667 = vrcp.pop %v8636
        %v8668 = vrcp.pop %v8638
        %v8669 = vrcp.pop %v8640
        %v8670 = vrcp.pop %v8642
        %v8671 = vrcp.pop %v8644
        %v8672 = vrcp.pop %v8646
        %v8673 = vrcp.pop %v8648
        %v8674 = vrcp.pop %v8650
        %v8675 = vrcp.pop %v8652
        %v8676 = vrcp.pop %v8654
        %v8677 = vrcp.pop %v8656
        %v8678 = vrcp.pop %v8658
        %v8679 = vrcp.pop %v8660
        %v8680 = vrcp.pop %v8662
        %v8681 = vrcp.pop %v8664
        %v8682 = vrcp.pop %v8666
        %v8683 = vmul.f32 %v8619, %v8667
        %v8684 = vmul.f32 %v8620, %v8668
        %v8685 = vmul.f32 %v8621, %v8669
        %v8686 = vmul.f32 %v8622, %v8670
        %v8687 = vmul.f32 %v8623, %v8671
        %v8688 = vmul.f32 %v8624, %v8672
        %v8689 = vmul.f32 %v8625, %v8673
        %v8690 = vmul.f32 %v8626, %v8674
        %v8691 = vmul.f32 %v8627, %v8675
        %v8692 = vmul.f32 %v8628, %v8676
        %v8693 = vmul.f32 %v8629, %v8677
        %v8694 = vmul.f32 %v8630, %v8678
        %v8695 = vmul.f32 %v8631, %v8679
        %v8696 = vmul.f32 %v8632, %v8680
        %v8697 = vmul.f32 %v8633, %v8681
        %v8698 = vmul.f32 %v8634, %v8682
        %v8699 = vadd.f32 %v8498, %v7602
        %v8700 = vadd.f32 %v8499, %v7604
        %v8701 = vadd.f32 %v8500, %v7606
        %v8702 = vadd.f32 %v8501, %v7608
        %v8703 = vadd.f32 %v8502, %v7610
        %v8704 = vadd.f32 %v8503, %v7612
        %v8705 = vadd.f32 %v8504, %v7614
        %v8706 = vadd.f32 %v8505, %v7616
        %v8707 = vadd.f32 %v8506, %v7618
        %v8708 = vadd.f32 %v8507, %v7620
        %v8709 = vadd.f32 %v8508, %v7622
        %v8710 = vadd.f32 %v8509, %v7624
        %v8711 = vadd.f32 %v8510, %v7626
        %v8712 = vadd.f32 %v8511, %v7628
        %v8713 = vadd.f32 %v8512, %v7630
        %v8714 = vadd.f32 %v8513, %v7632
        %v8715 = vlog2.pop %v8667
        %v8716 = vmul.f32 %v8715, 0.6931472
        %v8717 = vlog2.pop %v8668
        %v8718 = vmul.f32 %v8717, 0.6931472
        %v8719 = vlog2.pop %v8669
        %v8720 = vmul.f32 %v8719, 0.6931472
        %v8721 = vlog2.pop %v8670
        %v8722 = vmul.f32 %v8721, 0.6931472
        %v8723 = vlog2.pop %v8671
        %v8724 = vmul.f32 %v8723, 0.6931472
        %v8725 = vlog2.pop %v8672
        %v8726 = vmul.f32 %v8725, 0.6931472
        %v8727 = vlog2.pop %v8673
        %v8728 = vmul.f32 %v8727, 0.6931472
        %v8729 = vlog2.pop %v8674
        %v8730 = vmul.f32 %v8729, 0.6931472
        %v8731 = vlog2.pop %v8675
        %v8732 = vmul.f32 %v8731, 0.6931472
        %v8733 = vlog2.pop %v8676
        %v8734 = vmul.f32 %v8733, 0.6931472
        %v8735 = vlog2.pop %v8677
        %v8736 = vmul.f32 %v8735, 0.6931472
        %v8737 = vlog2.pop %v8678
        %v8738 = vmul.f32 %v8737, 0.6931472
        %v8739 = vlog2.pop %v8679
        %v8740 = vmul.f32 %v8739, 0.6931472
        %v8741 = vlog2.pop %v8680
        %v8742 = vmul.f32 %v8741, 0.6931472
        %v8743 = vlog2.pop %v8681
        %v8744 = vmul.f32 %v8743, 0.6931472
        %v8745 = vlog2.pop %v8682
        %v8746 = vmul.f32 %v8745, 0.6931472
        %v8747 = vsub.f32 %v8699, %v8716
        %v8748 = vsub.f32 %v8700, %v8718
        %v8749 = vsub.f32 %v8701, %v8720
        %v8750 = vsub.f32 %v8702, %v8722
        %v8751 = vsub.f32 %v8703, %v8724
        %v8752 = vsub.f32 %v8704, %v8726
        %v8753 = vsub.f32 %v8705, %v8728
        %v8754 = vsub.f32 %v8706, %v8730
        %v8755 = vsub.f32 %v8707, %v8732
        %v8756 = vsub.f32 %v8708, %v8734
        %v8757 = vsub.f32 %v8709, %v8736
        %v8758 = vsub.f32 %v8710, %v8738
        %v8759 = vsub.f32 %v8711, %v8740
        %v8760 = vsub.f32 %v8712, %v8742
        %v8761 = vsub.f32 %v8713, %v8744
        %v8762 = vsub.f32 %v8714, %v8746
        %v8763 = vpack.c.bf16 %v8684, %v8683
        %v8764 = vpack.c.bf16 %v8686, %v8685
        %v8765 = vpack.c.bf16 %v8688, %v8687
        %v8766 = vpack.c.bf16 %v8690, %v8689
        %v8767 = vpack.c.bf16 %v8692, %v8691
        %v8768 = vpack.c.bf16 %v8694, %v8693
        %v8769 = vpack.c.bf16 %v8696, %v8695
        %v8770 = vpack.c.bf16 %v8698, %v8697
        %8771 = vmatprep.subr.bf16.mxu0 0
        %8772 = vmatpush1.bf16.msra.mxu0 %v8257
        %8773 = vmatprep.subr.bf16.mxu0 0
        %8774 = vmatpush1.bf16.msra.mxu0 %v8258
        %8775 = vmatprep.subr.bf16.mxu0 0
        %8776 = vmatpush1.bf16.msra.mxu0 %v8259
        %8777 = vmatprep.subr.bf16.mxu0 0
        %8778 = vmatpush1.bf16.msra.mxu0 %v8260
        %8779 = vmatprep.subr.bf16.mxu0 0
        %8780 = vmatpush1.bf16.msra.mxu0 %v8261
        %8781 = vmatprep.subr.bf16.mxu0 0
        %8782 = vmatpush1.bf16.msra.mxu0 %v8262
        %8783 = vmatprep.subr.bf16.mxu0 0
        %8784 = vmatpush1.bf16.msra.mxu0 %v8263
        %8785 = vmatprep.subr.bf16.mxu0 0
        %8786 = vmatpush1.bf16.msra.mxu0 %v8264
        %8787 = vmatprep.subr.bf16.mxu0 0
        %8788 = vmatpush1.bf16.msra.mxu0 0
        %8789 = vmatprep.subr.bf16.mxu0 0
        %8790 = vmatpush1.bf16.msra.mxu0 0
        %8791 = vmatprep.subr.bf16.mxu0 0
        %8792 = vmatpush1.bf16.msra.mxu0 0
        %8793 = vmatprep.subr.bf16.mxu0 0
        %8794 = vmatpush1.bf16.msra.mxu0 0
        %8795 = vmatprep.subr.bf16.mxu0 0
        %8796 = vmatpush1.bf16.msra.mxu0 0
        %8797 = vmatprep.subr.bf16.mxu0 0
        %8798 = vmatpush1.bf16.msra.mxu0 0
        %8799 = vmatprep.subr.bf16.mxu0 0
        %8800 = vmatpush1.bf16.msra.mxu0 0
        %8801 = vmatprep.subr.bf16.mxu0 0
        %8802 = vmatpush1.bf16.msra.mxu0 0
        %8803 = vmatprep.mubr.bf16.mxu0 0
        %8804 = vmatmul.mubr.bf16.gmra.mrb[0].mxu0 %v8763
        %v8805 = vpop.f32.mrb[0].mxu0
        %v8806 = vadd.f32 0.0, %v8805
        %v8807 = vpop.f32.mrb[0].mxu0
        %v8808 = vpop.f32.mrb[0].mxu0
        %v8809 = vadd.f32 0.0, %v8808
        %v8810 = vpop.f32.mrb[0].mxu0
        %8811 = vmatprep.mubr.bf16.mxu0 0
        %8812 = vmatmul.mubr.bf16.gmra.mrb[0].mxu0 %v8764
        %v8813 = vpop.f32.mrb[0].mxu0
        %v8814 = vadd.f32 0.0, %v8813
        %v8815 = vpop.f32.mrb[0].mxu0
        %v8816 = vpop.f32.mrb[0].mxu0
        %v8817 = vadd.f32 0.0, %v8816
        %v8818 = vpop.f32.mrb[0].mxu0
        %8819 = vmatprep.mubr.bf16.mxu0 0
        %8820 = vmatmul.mubr.bf16.gmra.mrb[0].mxu0 %v8765
        %v8821 = vpop.f32.mrb[0].mxu0
        %v8822 = vadd.f32 0.0, %v8821
        %v8823 = vpop.f32.mrb[0].mxu0
        %v8824 = vpop.f32.mrb[0].mxu0
        %v8825 = vadd.f32 0.0, %v8824
        %v8826 = vpop.f32.mrb[0].mxu0
        %8827 = vmatprep.mubr.bf16.mxu0 0
        %8828 = vmatmul.mubr.bf16.gmra.mrb[0].mxu0 %v8766
        %v8829 = vpop.f32.mrb[0].mxu0
        %v8830 = vadd.f32 0.0, %v8829
        %v8831 = vpop.f32.mrb[0].mxu0
        %v8832 = vpop.f32.mrb[0].mxu0
        %v8833 = vadd.f32 0.0, %v8832
        %v8834 = vpop.f32.mrb[0].mxu0
        %8835 = vmatprep.mubr.bf16.mxu0 0
        %8836 = vmatmul.mubr.bf16.gmra.mrb[0].mxu0 %v8767
        %v8837 = vpop.f32.mrb[0].mxu0
        %v8838 = vadd.f32 0.0, %v8837
        %v8839 = vpop.f32.mrb[0].mxu0
        %v8840 = vpop.f32.mrb[0].mxu0
        %v8841 = vadd.f32 0.0, %v8840
        %v8842 = vpop.f32.mrb[0].mxu0
        %8843 = vmatprep.mubr.bf16.mxu0 0
        %8844 = vmatmul.mubr.bf16.gmra.mrb[0].mxu0 %v8768
        %v8845 = vpop.f32.mrb[0].mxu0
        %v8846 = vadd.f32 0.0, %v8845
        %v8847 = vpop.f32.mrb[0].mxu0
        %v8848 = vpop.f32.mrb[0].mxu0
        %v8849 = vadd.f32 0.0, %v8848
        %v8850 = vpop.f32.mrb[0].mxu0
        %8851 = vmatprep.mubr.bf16.mxu0 0
        %8852 = vmatmul.mubr.bf16.gmra.mrb[0].mxu0 %v8769
        %v8853 = vpop.f32.mrb[0].mxu0
        %v8854 = vadd.f32 0.0, %v8853
        %v8855 = vpop.f32.mrb[0].mxu0
        %v8856 = vpop.f32.mrb[0].mxu0
        %v8857 = vadd.f32 0.0, %v8856
        %v8858 = vpop.f32.mrb[0].mxu0
        %8859 = vmatprep.mubr.bf16.mxu0 0
        %8860 = vmatmul.mubr.bf16.gmra.mrb[0].mxu0 %v8770
        %v8861 = vpop.f32.mrb[0].mxu0
        %v8862 = vadd.f32 0.0, %v8861
        %v8863 = vpop.f32.mrb[0].mxu0
        %v8864 = vpop.f32.mrb[0].mxu0
        %v8865 = vadd.f32 0.0, %v8864
        %v8866 = vpop.f32.mrb[0].mxu0
        %8867 = vdwg.mxu0
        %v8868 = vmul.f32 %v8806, %v8018
        %v8869 = vmul.f32 %v8809, %v8020
        %v8870 = vmul.f32 %v8814, %v8022
        %v8871 = vmul.f32 %v8817, %v8024
        %v8872 = vmul.f32 %v8822, %v8026
        %v8873 = vmul.f32 %v8825, %v8028
        %v8874 = vmul.f32 %v8830, %v8030
        %v8875 = vmul.f32 %v8833, %v8032
        %v8876 = vmul.f32 %v8838, %v8034
        %v8877 = vmul.f32 %v8841, %v8036
        %v8878 = vmul.f32 %v8846, %v8038
        %v8879 = vmul.f32 %v8849, %v8040
        %v8880 = vmul.f32 %v8854, %v8042
        %v8881 = vmul.f32 %v8857, %v8044
        %v8882 = vmul.f32 %v8862, %v8046
        %v8883 = vmul.f32 %v8865, %v8048
        %8884 = vmax.xlane.f32.xlu0 %v8868
        %v8885 = vpop.xlane.xlu0 %8884
        %8886 = vmax.xlane.f32.xlu0 %v8869
        %v8887 = vpop.xlane.xlu0 %8886
        %8888 = vmax.xlane.f32.xlu0 %v8870
        %v8889 = vpop.xlane.xlu0 %8888
        %8890 = vmax.xlane.f32.xlu0 %v8871
        %v8891 = vpop.xlane.xlu0 %8890
        %8892 = vmax.xlane.f32.xlu0 %v8872
        %v8893 = vpop.xlane.xlu0 %8892
        %8894 = vmax.xlane.f32.xlu0 %v8873
        %v8895 = vpop.xlane.xlu0 %8894
        %8896 = vmax.xlane.f32.xlu0 %v8874
        %v8897 = vpop.xlane.xlu0 %8896
        %8898 = vmax.xlane.f32.xlu0 %v8875
        %v8899 = vpop.xlane.xlu0 %8898
        %8900 = vmax.xlane.f32.xlu0 %v8876
        %v8901 = vpop.xlane.xlu0 %8900
        %8902 = vmax.xlane.f32.xlu0 %v8877
        %v8903 = vpop.xlane.xlu0 %8902
        %8904 = vmax.xlane.f32.xlu0 %v8878
        %v8905 = vpop.xlane.xlu0 %8904
        %8906 = vmax.xlane.f32.xlu0 %v8879
        %v8907 = vpop.xlane.xlu0 %8906
        %8908 = vmax.xlane.f32.xlu0 %v8880
        %v8909 = vpop.xlane.xlu0 %8908
        %8910 = vmax.xlane.f32.xlu0 %v8881
        %v8911 = vpop.xlane.xlu0 %8910
        %8912 = vmax.xlane.f32.xlu0 %v8882
        %v8913 = vpop.xlane.xlu0 %8912
        %8914 = vmax.xlane.f32.xlu0 %v8883
        %v8915 = vpop.xlane.xlu0 %8914
        %v8916 = vrcp.pop %v8885
        %v8917 = vrcp.pop %v8887
        %v8918 = vrcp.pop %v8889
        %v8919 = vrcp.pop %v8891
        %v8920 = vrcp.pop %v8893
        %v8921 = vrcp.pop %v8895
        %v8922 = vrcp.pop %v8897
        %v8923 = vrcp.pop %v8899
        %v8924 = vrcp.pop %v8901
        %v8925 = vrcp.pop %v8903
        %v8926 = vrcp.pop %v8905
        %v8927 = vrcp.pop %v8907
        %v8928 = vrcp.pop %v8909
        %v8929 = vrcp.pop %v8911
        %v8930 = vrcp.pop %v8913
        %v8931 = vrcp.pop %v8915
        %v8932 = vmul.f32 %v8868, %v8916
        %v8933 = vmul.f32 %v8869, %v8917
        %v8934 = vmul.f32 %v8870, %v8918
        %v8935 = vmul.f32 %v8871, %v8919
        %v8936 = vmul.f32 %v8872, %v8920
        %v8937 = vmul.f32 %v8873, %v8921
        %v8938 = vmul.f32 %v8874, %v8922
        %v8939 = vmul.f32 %v8875, %v8923
        %v8940 = vmul.f32 %v8876, %v8924
        %v8941 = vmul.f32 %v8877, %v8925
        %v8942 = vmul.f32 %v8878, %v8926
        %v8943 = vmul.f32 %v8879, %v8927
        %v8944 = vmul.f32 %v8880, %v8928
        %v8945 = vmul.f32 %v8881, %v8929
        %v8946 = vmul.f32 %v8882, %v8930
        %v8947 = vmul.f32 %v8883, %v8931
        %v8948 = vadd.f32 %v8747, %v7634
        %v8949 = vadd.f32 %v8748, %v7636
        %v8950 = vadd.f32 %v8749, %v7638
        %v8951 = vadd.f32 %v8750, %v7640
        %v8952 = vadd.f32 %v8751, %v7642
        %v8953 = vadd.f32 %v8752, %v7644
        %v8954 = vadd.f32 %v8753, %v7646
        %v8955 = vadd.f32 %v8754, %v7648
        %v8956 = vadd.f32 %v8755, %v7650
        %v8957 = vadd.f32 %v8756, %v7652
        %v8958 = vadd.f32 %v8757, %v7654
        %v8959 = vadd.f32 %v8758, %v7656
        %v8960 = vadd.f32 %v8759, %v7658
        %v8961 = vadd.f32 %v8760, %v7660
        %v8962 = vadd.f32 %v8761, %v7662
        %v8963 = vadd.f32 %v8762, %v7664
        %v8964 = vlog2.pop %v8916
        %v8965 = vmul.f32 %v8964, 0.6931472
        %v8966 = vlog2.pop %v8917
        %v8967 = vmul.f32 %v8966, 0.6931472
        %v8968 = vlog2.pop %v8918
        %v8969 = vmul.f32 %v8968, 0.6931472
        %v8970 = vlog2.pop %v8919
        %v8971 = vmul.f32 %v8970, 0.6931472
        %v8972 = vlog2.pop %v8920
        %v8973 = vmul.f32 %v8972, 0.6931472
        %v8974 = vlog2.pop %v8921
        %v8975 = vmul.f32 %v8974, 0.6931472
        %v8976 = vlog2.pop %v8922
        %v8977 = vmul.f32 %v8976, 0.6931472
        %v8978 = vlog2.pop %v8923
        %v8979 = vmul.f32 %v8978, 0.6931472
        %v8980 = vlog2.pop %v8924
        %v8981 = vmul.f32 %v8980, 0.6931472
        %v8982 = vlog2.pop %v8925
        %v8983 = vmul.f32 %v8982, 0.6931472
        %v8984 = vlog2.pop %v8926
        %v8985 = vmul.f32 %v8984, 0.6931472
        %v8986 = vlog2.pop %v8927
        %v8987 = vmul.f32 %v8986, 0.6931472
        %v8988 = vlog2.pop %v8928
        %v8989 = vmul.f32 %v8988, 0.6931472
        %v8990 = vlog2.pop %v8929
        %v8991 = vmul.f32 %v8990, 0.6931472
        %v8992 = vlog2.pop %v8930
        %v8993 = vmul.f32 %v8992, 0.6931472
        %v8994 = vlog2.pop %v8931
        %v8995 = vmul.f32 %v8994, 0.6931472
        %v8996 = vsub.f32 %v8948, %v8965
        %v8997 = vsub.f32 %v8949, %v8967
        %v8998 = vsub.f32 %v8950, %v8969
        %v8999 = vsub.f32 %v8951, %v8971
        %v9000 = vsub.f32 %v8952, %v8973
        %v9001 = vsub.f32 %v8953, %v8975
        %v9002 = vsub.f32 %v8954, %v8977
        %v9003 = vsub.f32 %v8955, %v8979
        %v9004 = vsub.f32 %v8956, %v8981
        %v9005 = vsub.f32 %v8957, %v8983
        %v9006 = vsub.f32 %v8958, %v8985
        %v9007 = vsub.f32 %v8959, %v8987
        %v9008 = vsub.f32 %v8960, %v8989
        %v9009 = vsub.f32 %v8961, %v8991
        %v9010 = vsub.f32 %v8962, %v8993
        %v9011 = vsub.f32 %v8963, %v8995
        %v9012 = vpack.c.bf16 %v8933, %v8932
        %v9013 = vpack.c.bf16 %v8935, %v8934
        %v9014 = vpack.c.bf16 %v8937, %v8936
        %v9015 = vpack.c.bf16 %v8939, %v8938
        %v9016 = vpack.c.bf16 %v8941, %v8940
        %v9017 = vpack.c.bf16 %v8943, %v8942
        %v9018 = vpack.c.bf16 %v8945, %v8944
        %v9019 = vpack.c.bf16 %v8947, %v8946
        %9020 = vmatprep.subr.bf16.mxu0 0
        %9021 = vmatpush1.bf16.msra.mxu0 %v8257
        %9022 = vmatprep.subr.bf16.mxu0 0
        %9023 = vmatpush1.bf16.msra.mxu0 %v8258
        %9024 = vmatprep.subr.bf16.mxu0 0
        %9025 = vmatpush1.bf16.msra.mxu0 %v8259
        %9026 = vmatprep.subr.bf16.mxu0 0
        %9027 = vmatpush1.bf16.msra.mxu0 %v8260
        %9028 = vmatprep.subr.bf16.mxu0 0
        %9029 = vmatpush1.bf16.msra.mxu0 %v8261
        %9030 = vmatprep.subr.bf16.mxu0 0
        %9031 = vmatpush1.bf16.msra.mxu0 %v8262
        %9032 = vmatprep.subr.bf16.mxu0 0
        %9033 = vmatpush1.bf16.msra.mxu0 %v8263
        %9034 = vmatprep.subr.bf16.mxu0 0
        %9035 = vmatpush1.bf16.msra.mxu0 %v8264
        %9036 = vmatprep.subr.bf16.mxu0 0
        %9037 = vmatpush1.bf16.msra.mxu0 0
        %9038 = vmatprep.subr.bf16.mxu0 0
        %9039 = vmatpush1.bf16.msra.mxu0 0
        %9040 = vmatprep.subr.bf16.mxu0 0
        %9041 = vmatpush1.bf16.msra.mxu0 0
        %9042 = vmatprep.subr.bf16.mxu0 0
        %9043 = vmatpush1.bf16.msra.mxu0 0
        %9044 = vmatprep.subr.bf16.mxu0 0
        %9045 = vmatpush1.bf16.msra.mxu0 0
        %9046 = vmatprep.subr.bf16.mxu0 0
        %9047 = vmatpush1.bf16.msra.mxu0 0
        %9048 = vmatprep.subr.bf16.mxu0 0
        %9049 = vmatpush1.bf16.msra.mxu0 0
        %9050 = vmatprep.subr.bf16.mxu0 0
        %9051 = vmatpush1.bf16.msra.mxu0 0
        %9052 = vmatprep.mubr.bf16.mxu0 0
        %9053 = vmatmul.mubr.bf16.gmra.mrb[0].mxu0 %v9012
        %v9054 = vpop.f32.mrb[0].mxu0
        %v9055 = vadd.f32 0.0, %v9054
        %v9056 = vpop.f32.mrb[0].mxu0
        %v9057 = vpop.f32.mrb[0].mxu0
        %v9058 = vadd.f32 0.0, %v9057
        %v9059 = vpop.f32.mrb[0].mxu0
        %9060 = vmatprep.mubr.bf16.mxu0 0
        %9061 = vmatmul.mubr.bf16.gmra.mrb[0].mxu0 %v9013
        %v9062 = vpop.f32.mrb[0].mxu0
        %v9063 = vadd.f32 0.0, %v9062
        %v9064 = vpop.f32.mrb[0].mxu0
        %v9065 = vpop.f32.mrb[0].mxu0
        %v9066 = vadd.f32 0.0, %v9065
        %v9067 = vpop.f32.mrb[0].mxu0
        %9068 = vmatprep.mubr.bf16.mxu0 0
        %9069 = vmatmul.mubr.bf16.gmra.mrb[0].mxu0 %v9014
        %v9070 = vpop.f32.mrb[0].mxu0
        %v9071 = vadd.f32 0.0, %v9070
        %v9072 = vpop.f32.mrb[0].mxu0
        %v9073 = vpop.f32.mrb[0].mxu0
        %v9074 = vadd.f32 0.0, %v9073
        %v9075 = vpop.f32.mrb[0].mxu0
        %9076 = vmatprep.mubr.bf16.mxu0 0
        %9077 = vmatmul.mubr.bf16.gmra.mrb[0].mxu0 %v9015
        %v9078 = vpop.f32.mrb[0].mxu0
        %v9079 = vadd.f32 0.0, %v9078
        %v9080 = vpop.f32.mrb[0].mxu0
        %v9081 = vpop.f32.mrb[0].mxu0
        %v9082 = vadd.f32 0.0, %v9081
        %v9083 = vpop.f32.mrb[0].mxu0
        %9084 = vmatprep.mubr.bf16.mxu0 0
        %9085 = vmatmul.mubr.bf16.gmra.mrb[0].mxu0 %v9016
        %v9086 = vpop.f32.mrb[0].mxu0
        %v9087 = vadd.f32 0.0, %v9086
        %v9088 = vpop.f32.mrb[0].mxu0
        %v9089 = vpop.f32.mrb[0].mxu0
        %v9090 = vadd.f32 0.0, %v9089
        %v9091 = vpop.f32.mrb[0].mxu0
        %9092 = vmatprep.mubr.bf16.mxu0 0
        %9093 = vmatmul.mubr.bf16.gmra.mrb[0].mxu0 %v9017
        %v9094 = vpop.f32.mrb[0].mxu0
        %v9095 = vadd.f32 0.0, %v9094
        %v9096 = vpop.f32.mrb[0].mxu0
        %v9097 = vpop.f32.mrb[0].mxu0
        %v9098 = vadd.f32 0.0, %v9097
        %v9099 = vpop.f32.mrb[0].mxu0
        %9100 = vmatprep.mubr.bf16.mxu0 0
        %9101 = vmatmul.mubr.bf16.gmra.mrb[0].mxu0 %v9018
        %v9102 = vpop.f32.mrb[0].mxu0
        %v9103 = vadd.f32 0.0, %v9102
        %v9104 = vpop.f32.mrb[0].mxu0
        %v9105 = vpop.f32.mrb[0].mxu0
        %v9106 = vadd.f32 0.0, %v9105
        %v9107 = vpop.f32.mrb[0].mxu0
        %9108 = vmatprep.mubr.bf16.mxu0 0
        %9109 = vmatmul.mubr.bf16.gmra.mrb[0].mxu0 %v9019
        %v9110 = vpop.f32.mrb[0].mxu0
        %v9111 = vadd.f32 0.0, %v9110
        %v9112 = vpop.f32.mrb[0].mxu0
        %v9113 = vpop.f32.mrb[0].mxu0
        %v9114 = vadd.f32 0.0, %v9113
        %v9115 = vpop.f32.mrb[0].mxu0
        %9116 = vdwg.mxu0
        %v9117 = vmul.f32 %v9055, %v8050
        %v9118 = vmul.f32 %v9058, %v8052
        %v9119 = vmul.f32 %v9063, %v8054
        %v9120 = vmul.f32 %v9066, %v8056
        %v9121 = vmul.f32 %v9071, %v8058
        %v9122 = vmul.f32 %v9074, %v8060
        %v9123 = vmul.f32 %v9079, %v8062
        %v9124 = vmul.f32 %v9082, %v8064
        %v9125 = vmul.f32 %v9087, %v8066
        %v9126 = vmul.f32 %v9090, %v8068
        %v9127 = vmul.f32 %v9095, %v8070
        %v9128 = vmul.f32 %v9098, %v8072
        %v9129 = vmul.f32 %v9103, %v8074
        %v9130 = vmul.f32 %v9106, %v8076
        %v9131 = vmul.f32 %v9111, %v8078
        %v9132 = vmul.f32 %v9114, %v8080
        %9133 = vmax.xlane.f32.xlu0 %v9117
        %v9134 = vpop.xlane.xlu0 %9133
        %9135 = vmax.xlane.f32.xlu0 %v9118
        %v9136 = vpop.xlane.xlu0 %9135
        %9137 = vmax.xlane.f32.xlu0 %v9119
        %v9138 = vpop.xlane.xlu0 %9137
        %9139 = vmax.xlane.f32.xlu0 %v9120
        %v9140 = vpop.xlane.xlu0 %9139
        %9141 = vmax.xlane.f32.xlu0 %v9121
        %v9142 = vpop.xlane.xlu0 %9141
        %9143 = vmax.xlane.f32.xlu0 %v9122
        %v9144 = vpop.xlane.xlu0 %9143
        %9145 = vmax.xlane.f32.xlu0 %v9123
        %v9146 = vpop.xlane.xlu0 %9145
        %9147 = vmax.xlane.f32.xlu0 %v9124
        %v9148 = vpop.xlane.xlu0 %9147
        %9149 = vmax.xlane.f32.xlu0 %v9125
        %v9150 = vpop.xlane.xlu0 %9149
        %9151 = vmax.xlane.f32.xlu0 %v9126
        %v9152 = vpop.xlane.xlu0 %9151
        %9153 = vmax.xlane.f32.xlu0 %v9127
        %v9154 = vpop.xlane.xlu0 %9153
        %9155 = vmax.xlane.f32.xlu0 %v9128
        %v9156 = vpop.xlane.xlu0 %9155
        %9157 = vmax.xlane.f32.xlu0 %v9129
        %v9158 = vpop.xlane.xlu0 %9157
        %9159 = vmax.xlane.f32.xlu0 %v9130
        %v9160 = vpop.xlane.xlu0 %9159
        %9161 = vmax.xlane.f32.xlu0 %v9131
        %v9162 = vpop.xlane.xlu0 %9161
        %9163 = vmax.xlane.f32.xlu0 %v9132
        %v9164 = vpop.xlane.xlu0 %9163
        %v9165 = vrcp.pop %v9134
        %v9166 = vrcp.pop %v9136
        %v9167 = vrcp.pop %v9138
        %v9168 = vrcp.pop %v9140
        %v9169 = vrcp.pop %v9142
        %v9170 = vrcp.pop %v9144
        %v9171 = vrcp.pop %v9146
        %v9172 = vrcp.pop %v9148
        %v9173 = vrcp.pop %v9150
        %v9174 = vrcp.pop %v9152
        %v9175 = vrcp.pop %v9154
        %v9176 = vrcp.pop %v9156
        %v9177 = vrcp.pop %v9158
        %v9178 = vrcp.pop %v9160
        %v9179 = vrcp.pop %v9162
        %v9180 = vrcp.pop %v9164
        %v9181 = vmul.f32 %v9117, %v9165
        %v9182 = vmul.f32 %v9118, %v9166
        %v9183 = vmul.f32 %v9119, %v9167
        %v9184 = vmul.f32 %v9120, %v9168
        %v9185 = vmul.f32 %v9121, %v9169
        %v9186 = vmul.f32 %v9122, %v9170
        %v9187 = vmul.f32 %v9123, %v9171
        %v9188 = vmul.f32 %v9124, %v9172
        %v9189 = vmul.f32 %v9125, %v9173
        %v9190 = vmul.f32 %v9126, %v9174
        %v9191 = vmul.f32 %v9127, %v9175
        %v9192 = vmul.f32 %v9128, %v9176
        %v9193 = vmul.f32 %v9129, %v9177
        %v9194 = vmul.f32 %v9130, %v9178
        %v9195 = vmul.f32 %v9131, %v9179
        %v9196 = vmul.f32 %v9132, %v9180
        %v9197 = vadd.f32 %v8996, %v7666
        %v9198 = vadd.f32 %v8997, %v7668
        %v9199 = vadd.f32 %v8998, %v7670
        %v9200 = vadd.f32 %v8999, %v7672
        %v9201 = vadd.f32 %v9000, %v7674
        %v9202 = vadd.f32 %v9001, %v7676
        %v9203 = vadd.f32 %v9002, %v7678
        %v9204 = vadd.f32 %v9003, %v7680
        %v9205 = vadd.f32 %v9004, %v7682
        %v9206 = vadd.f32 %v9005, %v7684
        %v9207 = vadd.f32 %v9006, %v7686
        %v9208 = vadd.f32 %v9007, %v7688
        %v9209 = vadd.f32 %v9008, %v7690
        %v9210 = vadd.f32 %v9009, %v7692
        %v9211 = vadd.f32 %v9010, %v7694
        %v9212 = vadd.f32 %v9011, %v7696
        %v9213 = vlog2.pop %v9165
        %v9214 = vmul.f32 %v9213, 0.6931472
        %v9215 = vlog2.pop %v9166
        %v9216 = vmul.f32 %v9215, 0.6931472
        %v9217 = vlog2.pop %v9167
        %v9218 = vmul.f32 %v9217, 0.6931472
        %v9219 = vlog2.pop %v9168
        %v9220 = vmul.f32 %v9219, 0.6931472
        %v9221 = vlog2.pop %v9169
        %v9222 = vmul.f32 %v9221, 0.6931472
        %v9223 = vlog2.pop %v9170
        %v9224 = vmul.f32 %v9223, 0.6931472
        %v9225 = vlog2.pop %v9171
        %v9226 = vmul.f32 %v9225, 0.6931472
        %v9227 = vlog2.pop %v9172
        %v9228 = vmul.f32 %v9227, 0.6931472
        %v9229 = vlog2.pop %v9173
        %v9230 = vmul.f32 %v9229, 0.6931472
        %v9231 = vlog2.pop %v9174
        %v9232 = vmul.f32 %v9231, 0.6931472
        %v9233 = vlog2.pop %v9175
        %v9234 = vmul.f32 %v9233, 0.6931472
        %v9235 = vlog2.pop %v9176
        %v9236 = vmul.f32 %v9235, 0.6931472
        %v9237 = vlog2.pop %v9177
        %v9238 = vmul.f32 %v9237, 0.6931472
        %v9239 = vlog2.pop %v9178
        %v9240 = vmul.f32 %v9239, 0.6931472
        %v9241 = vlog2.pop %v9179
        %v9242 = vmul.f32 %v9241, 0.6931472
        %v9243 = vlog2.pop %v9180
        %v9244 = vmul.f32 %v9243, 0.6931472
        %v9245 = vsub.f32 %v9197, %v9214
        %v9246 = vsub.f32 %v9198, %v9216
        %v9247 = vsub.f32 %v9199, %v9218
        %v9248 = vsub.f32 %v9200, %v9220
        %v9249 = vsub.f32 %v9201, %v9222
        %v9250 = vsub.f32 %v9202, %v9224
        %v9251 = vsub.f32 %v9203, %v9226
        %v9252 = vsub.f32 %v9204, %v9228
        %v9253 = vsub.f32 %v9205, %v9230
        %v9254 = vsub.f32 %v9206, %v9232
        %v9255 = vsub.f32 %v9207, %v9234
        %v9256 = vsub.f32 %v9208, %v9236
        %v9257 = vsub.f32 %v9209, %v9238
        %v9258 = vsub.f32 %v9210, %v9240
        %v9259 = vsub.f32 %v9211, %v9242
        %v9260 = vsub.f32 %v9212, %v9244
        %v9261 = vpack.c.bf16 %v9182, %v9181
        %v9262 = vpack.c.bf16 %v9184, %v9183
        %v9263 = vpack.c.bf16 %v9186, %v9185
        %v9264 = vpack.c.bf16 %v9188, %v9187
        %v9265 = vpack.c.bf16 %v9190, %v9189
        %v9266 = vpack.c.bf16 %v9192, %v9191
        %v9267 = vpack.c.bf16 %v9194, %v9193
        %v9268 = vpack.c.bf16 %v9196, %v9195
        %9269 = vmatprep.subr.bf16.mxu0 0
        %9270 = vmatpush1.bf16.msra.mxu0 %v8257
        %9271 = vmatprep.subr.bf16.mxu0 0
        %9272 = vmatpush1.bf16.msra.mxu0 %v8258
        %9273 = vmatprep.subr.bf16.mxu0 0
        %9274 = vmatpush1.bf16.msra.mxu0 %v8259
        %9275 = vmatprep.subr.bf16.mxu0 0
        %9276 = vmatpush1.bf16.msra.mxu0 %v8260
        %9277 = vmatprep.subr.bf16.mxu0 0
        %9278 = vmatpush1.bf16.msra.mxu0 %v8261
        %9279 = vmatprep.subr.bf16.mxu0 0
        %9280 = vmatpush1.bf16.msra.mxu0 %v8262
        %9281 = vmatprep.subr.bf16.mxu0 0
        %9282 = vmatpush1.bf16.msra.mxu0 %v8263
        %9283 = vmatprep.subr.bf16.mxu0 0
        %9284 = vmatpush1.bf16.msra.mxu0 %v8264
        %9285 = vmatprep.subr.bf16.mxu0 0
        %9286 = vmatpush1.bf16.msra.mxu0 0
        %9287 = vmatprep.subr.bf16.mxu0 0
        %9288 = vmatpush1.bf16.msra.mxu0 0
        %9289 = vmatprep.subr.bf16.mxu0 0
        %9290 = vmatpush1.bf16.msra.mxu0 0
        %9291 = vmatprep.subr.bf16.mxu0 0
        %9292 = vmatpush1.bf16.msra.mxu0 0
        %9293 = vmatprep.subr.bf16.mxu0 0
        %9294 = vmatpush1.bf16.msra.mxu0 0
        %9295 = vmatprep.subr.bf16.mxu0 0
        %9296 = vmatpush1.bf16.msra.mxu0 0
        %9297 = vmatprep.subr.bf16.mxu0 0
        %9298 = vmatpush1.bf16.msra.mxu0 0
        %9299 = vmatprep.subr.bf16.mxu0 0
        %9300 = vmatpush1.bf16.msra.mxu0 0
        %9301 = vmatprep.mubr.bf16.mxu0 0
        %9302 = vmatmul.mubr.bf16.gmra.mrb[0].mxu0 %v9261
        %v9303 = vpop.f32.mrb[0].mxu0
        %v9304 = vadd.f32 0.0, %v9303
        %v9305 = vpop.f32.mrb[0].mxu0
        %v9306 = vpop.f32.mrb[0].mxu0
        %v9307 = vadd.f32 0.0, %v9306
        %v9308 = vpop.f32.mrb[0].mxu0
        %9309 = vmatprep.mubr.bf16.mxu0 0
        %9310 = vmatmul.mubr.bf16.gmra.mrb[0].mxu0 %v9262
        %v9311 = vpop.f32.mrb[0].mxu0
        %v9312 = vadd.f32 0.0, %v9311
        %v9313 = vpop.f32.mrb[0].mxu0
        %v9314 = vpop.f32.mrb[0].mxu0
        %v9315 = vadd.f32 0.0, %v9314
        %v9316 = vpop.f32.mrb[0].mxu0
        %9317 = vmatprep.mubr.bf16.mxu0 0
        %9318 = vmatmul.mubr.bf16.gmra.mrb[0].mxu0 %v9263
        %v9319 = vpop.f32.mrb[0].mxu0
        %v9320 = vadd.f32 0.0, %v9319
        %v9321 = vpop.f32.mrb[0].mxu0
        %v9322 = vpop.f32.mrb[0].mxu0
        %v9323 = vadd.f32 0.0, %v9322
        %v9324 = vpop.f32.mrb[0].mxu0
        %9325 = vmatprep.mubr.bf16.mxu0 0
        %9326 = vmatmul.mubr.bf16.gmra.mrb[0].mxu0 %v9264
        %v9327 = vpop.f32.mrb[0].mxu0
        %v9328 = vadd.f32 0.0, %v9327
        %v9329 = vpop.f32.mrb[0].mxu0
        %v9330 = vpop.f32.mrb[0].mxu0
        %v9331 = vadd.f32 0.0, %v9330
        %v9332 = vpop.f32.mrb[0].mxu0
        %9333 = vmatprep.mubr.bf16.mxu0 0
        %9334 = vmatmul.mubr.bf16.gmra.mrb[0].mxu0 %v9265
        %v9335 = vpop.f32.mrb[0].mxu0
        %v9336 = vadd.f32 0.0, %v9335
        %v9337 = vpop.f32.mrb[0].mxu0
        %v9338 = vpop.f32.mrb[0].mxu0
        %v9339 = vadd.f32 0.0, %v9338
        %v9340 = vpop.f32.mrb[0].mxu0
        %9341 = vmatprep.mubr.bf16.mxu0 0
        %9342 = vmatmul.mubr.bf16.gmra.mrb[0].mxu0 %v9266
        %v9343 = vpop.f32.mrb[0].mxu0
        %v9344 = vadd.f32 0.0, %v9343
        %v9345 = vpop.f32.mrb[0].mxu0
        %v9346 = vpop.f32.mrb[0].mxu0
        %v9347 = vadd.f32 0.0, %v9346
        %v9348 = vpop.f32.mrb[0].mxu0
        %9349 = vmatprep.mubr.bf16.mxu0 0
        %9350 = vmatmul.mubr.bf16.gmra.mrb[0].mxu0 %v9267
        %v9351 = vpop.f32.mrb[0].mxu0
        %v9352 = vadd.f32 0.0, %v9351
        %v9353 = vpop.f32.mrb[0].mxu0
        %v9354 = vpop.f32.mrb[0].mxu0
        %v9355 = vadd.f32 0.0, %v9354
        %v9356 = vpop.f32.mrb[0].mxu0
        %9357 = vmatprep.mubr.bf16.mxu0 0
        %9358 = vmatmul.mubr.bf16.gmra.mrb[0].mxu0 %v9268
        %v9359 = vpop.f32.mrb[0].mxu0
        %v9360 = vadd.f32 0.0, %v9359
        %v9361 = vpop.f32.mrb[0].mxu0
        %v9362 = vpop.f32.mrb[0].mxu0
        %v9363 = vadd.f32 0.0, %v9362
        %v9364 = vpop.f32.mrb[0].mxu0
        %9365 = vdwg.mxu0
        %v9366 = vmul.f32 %v9304, %v8082
        %v9367 = vmul.f32 %v9307, %v8084
        %v9368 = vmul.f32 %v9312, %v8086
        %v9369 = vmul.f32 %v9315, %v8088
        %v9370 = vmul.f32 %v9320, %v8090
        %v9371 = vmul.f32 %v9323, %v8092
        %v9372 = vmul.f32 %v9328, %v8094
        %v9373 = vmul.f32 %v9331, %v8096
        %v9374 = vmul.f32 %v9336, %v8098
        %v9375 = vmul.f32 %v9339, %v8100
        %v9376 = vmul.f32 %v9344, %v8102
        %v9377 = vmul.f32 %v9347, %v8104
        %v9378 = vmul.f32 %v9352, %v8106
        %v9379 = vmul.f32 %v9355, %v8108
        %v9380 = vmul.f32 %v9360, %v8110
        %v9381 = vmul.f32 %v9363, %v8112
        %9382 = vmax.xlane.f32.xlu0 %v9366
        %v9383 = vpop.xlane.xlu0 %9382
        %9384 = vmax.xlane.f32.xlu0 %v9367
        %v9385 = vpop.xlane.xlu0 %9384
        %9386 = vmax.xlane.f32.xlu0 %v9368
        %v9387 = vpop.xlane.xlu0 %9386
        %9388 = vmax.xlane.f32.xlu0 %v9369
        %v9389 = vpop.xlane.xlu0 %9388
        %9390 = vmax.xlane.f32.xlu0 %v9370
        %v9391 = vpop.xlane.xlu0 %9390
        %9392 = vmax.xlane.f32.xlu0 %v9371
        %v9393 = vpop.xlane.xlu0 %9392
        %9394 = vmax.xlane.f32.xlu0 %v9372
        %v9395 = vpop.xlane.xlu0 %9394
        %9396 = vmax.xlane.f32.xlu0 %v9373
        %v9397 = vpop.xlane.xlu0 %9396
        %9398 = vmax.xlane.f32.xlu0 %v9374
        %v9399 = vpop.xlane.xlu0 %9398
        %9400 = vmax.xlane.f32.xlu0 %v9375
        %v9401 = vpop.xlane.xlu0 %9400
        %9402 = vmax.xlane.f32.xlu0 %v9376
        %v9403 = vpop.xlane.xlu0 %9402
        %9404 = vmax.xlane.f32.xlu0 %v9377
        %v9405 = vpop.xlane.xlu0 %9404
        %9406 = vmax.xlane.f32.xlu0 %v9378
        %v9407 = vpop.xlane.xlu0 %9406
        %9408 = vmax.xlane.f32.xlu0 %v9379
        %v9409 = vpop.xlane.xlu0 %9408
        %9410 = vmax.xlane.f32.xlu0 %v9380
        %v9411 = vpop.xlane.xlu0 %9410
        %9412 = vmax.xlane.f32.xlu0 %v9381
        %v9413 = vpop.xlane.xlu0 %9412
        %v9414 = vrcp.pop %v9383
        %v9415 = vrcp.pop %v9385
        %v9416 = vrcp.pop %v9387
        %v9417 = vrcp.pop %v9389
        %v9418 = vrcp.pop %v9391
        %v9419 = vrcp.pop %v9393
        %v9420 = vrcp.pop %v9395
        %v9421 = vrcp.pop %v9397
        %v9422 = vrcp.pop %v9399
        %v9423 = vrcp.pop %v9401
        %v9424 = vrcp.pop %v9403
        %v9425 = vrcp.pop %v9405
        %v9426 = vrcp.pop %v9407
        %v9427 = vrcp.pop %v9409
        %v9428 = vrcp.pop %v9411
        %v9429 = vrcp.pop %v9413
        %v9430 = vmul.f32 %v9366, %v9414
        %v9431 = vmul.f32 %v9367, %v9415
        %v9432 = vmul.f32 %v9368, %v9416
        %v9433 = vmul.f32 %v9369, %v9417
        %v9434 = vmul.f32 %v9370, %v9418
        %v9435 = vmul.f32 %v9371, %v9419
        %v9436 = vmul.f32 %v9372, %v9420
        %v9437 = vmul.f32 %v9373, %v9421
        %v9438 = vmul.f32 %v9374, %v9422
        %v9439 = vmul.f32 %v9375, %v9423
        %v9440 = vmul.f32 %v9376, %v9424
        %v9441 = vmul.f32 %v9377, %v9425
        %v9442 = vmul.f32 %v9378, %v9426
        %v9443 = vmul.f32 %v9379, %v9427
        %v9444 = vmul.f32 %v9380, %v9428
        %v9445 = vmul.f32 %v9381, %v9429
        %v9446 = vadd.f32 %v9245, %v7698
        %v9447 = vadd.f32 %v9246, %v7700
        %v9448 = vadd.f32 %v9247, %v7702
        %v9449 = vadd.f32 %v9248, %v7704
        %v9450 = vadd.f32 %v9249, %v7706
        %v9451 = vadd.f32 %v9250, %v7708
        %v9452 = vadd.f32 %v9251, %v7710
        %v9453 = vadd.f32 %v9252, %v7712
        %v9454 = vadd.f32 %v9253, %v7714
        %v9455 = vadd.f32 %v9254, %v7716
        %v9456 = vadd.f32 %v9255, %v7718
        %v9457 = vadd.f32 %v9256, %v7720
        %v9458 = vadd.f32 %v9257, %v7722
        %v9459 = vadd.f32 %v9258, %v7724
        %v9460 = vadd.f32 %v9259, %v7726
        %v9461 = vadd.f32 %v9260, %v7728
        %v9462 = vlog2.pop %v9414
        %v9463 = vmul.f32 %v9462, 0.6931472
        %v9464 = vlog2.pop %v9415
        %v9465 = vmul.f32 %v9464, 0.6931472
        %v9466 = vlog2.pop %v9416
        %v9467 = vmul.f32 %v9466, 0.6931472
        %v9468 = vlog2.pop %v9417
        %v9469 = vmul.f32 %v9468, 0.6931472
        %v9470 = vlog2.pop %v9418
        %v9471 = vmul.f32 %v9470, 0.6931472
        %v9472 = vlog2.pop %v9419
        %v9473 = vmul.f32 %v9472, 0.6931472
        %v9474 = vlog2.pop %v9420
        %v9475 = vmul.f32 %v9474, 0.6931472
        %v9476 = vlog2.pop %v9421
        %v9477 = vmul.f32 %v9476, 0.6931472
        %v9478 = vlog2.pop %v9422
        %v9479 = vmul.f32 %v9478, 0.6931472
        %v9480 = vlog2.pop %v9423
        %v9481 = vmul.f32 %v9480, 0.6931472
        %v9482 = vlog2.pop %v9424
        %v9483 = vmul.f32 %v9482, 0.6931472
        %v9484 = vlog2.pop %v9425
        %v9485 = vmul.f32 %v9484, 0.6931472
        %v9486 = vlog2.pop %v9426
        %v9487 = vmul.f32 %v9486, 0.6931472
        %v9488 = vlog2.pop %v9427
        %v9489 = vmul.f32 %v9488, 0.6931472
        %v9490 = vlog2.pop %v9428
        %v9491 = vmul.f32 %v9490, 0.6931472
        %v9492 = vlog2.pop %v9429
        %v9493 = vmul.f32 %v9492, 0.6931472
        %v9494 = vsub.f32 %v9446, %v9463
        %v9495 = vsub.f32 %v9447, %v9465
        %v9496 = vsub.f32 %v9448, %v9467
        %v9497 = vsub.f32 %v9449, %v9469
        %v9498 = vsub.f32 %v9450, %v9471
        %v9499 = vsub.f32 %v9451, %v9473
        %v9500 = vsub.f32 %v9452, %v9475
        %v9501 = vsub.f32 %v9453, %v9477
        %v9502 = vsub.f32 %v9454, %v9479
        %v9503 = vsub.f32 %v9455, %v9481
        %v9504 = vsub.f32 %v9456, %v9483
        %v9505 = vsub.f32 %v9457, %v9485
        %v9506 = vsub.f32 %v9458, %v9487
        %v9507 = vsub.f32 %v9459, %v9489
        %v9508 = vsub.f32 %v9460, %v9491
        %v9509 = vsub.f32 %v9461, %v9493
        %v9510 = vpack.c.bf16 %v9431, %v9430
        %v9511 = vpack.c.bf16 %v9433, %v9432
        %v9512 = vpack.c.bf16 %v9435, %v9434
        %v9513 = vpack.c.bf16 %v9437, %v9436
        %v9514 = vpack.c.bf16 %v9439, %v9438
        %v9515 = vpack.c.bf16 %v9441, %v9440
        %v9516 = vpack.c.bf16 %v9443, %v9442
        %v9517 = vpack.c.bf16 %v9445, %v9444
        %9518 = vmatprep.subr.bf16.mxu0 0
        %9519 = vmatpush1.bf16.msra.mxu0 %v8257
        %9520 = vmatprep.subr.bf16.mxu0 0
        %9521 = vmatpush1.bf16.msra.mxu0 %v8258
        %9522 = vmatprep.subr.bf16.mxu0 0
        %9523 = vmatpush1.bf16.msra.mxu0 %v8259
        %9524 = vmatprep.subr.bf16.mxu0 0
        %9525 = vmatpush1.bf16.msra.mxu0 %v8260
        %9526 = vmatprep.subr.bf16.mxu0 0
        %9527 = vmatpush1.bf16.msra.mxu0 %v8261
        %9528 = vmatprep.subr.bf16.mxu0 0
        %9529 = vmatpush1.bf16.msra.mxu0 %v8262
        %9530 = vmatprep.subr.bf16.mxu0 0
        %9531 = vmatpush1.bf16.msra.mxu0 %v8263
        %9532 = vmatprep.subr.bf16.mxu0 0
        %9533 = vmatpush1.bf16.msra.mxu0 %v8264
        %9534 = vmatprep.subr.bf16.mxu0 0
        %9535 = vmatpush1.bf16.msra.mxu0 0
        %9536 = vmatprep.subr.bf16.mxu0 0
        %9537 = vmatpush1.bf16.msra.mxu0 0
        %9538 = vmatprep.subr.bf16.mxu0 0
        %9539 = vmatpush1.bf16.msra.mxu0 0
        %9540 = vmatprep.subr.bf16.mxu0 0
        %9541 = vmatpush1.bf16.msra.mxu0 0
        %9542 = vmatprep.subr.bf16.mxu0 0
        %9543 = vmatpush1.bf16.msra.mxu0 0
        %9544 = vmatprep.subr.bf16.mxu0 0
        %9545 = vmatpush1.bf16.msra.mxu0 0
        %9546 = vmatprep.subr.bf16.mxu0 0
        %9547 = vmatpush1.bf16.msra.mxu0 0
        %9548 = vmatprep.subr.bf16.mxu0 0
        %9549 = vmatpush1.bf16.msra.mxu0 0
        %9550 = vmatprep.mubr.bf16.mxu0 0
        %9551 = vmatmul.mubr.bf16.gmra.mrb[0].mxu0 %v9510
        %v9552 = vpop.f32.mrb[0].mxu0
        %v9553 = vadd.f32 0.0, %v9552
        %v9554 = vpop.f32.mrb[0].mxu0
        %v9555 = vpop.f32.mrb[0].mxu0
        %v9556 = vadd.f32 0.0, %v9555
        %v9557 = vpop.f32.mrb[0].mxu0
        %9558 = vmatprep.mubr.bf16.mxu0 0
        %9559 = vmatmul.mubr.bf16.gmra.mrb[0].mxu0 %v9511
        %v9560 = vpop.f32.mrb[0].mxu0
        %v9561 = vadd.f32 0.0, %v9560
        %v9562 = vpop.f32.mrb[0].mxu0
        %v9563 = vpop.f32.mrb[0].mxu0
        %v9564 = vadd.f32 0.0, %v9563
        %v9565 = vpop.f32.mrb[0].mxu0
        %9566 = vmatprep.mubr.bf16.mxu0 0
        %9567 = vmatmul.mubr.bf16.gmra.mrb[0].mxu0 %v9512
        %v9568 = vpop.f32.mrb[0].mxu0
        %v9569 = vadd.f32 0.0, %v9568
        %v9570 = vpop.f32.mrb[0].mxu0
        %v9571 = vpop.f32.mrb[0].mxu0
        %v9572 = vadd.f32 0.0, %v9571
        %v9573 = vpop.f32.mrb[0].mxu0
        %9574 = vmatprep.mubr.bf16.mxu0 0
        %9575 = vmatmul.mubr.bf16.gmra.mrb[0].mxu0 %v9513
        %v9576 = vpop.f32.mrb[0].mxu0
        %v9577 = vadd.f32 0.0, %v9576
        %v9578 = vpop.f32.mrb[0].mxu0
        %v9579 = vpop.f32.mrb[0].mxu0
        %v9580 = vadd.f32 0.0, %v9579
        %v9581 = vpop.f32.mrb[0].mxu0
        %9582 = vmatprep.mubr.bf16.mxu0 0
        %9583 = vmatmul.mubr.bf16.gmra.mrb[0].mxu0 %v9514
        %v9584 = vpop.f32.mrb[0].mxu0
        %v9585 = vadd.f32 0.0, %v9584
        %v9586 = vpop.f32.mrb[0].mxu0
        %v9587 = vpop.f32.mrb[0].mxu0
        %v9588 = vadd.f32 0.0, %v9587
        %v9589 = vpop.f32.mrb[0].mxu0
        %9590 = vmatprep.mubr.bf16.mxu0 0
        %9591 = vmatmul.mubr.bf16.gmra.mrb[0].mxu0 %v9515
        %v9592 = vpop.f32.mrb[0].mxu0
        %v9593 = vadd.f32 0.0, %v9592
        %v9594 = vpop.f32.mrb[0].mxu0
        %v9595 = vpop.f32.mrb[0].mxu0
        %v9596 = vadd.f32 0.0, %v9595
        %v9597 = vpop.f32.mrb[0].mxu0
        %9598 = vmatprep.mubr.bf16.mxu0 0
        %9599 = vmatmul.mubr.bf16.gmra.mrb[0].mxu0 %v9516
        %v9600 = vpop.f32.mrb[0].mxu0
        %v9601 = vadd.f32 0.0, %v9600
        %v9602 = vpop.f32.mrb[0].mxu0
        %v9603 = vpop.f32.mrb[0].mxu0
        %v9604 = vadd.f32 0.0, %v9603
        %v9605 = vpop.f32.mrb[0].mxu0
        %9606 = vmatprep.mubr.bf16.mxu0 0
        %9607 = vmatmul.mubr.bf16.gmra.mrb[0].mxu0 %v9517
        %v9608 = vpop.f32.mrb[0].mxu0
        %v9609 = vadd.f32 0.0, %v9608
        %v9610 = vpop.f32.mrb[0].mxu0
        %v9611 = vpop.f32.mrb[0].mxu0
        %v9612 = vadd.f32 0.0, %v9611
        %v9613 = vpop.f32.mrb[0].mxu0
        %9614 = vdwg.mxu0
        %v9615 = vmul.f32 %v9553, %v8114
        %v9616 = vmul.f32 %v9556, %v8116
        %v9617 = vmul.f32 %v9561, %v8118
        %v9618 = vmul.f32 %v9564, %v8120
        %v9619 = vmul.f32 %v9569, %v8122
        %v9620 = vmul.f32 %v9572, %v8124
        %v9621 = vmul.f32 %v9577, %v8126
        %v9622 = vmul.f32 %v9580, %v8128
        %v9623 = vmul.f32 %v9585, %v8130
        %v9624 = vmul.f32 %v9588, %v8132
        %v9625 = vmul.f32 %v9593, %v8134
        %v9626 = vmul.f32 %v9596, %v8136
        %v9627 = vmul.f32 %v9601, %v8138
        %v9628 = vmul.f32 %v9604, %v8140
        %v9629 = vmul.f32 %v9609, %v8142
        %v9630 = vmul.f32 %v9612, %v8144
        %9631 = vmax.xlane.f32.xlu0 %v9615
        %v9632 = vpop.xlane.xlu0 %9631
        %9633 = vmax.xlane.f32.xlu0 %v9616
        %v9634 = vpop.xlane.xlu0 %9633
        %9635 = vmax.xlane.f32.xlu0 %v9617
        %v9636 = vpop.xlane.xlu0 %9635
        %9637 = vmax.xlane.f32.xlu0 %v9618
        %v9638 = vpop.xlane.xlu0 %9637
        %9639 = vmax.xlane.f32.xlu0 %v9619
        %v9640 = vpop.xlane.xlu0 %9639
        %9641 = vmax.xlane.f32.xlu0 %v9620
        %v9642 = vpop.xlane.xlu0 %9641
        %9643 = vmax.xlane.f32.xlu0 %v9621
        %v9644 = vpop.xlane.xlu0 %9643
        %9645 = vmax.xlane.f32.xlu0 %v9622
        %v9646 = vpop.xlane.xlu0 %9645
        %9647 = vmax.xlane.f32.xlu0 %v9623
        %v9648 = vpop.xlane.xlu0 %9647
        %9649 = vmax.xlane.f32.xlu0 %v9624
        %v9650 = vpop.xlane.xlu0 %9649
        %9651 = vmax.xlane.f32.xlu0 %v9625
        %v9652 = vpop.xlane.xlu0 %9651
        %9653 = vmax.xlane.f32.xlu0 %v9626
        %v9654 = vpop.xlane.xlu0 %9653
        %9655 = vmax.xlane.f32.xlu0 %v9627
        %v9656 = vpop.xlane.xlu0 %9655
        %9657 = vmax.xlane.f32.xlu0 %v9628
        %v9658 = vpop.xlane.xlu0 %9657
        %9659 = vmax.xlane.f32.xlu0 %v9629
        %v9660 = vpop.xlane.xlu0 %9659
        %9661 = vmax.xlane.f32.xlu0 %v9630
        %v9662 = vpop.xlane.xlu0 %9661
        %v9663 = vrcp.pop %v9632
        %v9664 = vrcp.pop %v9634
        %v9665 = vrcp.pop %v9636
        %v9666 = vrcp.pop %v9638
        %v9667 = vrcp.pop %v9640
        %v9668 = vrcp.pop %v9642
        %v9669 = vrcp.pop %v9644
        %v9670 = vrcp.pop %v9646
        %v9671 = vrcp.pop %v9648
        %v9672 = vrcp.pop %v9650
        %v9673 = vrcp.pop %v9652
        %v9674 = vrcp.pop %v9654
        %v9675 = vrcp.pop %v9656
        %v9676 = vrcp.pop %v9658
        %v9677 = vrcp.pop %v9660
        %v9678 = vrcp.pop %v9662
        %v9679 = vmul.f32 %v9615, %v9663
        %v9680 = vmul.f32 %v9616, %v9664
        %v9681 = vmul.f32 %v9617, %v9665
        %v9682 = vmul.f32 %v9618, %v9666
        %v9683 = vmul.f32 %v9619, %v9667
        %v9684 = vmul.f32 %v9620, %v9668
        %v9685 = vmul.f32 %v9621, %v9669
        %v9686 = vmul.f32 %v9622, %v9670
        %v9687 = vmul.f32 %v9623, %v9671
        %v9688 = vmul.f32 %v9624, %v9672
        %v9689 = vmul.f32 %v9625, %v9673
        %v9690 = vmul.f32 %v9626, %v9674
        %v9691 = vmul.f32 %v9627, %v9675
        %v9692 = vmul.f32 %v9628, %v9676
        %v9693 = vmul.f32 %v9629, %v9677
        %v9694 = vmul.f32 %v9630, %v9678
        %v9695 = vadd.f32 %v9494, %v7730
        %v9696 = vadd.f32 %v9495, %v7732
        %v9697 = vadd.f32 %v9496, %v7734
        %v9698 = vadd.f32 %v9497, %v7736
        %v9699 = vadd.f32 %v9498, %v7738
        %v9700 = vadd.f32 %v9499, %v7740
        %v9701 = vadd.f32 %v9500, %v7742
        %v9702 = vadd.f32 %v9501, %v7744
        %v9703 = vadd.f32 %v9502, %v7746
        %v9704 = vadd.f32 %v9503, %v7748
        %v9705 = vadd.f32 %v9504, %v7750
        %v9706 = vadd.f32 %v9505, %v7752
        %v9707 = vadd.f32 %v9506, %v7754
        %v9708 = vadd.f32 %v9507, %v7756
        %v9709 = vadd.f32 %v9508, %v7758
        %v9710 = vadd.f32 %v9509, %v7760
        %v9711 = vlog2.pop %v9663
        %v9712 = vmul.f32 %v9711, 0.6931472
        %v9713 = vlog2.pop %v9664
        %v9714 = vmul.f32 %v9713, 0.6931472
        %v9715 = vlog2.pop %v9665
        %v9716 = vmul.f32 %v9715, 0.6931472
        %v9717 = vlog2.pop %v9666
        %v9718 = vmul.f32 %v9717, 0.6931472
        %v9719 = vlog2.pop %v9667
        %v9720 = vmul.f32 %v9719, 0.6931472
        %v9721 = vlog2.pop %v9668
        %v9722 = vmul.f32 %v9721, 0.6931472
        %v9723 = vlog2.pop %v9669
        %v9724 = vmul.f32 %v9723, 0.6931472
        %v9725 = vlog2.pop %v9670
        %v9726 = vmul.f32 %v9725, 0.6931472
        %v9727 = vlog2.pop %v9671
        %v9728 = vmul.f32 %v9727, 0.6931472
        %v9729 = vlog2.pop %v9672
        %v9730 = vmul.f32 %v9729, 0.6931472
        %v9731 = vlog2.pop %v9673
        %v9732 = vmul.f32 %v9731, 0.6931472
        %v9733 = vlog2.pop %v9674
        %v9734 = vmul.f32 %v9733, 0.6931472
        %v9735 = vlog2.pop %v9675
        %v9736 = vmul.f32 %v9735, 0.6931472
        %v9737 = vlog2.pop %v9676
        %v9738 = vmul.f32 %v9737, 0.6931472
        %v9739 = vlog2.pop %v9677
        %v9740 = vmul.f32 %v9739, 0.6931472
        %v9741 = vlog2.pop %v9678
        %v9742 = vmul.f32 %v9741, 0.6931472
        %v9743 = vsub.f32 %v9695, %v9712
        %v9744 = vsub.f32 %v9696, %v9714
        %v9745 = vsub.f32 %v9697, %v9716
        %v9746 = vsub.f32 %v9698, %v9718
        %v9747 = vsub.f32 %v9699, %v9720
        %v9748 = vsub.f32 %v9700, %v9722
        %v9749 = vsub.f32 %v9701, %v9724
        %v9750 = vsub.f32 %v9702, %v9726
        %v9751 = vsub.f32 %v9703, %v9728
        %v9752 = vsub.f32 %v9704, %v9730
        %v9753 = vsub.f32 %v9705, %v9732
        %v9754 = vsub.f32 %v9706, %v9734
        %v9755 = vsub.f32 %v9707, %v9736
        %v9756 = vsub.f32 %v9708, %v9738
        %v9757 = vsub.f32 %v9709, %v9740
        %v9758 = vsub.f32 %v9710, %v9742
        %v9759 = vpack.c.bf16 %v9680, %v9679
        %v9760 = vpack.c.bf16 %v9682, %v9681
        %v9761 = vpack.c.bf16 %v9684, %v9683
        %v9762 = vpack.c.bf16 %v9686, %v9685
        %v9763 = vpack.c.bf16 %v9688, %v9687
        %v9764 = vpack.c.bf16 %v9690, %v9689
        %v9765 = vpack.c.bf16 %v9692, %v9691
        %v9766 = vpack.c.bf16 %v9694, %v9693
        %9767 = vmatprep.subr.bf16.mxu0 0
        %9768 = vmatpush1.bf16.msra.mxu0 %v8257
        %9769 = vmatprep.subr.bf16.mxu0 0
        %9770 = vmatpush1.bf16.msra.mxu0 %v8258
        %9771 = vmatprep.subr.bf16.mxu0 0
        %9772 = vmatpush1.bf16.msra.mxu0 %v8259
        %9773 = vmatprep.subr.bf16.mxu0 0
        %9774 = vmatpush1.bf16.msra.mxu0 %v8260
        %9775 = vmatprep.subr.bf16.mxu0 0
        %9776 = vmatpush1.bf16.msra.mxu0 %v8261
        %9777 = vmatprep.subr.bf16.mxu0 0
        %9778 = vmatpush1.bf16.msra.mxu0 %v8262
        %9779 = vmatprep.subr.bf16.mxu0 0
        %9780 = vmatpush1.bf16.msra.mxu0 %v8263
        %9781 = vmatprep.subr.bf16.mxu0 0
        %9782 = vmatpush1.bf16.msra.mxu0 %v8264
        %9783 = vmatprep.subr.bf16.mxu0 0
        %9784 = vmatpush1.bf16.msra.mxu0 0
        %9785 = vmatprep.subr.bf16.mxu0 0
        %9786 = vmatpush1.bf16.msra.mxu0 0
        %9787 = vmatprep.subr.bf16.mxu0 0
        %9788 = vmatpush1.bf16.msra.mxu0 0
        %9789 = vmatprep.subr.bf16.mxu0 0
        %9790 = vmatpush1.bf16.msra.mxu0 0
        %9791 = vmatprep.subr.bf16.mxu0 0
        %9792 = vmatpush1.bf16.msra.mxu0 0
        %9793 = vmatprep.subr.bf16.mxu0 0
        %9794 = vmatpush1.bf16.msra.mxu0 0
        %9795 = vmatprep.subr.bf16.mxu0 0
        %9796 = vmatpush1.bf16.msra.mxu0 0
        %9797 = vmatprep.subr.bf16.mxu0 0
        %9798 = vmatpush1.bf16.msra.mxu0 0
        %9799 = vmatprep.mubr.bf16.mxu0 0
        %9800 = vmatmul.mubr.bf16.gmra.mrb[0].mxu0 %v9759
        %v9801 = vpop.f32.mrb[0].mxu0
        %v9802 = vadd.f32 0.0, %v9801
        %v9803 = vpop.f32.mrb[0].mxu0
        %v9804 = vpop.f32.mrb[0].mxu0
        %v9805 = vadd.f32 0.0, %v9804
        %v9806 = vpop.f32.mrb[0].mxu0
        %9807 = vmatprep.mubr.bf16.mxu0 0
        %9808 = vmatmul.mubr.bf16.gmra.mrb[0].mxu0 %v9760
        %v9809 = vpop.f32.mrb[0].mxu0
        %v9810 = vadd.f32 0.0, %v9809
        %v9811 = vpop.f32.mrb[0].mxu0
        %v9812 = vpop.f32.mrb[0].mxu0
        %v9813 = vadd.f32 0.0, %v9812
        %v9814 = vpop.f32.mrb[0].mxu0
        %9815 = vmatprep.mubr.bf16.mxu0 0
        %9816 = vmatmul.mubr.bf16.gmra.mrb[0].mxu0 %v9761
        %v9817 = vpop.f32.mrb[0].mxu0
        %v9818 = vadd.f32 0.0, %v9817
        %v9819 = vpop.f32.mrb[0].mxu0
        %v9820 = vpop.f32.mrb[0].mxu0
        %v9821 = vadd.f32 0.0, %v9820
        %v9822 = vpop.f32.mrb[0].mxu0
        %9823 = vmatprep.mubr.bf16.mxu0 0
        %9824 = vmatmul.mubr.bf16.gmra.mrb[0].mxu0 %v9762
        %v9825 = vpop.f32.mrb[0].mxu0
        %v9826 = vadd.f32 0.0, %v9825
        %v9827 = vpop.f32.mrb[0].mxu0
        %v9828 = vpop.f32.mrb[0].mxu0
        %v9829 = vadd.f32 0.0, %v9828
        %v9830 = vpop.f32.mrb[0].mxu0
        %9831 = vmatprep.mubr.bf16.mxu0 0
        %9832 = vmatmul.mubr.bf16.gmra.mrb[0].mxu0 %v9763
        %v9833 = vpop.f32.mrb[0].mxu0
        %v9834 = vadd.f32 0.0, %v9833
        %v9835 = vpop.f32.mrb[0].mxu0
        %v9836 = vpop.f32.mrb[0].mxu0
        %v9837 = vadd.f32 0.0, %v9836
        %v9838 = vpop.f32.mrb[0].mxu0
        %9839 = vmatprep.mubr.bf16.mxu0 0
        %9840 = vmatmul.mubr.bf16.gmra.mrb[0].mxu0 %v9764
        %v9841 = vpop.f32.mrb[0].mxu0
        %v9842 = vadd.f32 0.0, %v9841
        %v9843 = vpop.f32.mrb[0].mxu0
        %v9844 = vpop.f32.mrb[0].mxu0
        %v9845 = vadd.f32 0.0, %v9844
        %v9846 = vpop.f32.mrb[0].mxu0
        %9847 = vmatprep.mubr.bf16.mxu0 0
        %9848 = vmatmul.mubr.bf16.gmra.mrb[0].mxu0 %v9765
        %v9849 = vpop.f32.mrb[0].mxu0
        %v9850 = vadd.f32 0.0, %v9849
        %v9851 = vpop.f32.mrb[0].mxu0
        %v9852 = vpop.f32.mrb[0].mxu0
        %v9853 = vadd.f32 0.0, %v9852
        %v9854 = vpop.f32.mrb[0].mxu0
        %9855 = vmatprep.mubr.bf16.mxu0 0
        %9856 = vmatmul.mubr.bf16.gmra.mrb[0].mxu0 %v9766
        %v9857 = vpop.f32.mrb[0].mxu0
        %v9858 = vadd.f32 0.0, %v9857
        %v9859 = vpop.f32.mrb[0].mxu0
        %v9860 = vpop.f32.mrb[0].mxu0
        %v9861 = vadd.f32 0.0, %v9860
        %v9862 = vpop.f32.mrb[0].mxu0
        %9863 = vdwg.mxu0
        %v9864 = vmul.f32 %v9802, %v8146
        %v9865 = vmul.f32 %v9805, %v8148
        %v9866 = vmul.f32 %v9810, %v8150
        %v9867 = vmul.f32 %v9813, %v8152
        %v9868 = vmul.f32 %v9818, %v8154
        %v9869 = vmul.f32 %v9821, %v8156
        %v9870 = vmul.f32 %v9826, %v8158
        %v9871 = vmul.f32 %v9829, %v8160
        %v9872 = vmul.f32 %v9834, %v8162
        %v9873 = vmul.f32 %v9837, %v8164
        %v9874 = vmul.f32 %v9842, %v8166
        %v9875 = vmul.f32 %v9845, %v8168
        %v9876 = vmul.f32 %v9850, %v8170
        %v9877 = vmul.f32 %v9853, %v8172
        %v9878 = vmul.f32 %v9858, %v8174
        %v9879 = vmul.f32 %v9861, %v8176
        %9880 = vmax.xlane.f32.xlu0 %v9864
        %v9881 = vpop.xlane.xlu0 %9880
        %9882 = vmax.xlane.f32.xlu0 %v9865
        %v9883 = vpop.xlane.xlu0 %9882
        %9884 = vmax.xlane.f32.xlu0 %v9866
        %v9885 = vpop.xlane.xlu0 %9884
        %9886 = vmax.xlane.f32.xlu0 %v9867
        %v9887 = vpop.xlane.xlu0 %9886
        %9888 = vmax.xlane.f32.xlu0 %v9868
        %v9889 = vpop.xlane.xlu0 %9888
        %9890 = vmax.xlane.f32.xlu0 %v9869
        %v9891 = vpop.xlane.xlu0 %9890
        %9892 = vmax.xlane.f32.xlu0 %v9870
        %v9893 = vpop.xlane.xlu0 %9892
        %9894 = vmax.xlane.f32.xlu0 %v9871
        %v9895 = vpop.xlane.xlu0 %9894
        %9896 = vmax.xlane.f32.xlu0 %v9872
        %v9897 = vpop.xlane.xlu0 %9896
        %9898 = vmax.xlane.f32.xlu0 %v9873
        %v9899 = vpop.xlane.xlu0 %9898
        %9900 = vmax.xlane.f32.xlu0 %v9874
        %v9901 = vpop.xlane.xlu0 %9900
        %9902 = vmax.xlane.f32.xlu0 %v9875
        %v9903 = vpop.xlane.xlu0 %9902
        %9904 = vmax.xlane.f32.xlu0 %v9876
        %v9905 = vpop.xlane.xlu0 %9904
        %9906 = vmax.xlane.f32.xlu0 %v9877
        %v9907 = vpop.xlane.xlu0 %9906
        %9908 = vmax.xlane.f32.xlu0 %v9878
        %v9909 = vpop.xlane.xlu0 %9908
        %9910 = vmax.xlane.f32.xlu0 %v9879
        %v9911 = vpop.xlane.xlu0 %9910
        %v9912 = vrcp.pop %v9881
        %v9913 = vrcp.pop %v9883
        %v9914 = vrcp.pop %v9885
        %v9915 = vrcp.pop %v9887
        %v9916 = vrcp.pop %v9889
        %v9917 = vrcp.pop %v9891
        %v9918 = vrcp.pop %v9893
        %v9919 = vrcp.pop %v9895
        %v9920 = vrcp.pop %v9897
        %v9921 = vrcp.pop %v9899
        %v9922 = vrcp.pop %v9901
        %v9923 = vrcp.pop %v9903
        %v9924 = vrcp.pop %v9905
        %v9925 = vrcp.pop %v9907
        %v9926 = vrcp.pop %v9909
        %v9927 = vrcp.pop %v9911
        %v9928 = vmul.f32 %v9864, %v9912
        %v9929 = vmul.f32 %v9865, %v9913
        %v9930 = vmul.f32 %v9866, %v9914
        %v9931 = vmul.f32 %v9867, %v9915
        %v9932 = vmul.f32 %v9868, %v9916
        %v9933 = vmul.f32 %v9869, %v9917
        %v9934 = vmul.f32 %v9870, %v9918
        %v9935 = vmul.f32 %v9871, %v9919
        %v9936 = vmul.f32 %v9872, %v9920
        %v9937 = vmul.f32 %v9873, %v9921
        %v9938 = vmul.f32 %v9874, %v9922
        %v9939 = vmul.f32 %v9875, %v9923
        %v9940 = vmul.f32 %v9876, %v9924
        %v9941 = vmul.f32 %v9877, %v9925
        %v9942 = vmul.f32 %v9878, %v9926
        %v9943 = vmul.f32 %v9879, %v9927
        %v9944 = vadd.f32 %v9743, %v7762
        %v9945 = vadd.f32 %v9744, %v7764
        %v9946 = vadd.f32 %v9745, %v7766
        %v9947 = vadd.f32 %v9746, %v7768
        %v9948 = vadd.f32 %v9747, %v7770
        %v9949 = vadd.f32 %v9748, %v7772
        %v9950 = vadd.f32 %v9749, %v7774
        %v9951 = vadd.f32 %v9750, %v7776
        %v9952 = vadd.f32 %v9751, %v7778
        %v9953 = vadd.f32 %v9752, %v7780
        %v9954 = vadd.f32 %v9753, %v7782
        %v9955 = vadd.f32 %v9754, %v7784
        %v9956 = vadd.f32 %v9755, %v7786
        %v9957 = vadd.f32 %v9756, %v7788
        %v9958 = vadd.f32 %v9757, %v7790
        %v9959 = vadd.f32 %v9758, %v7792
        %v9960 = vlog2.pop %v9912
        %v9961 = vmul.f32 %v9960, 0.6931472
        %v9962 = vlog2.pop %v9913
        %v9963 = vmul.f32 %v9962, 0.6931472
        %v9964 = vlog2.pop %v9914
        %v9965 = vmul.f32 %v9964, 0.6931472
        %v9966 = vlog2.pop %v9915
        %v9967 = vmul.f32 %v9966, 0.6931472
        %v9968 = vlog2.pop %v9916
        %v9969 = vmul.f32 %v9968, 0.6931472
        %v9970 = vlog2.pop %v9917
        %v9971 = vmul.f32 %v9970, 0.6931472
        %v9972 = vlog2.pop %v9918
        %v9973 = vmul.f32 %v9972, 0.6931472
        %v9974 = vlog2.pop %v9919
        %v9975 = vmul.f32 %v9974, 0.6931472
        %v9976 = vlog2.pop %v9920
        %v9977 = vmul.f32 %v9976, 0.6931472
        %v9978 = vlog2.pop %v9921
        %v9979 = vmul.f32 %v9978, 0.6931472
        %v9980 = vlog2.pop %v9922
        %v9981 = vmul.f32 %v9980, 0.6931472
        %v9982 = vlog2.pop %v9923
        %v9983 = vmul.f32 %v9982, 0.6931472
        %v9984 = vlog2.pop %v9924
        %v9985 = vmul.f32 %v9984, 0.6931472
        %v9986 = vlog2.pop %v9925
        %v9987 = vmul.f32 %v9986, 0.6931472
        %v9988 = vlog2.pop %v9926
        %v9989 = vmul.f32 %v9988, 0.6931472
        %v9990 = vlog2.pop %v9927
        %v9991 = vmul.f32 %v9990, 0.6931472
        %v9992 = vsub.f32 %v9944, %v9961
        %v9993 = vsub.f32 %v9945, %v9963
        %v9994 = vsub.f32 %v9946, %v9965
        %v9995 = vsub.f32 %v9947, %v9967
        %v9996 = vsub.f32 %v9948, %v9969
        %v9997 = vsub.f32 %v9949, %v9971
        %v9998 = vsub.f32 %v9950, %v9973
        %v9999 = vsub.f32 %v9951, %v9975
        %v10000 = vsub.f32 %v9952, %v9977
        %v10001 = vsub.f32 %v9953, %v9979
        %v10002 = vsub.f32 %v9954, %v9981
        %v10003 = vsub.f32 %v9955, %v9983
        %v10004 = vsub.f32 %v9956, %v9985
        %v10005 = vsub.f32 %v9957, %v9987
        %v10006 = vsub.f32 %v9958, %v9989
        %v10007 = vsub.f32 %v9959, %v9991
        %v10008 = vmul.f32 %v5329, 1.442695
        %v10009 = vpow.pop %v10008
        %v10011 = vlaneseq
        %v10012 = vshrl.u32 %v10011, 7
        %v10013 = vsub.s32 0, %v10012
        %v10014 = vrot.slane %v10009, %v10013
        %v10016 = vmul.f32 %v9928, %v10014
        %v10017 = vmul.f32 %v9929, %v10014
        %v10018 = vmul.f32 %v9930, %v10014
        %v10019 = vmul.f32 %v9931, %v10014
        %v10020 = vmul.f32 %v9932, %v10014
        %v10021 = vmul.f32 %v9933, %v10014
        %v10022 = vmul.f32 %v9934, %v10014
        %v10023 = vmul.f32 %v9935, %v10014
        %v10024 = vmul.f32 %v9936, %v10014
        %v10025 = vmul.f32 %v9937, %v10014
        %v10026 = vmul.f32 %v9938, %v10014
        %v10027 = vmul.f32 %v9939, %v10014
        %v10028 = vmul.f32 %v9940, %v10014
        %v10029 = vmul.f32 %v9941, %v10014
        %v10030 = vmul.f32 %v9942, %v10014
        %v10031 = vmul.f32 %v9943, %v10014
        %10032 = vadd.xlane.f32.xlu0 %v10016
        %v10033 = vpop.xlane.xlu0 %10032
        %10034 = vadd.xlane.f32.xlu0 %v10017
        %v10035 = vpop.xlane.xlu0 %10034
        %10036 = vadd.xlane.f32.xlu0 %v10018
        %v10037 = vpop.xlane.xlu0 %10036
        %10038 = vadd.xlane.f32.xlu0 %v10019
        %v10039 = vpop.xlane.xlu0 %10038
        %10040 = vadd.xlane.f32.xlu0 %v10020
        %v10041 = vpop.xlane.xlu0 %10040
        %10042 = vadd.xlane.f32.xlu0 %v10021
        %v10043 = vpop.xlane.xlu0 %10042
        %10044 = vadd.xlane.f32.xlu0 %v10022
        %v10045 = vpop.xlane.xlu0 %10044
        %10046 = vadd.xlane.f32.xlu0 %v10023
        %v10047 = vpop.xlane.xlu0 %10046
        %10048 = vadd.xlane.f32.xlu0 %v10024
        %v10049 = vpop.xlane.xlu0 %10048
        %10050 = vadd.xlane.f32.xlu0 %v10025
        %v10051 = vpop.xlane.xlu0 %10050
        %10052 = vadd.xlane.f32.xlu0 %v10026
        %v10053 = vpop.xlane.xlu0 %10052
        %10054 = vadd.xlane.f32.xlu0 %v10027
        %v10055 = vpop.xlane.xlu0 %10054
        %10056 = vadd.xlane.f32.xlu0 %v10028
        %v10057 = vpop.xlane.xlu0 %10056
        %10058 = vadd.xlane.f32.xlu0 %v10029
        %v10059 = vpop.xlane.xlu0 %10058
        %10060 = vadd.xlane.f32.xlu0 %v10030
        %v10061 = vpop.xlane.xlu0 %10060
        %10062 = vadd.xlane.f32.xlu0 %v10031
        %v10063 = vpop.xlane.xlu0 %10062
        %v10064 = vlog2.pop %v10033
        %v10065 = vmul.f32 %v10064, 0.6931472
        %v10066 = vlog2.pop %v10035
        %v10067 = vmul.f32 %v10066, 0.6931472
        %v10068 = vlog2.pop %v10037
        %v10069 = vmul.f32 %v10068, 0.6931472
        %v10070 = vlog2.pop %v10039
        %v10071 = vmul.f32 %v10070, 0.6931472
        %v10072 = vlog2.pop %v10041
        %v10073 = vmul.f32 %v10072, 0.6931472
        %v10074 = vlog2.pop %v10043
        %v10075 = vmul.f32 %v10074, 0.6931472
        %v10076 = vlog2.pop %v10045
        %v10077 = vmul.f32 %v10076, 0.6931472
        %v10078 = vlog2.pop %v10047
        %v10079 = vmul.f32 %v10078, 0.6931472
        %v10080 = vlog2.pop %v10049
        %v10081 = vmul.f32 %v10080, 0.6931472
        %v10082 = vlog2.pop %v10051
        %v10083 = vmul.f32 %v10082, 0.6931472
        %v10084 = vlog2.pop %v10053
        %v10085 = vmul.f32 %v10084, 0.6931472
        %v10086 = vlog2.pop %v10055
        %v10087 = vmul.f32 %v10086, 0.6931472
        %v10088 = vlog2.pop %v10057
        %v10089 = vmul.f32 %v10088, 0.6931472
        %v10090 = vlog2.pop %v10059
        %v10091 = vmul.f32 %v10090, 0.6931472
        %v10092 = vlog2.pop %v10061
        %v10093 = vmul.f32 %v10092, 0.6931472
        %v10094 = vlog2.pop %v10063
        %v10095 = vmul.f32 %v10094, 0.6931472
        %v10096 = vadd.f32 %v9992, %v10065
        %v10097 = vadd.f32 %v9993, %v10067
        %v10098 = vadd.f32 %v9994, %v10069
        %v10099 = vadd.f32 %v9995, %v10071
        %v10100 = vadd.f32 %v9996, %v10073
        %v10101 = vadd.f32 %v9997, %v10075
        %v10102 = vadd.f32 %v9998, %v10077
        %v10103 = vadd.f32 %v9999, %v10079
        %v10104 = vadd.f32 %v10000, %v10081
        %v10105 = vadd.f32 %v10001, %v10083
        %v10106 = vadd.f32 %v10002, %v10085
        %v10107 = vadd.f32 %v10003, %v10087
        %v10108 = vadd.f32 %v10004, %v10089
        %v10109 = vadd.f32 %v10005, %v10091
        %v10110 = vadd.f32 %v10006, %v10093
        %v10111 = vadd.f32 %v10007, %v10095
        %v10112 = vsub.f32 %v10096, %v7506
        %v10113 = vsub.f32 %v10097, %v7508
        %v10114 = vsub.f32 %v10098, %v7510
        %v10115 = vsub.f32 %v10099, %v7512
        %v10116 = vsub.f32 %v10100, %v7514
        %v10117 = vsub.f32 %v10101, %v7516
        %v10118 = vsub.f32 %v10102, %v7518
        %v10119 = vsub.f32 %v10103, %v7520
        %v10120 = vsub.f32 %v10104, %v7522
        %v10121 = vsub.f32 %v10105, %v7524
        %v10122 = vsub.f32 %v10106, %v7526
        %v10123 = vsub.f32 %v10107, %v7528
        %v10124 = vsub.f32 %v10108, %v7530
        %v10125 = vsub.f32 %v10109, %v7532
        %v10126 = vsub.f32 %v10110, %v7534
        %v10127 = vsub.f32 %v10111, %v7536
        %10128 = vst [vmem:[%s993] sm:$0xff] %v10112
        %10129 = vst [vmem:[%s993 + $0x8] sm:$0xff] %v10113
        %10130 = vst [vmem:[%s993 + $0x10] sm:$0xff] %v10114
        %10131 = vst [vmem:[%s993 + $0x18] sm:$0xff] %v10115
        %10132 = vst [vmem:[%s993 + $0x20] sm:$0xff] %v10116
        %10133 = vst [vmem:[%s993 + $0x28] sm:$0xff] %v10117
        %10134 = vst [vmem:[%s993 + $0x30] sm:$0xff] %v10118
        %10135 = vst [vmem:[%s993 + $0x38] sm:$0xff] %v10119
        %10136 = vst [vmem:[%s993 + $0x40] sm:$0xff] %v10120
        %10137 = vst [vmem:[%s993 + $0x48] sm:$0xff] %v10121
        %10138 = vst [vmem:[%s993 + $0x50] sm:$0xff] %v10122
        %10139 = vst [vmem:[%s993 + $0x58] sm:$0xff] %v10123
        %10140 = vst [vmem:[%s993 + $0x60] sm:$0xff] %v10124
        %10141 = vst [vmem:[%s993 + $0x68] sm:$0xff] %v10125
        %10142 = vst [vmem:[%s993 + $0x70] sm:$0xff] %v10126
        %10143 = vst [vmem:[%s993 + $0x78] sm:$0xff] %v10127
        %s10144 = sand.u32 %s214, 1
        %s10145 = scalar_lea.sflag [#allocation5], %s10144
        %s10146 = sand.u32 %s214, 1
        %s10147 = smul.addr %s10146, 128
        %s10148 = scalar_lea.vmem [#allocation15], %s10147
        // Predicated region
        $region119: #{tpu_custom_call.1} parent=85 // pred_check
          %p10149 = pneg %p224
        $region120: #{tpu_custom_call.1} parent=85 // pred_check_branch
          %10151 = sbr.rel (%p10149) target = $region122
        $region121: #{tpu_custom_call.1} parent=85 // pred_region
          %s10152 = smul.u32 16, %s28
          %s10154 = ssub.s32 2048, 2048
          %10155 = vsyncadd %s10145, %s10154
          %s10156 = smul.addr %s10152, 128
          %s10157 = scalar_lea.hbm %s8, %s10156
          %s10158 = sshll.u32 %s10148, 4
          %s10159 = int_to_ptr.vmem [resolvable:$true] %s10158
          %10164 = dma.vmem_to_hbm [thread:$0]  %s10159, 2048, %s10157, %s10145, 128, 128, 8
        $region122: #{tpu_custom_call.1} parent=85 // pred_fallthru
          _
      $region86: #{tpu_custom_call.1} parent=5 // pred_fallthru
        _
      %p10165 = scmp.le.s32.totalorder 2, %s23
      // Predicated region
      $region123: #{tpu_custom_call.1} parent=5 // pred_check
        %p10166 = pneg %p10165
      $region124: #{tpu_custom_call.1} parent=5 // pred_check_branch
        %10168 = sbr.rel (%p10166) target = $region126
      $region125: #{tpu_custom_call.1} parent=5 // pred_region
        %s10169 = ssub.s32 %s23, 2
        // Predicated region
        $region127: #{tpu_custom_call.1} parent=125 // pred_check
          %p10170 = pneg %p230
        $region128: #{tpu_custom_call.1} parent=125 // pred_check_branch
          %10172 = sbr.rel (%p10170) target = $region130
        $region129: #{tpu_custom_call.1} parent=125 // pred_region
          %s10173 = sand.u32 %s215, 1
          %s10174 = scalar_lea.sflag [#allocation5], %s10173
          %s10175 = sand.u32 %s215, 1
          %s10176 = smul.addr %s10175, 128
          %s10177 = scalar_lea.vmem [#allocation15], %s10176
          %10178 = dma.done %s10174, 2048
        $region130: #{tpu_custom_call.1} parent=125 // pred_fallthru
          _
      $region126: #{tpu_custom_call.1} parent=5 // pred_fallthru
        _
    $region6: #{tpu_custom_call.1} parent=1 // loop_footer
      %s27 = sadd.s32 1, %s23
    $region7: #{tpu_custom_call.1} parent=1 // loop_footer_branch
      %22 = sbr.rel target = $region3
    $region8: #{tpu_custom_call.1} parent=1 // loop_exit
      _
    %10179 = vsyncpa [#allocation4], 1
    %s10180 = scalar_lea.sflag [#allocation4], 1
    %10181 = vsyncpa %s10180, 1
    %10182 = vsyncpa [#allocation7], 1
    %10183 = vsyncpa [#allocation10], 1
    %10184 = vsyncpa [#allocation13], 1
    %10185 = vsyncpa [#allocation5], 1
    %s10186 = scalar_lea.sflag [#allocation5], 1
    %10187 = vsyncpa %s10186, 1

</llo_original>
